<compile_context>
chip_gen: v7x
topology: tpu7x:2x2x1
jax: 0.10.0
libtpu: 0.0.40
codegen_flags: <defaults>
</compile_context>

<pallas_src>
import math

import jax
import jax.numpy as jnp
from jax.experimental import pallas as pl
from jax.experimental.pallas import tpu as pltpu

LANE = 128


def _round_up(x, m):
    return (x + m - 1) // m * m


def basic_block_kernel(xpad_ref, xres_ref, w1_ref, w2_ref, s1_ref, b1_ref,
                       s2_ref, b2_ref, out_ref, mid_ref):
    # xpad_ref : (B, H+2, W+2, Cp)   bf16 spatially zero-padded input tile
    # xres_ref : (B, H,   W,   Cp)   bf16 unpadded input (residual path)
    # w1_ref   : (9*Cp,  Cmp)        bf16 conv1 taps stacked along K
    # w2_ref   : (9*Cmp, Cp)         bf16 conv2 taps stacked along K
    # s*/b*    : (1, C)              f32 folded BN scale / bias (eval mode)
    # out_ref  : (B, H, W, Cp)       f32
    # mid_ref  : (B, H+2, W+2, Cmp)  bf16 scratch (padded conv1 activation)
    B = xpad_ref.shape[0]
    H = out_ref.shape[1]
    W = out_ref.shape[2]
    Cp = xpad_ref.shape[3]
    Cmp = mid_ref.shape[3]
    rows = B * H * W

    def elu(v):
        # clamp the exp argument: positive branch never feeds the EUP / never
        # produces an inf intermediate.
        return jnp.where(v > 0, v, jnp.exp(jnp.minimum(v, 0.0)) - 1.0)

    # ---- conv1: single fat MXU matmul, K = 9*Cp (in-kernel im2col) ----
    patches1 = [xpad_ref[:, kh:kh + H, kw:kw + W, :].reshape(rows, Cp)
                for kh in range(3) for kw in range(3)]
    im2col1 = jnp.concatenate(patches1, axis=1)            # (rows, 9*Cp) bf16
    acc1 = jnp.dot(im2col1, w1_ref[...], preferred_element_type=jnp.float32)

    # ---- bn1 (folded, eval mode) + ELU, in f32 ----
    y1 = elu(acc1 * s1_ref[...] + b1_ref[...])

    # Stage conv1 activation in a spatially padded scratch so conv2 sees
    # pad=1.  Only the 1-pixel border is zeroed (interior is fully overwritten
    # every iteration); zero it each step so the kernel stays correct when the
    # parallel batch axis is sharded across TensorCores (per-core scratch, a
    # core may never execute program_id 0).
    zrow = jnp.zeros((B, 1, W + 2, Cmp), mid_ref.dtype)
    zcol = jnp.zeros((B, H, 1, Cmp), mid_ref.dtype)
    mid_ref[:, 0:1, :, :] = zrow
    mid_ref[:, H + 1:H + 2, :, :] = zrow
    mid_ref[:, 1:H + 1, 0:1, :] = zcol
    mid_ref[:, 1:H + 1, W + 1:W + 2, :] = zcol
    mid_ref[:, 1:1 + H, 1:1 + W, :] = (
        y1.reshape(B, H, W, Cmp).astype(mid_ref.dtype))

    # ---- conv2: single fat MXU matmul, K = 9*Cmp ----
    patches2 = [mid_ref[:, kh:kh + H, kw:kw + W, :].reshape(rows, Cmp)
                for kh in range(3) for kw in range(3)]
    im2col2 = jnp.concatenate(patches2, axis=1)            # (rows, 9*Cmp)
    acc2 = jnp.dot(im2col2, w2_ref[...], preferred_element_type=jnp.float32)

    # ---- bn2 + identity residual + ELU ----
    y2 = acc2 * s2_ref[...] + b2_ref[...]
    y2 = y2 + xres_ref[...].reshape(rows, Cp).astype(jnp.float32)
    y2 = elu(y2)
    out_ref[...] = y2.reshape(B, H, W, Cp).astype(out_ref.dtype)


def _fold_bn(gamma, beta, mean, var, cpad, eps=1e-5):
    scale = (gamma / jnp.sqrt(var + eps)).astype(jnp.float32)
    bias = (beta - mean * scale).astype(jnp.float32)
    pad = cpad - scale.shape[0]
    scale = jnp.pad(scale, (0, pad))     # padded lanes contribute exactly 0
    bias = jnp.pad(bias, (0, pad))
    return scale.reshape(1, cpad), bias.reshape(1, cpad)


def _pack_conv_weight(w, cin_pad, cout_pad):
    # torch (Cout, Cin, 3, 3) -> (9*cin_pad, cout_pad); K index = (kh*3+kw)*cin_pad + cin
    cout, cin = w.shape[0], w.shape[1]
    wt = jnp.transpose(w, (2, 3, 1, 0))                    # (kh, kw, cin, cout)
    wt = jnp.pad(wt, ((0, 0), (0, 0), (0, cin_pad - cin), (0, cout_pad - cout)))
    return wt.reshape(9 * cin_pad, cout_pad).astype(jnp.bfloat16)


def _pick_batch_tile(n, h, w, target_rows=512):
    # Grow the batch tile while (a) the grid keeps >=2 steps (feeds both v7x
    # TCs / keeps the pipeline busy) and (b) matmul rows per step stay modest.
    bt = 1
    while (n % (bt * 2) == 0 and n // (bt * 2) >= 2
           and bt * h * w < target_rows):
        bt *= 2
    return bt


def basic_block(x_nchw, w1, w2, bn1, bn2):
    """BasicBlock forward.  x_nchw: (N,Cin,H,W); w*: (Cout,Cin,3,3) torch layout;
    bn* = (gamma, beta, running_mean, running_var)."""
    N, Cin, H, W = x_nchw.shape
    Cmid = w1.shape[0]
    Cout = w2.shape[0]
    assert Cin == Cout, "identity residual requires inplanes == planes"

    Cp = _round_up(Cin, LANE)     # lane-dense input/output channel width
    Cmp = _round_up(Cmid, LANE)   # lane-dense mid channel width

    # glue: NCHW -> NHWC, bf16 matmul operands, channel zero-pad, spatial pad.
    x = jnp.transpose(x_nchw, (0, 2, 3, 1)).astype(jnp.bfloat16)
    x = jnp.pad(x, ((0, 0), (0, 0), (0, 0), (0, Cp - Cin)))
    xpad = jnp.pad(x, ((0, 0), (1, 1), (1, 1), (0, 0)))

    w1m = _pack_conv_weight(w1, Cp, Cmp)
    w2m = _pack_conv_weight(w2, Cmp, Cp)
    s1, b1 = _fold_bn(*bn1, Cmp)
    s2, b2 = _fold_bn(*bn2, Cp)

    bt = _pick_batch_tile(N, H, W)
    grid = (N // bt,)

    # VMEM budget: double-buffered ins/out + persistent scratch + matmul temps.
    bytes_in = bt * (H + 2) * (W + 2) * Cp * 2 + bt * H * W * Cp * 2
    bytes_w = w1m.size * 2 + w2m.size * 2
    bytes_out = bt * H * W * Cp * 4
    bytes_scratch = bt * (H + 2) * (W + 2) * Cmp * 2
    bytes_tmp = bt * H * W * (9 * Cp * 2 + 9 * Cmp * 2 + Cp * 4 + Cmp * 4)
    vmem_need = 2 * (bytes_in + bytes_w + bytes_out) + bytes_scratch + bytes_tmp
    vmem_limit = int(min(max(2 * vmem_need, 32 * 1024 * 1024),
                         60 * 1024 * 1024))   # stay under v7x's 64 MiB VMEM

    cost = pl.CostEstimate(
        flops=2 * N * H * W * 9 * (Cp * Cmp + Cmp * Cp),
        transcendentals=2 * N * H * W * max(Cp, Cmp),
        bytes_accessed=int(xpad.size * 2 + x.size * 2 + w1m.size * 2
                           + w2m.size * 2 + N * H * W * Cp * 4),
    )

    out_nhwc = pl.pallas_call(
        basic_block_kernel,
        out_shape=jax.ShapeDtypeStruct((N, H, W, Cp), jnp.float32),
        grid_spec=pltpu.PrefetchScalarGridSpec(
            num_scalar_prefetch=0,
            grid=grid,
            in_specs=[
                pl.BlockSpec((bt, H + 2, W + 2, Cp), lambda n: (n, 0, 0, 0)),
                pl.BlockSpec((bt, H, W, Cp), lambda n: (n, 0, 0, 0)),
                pl.BlockSpec((9 * Cp, Cmp), lambda n: (0, 0)),
                pl.BlockSpec((9 * Cmp, Cp), lambda n: (0, 0)),
                pl.BlockSpec((1, Cmp), lambda n: (0, 0)),
                pl.BlockSpec((1, Cmp), lambda n: (0, 0)),
                pl.BlockSpec((1, Cp), lambda n: (0, 0)),
                pl.BlockSpec((1, Cp), lambda n: (0, 0)),
            ],
            out_specs=pl.BlockSpec((bt, H, W, Cp), lambda n: (n, 0, 0, 0)),
            scratch_shapes=[pltpu.VMEM((bt, H + 2, W + 2, Cmp), jnp.bfloat16)],
        ),
        compiler_params=pltpu.CompilerParams(
            dimension_semantics=("parallel",),
            vmem_limit_bytes=vmem_limit),
        cost_estimate=cost,
    )(xpad, x, w1m, w2m, s1, b1, s2, b2)

    out = out_nhwc[..., :Cout]
    return jnp.transpose(out, (0, 3, 1, 2))


# ---------------------- pure-JAX reference (for checking) ----------------------
def _reference(x, w1, w2, bn1, bn2, eps=1e-5):
    def conv(x, w):
        return jax.lax.conv_general_dilated(
            x, w, window_strides=(1, 1), padding=((1, 1), (1, 1)),
            dimension_numbers=("NCHW", "OIHW", "NCHW"))

    def bn(x, p):
        g, b, m, v = p
        return ((x - m[None, :, None, None])
                / jnp.sqrt(v[None, :, None, None] + eps)
                * g[None, :, None, None] + b[None, :, None, None])

    def elu(x):
        return jnp.where(x > 0, x, jnp.exp(x) - 1.0)

    out = elu(bn(conv(x, w1), bn1))
    out = bn(conv(out, w2), bn2) + x
    return elu(out)


if __name__ == "__main__":
    key = jax.random.PRNGKey(0)
    ks = jax.random.split(key, 12)

    # small shapes consistent with the module: inplanes == planes (identity skip)
    N, C, H, W = 2, 8, 16, 16
    planes = C

    # make inputs bf16-representable so the kernel's bf16 operands match the
    # f32 reference on the input side (remaining error: bf16 mid activation).
    def q(a):
        return a.astype(jnp.bfloat16).astype(jnp.float32)

    x = q(jax.random.normal(ks[0], (N, C, H, W), jnp.float32))
    w1 = q(jax.random.normal(ks[1], (planes, C, 3, 3), jnp.float32)
           * math.sqrt(2.0 / (C * 9)))
    w2 = q(jax.random.normal(ks[2], (planes, planes, 3, 3), jnp.float32)
           * math.sqrt(2.0 / (planes * 9)))

    bn1 = (1.0 + 0.1 * jax.random.normal(ks[3], (planes,), jnp.float32),
           0.1 * jax.random.normal(ks[4], (planes,), jnp.float32),
           0.1 * jax.random.normal(ks[5], (planes,), jnp.float32),
           0.5 + jax.random.uniform(ks[6], (planes,), jnp.float32))
    bn2 = (1.0 + 0.1 * jax.random.normal(ks[7], (planes,), jnp.float32),
           0.1 * jax.random.normal(ks[8], (planes,), jnp.float32),
           0.1 * jax.random.normal(ks[9], (planes,), jnp.float32),
           0.5 + jax.random.uniform(ks[10], (planes,), jnp.float32))

    out = basic_block(x, w1, w2, bn1, bn2)
    out = jax.block_until_ready(out)

    ref = _reference(x, w1, w2, bn1, bn2)
    assert out.shape == (N, planes, H, W)
    err = float(jnp.max(jnp.abs(out - ref)))
    assert jnp.allclose(out, ref, rtol=5e-2, atol=5e-2), f"max abs err {err}"

    print("KERNEL_OK")
</pallas_src>

<mosaic_0001>
module attributes {stable_mosaic.version = 11 : i64} {
  func.func @basic_block_kernel(%arg0: i32, %arg1: memref<1x18x18x128xbf16, #tpu.memory_space<vmem>>, %arg2: memref<1x16x16x128xbf16, #tpu.memory_space<vmem>>, %arg3: memref<1152x128xbf16, #tpu.memory_space<vmem>>, %arg4: memref<1152x128xbf16, #tpu.memory_space<vmem>>, %arg5: memref<1x128xf32, #tpu.memory_space<vmem>>, %arg6: memref<1x128xf32, #tpu.memory_space<vmem>>, %arg7: memref<1x128xf32, #tpu.memory_space<vmem>>, %arg8: memref<1x128xf32, #tpu.memory_space<vmem>>, %arg9: memref<1x16x16x128xf32, #tpu.memory_space<vmem>>, %arg10: memref<1x18x18x128xbf16, #tpu.memory_space<vmem>>) attributes {dimension_semantics = [#tpu.dimension_semantics<parallel>], iteration_bounds = array<i64: 2>, scalar_prefetch = 0 : i64, scratch_operands = 1 : i64, tpu.core_type = #tpu.core_type<tc>, window_params = [{transform_indices = @transform_0, window_bounds = array<i64: 1, 18, 18, 128>}, {transform_indices = @transform_1, window_bounds = array<i64: 1, 16, 16, 128>}, {pipeline_mode = #tpu.pipeline_mode<synchronous>, transform_indices = @transform_2, window_bounds = array<i64: 1152, 128>}, {pipeline_mode = #tpu.pipeline_mode<synchronous>, transform_indices = @transform_3, window_bounds = array<i64: 1152, 128>}, {pipeline_mode = #tpu.pipeline_mode<synchronous>, transform_indices = @transform_4, window_bounds = array<i64: 1, 128>}, {pipeline_mode = #tpu.pipeline_mode<synchronous>, transform_indices = @transform_5, window_bounds = array<i64: 1, 128>}, {pipeline_mode = #tpu.pipeline_mode<synchronous>, transform_indices = @transform_6, window_bounds = array<i64: 1, 128>}, {pipeline_mode = #tpu.pipeline_mode<synchronous>, transform_indices = @transform_7, window_bounds = array<i64: 1, 128>}, {transform_indices = @transform_8, window_bounds = array<i64: 1, 16, 16, 128>}]} {
    %c0 = arith.constant 0 : index
    %c0_0 = arith.constant 0 : index
    %c0_1 = arith.constant 0 : index
    %c0_2 = arith.constant 0 : index
    %0 = vector.load %arg1[%c0, %c0_0, %c0_1, %c0_2] : memref<1x18x18x128xbf16, #tpu.memory_space<vmem>>, vector<1x16x16x128xbf16>
    %1 = vector.shape_cast %0 : vector<1x16x16x128xbf16> to vector<256x128xbf16>
    %c0_3 = arith.constant 0 : index
    %c0_4 = arith.constant 0 : index
    %c1 = arith.constant 1 : index
    %c0_5 = arith.constant 0 : index
    %2 = vector.load %arg1[%c0_3, %c0_4, %c1, %c0_5] : memref<1x18x18x128xbf16, #tpu.memory_space<vmem>>, vector<1x16x16x128xbf16>
    %3 = vector.shape_cast %2 : vector<1x16x16x128xbf16> to vector<256x128xbf16>
    %c0_6 = arith.constant 0 : index
    %c0_7 = arith.constant 0 : index
    %c2 = arith.constant 2 : index
    %c0_8 = arith.constant 0 : index
    %4 = vector.load %arg1[%c0_6, %c0_7, %c2, %c0_8] : memref<1x18x18x128xbf16, #tpu.memory_space<vmem>>, vector<1x16x16x128xbf16>
    %5 = vector.shape_cast %4 : vector<1x16x16x128xbf16> to vector<256x128xbf16>
    %c0_9 = arith.constant 0 : index
    %c1_10 = arith.constant 1 : index
    %c0_11 = arith.constant 0 : index
    %c0_12 = arith.constant 0 : index
    %6 = vector.load %arg1[%c0_9, %c1_10, %c0_11, %c0_12] : memref<1x18x18x128xbf16, #tpu.memory_space<vmem>>, vector<1x16x16x128xbf16>
    %7 = vector.shape_cast %6 : vector<1x16x16x128xbf16> to vector<256x128xbf16>
    %c0_13 = arith.constant 0 : index
    %c1_14 = arith.constant 1 : index
    %c1_15 = arith.constant 1 : index
    %c0_16 = arith.constant 0 : index
    %8 = vector.load %arg1[%c0_13, %c1_14, %c1_15, %c0_16] : memref<1x18x18x128xbf16, #tpu.memory_space<vmem>>, vector<1x16x16x128xbf16>
    %9 = vector.shape_cast %8 : vector<1x16x16x128xbf16> to vector<256x128xbf16>
    %c0_17 = arith.constant 0 : index
    %c1_18 = arith.constant 1 : index
    %c2_19 = arith.constant 2 : index
    %c0_20 = arith.constant 0 : index
    %10 = vector.load %arg1[%c0_17, %c1_18, %c2_19, %c0_20] : memref<1x18x18x128xbf16, #tpu.memory_space<vmem>>, vector<1x16x16x128xbf16>
    %11 = vector.shape_cast %10 : vector<1x16x16x128xbf16> to vector<256x128xbf16>
    %c0_21 = arith.constant 0 : index
    %c2_22 = arith.constant 2 : index
    %c0_23 = arith.constant 0 : index
    %c0_24 = arith.constant 0 : index
    %12 = vector.load %arg1[%c0_21, %c2_22, %c0_23, %c0_24] : memref<1x18x18x128xbf16, #tpu.memory_space<vmem>>, vector<1x16x16x128xbf16>
    %13 = vector.shape_cast %12 : vector<1x16x16x128xbf16> to vector<256x128xbf16>
    %c0_25 = arith.constant 0 : index
    %c2_26 = arith.constant 2 : index
    %c1_27 = arith.constant 1 : index
    %c0_28 = arith.constant 0 : index
    %14 = vector.load %arg1[%c0_25, %c2_26, %c1_27, %c0_28] : memref<1x18x18x128xbf16, #tpu.memory_space<vmem>>, vector<1x16x16x128xbf16>
    %15 = vector.shape_cast %14 : vector<1x16x16x128xbf16> to vector<256x128xbf16>
    %c0_29 = arith.constant 0 : index
    %c2_30 = arith.constant 2 : index
    %c2_31 = arith.constant 2 : index
    %c0_32 = arith.constant 0 : index
    %16 = vector.load %arg1[%c0_29, %c2_30, %c2_31, %c0_32] : memref<1x18x18x128xbf16, #tpu.memory_space<vmem>>, vector<1x16x16x128xbf16>
    %17 = vector.shape_cast %16 : vector<1x16x16x128xbf16> to vector<256x128xbf16>
    %18 = tpu.concatenate %1, %3, %5, %7, %9, %11, %13, %15, %17 in 1 : vector<256x128xbf16>, vector<256x128xbf16>, vector<256x128xbf16>, vector<256x128xbf16>, vector<256x128xbf16>, vector<256x128xbf16>, vector<256x128xbf16>, vector<256x128xbf16>, vector<256x128xbf16> -> vector<256x1152xbf16>
    %c0_33 = arith.constant 0 : index
    %c0_34 = arith.constant 0 : index
    %19 = vector.load %arg3[%c0_33, %c0_34] : memref<1152x128xbf16, #tpu.memory_space<vmem>>, vector<1152x128xbf16>
    %cst = arith.constant dense<0.000000e+00> : vector<256x128xf32>
    %20 = tpu.matmul %18, %19, %cst {dimension_numbers = #tpu.dot_dimension_numbers<[1], [0], [0], [1], [0, 0, 1, 1], [], []>} : vector<256x1152xbf16>, vector<1152x128xbf16>, vector<256x128xf32> -> vector<256x128xf32>
    %c0_35 = arith.constant 0 : index
    %c0_36 = arith.constant 0 : index
    %21 = vector.load %arg5[%c0_35, %c0_36] : memref<1x128xf32, #tpu.memory_space<vmem>>, vector<1x128xf32>
    %22 = vector.broadcast %21 : vector<1x128xf32> to vector<256x128xf32>
    %23 = arith.mulf %20, %22 : vector<256x128xf32>
    %c0_37 = arith.constant 0 : index
    %c0_38 = arith.constant 0 : index
    %24 = vector.load %arg6[%c0_37, %c0_38] : memref<1x128xf32, #tpu.memory_space<vmem>>, vector<1x128xf32>
    %25 = vector.broadcast %24 : vector<1x128xf32> to vector<256x128xf32>
    %26 = arith.addf %23, %25 : vector<256x128xf32>
    %cst_39 = arith.constant 0.000000e+00 : f32
    %27 = vector.broadcast %cst_39 : f32 to vector<256x128xf32>
    %28 = arith.cmpf ogt, %26, %27 : vector<256x128xf32>
    %cst_40 = arith.constant 0.000000e+00 : f32
    %29 = vector.broadcast %cst_40 : f32 to vector<256x128xf32>
    %30 = arith.minimumf %26, %29 : vector<256x128xf32>
    %31 = math.exp %30 : vector<256x128xf32>
    %cst_41 = arith.constant 1.000000e+00 : f32
    %32 = vector.broadcast %cst_41 : f32 to vector<256x128xf32>
    %33 = arith.subf %31, %32 : vector<256x128xf32>
    %34 = arith.select %28, %26, %33 : vector<256x128xi1>, vector<256x128xf32>
    %cst_42 = arith.constant 0.000000e+00 : bf16
    %35 = vector.broadcast %cst_42 : bf16 to vector<1x1x18x128xbf16>
    %cst_43 = arith.constant 0.000000e+00 : bf16
    %36 = vector.broadcast %cst_43 : bf16 to vector<1x16x1x128xbf16>
    %c0_44 = arith.constant 0 : index
    %c0_45 = arith.constant 0 : index
    %c0_46 = arith.constant 0 : index
    %c0_47 = arith.constant 0 : index
    %37 = vector.load %arg10[%c0_44, %c0_45, %c0_46, %c0_47] : memref<1x18x18x128xbf16, #tpu.memory_space<vmem>>, vector<1x1x18x128xbf16>
    tpu.vector_store %arg10[%c0_44, %c0_45, %c0_46, %c0_47], %35 {strides = array<i32>} : memref<1x18x18x128xbf16, #tpu.memory_space<vmem>>, vector<1x1x18x128xbf16>,
    %c0_48 = arith.constant 0 : index
    %c17 = arith.constant 17 : index
    %c0_49 = arith.constant 0 : index
    %c0_50 = arith.constant 0 : index
    %38 = vector.load %arg10[%c0_48, %c17, %c0_49, %c0_50] : memref<1x18x18x128xbf16, #tpu.memory_space<vmem>>, vector<1x1x18x128xbf16>
    tpu.vector_store %arg10[%c0_48, %c17, %c0_49, %c0_50], %35 {strides = array<i32>} : memref<1x18x18x128xbf16, #tpu.memory_space<vmem>>, vector<1x1x18x128xbf16>,
    %c0_51 = arith.constant 0 : index
    %c1_52 = arith.constant 1 : index
    %c0_53 = arith.constant 0 : index
    %c0_54 = arith.constant 0 : index
    %39 = vector.load %arg10[%c0_51, %c1_52, %c0_53, %c0_54] : memref<1x18x18x128xbf16, #tpu.memory_space<vmem>>, vector<1x16x1x128xbf16>
    tpu.vector_store %arg10[%c0_51, %c1_52, %c0_53, %c0_54], %36 {strides = array<i32>} : memref<1x18x18x128xbf16, #tpu.memory_space<vmem>>, vector<1x16x1x128xbf16>,
    %c0_55 = arith.constant 0 : index
    %c1_56 = arith.constant 1 : index
    %c17_57 = arith.constant 17 : index
    %c0_58 = arith.constant 0 : index
    %40 = vector.load %arg10[%c0_55, %c1_56, %c17_57, %c0_58] : memref<1x18x18x128xbf16, #tpu.memory_space<vmem>>, vector<1x16x1x128xbf16>
    tpu.vector_store %arg10[%c0_55, %c1_56, %c17_57, %c0_58], %36 {strides = array<i32>} : memref<1x18x18x128xbf16, #tpu.memory_space<vmem>>, vector<1x16x1x128xbf16>,
    %41 = vector.shape_cast %34 : vector<256x128xf32> to vector<1x16x16x128xf32>
    %42 = arith.truncf %41 : vector<1x16x16x128xf32> to vector<1x16x16x128xbf16>
    %c0_59 = arith.constant 0 : index
    %c1_60 = arith.constant 1 : index
    %c1_61 = arith.constant 1 : index
    %c0_62 = arith.constant 0 : index
    %43 = vector.load %arg10[%c0_59, %c1_60, %c1_61, %c0_62] : memref<1x18x18x128xbf16, #tpu.memory_space<vmem>>, vector<1x16x16x128xbf16>
    tpu.vector_store %arg10[%c0_59, %c1_60, %c1_61, %c0_62], %42 {strides = array<i32>} : memref<1x18x18x128xbf16, #tpu.memory_space<vmem>>, vector<1x16x16x128xbf16>,
    %c0_63 = arith.constant 0 : index
    %c0_64 = arith.constant 0 : index
    %c0_65 = arith.constant 0 : index
    %c0_66 = arith.constant 0 : index
    %44 = vector.load %arg10[%c0_63, %c0_64, %c0_65, %c0_66] : memref<1x18x18x128xbf16, #tpu.memory_space<vmem>>, vector<1x16x16x128xbf16>
    %45 = vector.shape_cast %44 : vector<1x16x16x128xbf16> to vector<256x128xbf16>
    %c0_67 = arith.constant 0 : index
    %c0_68 = arith.constant 0 : index
    %c1_69 = arith.constant 1 : index
    %c0_70 = arith.constant 0 : index
    %46 = vector.load %arg10[%c0_67, %c0_68, %c1_69, %c0_70] : memref<1x18x18x128xbf16, #tpu.memory_space<vmem>>, vector<1x16x16x128xbf16>
    %47 = vector.shape_cast %46 : vector<1x16x16x128xbf16> to vector<256x128xbf16>
    %c0_71 = arith.constant 0 : index
    %c0_72 = arith.constant 0 : index
    %c2_73 = arith.constant 2 : index
    %c0_74 = arith.constant 0 : index
    %48 = vector.load %arg10[%c0_71, %c0_72, %c2_73, %c0_74] : memref<1x18x18x128xbf16, #tpu.memory_space<vmem>>, vector<1x16x16x128xbf16>
    %49 = vector.shape_cast %48 : vector<1x16x16x128xbf16> to vector<256x128xbf16>
    %c0_75 = arith.constant 0 : index
    %c1_76 = arith.constant 1 : index
    %c0_77 = arith.constant 0 : index
    %c0_78 = arith.constant 0 : index
    %50 = vector.load %arg10[%c0_75, %c1_76, %c0_77, %c0_78] : memref<1x18x18x128xbf16, #tpu.memory_space<vmem>>, vector<1x16x16x128xbf16>
    %51 = vector.shape_cast %50 : vector<1x16x16x128xbf16> to vector<256x128xbf16>
    %c0_79 = arith.constant 0 : index
    %c1_80 = arith.constant 1 : index
    %c1_81 = arith.constant 1 : index
    %c0_82 = arith.constant 0 : index
    %52 = vector.load %arg10[%c0_79, %c1_80, %c1_81, %c0_82] : memref<1x18x18x128xbf16, #tpu.memory_space<vmem>>, vector<1x16x16x128xbf16>
    %53 = vector.shape_cast %52 : vector<1x16x16x128xbf16> to vector<256x128xbf16>
    %c0_83 = arith.constant 0 : index
    %c1_84 = arith.constant 1 : index
    %c2_85 = arith.constant 2 : index
    %c0_86 = arith.constant 0 : index
    %54 = vector.load %arg10[%c0_83, %c1_84, %c2_85, %c0_86] : memref<1x18x18x128xbf16, #tpu.memory_space<vmem>>, vector<1x16x16x128xbf16>
    %55 = vector.shape_cast %54 : vector<1x16x16x128xbf16> to vector<256x128xbf16>
    %c0_87 = arith.constant 0 : index
    %c2_88 = arith.constant 2 : index
    %c0_89 = arith.constant 0 : index
    %c0_90 = arith.constant 0 : index
    %56 = vector.load %arg10[%c0_87, %c2_88, %c0_89, %c0_90] : memref<1x18x18x128xbf16, #tpu.memory_space<vmem>>, vector<1x16x16x128xbf16>
    %57 = vector.shape_cast %56 : vector<1x16x16x128xbf16> to vector<256x128xbf16>
    %c0_91 = arith.constant 0 : index
    %c2_92 = arith.constant 2 : index
    %c1_93 = arith.constant 1 : index
    %c0_94 = arith.constant 0 : index
    %58 = vector.load %arg10[%c0_91, %c2_92, %c1_93, %c0_94] : memref<1x18x18x128xbf16, #tpu.memory_space<vmem>>, vector<1x16x16x128xbf16>
    %59 = vector.shape_cast %58 : vector<1x16x16x128xbf16> to vector<256x128xbf16>
    %c0_95 = arith.constant 0 : index
    %c2_96 = arith.constant 2 : index
    %c2_97 = arith.constant 2 : index
    %c0_98 = arith.constant 0 : index
    %60 = vector.load %arg10[%c0_95, %c2_96, %c2_97, %c0_98] : memref<1x18x18x128xbf16, #tpu.memory_space<vmem>>, vector<1x16x16x128xbf16>
    %61 = vector.shape_cast %60 : vector<1x16x16x128xbf16> to vector<256x128xbf16>
    %62 = tpu.concatenate %45, %47, %49, %51, %53, %55, %57, %59, %61 in 1 : vector<256x128xbf16>, vector<256x128xbf16>, vector<256x128xbf16>, vector<256x128xbf16>, vector<256x128xbf16>, vector<256x128xbf16>, vector<256x128xbf16>, vector<256x128xbf16>, vector<256x128xbf16> -> vector<256x1152xbf16>
    %c0_99 = arith.constant 0 : index
    %c0_100 = arith.constant 0 : index
    %63 = vector.load %arg4[%c0_99, %c0_100] : memref<1152x128xbf16, #tpu.memory_space<vmem>>, vector<1152x128xbf16>
    %cst_101 = arith.constant dense<0.000000e+00> : vector<256x128xf32>
    %64 = tpu.matmul %62, %63, %cst_101 {dimension_numbers = #tpu.dot_dimension_numbers<[1], [0], [0], [1], [0, 0, 1, 1], [], []>} : vector<256x1152xbf16>, vector<1152x128xbf16>, vector<256x128xf32> -> vector<256x128xf32>
    %c0_102 = arith.constant 0 : index
    %c0_103 = arith.constant 0 : index
    %65 = vector.load %arg7[%c0_102, %c0_103] : memref<1x128xf32, #tpu.memory_space<vmem>>, vector<1x128xf32>
    %66 = vector.broadcast %65 : vector<1x128xf32> to vector<256x128xf32>
    %67 = arith.mulf %64, %66 : vector<256x128xf32>
    %c0_104 = arith.constant 0 : index
    %c0_105 = arith.constant 0 : index
    %68 = vector.load %arg8[%c0_104, %c0_105] : memref<1x128xf32, #tpu.memory_space<vmem>>, vector<1x128xf32>
    %69 = vector.broadcast %68 : vector<1x128xf32> to vector<256x128xf32>
    %70 = arith.addf %67, %69 : vector<256x128xf32>
    %c0_106 = arith.constant 0 : index
    %c0_107 = arith.constant 0 : index
    %c0_108 = arith.constant 0 : index
    %c0_109 = arith.constant 0 : index
    %71 = vector.load %arg2[%c0_106, %c0_107, %c0_108, %c0_109] : memref<1x16x16x128xbf16, #tpu.memory_space<vmem>>, vector<1x16x16x128xbf16>
    %72 = vector.shape_cast %71 : vector<1x16x16x128xbf16> to vector<256x128xbf16>
    %73 = arith.extf %72 : vector<256x128xbf16> to vector<256x128xf32>
    %74 = arith.addf %70, %73 : vector<256x128xf32>
    %cst_110 = arith.constant 0.000000e+00 : f32
    %75 = vector.broadcast %cst_110 : f32 to vector<256x128xf32>
    %76 = arith.cmpf ogt, %74, %75 : vector<256x128xf32>
    %cst_111 = arith.constant 0.000000e+00 : f32
    %77 = vector.broadcast %cst_111 : f32 to vector<256x128xf32>
    %78 = arith.minimumf %74, %77 : vector<256x128xf32>
    %79 = math.exp %78 : vector<256x128xf32>
    %cst_112 = arith.constant 1.000000e+00 : f32
    %80 = vector.broadcast %cst_112 : f32 to vector<256x128xf32>
    %81 = arith.subf %79, %80 : vector<256x128xf32>
    %82 = arith.select %76, %74, %81 : vector<256x128xi1>, vector<256x128xf32>
    %83 = vector.shape_cast %82 : vector<256x128xf32> to vector<1x16x16x128xf32>
    %c0_113 = arith.constant 0 : index
    %c0_114 = arith.constant 0 : index
    %c0_115 = arith.constant 0 : index
    %c0_116 = arith.constant 0 : index
    %84 = vector.load %arg9[%c0_113, %c0_114, %c0_115, %c0_116] : memref<1x16x16x128xf32, #tpu.memory_space<vmem>>, vector<1x16x16x128xf32>
    tpu.vector_store %arg9[%c0_113, %c0_114, %c0_115, %c0_116], %83 {strides = array<i32>} : memref<1x16x16x128xf32, #tpu.memory_space<vmem>>, vector<1x16x16x128xf32>,
    return
  }
  func.func @transform_0(%arg0: i32) -> (i32, i32, i32, i32) {
    %c0_i32 = arith.constant 0 : i32
    %c0_i32_0 = arith.constant 0 : i32
    %c0_i32_1 = arith.constant 0 : i32
    %c0_i32_2 = arith.constant 0 : i32
    return %arg0, %c0_i32, %c0_i32_0, %c0_i32_1 : i32, i32, i32, i32
  }
  func.func @transform_1(%arg0: i32) -> (i32, i32, i32, i32) {
    %c0_i32 = arith.constant 0 : i32
    %c0_i32_0 = arith.constant 0 : i32
    %c0_i32_1 = arith.constant 0 : i32
    %c0_i32_2 = arith.constant 0 : i32
    return %arg0, %c0_i32, %c0_i32_0, %c0_i32_1 : i32, i32, i32, i32
  }
  func.func @transform_2(%arg0: i32) -> (i32, i32) {
    %c0_i32 = arith.constant 0 : i32
    %c0_i32_0 = arith.constant 0 : i32
    %c0_i32_1 = arith.constant 0 : i32
    return %c0_i32, %c0_i32_0 : i32, i32
  }
  func.func @transform_3(%arg0: i32) -> (i32, i32) {
    %c0_i32 = arith.constant 0 : i32
    %c0_i32_0 = arith.constant 0 : i32
    %c0_i32_1 = arith.constant 0 : i32
    return %c0_i32, %c0_i32_0 : i32, i32
  }
  func.func @transform_4(%arg0: i32) -> (i32, i32) {
    %c0_i32 = arith.constant 0 : i32
    %c0_i32_0 = arith.constant 0 : i32
    %c0_i32_1 = arith.constant 0 : i32
    return %c0_i32, %c0_i32_0 : i32, i32
  }
  func.func @transform_5(%arg0: i32) -> (i32, i32) {
    %c0_i32 = arith.constant 0 : i32
    %c0_i32_0 = arith.constant 0 : i32
    %c0_i32_1 = arith.constant 0 : i32
    return %c0_i32, %c0_i32_0 : i32, i32
  }
  func.func @transform_6(%arg0: i32) -> (i32, i32) {
    %c0_i32 = arith.constant 0 : i32
    %c0_i32_0 = arith.constant 0 : i32
    %c0_i32_1 = arith.constant 0 : i32
    return %c0_i32, %c0_i32_0 : i32, i32
  }
  func.func @transform_7(%arg0: i32) -> (i32, i32) {
    %c0_i32 = arith.constant 0 : i32
    %c0_i32_0 = arith.constant 0 : i32
    %c0_i32_1 = arith.constant 0 : i32
    return %c0_i32, %c0_i32_0 : i32, i32
  }
  func.func @transform_8(%arg0: i32) -> (i32, i32, i32, i32) {
    %c0_i32 = arith.constant 0 : i32
    %c0_i32_0 = arith.constant 0 : i32
    %c0_i32_1 = arith.constant 0 : i32
    %c0_i32_2 = arith.constant 0 : i32
    return %arg0, %c0_i32, %c0_i32_0, %c0_i32_1 : i32, i32, i32, i32
  }
}

</mosaic_0001>

<llo_original>
// kernel: tpu_custom_call.1
$region0: #{tpu_custom_call.1}
  #allocation0 [shape = 'u32[]', space=smem, size = 0x4, offset = 0x4, fixed_abs, tag = 'smem constant byte address 0x4 - core index']
  #allocation1 [shape = 'u32[144,128]{1,0:T(1,128)}', space=vmem, size = 0x12000, scoped, tag = 'internal scratch']
  #allocation2 [shape = 'bf16[1,18,18,128]{3,2,1,0:T(8,128)(2,1)}', space=vmem, size = 0x1b000, scoped, tag = 'scratch operand']
  %s0 = inlined_call_operand.vmem [shape: bf16[2,18,18,128], index: 0, kind: input, shape index: {}]
  %s1 = inlined_call_operand.hbm [shape: bf16[2,16,16,128], index: 1, kind: input, shape index: {}]
  %s2 = inlined_call_operand.vmem [shape: bf16[1152,128], index: 2, kind: input, shape index: {}]
  %s3 = inlined_call_operand.hbm [shape: bf16[1152,128], index: 3, kind: input, shape index: {}]
  %s4 = inlined_call_operand.vmem [shape: f32[1,128], index: 4, kind: input, shape index: {}]
  %s5 = inlined_call_operand.vmem [shape: f32[1,128], index: 5, kind: input, shape index: {}]
  %s6 = inlined_call_operand.vmem [shape: f32[1,128], index: 6, kind: input, shape index: {}]
  %s7 = inlined_call_operand.vmem [shape: f32[1,128], index: 7, kind: input, shape index: {}]
  %s8 = inlined_call_operand.hbm [shape: f32[2,16,16,128], index: 8, kind: output, shape index: {}]
  %s9 = sld [smem:[#allocation0]]
  $region73: #{tpu_custom_call.1} parent=0
    _
  %s11 = ssub.s32 1, %s9
  %s12 = scalar_select 0, %s11, %s9
  $region1: #{tpu_custom_call.1} parent=0
    #allocation3 [shape = 'u8[131072]{0}', space=vmem, size = 0x20000, scoped, tag = 'input window, operand 1']
    #allocation4 [shape = 's32[2]{0}', space=sflag, size = 0x8, scoped, tag = 'scoped memory for tpu_custom_call.1']
    #allocation5 [shape = 's32[2]{0}', space=sflag, size = 0x8, scoped, tag = 'scoped memory for tpu_custom_call.1']
    #allocation6 [shape = 'u8[294912]{0}', space=vmem, size = 0x48000, scoped, tag = 'input window, operand 3, single buffered']
    #allocation7 [shape = 's32[1]{0}', space=sflag, size = 0x4, scoped, tag = 'scoped memory for tpu_custom_call.1']
    #allocation8 [shape = 'u8[262144]{0}', space=vmem, size = 0x40000, scoped, tag = 'output window, operand 0']
    %13 = vsyncpa [#allocation4], 0
    %s14 = scalar_lea.sflag [#allocation4], 1
    %15 = vsyncpa %s14, 0
    %16 = vsyncpa [#allocation7], 0
    %17 = vsyncpa [#allocation5], 0
    %s18 = scalar_lea.sflag [#allocation5], 1
    %19 = vsyncpa %s18, 0
    loop: start=0, step=1, limit=4
    $region2: #{tpu_custom_call.1} parent=1 // loop_pre_header
      _
    $region3: #{tpu_custom_call.1} parent=1 // loop_header
      %s21 = sphi 0, %s25
      %p22 = scmp.ge.s32.totalorder %s21, 4
      %s31 = sphi 0, %s33
      %s34 = sphi 0, %s31
      %s35 = sphi 0, %s34
      %s51 = sphi 0, %s35
      %s57 = sphi 0, %s59
      %s60 = sphi 0, %s57
      %s61 = sphi 0, %s60
      %s77 = sphi 0, %s61
      %s81 = sphi 0, %s81
      %s83 = sphi 0, %s81
      %s84 = sphi 0, %s83
      %s98 = sphi 0, %s84
      %s102 = sphi 0, %s102
      %s104 = sphi 0, %s102
      %s105 = sphi 0, %s104
      %s119 = sphi 0, %s105
      %s123 = sphi 0, %s123
      %s125 = sphi 0, %s123
      %s126 = sphi 0, %s125
      %s140 = sphi 0, %s126
      %s144 = sphi 0, %s144
      %s146 = sphi 0, %s144
      %s147 = sphi 0, %s146
      %s161 = sphi 0, %s147
      %s165 = sphi 0, %s165
      %s167 = sphi 0, %s165
      %s168 = sphi 0, %s167
      %s182 = sphi 0, %s168
      %s186 = sphi 0, %s186
      %s188 = sphi 0, %s186
      %s189 = sphi 0, %s188
      %s203 = sphi 0, %s189
      %s209 = sphi 0, %s211
      %s212 = sphi 0, %s209
      %s213 = sphi 0, %s212
      %s229 = sphi 0, %s213
    $region4: #{tpu_custom_call.1} parent=1 // loop_header_branch
      %24 = sbr.rel (%p22) target = $region8
    $region5: #{tpu_custom_call.1} parent=1 // loop_body
      %s26 = ssub.s32 %s21, 1
      %s27 = ssub.s32 %s21, 2
      %s28 = sadd.s32 %s21, 1
      %s29 = ssub.s32 %s21, %s28
      %p30 = scmp.eq.s32.totalorder %s29, 0
      %s32 = sadd.s32 %s31, 1
      %s33 = scalar_select %p30, %s31, %s32
      %p36 = pneg %p30
      %p37 = scmp.eq.s32.totalorder %s21, 1
      %p38 = por %p36, %p37
      %p39 = scmp.ne.s32.totalorder %s31, %s34
      %p40 = scmp.eq.s32.totalorder %s21, 0
      %p41 = por %p39, %p40
      %p42 = scmp.ne.s32.totalorder %s31, %s34
      %p43 = scmp.eq.s32.totalorder %s26, 1
      %p44 = por %p42, %p43
      %p45 = scmp.ne.s32.totalorder %s34, %s35
      %p46 = scmp.eq.s32.totalorder %s26, 0
      %p47 = por %p45, %p46
      %p48 = scmp.ne.s32.totalorder %s34, %s35
      %p49 = scmp.eq.s32.totalorder %s27, 1
      %p50 = por %p48, %p49
      %p52 = scmp.ne.s32.totalorder %s35, %s51
      %p53 = scmp.eq.s32.totalorder %s27, 0
      %p54 = por %p52, %p53
      %s55 = ssub.s32 %s21, %s28
      %p56 = scmp.eq.s32.totalorder %s55, 0
      %s58 = sadd.s32 %s57, 1
      %s59 = scalar_select %p56, %s57, %s58
      %p62 = pneg %p56
      %p63 = scmp.eq.s32.totalorder %s21, 1
      %p64 = por %p62, %p63
      %p65 = scmp.ne.s32.totalorder %s57, %s60
      %p66 = scmp.eq.s32.totalorder %s21, 0
      %p67 = por %p65, %p66
      %p68 = scmp.ne.s32.totalorder %s57, %s60
      %p69 = scmp.eq.s32.totalorder %s26, 1
      %p70 = por %p68, %p69
      %p71 = scmp.ne.s32.totalorder %s60, %s61
      %p72 = scmp.eq.s32.totalorder %s26, 0
      %p73 = por %p71, %p72
      %p74 = scmp.ne.s32.totalorder %s60, %s61
      %p75 = scmp.eq.s32.totalorder %s27, 1
      %p76 = por %p74, %p75
      %p78 = scmp.ne.s32.totalorder %s61, %s77
      %p79 = scmp.eq.s32.totalorder %s27, 0
      %p80 = por %p78, %p79
      %s82 = sadd.s32 %s81, 1
      %p85 = scmp.eq.s32.totalorder %s21, 1
      %p86 = scmp.ne.s32.totalorder %s81, %s83
      %p87 = scmp.eq.s32.totalorder %s21, 0
      %p88 = por %p86, %p87
      %p89 = scmp.ne.s32.totalorder %s81, %s83
      %p90 = scmp.eq.s32.totalorder %s26, 1
      %p91 = por %p89, %p90
      %p92 = scmp.ne.s32.totalorder %s83, %s84
      %p93 = scmp.eq.s32.totalorder %s26, 0
      %p94 = por %p92, %p93
      %p95 = scmp.ne.s32.totalorder %s83, %s84
      %p96 = scmp.eq.s32.totalorder %s27, 1
      %p97 = por %p95, %p96
      %p99 = scmp.ne.s32.totalorder %s84, %s98
      %p100 = scmp.eq.s32.totalorder %s27, 0
      %p101 = por %p99, %p100
      %s103 = sadd.s32 %s102, 1
      %p106 = scmp.eq.s32.totalorder %s21, 1
      %p107 = scmp.ne.s32.totalorder %s102, %s104
      %p108 = scmp.eq.s32.totalorder %s21, 0
      %p109 = por %p107, %p108
      %p110 = scmp.ne.s32.totalorder %s102, %s104
      %p111 = scmp.eq.s32.totalorder %s26, 1
      %p112 = por %p110, %p111
      %p113 = scmp.ne.s32.totalorder %s104, %s105
      %p114 = scmp.eq.s32.totalorder %s26, 0
      %p115 = por %p113, %p114
      %p116 = scmp.ne.s32.totalorder %s104, %s105
      %p117 = scmp.eq.s32.totalorder %s27, 1
      %p118 = por %p116, %p117
      %p120 = scmp.ne.s32.totalorder %s105, %s119
      %p121 = scmp.eq.s32.totalorder %s27, 0
      %p122 = por %p120, %p121
      %s124 = sadd.s32 %s123, 1
      %p127 = scmp.eq.s32.totalorder %s21, 1
      %p128 = scmp.ne.s32.totalorder %s123, %s125
      %p129 = scmp.eq.s32.totalorder %s21, 0
      %p130 = por %p128, %p129
      %p131 = scmp.ne.s32.totalorder %s123, %s125
      %p132 = scmp.eq.s32.totalorder %s26, 1
      %p133 = por %p131, %p132
      %p134 = scmp.ne.s32.totalorder %s125, %s126
      %p135 = scmp.eq.s32.totalorder %s26, 0
      %p136 = por %p134, %p135
      %p137 = scmp.ne.s32.totalorder %s125, %s126
      %p138 = scmp.eq.s32.totalorder %s27, 1
      %p139 = por %p137, %p138
      %p141 = scmp.ne.s32.totalorder %s126, %s140
      %p142 = scmp.eq.s32.totalorder %s27, 0
      %p143 = por %p141, %p142
      %s145 = sadd.s32 %s144, 1
      %p148 = scmp.eq.s32.totalorder %s21, 1
      %p149 = scmp.ne.s32.totalorder %s144, %s146
      %p150 = scmp.eq.s32.totalorder %s21, 0
      %p151 = por %p149, %p150
      %p152 = scmp.ne.s32.totalorder %s144, %s146
      %p153 = scmp.eq.s32.totalorder %s26, 1
      %p154 = por %p152, %p153
      %p155 = scmp.ne.s32.totalorder %s146, %s147
      %p156 = scmp.eq.s32.totalorder %s26, 0
      %p157 = por %p155, %p156
      %p158 = scmp.ne.s32.totalorder %s146, %s147
      %p159 = scmp.eq.s32.totalorder %s27, 1
      %p160 = por %p158, %p159
      %p162 = scmp.ne.s32.totalorder %s147, %s161
      %p163 = scmp.eq.s32.totalorder %s27, 0
      %p164 = por %p162, %p163
      %s166 = sadd.s32 %s165, 1
      %p169 = scmp.eq.s32.totalorder %s21, 1
      %p170 = scmp.ne.s32.totalorder %s165, %s167
      %p171 = scmp.eq.s32.totalorder %s21, 0
      %p172 = por %p170, %p171
      %p173 = scmp.ne.s32.totalorder %s165, %s167
      %p174 = scmp.eq.s32.totalorder %s26, 1
      %p175 = por %p173, %p174
      %p176 = scmp.ne.s32.totalorder %s167, %s168
      %p177 = scmp.eq.s32.totalorder %s26, 0
      %p178 = por %p176, %p177
      %p179 = scmp.ne.s32.totalorder %s167, %s168
      %p180 = scmp.eq.s32.totalorder %s27, 1
      %p181 = por %p179, %p180
      %p183 = scmp.ne.s32.totalorder %s168, %s182
      %p184 = scmp.eq.s32.totalorder %s27, 0
      %p185 = por %p183, %p184
      %s187 = sadd.s32 %s186, 1
      %p190 = scmp.eq.s32.totalorder %s21, 1
      %p191 = scmp.ne.s32.totalorder %s186, %s188
      %p192 = scmp.eq.s32.totalorder %s21, 0
      %p193 = por %p191, %p192
      %p194 = scmp.ne.s32.totalorder %s186, %s188
      %p195 = scmp.eq.s32.totalorder %s26, 1
      %p196 = por %p194, %p195
      %p197 = scmp.ne.s32.totalorder %s188, %s189
      %p198 = scmp.eq.s32.totalorder %s26, 0
      %p199 = por %p197, %p198
      %p200 = scmp.ne.s32.totalorder %s188, %s189
      %p201 = scmp.eq.s32.totalorder %s27, 1
      %p202 = por %p200, %p201
      %p204 = scmp.ne.s32.totalorder %s189, %s203
      %p205 = scmp.eq.s32.totalorder %s27, 0
      %p206 = por %p204, %p205
      %s207 = ssub.s32 %s21, %s28
      %p208 = scmp.eq.s32.totalorder %s207, 0
      %s210 = sadd.s32 %s209, 1
      %s211 = scalar_select %p208, %s209, %s210
      %p214 = pneg %p208
      %p215 = scmp.eq.s32.totalorder %s21, 1
      %p216 = por %p214, %p215
      %p217 = scmp.ne.s32.totalorder %s209, %s212
      %p218 = scmp.eq.s32.totalorder %s21, 0
      %p219 = por %p217, %p218
      %p220 = scmp.ne.s32.totalorder %s209, %s212
      %p221 = scmp.eq.s32.totalorder %s26, 1
      %p222 = por %p220, %p221
      %p223 = scmp.ne.s32.totalorder %s212, %s213
      %p224 = scmp.eq.s32.totalorder %s26, 0
      %p225 = por %p223, %p224
      %p226 = scmp.ne.s32.totalorder %s212, %s213
      %p227 = scmp.eq.s32.totalorder %s27, 1
      %p228 = por %p226, %p227
      %p230 = scmp.ne.s32.totalorder %s213, %s229
      %p231 = scmp.eq.s32.totalorder %s27, 0
      %p232 = por %p230, %p231
      %p233 = scmp.le.s32.totalorder 1, %s21
      %p234 = scmp.lt.s32.totalorder %s21, 3
      %p235 = pnand %p233, %p234
      %p236 = pneg %p235
      // Predicated region
      $region9: #{tpu_custom_call.1} parent=5 // pred_check
        _
      $region10: #{tpu_custom_call.1} parent=5 // pred_check_branch
        %238 = sbr.rel (%p235) target = $region12
      $region11: #{tpu_custom_call.1} parent=5 // pred_region
        %s239 = ssub.s32 %s21, 1
        // Predicated region
        $region13: #{tpu_custom_call.1} parent=11 // pred_check
          %p240 = pneg %p94
        $region14: #{tpu_custom_call.1} parent=11 // pred_check_branch
          %242 = sbr.rel (%p240) target = $region16
        $region15: #{tpu_custom_call.1} parent=11 // pred_region
          _
        $region16: #{tpu_custom_call.1} parent=11 // pred_fallthru
          _
        // Predicated region
        $region17: #{tpu_custom_call.1} parent=11 // pred_check
          %p243 = pneg %p115
        $region18: #{tpu_custom_call.1} parent=11 // pred_check_branch
          %245 = sbr.rel (%p243) target = $region20
        $region19: #{tpu_custom_call.1} parent=11 // pred_region
          %s247 = ssub.s32 9216, 9216
          %248 = vsyncadd [#allocation7], %s247
          %s249 = sshll.u32 [#allocation6], 4
          %s250 = int_to_ptr.vmem [resolvable:$true] %s249
          %255 = dma.hbm_to_vmem [thread:$0]  %s3, 9216, %s250, [#allocation7], 64, 64, 4
        $region20: #{tpu_custom_call.1} parent=11 // pred_fallthru
          _
        // Predicated region
        $region21: #{tpu_custom_call.1} parent=11 // pred_check
          %p256 = pneg %p136
        $region22: #{tpu_custom_call.1} parent=11 // pred_check_branch
          %258 = sbr.rel (%p256) target = $region24
        $region23: #{tpu_custom_call.1} parent=11 // pred_region
          _
        $region24: #{tpu_custom_call.1} parent=11 // pred_fallthru
          _
        // Predicated region
        $region25: #{tpu_custom_call.1} parent=11 // pred_check
          %p259 = pneg %p157
        $region26: #{tpu_custom_call.1} parent=11 // pred_check_branch
          %261 = sbr.rel (%p259) target = $region28
        $region27: #{tpu_custom_call.1} parent=11 // pred_region
          _
        $region28: #{tpu_custom_call.1} parent=11 // pred_fallthru
          _
        // Predicated region
        $region29: #{tpu_custom_call.1} parent=11 // pred_check
          %p262 = pneg %p178
        $region30: #{tpu_custom_call.1} parent=11 // pred_check_branch
          %264 = sbr.rel (%p262) target = $region32
        $region31: #{tpu_custom_call.1} parent=11 // pred_region
          _
        $region32: #{tpu_custom_call.1} parent=11 // pred_fallthru
          _
        // Predicated region
        $region33: #{tpu_custom_call.1} parent=11 // pred_check
          %p265 = pneg %p199
        $region34: #{tpu_custom_call.1} parent=11 // pred_check_branch
          %267 = sbr.rel (%p265) target = $region36
        $region35: #{tpu_custom_call.1} parent=11 // pred_region
          _
        $region36: #{tpu_custom_call.1} parent=11 // pred_fallthru
          _
      $region12: #{tpu_custom_call.1} parent=5 // pred_fallthru
        _
      %p268 = scmp.lt.s32.totalorder %s21, 2
      // Predicated region
      $region37: #{tpu_custom_call.1} parent=5 // pred_check
        %p269 = pneg %p268
      $region38: #{tpu_custom_call.1} parent=5 // pred_check_branch
        %271 = sbr.rel (%p269) target = $region40
      $region39: #{tpu_custom_call.1} parent=5 // pred_region
        // Predicated region
        $region41: #{tpu_custom_call.1} parent=39 // pred_check
          %p272 = pneg %p41
        $region42: #{tpu_custom_call.1} parent=39 // pred_check_branch
          %274 = sbr.rel (%p272) target = $region44
        $region43: #{tpu_custom_call.1} parent=39 // pred_region
          %p275 = scmp.lt.s32.totalorder %s21, 1
          %s276 = scalar_select %p275, %s21, 1
          %s277 = smul.addr %s276, 54
          %s278 = smul.addr %s277, 4
          %s279 = scalar_lea.vmem %s0, %s278
        $region44: #{tpu_custom_call.1} parent=39 // pred_fallthru
          _
        // Predicated region
        $region45: #{tpu_custom_call.1} parent=39 // pred_check
          %p280 = pneg %p67
        $region46: #{tpu_custom_call.1} parent=39 // pred_check_branch
          %282 = sbr.rel (%p280) target = $region48
        $region47: #{tpu_custom_call.1} parent=39 // pred_region
          %s283 = sand.u32 %s57, 1
          %s284 = scalar_lea.sflag [#allocation4], %s283
          %s285 = sand.u32 %s57, 1
          %s286 = smul.addr %s285, 128
          %s287 = scalar_lea.vmem [#allocation3], %s286
          %s289 = ssub.s32 2048, 2048
          %290 = vsyncadd %s284, %s289
          %s291 = smul.addr %s21, 32
          %s292 = smul.addr %s291, 64
          %s293 = scalar_lea.hbm %s1, %s292
          %s294 = sshll.u32 %s287, 4
          %s295 = int_to_ptr.vmem [resolvable:$true] %s294
          %300 = dma.hbm_to_vmem [thread:$0]  %s293, 2048, %s295, %s284, 64, 64, 4
        $region48: #{tpu_custom_call.1} parent=39 // pred_fallthru
          _
      $region40: #{tpu_custom_call.1} parent=5 // pred_fallthru
        _
      %p301 = scmp.le.s32.totalorder 1, %s21
      %p302 = scmp.lt.s32.totalorder %s21, 3
      %p303 = pnand %p301, %p302
      %p304 = pneg %p303
      // Predicated region
      $region49: #{tpu_custom_call.1} parent=5 // pred_check
        _
      $region50: #{tpu_custom_call.1} parent=5 // pred_check_branch
        %306 = sbr.rel (%p303) target = $region52
      $region51: #{tpu_custom_call.1} parent=5 // pred_region
        %s307 = ssub.s32 %s21, 1
        %s308 = sand.u32 %s60, 1
        %s309 = scalar_lea.sflag [#allocation4], %s308
        %s310 = sand.u32 %s60, 1
        %s311 = smul.addr %s310, 128
        %s312 = scalar_lea.vmem [#allocation3], %s311
        // Predicated region
        $region53: #{tpu_custom_call.1} parent=51 // pred_check
          %p313 = pneg %p73
        $region54: #{tpu_custom_call.1} parent=51 // pred_check_branch
          %315 = sbr.rel (%p313) target = $region56
        $region55: #{tpu_custom_call.1} parent=51 // pred_region
          %316 = dma.done %s309, 2048
        $region56: #{tpu_custom_call.1} parent=51 // pred_fallthru
          _
        // Predicated region
        $region57: #{tpu_custom_call.1} parent=51 // pred_check
          %p317 = pneg %p115
        $region58: #{tpu_custom_call.1} parent=51 // pred_check_branch
          %319 = sbr.rel (%p317) target = $region60
        $region59: #{tpu_custom_call.1} parent=51 // pred_region
          %320 = dma.done [#allocation7], 9216
        $region60: #{tpu_custom_call.1} parent=51 // pred_fallthru
          _
        %p321 = scmp.lt.s32.totalorder %s26, 1
        %s322 = scalar_select %p321, %s26, 1
        %s323 = smul.addr %s322, 54
        %s324 = smul.addr %s323, 4
        %s325 = scalar_lea.vmem %s0, %s324
        %p326 = pneg %p47
        %p327 = pneg %p44
        %s328 = sand.u32 %s60, 1
        %s329 = scalar_lea.sflag [#allocation4], %s328
        %s330 = sand.u32 %s60, 1
        %s331 = smul.addr %s330, 128
        %s332 = scalar_lea.vmem [#allocation3], %s331
        %p333 = pneg %p73
        %p334 = pneg %p70
        %p335 = pneg %p94
        %p336 = pneg %p91
        %p337 = pneg %p115
        %p338 = pneg %p112
        %p339 = pneg %p136
        %p340 = pneg %p133
        %p341 = pneg %p157
        %p342 = pneg %p154
        %p343 = pneg %p178
        %p344 = pneg %p175
        %p345 = pneg %p199
        %p346 = pneg %p196
        %p347 = pneg %p225
        %p348 = pneg %p222
        %s349 = sand.u32 %s212, 1
        %s350 = scalar_lea.sflag [#allocation5], %s349
        %s351 = sand.u32 %s212, 1
        %s352 = smul.addr %s351, 256
        %s353 = scalar_lea.vmem [#allocation8], %s352
        %p354 = scmp.lt.s32.totalorder %s26, 1
        %s355 = scalar_select %p354, %s26, 1
        %s356 = smul.addr %s355, 54
        %s357 = smul.addr %s356, 4
        %s358 = scalar_lea.vmem %s0, %s357
        %v360 = vld [vmem:[%s358] sm:$0xf]
        %v361 = vld [vmem:[%s358 + $0x4] sm:$0xf]
        %v362 = vld [vmem:[%s358 + $0xc] sm:$0xf]
        %v363 = vld [vmem:[%s358 + $0x10] sm:$0xf]
        %v364 = vld [vmem:[%s358 + $0x18] sm:$0xf]
        %v365 = vld [vmem:[%s358 + $0x1c] sm:$0xf]
        %v366 = vld [vmem:[%s358 + $0x24] sm:$0xf]
        %v367 = vld [vmem:[%s358 + $0x28] sm:$0xf]
        %v368 = vld [vmem:[%s358 + $0x30] sm:$0xf]
        %v369 = vld [vmem:[%s358 + $0x34] sm:$0xf]
        %v370 = vld [vmem:[%s358 + $0x3c] sm:$0xf]
        %v371 = vld [vmem:[%s358 + $0x40] sm:$0xf]
        %v372 = vld [vmem:[%s358 + $0x48] sm:$0xf]
        %v373 = vld [vmem:[%s358 + $0x4c] sm:$0xf]
        %v374 = vld [vmem:[%s358 + $0x54] sm:$0xf]
        %v375 = vld [vmem:[%s358 + $0x58] sm:$0xf]
        %v376 = vld [vmem:[%s358 + $0x60] sm:$0xf]
        %v377 = vld [vmem:[%s358 + $0x64] sm:$0xf]
        %v378 = vld [vmem:[%s358 + $0x6c] sm:$0xf]
        %v379 = vld [vmem:[%s358 + $0x70] sm:$0xf]
        %v380 = vld [vmem:[%s358 + $0x78] sm:$0xf]
        %v381 = vld [vmem:[%s358 + $0x7c] sm:$0xf]
        %v382 = vld [vmem:[%s358 + $0x84] sm:$0xf]
        %v383 = vld [vmem:[%s358 + $0x88] sm:$0xf]
        %v384 = vld [vmem:[%s358 + $0x90] sm:$0xf]
        %v385 = vld [vmem:[%s358 + $0x94] sm:$0xf]
        %v386 = vld [vmem:[%s358 + $0x9c] sm:$0xf]
        %v387 = vld [vmem:[%s358 + $0xa0] sm:$0xf]
        %v388 = vld [vmem:[%s358 + $0xa8] sm:$0xf]
        %v389 = vld [vmem:[%s358 + $0xac] sm:$0xf]
        %v390 = vld [vmem:[%s358 + $0xb4] sm:$0xf]
        %v391 = vld [vmem:[%s358 + $0xb8] sm:$0xf]
        %v392 = vld [vmem:[%s358 + $0x8] sm:$0x1]
        %v393 = vld [vmem:[%s358 + $0x14] sm:$0x1]
        %v394 = vld [vmem:[%s358 + $0x20] sm:$0x1]
        %v395 = vld [vmem:[%s358 + $0x2c] sm:$0x1]
        %v396 = vld [vmem:[%s358 + $0x38] sm:$0x1]
        %v397 = vld [vmem:[%s358 + $0x44] sm:$0x1]
        %v398 = vld [vmem:[%s358 + $0x50] sm:$0x1]
        %v399 = vld [vmem:[%s358 + $0x5c] sm:$0x1]
        %v400 = vld [vmem:[%s358 + $0x68] sm:$0x1]
        %v401 = vld [vmem:[%s358 + $0x74] sm:$0x1]
        %v402 = vld [vmem:[%s358 + $0x80] sm:$0x1]
        %v403 = vld [vmem:[%s358 + $0x8c] sm:$0x1]
        %v404 = vld [vmem:[%s358 + $0x98] sm:$0x1]
        %v405 = vld [vmem:[%s358 + $0xa4] sm:$0x1]
        %v406 = vld [vmem:[%s358 + $0xb0] sm:$0x1]
        %v407 = vld [vmem:[%s358 + $0xbc] sm:$0x1]
        %vm408 = vsmask.f32 3328
        %vm409 = vsmask.f32 7440
        %vm410 = vmor %vm408, %vm409
        %v412 = vshrl.u32 %v360, 16
        %v414 = vrot.slane %v412, 4
        %v415 = vshll.u32 %v360, 16
        %v417 = vrot.slane %v415, 5
        %v418 = vor.u32 %v414, %v417
        %v419 = vrot.slane %v418, 4
        %v421 = vshll.u32 %v361, 16
        %v423 = vrot.slane %v421, 5
        %v424 = vsel %vm410, %v419, %v423
        %v425 = vshrl.u32 %v361, 16
        %v427 = vrot.slane %v425, 4
        %v428 = vor.u32 %v427, %v423
        %v429 = vrot.slane %v428, 4
        %v431 = vshll.u32 %v392, 16
        %v433 = vrot.slane %v431, 5
        %v434 = vsel %vm410, %v429, %v433
        %v436 = vshrl.u32 %v362, 16
        %v438 = vrot.slane %v436, 4
        %v439 = vshll.u32 %v362, 16
        %v441 = vrot.slane %v439, 5
        %v442 = vor.u32 %v438, %v441
        %v443 = vrot.slane %v442, 4
        %v445 = vshll.u32 %v363, 16
        %v447 = vrot.slane %v445, 5
        %v448 = vsel %vm410, %v443, %v447
        %v449 = vshrl.u32 %v363, 16
        %v451 = vrot.slane %v449, 4
        %v452 = vor.u32 %v451, %v447
        %v453 = vrot.slane %v452, 4
        %v455 = vshll.u32 %v393, 16
        %v457 = vrot.slane %v455, 5
        %v458 = vsel %vm410, %v453, %v457
        %v460 = vshrl.u32 %v364, 16
        %v462 = vrot.slane %v460, 4
        %v463 = vshll.u32 %v364, 16
        %v465 = vrot.slane %v463, 5
        %v466 = vor.u32 %v462, %v465
        %v467 = vrot.slane %v466, 4
        %v469 = vshll.u32 %v365, 16
        %v471 = vrot.slane %v469, 5
        %v472 = vsel %vm410, %v467, %v471
        %v473 = vshrl.u32 %v365, 16
        %v475 = vrot.slane %v473, 4
        %v476 = vor.u32 %v475, %v471
        %v477 = vrot.slane %v476, 4
        %v479 = vshll.u32 %v394, 16
        %v481 = vrot.slane %v479, 5
        %v482 = vsel %vm410, %v477, %v481
        %v484 = vshrl.u32 %v366, 16
        %v486 = vrot.slane %v484, 4
        %v487 = vshll.u32 %v366, 16
        %v489 = vrot.slane %v487, 5
        %v490 = vor.u32 %v486, %v489
        %v491 = vrot.slane %v490, 4
        %v493 = vshll.u32 %v367, 16
        %v495 = vrot.slane %v493, 5
        %v496 = vsel %vm410, %v491, %v495
        %v497 = vshrl.u32 %v367, 16
        %v499 = vrot.slane %v497, 4
        %v500 = vor.u32 %v499, %v495
        %v501 = vrot.slane %v500, 4
        %v503 = vshll.u32 %v395, 16
        %v505 = vrot.slane %v503, 5
        %v506 = vsel %vm410, %v501, %v505
        %v508 = vshrl.u32 %v368, 16
        %v510 = vrot.slane %v508, 4
        %v511 = vshll.u32 %v368, 16
        %v513 = vrot.slane %v511, 5
        %v514 = vor.u32 %v510, %v513
        %v515 = vrot.slane %v514, 4
        %v517 = vshll.u32 %v369, 16
        %v519 = vrot.slane %v517, 5
        %v520 = vsel %vm410, %v515, %v519
        %v521 = vshrl.u32 %v369, 16
        %v523 = vrot.slane %v521, 4
        %v524 = vor.u32 %v523, %v519
        %v525 = vrot.slane %v524, 4
        %v527 = vshll.u32 %v396, 16
        %v529 = vrot.slane %v527, 5
        %v530 = vsel %vm410, %v525, %v529
        %v532 = vshrl.u32 %v370, 16
        %v534 = vrot.slane %v532, 4
        %v535 = vshll.u32 %v370, 16
        %v537 = vrot.slane %v535, 5
        %v538 = vor.u32 %v534, %v537
        %v539 = vrot.slane %v538, 4
        %v541 = vshll.u32 %v371, 16
        %v543 = vrot.slane %v541, 5
        %v544 = vsel %vm410, %v539, %v543
        %v545 = vshrl.u32 %v371, 16
        %v547 = vrot.slane %v545, 4
        %v548 = vor.u32 %v547, %v543
        %v549 = vrot.slane %v548, 4
        %v551 = vshll.u32 %v397, 16
        %v553 = vrot.slane %v551, 5
        %v554 = vsel %vm410, %v549, %v553
        %v556 = vshrl.u32 %v372, 16
        %v558 = vrot.slane %v556, 4
        %v559 = vshll.u32 %v372, 16
        %v561 = vrot.slane %v559, 5
        %v562 = vor.u32 %v558, %v561
        %v563 = vrot.slane %v562, 4
        %v565 = vshll.u32 %v373, 16
        %v567 = vrot.slane %v565, 5
        %v568 = vsel %vm410, %v563, %v567
        %v569 = vshrl.u32 %v373, 16
        %v571 = vrot.slane %v569, 4
        %v572 = vor.u32 %v571, %v567
        %v573 = vrot.slane %v572, 4
        %v575 = vshll.u32 %v398, 16
        %v577 = vrot.slane %v575, 5
        %v578 = vsel %vm410, %v573, %v577
        %v580 = vshrl.u32 %v374, 16
        %v582 = vrot.slane %v580, 4
        %v583 = vshll.u32 %v374, 16
        %v585 = vrot.slane %v583, 5
        %v586 = vor.u32 %v582, %v585
        %v587 = vrot.slane %v586, 4
        %v589 = vshll.u32 %v375, 16
        %v591 = vrot.slane %v589, 5
        %v592 = vsel %vm410, %v587, %v591
        %v593 = vshrl.u32 %v375, 16
        %v595 = vrot.slane %v593, 4
        %v596 = vor.u32 %v595, %v591
        %v597 = vrot.slane %v596, 4
        %v599 = vshll.u32 %v399, 16
        %v601 = vrot.slane %v599, 5
        %v602 = vsel %vm410, %v597, %v601
        %v604 = vshrl.u32 %v376, 16
        %v606 = vrot.slane %v604, 4
        %v607 = vshll.u32 %v376, 16
        %v609 = vrot.slane %v607, 5
        %v610 = vor.u32 %v606, %v609
        %v611 = vrot.slane %v610, 4
        %v613 = vshll.u32 %v377, 16
        %v615 = vrot.slane %v613, 5
        %v616 = vsel %vm410, %v611, %v615
        %v617 = vshrl.u32 %v377, 16
        %v619 = vrot.slane %v617, 4
        %v620 = vor.u32 %v619, %v615
        %v621 = vrot.slane %v620, 4
        %v623 = vshll.u32 %v400, 16
        %v625 = vrot.slane %v623, 5
        %v626 = vsel %vm410, %v621, %v625
        %v628 = vshrl.u32 %v378, 16
        %v630 = vrot.slane %v628, 4
        %v631 = vshll.u32 %v378, 16
        %v633 = vrot.slane %v631, 5
        %v634 = vor.u32 %v630, %v633
        %v635 = vrot.slane %v634, 4
        %v637 = vshll.u32 %v379, 16
        %v639 = vrot.slane %v637, 5
        %v640 = vsel %vm410, %v635, %v639
        %v641 = vshrl.u32 %v379, 16
        %v643 = vrot.slane %v641, 4
        %v644 = vor.u32 %v643, %v639
        %v645 = vrot.slane %v644, 4
        %v647 = vshll.u32 %v401, 16
        %v649 = vrot.slane %v647, 5
        %v650 = vsel %vm410, %v645, %v649
        %v652 = vshrl.u32 %v380, 16
        %v654 = vrot.slane %v652, 4
        %v655 = vshll.u32 %v380, 16
        %v657 = vrot.slane %v655, 5
        %v658 = vor.u32 %v654, %v657
        %v659 = vrot.slane %v658, 4
        %v661 = vshll.u32 %v381, 16
        %v663 = vrot.slane %v661, 5
        %v664 = vsel %vm410, %v659, %v663
        %v665 = vshrl.u32 %v381, 16
        %v667 = vrot.slane %v665, 4
        %v668 = vor.u32 %v667, %v663
        %v669 = vrot.slane %v668, 4
        %v671 = vshll.u32 %v402, 16
        %v673 = vrot.slane %v671, 5
        %v674 = vsel %vm410, %v669, %v673
        %v676 = vshrl.u32 %v382, 16
        %v678 = vrot.slane %v676, 4
        %v679 = vshll.u32 %v382, 16
        %v681 = vrot.slane %v679, 5
        %v682 = vor.u32 %v678, %v681
        %v683 = vrot.slane %v682, 4
        %v685 = vshll.u32 %v383, 16
        %v687 = vrot.slane %v685, 5
        %v688 = vsel %vm410, %v683, %v687
        %v689 = vshrl.u32 %v383, 16
        %v691 = vrot.slane %v689, 4
        %v692 = vor.u32 %v691, %v687
        %v693 = vrot.slane %v692, 4
        %v695 = vshll.u32 %v403, 16
        %v697 = vrot.slane %v695, 5
        %v698 = vsel %vm410, %v693, %v697
        %v700 = vshrl.u32 %v384, 16
        %v702 = vrot.slane %v700, 4
        %v703 = vshll.u32 %v384, 16
        %v705 = vrot.slane %v703, 5
        %v706 = vor.u32 %v702, %v705
        %v707 = vrot.slane %v706, 4
        %v709 = vshll.u32 %v385, 16
        %v711 = vrot.slane %v709, 5
        %v712 = vsel %vm410, %v707, %v711
        %v713 = vshrl.u32 %v385, 16
        %v715 = vrot.slane %v713, 4
        %v716 = vor.u32 %v715, %v711
        %v717 = vrot.slane %v716, 4
        %v719 = vshll.u32 %v404, 16
        %v721 = vrot.slane %v719, 5
        %v722 = vsel %vm410, %v717, %v721
        %v724 = vshrl.u32 %v386, 16
        %v726 = vrot.slane %v724, 4
        %v727 = vshll.u32 %v386, 16
        %v729 = vrot.slane %v727, 5
        %v730 = vor.u32 %v726, %v729
        %v731 = vrot.slane %v730, 4
        %v733 = vshll.u32 %v387, 16
        %v735 = vrot.slane %v733, 5
        %v736 = vsel %vm410, %v731, %v735
        %v737 = vshrl.u32 %v387, 16
        %v739 = vrot.slane %v737, 4
        %v740 = vor.u32 %v739, %v735
        %v741 = vrot.slane %v740, 4
        %v743 = vshll.u32 %v405, 16
        %v745 = vrot.slane %v743, 5
        %v746 = vsel %vm410, %v741, %v745
        %v748 = vshrl.u32 %v388, 16
        %v750 = vrot.slane %v748, 4
        %v751 = vshll.u32 %v388, 16
        %v753 = vrot.slane %v751, 5
        %v754 = vor.u32 %v750, %v753
        %v755 = vrot.slane %v754, 4
        %v757 = vshll.u32 %v389, 16
        %v759 = vrot.slane %v757, 5
        %v760 = vsel %vm410, %v755, %v759
        %v761 = vshrl.u32 %v389, 16
        %v763 = vrot.slane %v761, 4
        %v764 = vor.u32 %v763, %v759
        %v765 = vrot.slane %v764, 4
        %v767 = vshll.u32 %v406, 16
        %v769 = vrot.slane %v767, 5
        %v770 = vsel %vm410, %v765, %v769
        %v772 = vshrl.u32 %v390, 16
        %v774 = vrot.slane %v772, 4
        %v775 = vshll.u32 %v390, 16
        %v777 = vrot.slane %v775, 5
        %v778 = vor.u32 %v774, %v777
        %v779 = vrot.slane %v778, 4
        %v781 = vshll.u32 %v391, 16
        %v783 = vrot.slane %v781, 5
        %v784 = vsel %vm410, %v779, %v783
        %v785 = vshrl.u32 %v391, 16
        %v787 = vrot.slane %v785, 4
        %v788 = vor.u32 %v787, %v783
        %v789 = vrot.slane %v788, 4
        %v791 = vshll.u32 %v407, 16
        %v793 = vrot.slane %v791, 5
        %v794 = vsel %vm410, %v789, %v793
        %v795 = vld [vmem:[%s358] sm:$0xe]
        %v796 = vld [vmem:[%s358 + $0xc] sm:$0xe]
        %v797 = vld [vmem:[%s358 + $0x18] sm:$0xe]
        %v798 = vld [vmem:[%s358 + $0x24] sm:$0xe]
        %v799 = vld [vmem:[%s358 + $0x30] sm:$0xe]
        %v800 = vld [vmem:[%s358 + $0x3c] sm:$0xe]
        %v801 = vld [vmem:[%s358 + $0x48] sm:$0xe]
        %v802 = vld [vmem:[%s358 + $0x54] sm:$0xe]
        %v803 = vld [vmem:[%s358 + $0x60] sm:$0xe]
        %v804 = vld [vmem:[%s358 + $0x6c] sm:$0xe]
        %v805 = vld [vmem:[%s358 + $0x78] sm:$0xe]
        %v806 = vld [vmem:[%s358 + $0x84] sm:$0xe]
        %v807 = vld [vmem:[%s358 + $0x90] sm:$0xe]
        %v808 = vld [vmem:[%s358 + $0x9c] sm:$0xe]
        %v809 = vld [vmem:[%s358 + $0xa8] sm:$0xe]
        %v810 = vld [vmem:[%s358 + $0xb4] sm:$0xe]
        %vm859 = vcmask 1042432
        %vm860 = vcmask 1046532
        %vm861 = vmor %vm859, %vm860
        %v862 = vrot.slane %v795, 5
        %v863 = vrot.slane %v862, 4
        %v864 = vrot.slane %v361, 5
        %v865 = vsel %vm861, %v863, %v864
        %v866 = vrot.slane %v864, 4
        %v867 = vrot.slane %v392, 5
        %v868 = vsel %vm861, %v866, %v867
        %v869 = vrot.slane %v796, 5
        %v870 = vrot.slane %v869, 4
        %v871 = vrot.slane %v363, 5
        %v872 = vsel %vm861, %v870, %v871
        %v873 = vrot.slane %v871, 4
        %v874 = vrot.slane %v393, 5
        %v875 = vsel %vm861, %v873, %v874
        %v876 = vrot.slane %v797, 5
        %v877 = vrot.slane %v876, 4
        %v878 = vrot.slane %v365, 5
        %v879 = vsel %vm861, %v877, %v878
        %v880 = vrot.slane %v878, 4
        %v881 = vrot.slane %v394, 5
        %v882 = vsel %vm861, %v880, %v881
        %v883 = vrot.slane %v798, 5
        %v884 = vrot.slane %v883, 4
        %v885 = vrot.slane %v367, 5
        %v886 = vsel %vm861, %v884, %v885
        %v887 = vrot.slane %v885, 4
        %v888 = vrot.slane %v395, 5
        %v889 = vsel %vm861, %v887, %v888
        %v890 = vrot.slane %v799, 5
        %v891 = vrot.slane %v890, 4
        %v892 = vrot.slane %v369, 5
        %v893 = vsel %vm861, %v891, %v892
        %v894 = vrot.slane %v892, 4
        %v895 = vrot.slane %v396, 5
        %v896 = vsel %vm861, %v894, %v895
        %v897 = vrot.slane %v800, 5
        %v898 = vrot.slane %v897, 4
        %v899 = vrot.slane %v371, 5
        %v900 = vsel %vm861, %v898, %v899
        %v901 = vrot.slane %v899, 4
        %v902 = vrot.slane %v397, 5
        %v903 = vsel %vm861, %v901, %v902
        %v904 = vrot.slane %v801, 5
        %v905 = vrot.slane %v904, 4
        %v906 = vrot.slane %v373, 5
        %v907 = vsel %vm861, %v905, %v906
        %v908 = vrot.slane %v906, 4
        %v909 = vrot.slane %v398, 5
        %v910 = vsel %vm861, %v908, %v909
        %v911 = vrot.slane %v802, 5
        %v912 = vrot.slane %v911, 4
        %v913 = vrot.slane %v375, 5
        %v914 = vsel %vm861, %v912, %v913
        %v915 = vrot.slane %v913, 4
        %v916 = vrot.slane %v399, 5
        %v917 = vsel %vm861, %v915, %v916
        %v918 = vrot.slane %v803, 5
        %v919 = vrot.slane %v918, 4
        %v920 = vrot.slane %v377, 5
        %v921 = vsel %vm861, %v919, %v920
        %v922 = vrot.slane %v920, 4
        %v923 = vrot.slane %v400, 5
        %v924 = vsel %vm861, %v922, %v923
        %v925 = vrot.slane %v804, 5
        %v926 = vrot.slane %v925, 4
        %v927 = vrot.slane %v379, 5
        %v928 = vsel %vm861, %v926, %v927
        %v929 = vrot.slane %v927, 4
        %v930 = vrot.slane %v401, 5
        %v931 = vsel %vm861, %v929, %v930
        %v932 = vrot.slane %v805, 5
        %v933 = vrot.slane %v932, 4
        %v934 = vrot.slane %v381, 5
        %v935 = vsel %vm861, %v933, %v934
        %v936 = vrot.slane %v934, 4
        %v937 = vrot.slane %v402, 5
        %v938 = vsel %vm861, %v936, %v937
        %v939 = vrot.slane %v806, 5
        %v940 = vrot.slane %v939, 4
        %v941 = vrot.slane %v383, 5
        %v942 = vsel %vm861, %v940, %v941
        %v943 = vrot.slane %v941, 4
        %v944 = vrot.slane %v403, 5
        %v945 = vsel %vm861, %v943, %v944
        %v946 = vrot.slane %v807, 5
        %v947 = vrot.slane %v946, 4
        %v948 = vrot.slane %v385, 5
        %v949 = vsel %vm861, %v947, %v948
        %v950 = vrot.slane %v948, 4
        %v951 = vrot.slane %v404, 5
        %v952 = vsel %vm861, %v950, %v951
        %v953 = vrot.slane %v808, 5
        %v954 = vrot.slane %v953, 4
        %v955 = vrot.slane %v387, 5
        %v956 = vsel %vm861, %v954, %v955
        %v957 = vrot.slane %v955, 4
        %v958 = vrot.slane %v405, 5
        %v959 = vsel %vm861, %v957, %v958
        %v960 = vrot.slane %v809, 5
        %v961 = vrot.slane %v960, 4
        %v962 = vrot.slane %v389, 5
        %v963 = vsel %vm861, %v961, %v962
        %v964 = vrot.slane %v962, 4
        %v965 = vrot.slane %v406, 5
        %v966 = vsel %vm861, %v964, %v965
        %v967 = vrot.slane %v810, 5
        %v968 = vrot.slane %v967, 4
        %v969 = vrot.slane %v391, 5
        %v970 = vsel %vm861, %v968, %v969
        %v971 = vrot.slane %v969, 4
        %v972 = vrot.slane %v407, 5
        %v973 = vsel %vm861, %v971, %v972
        %s974 = scalar_lea.vmem %s358, 12
        %v975 = vld [vmem:[%s974] sm:$0xf]
        %v976 = vld [vmem:[%s974 + $0x4] sm:$0xf]
        %v977 = vld [vmem:[%s974 + $0xc] sm:$0xf]
        %v978 = vld [vmem:[%s974 + $0x10] sm:$0xf]
        %v979 = vld [vmem:[%s974 + $0x18] sm:$0xf]
        %v980 = vld [vmem:[%s974 + $0x1c] sm:$0xf]
        %v981 = vld [vmem:[%s974 + $0x24] sm:$0xf]
        %v982 = vld [vmem:[%s974 + $0x28] sm:$0xf]
        %v983 = vld [vmem:[%s974 + $0x30] sm:$0xf]
        %v984 = vld [vmem:[%s974 + $0x34] sm:$0xf]
        %v985 = vld [vmem:[%s974 + $0x3c] sm:$0xf]
        %v986 = vld [vmem:[%s974 + $0x40] sm:$0xf]
        %v987 = vld [vmem:[%s974 + $0x48] sm:$0xf]
        %v988 = vld [vmem:[%s974 + $0x4c] sm:$0xf]
        %v989 = vld [vmem:[%s974 + $0x54] sm:$0xf]
        %v990 = vld [vmem:[%s974 + $0x58] sm:$0xf]
        %v991 = vld [vmem:[%s974 + $0x60] sm:$0xf]
        %v992 = vld [vmem:[%s974 + $0x64] sm:$0xf]
        %v993 = vld [vmem:[%s974 + $0x6c] sm:$0xf]
        %v994 = vld [vmem:[%s974 + $0x70] sm:$0xf]
        %v995 = vld [vmem:[%s974 + $0x78] sm:$0xf]
        %v996 = vld [vmem:[%s974 + $0x7c] sm:$0xf]
        %v997 = vld [vmem:[%s974 + $0x84] sm:$0xf]
        %v998 = vld [vmem:[%s974 + $0x88] sm:$0xf]
        %v999 = vld [vmem:[%s974 + $0x90] sm:$0xf]
        %v1000 = vld [vmem:[%s974 + $0x94] sm:$0xf]
        %v1001 = vld [vmem:[%s974 + $0x9c] sm:$0xf]
        %v1002 = vld [vmem:[%s974 + $0xa0] sm:$0xf]
        %v1003 = vld [vmem:[%s974 + $0xa8] sm:$0xf]
        %v1004 = vld [vmem:[%s974 + $0xac] sm:$0xf]
        %v1005 = vld [vmem:[%s974 + $0xb4] sm:$0xf]
        %v1006 = vld [vmem:[%s974 + $0xb8] sm:$0xf]
        %v1007 = vld [vmem:[%s974 + $0x8] sm:$0x1]
        %v1008 = vld [vmem:[%s974 + $0x14] sm:$0x1]
        %v1009 = vld [vmem:[%s974 + $0x20] sm:$0x1]
        %v1010 = vld [vmem:[%s974 + $0x2c] sm:$0x1]
        %v1011 = vld [vmem:[%s974 + $0x38] sm:$0x1]
        %v1012 = vld [vmem:[%s974 + $0x44] sm:$0x1]
        %v1013 = vld [vmem:[%s974 + $0x50] sm:$0x1]
        %v1014 = vld [vmem:[%s974 + $0x5c] sm:$0x1]
        %v1015 = vld [vmem:[%s974 + $0x68] sm:$0x1]
        %v1016 = vld [vmem:[%s974 + $0x74] sm:$0x1]
        %v1017 = vld [vmem:[%s974 + $0x80] sm:$0x1]
        %v1018 = vld [vmem:[%s974 + $0x8c] sm:$0x1]
        %v1019 = vld [vmem:[%s974 + $0x98] sm:$0x1]
        %v1020 = vld [vmem:[%s974 + $0xa4] sm:$0x1]
        %v1021 = vld [vmem:[%s974 + $0xb0] sm:$0x1]
        %v1022 = vld [vmem:[%s974 + $0xbc] sm:$0x1]
        %v1024 = vshrl.u32 %v975, 16
        %v1026 = vrot.slane %v1024, 4
        %v1027 = vshll.u32 %v975, 16
        %v1029 = vrot.slane %v1027, 5
        %v1030 = vor.u32 %v1026, %v1029
        %v1031 = vrot.slane %v1030, 4
        %v1033 = vshll.u32 %v976, 16
        %v1035 = vrot.slane %v1033, 5
        %v1036 = vsel %vm410, %v1031, %v1035
        %v1037 = vshrl.u32 %v976, 16
        %v1039 = vrot.slane %v1037, 4
        %v1040 = vor.u32 %v1039, %v1035
        %v1041 = vrot.slane %v1040, 4
        %v1043 = vshll.u32 %v1007, 16
        %v1045 = vrot.slane %v1043, 5
        %v1046 = vsel %vm410, %v1041, %v1045
        %v1048 = vshrl.u32 %v977, 16
        %v1050 = vrot.slane %v1048, 4
        %v1051 = vshll.u32 %v977, 16
        %v1053 = vrot.slane %v1051, 5
        %v1054 = vor.u32 %v1050, %v1053
        %v1055 = vrot.slane %v1054, 4
        %v1057 = vshll.u32 %v978, 16
        %v1059 = vrot.slane %v1057, 5
        %v1060 = vsel %vm410, %v1055, %v1059
        %v1061 = vshrl.u32 %v978, 16
        %v1063 = vrot.slane %v1061, 4
        %v1064 = vor.u32 %v1063, %v1059
        %v1065 = vrot.slane %v1064, 4
        %v1067 = vshll.u32 %v1008, 16
        %v1069 = vrot.slane %v1067, 5
        %v1070 = vsel %vm410, %v1065, %v1069
        %v1072 = vshrl.u32 %v979, 16
        %v1074 = vrot.slane %v1072, 4
        %v1075 = vshll.u32 %v979, 16
        %v1077 = vrot.slane %v1075, 5
        %v1078 = vor.u32 %v1074, %v1077
        %v1079 = vrot.slane %v1078, 4
        %v1081 = vshll.u32 %v980, 16
        %v1083 = vrot.slane %v1081, 5
        %v1084 = vsel %vm410, %v1079, %v1083
        %v1085 = vshrl.u32 %v980, 16
        %v1087 = vrot.slane %v1085, 4
        %v1088 = vor.u32 %v1087, %v1083
        %v1089 = vrot.slane %v1088, 4
        %v1091 = vshll.u32 %v1009, 16
        %v1093 = vrot.slane %v1091, 5
        %v1094 = vsel %vm410, %v1089, %v1093
        %v1096 = vshrl.u32 %v981, 16
        %v1098 = vrot.slane %v1096, 4
        %v1099 = vshll.u32 %v981, 16
        %v1101 = vrot.slane %v1099, 5
        %v1102 = vor.u32 %v1098, %v1101
        %v1103 = vrot.slane %v1102, 4
        %v1105 = vshll.u32 %v982, 16
        %v1107 = vrot.slane %v1105, 5
        %v1108 = vsel %vm410, %v1103, %v1107
        %v1109 = vshrl.u32 %v982, 16
        %v1111 = vrot.slane %v1109, 4
        %v1112 = vor.u32 %v1111, %v1107
        %v1113 = vrot.slane %v1112, 4
        %v1115 = vshll.u32 %v1010, 16
        %v1117 = vrot.slane %v1115, 5
        %v1118 = vsel %vm410, %v1113, %v1117
        %v1120 = vshrl.u32 %v983, 16
        %v1122 = vrot.slane %v1120, 4
        %v1123 = vshll.u32 %v983, 16
        %v1125 = vrot.slane %v1123, 5
        %v1126 = vor.u32 %v1122, %v1125
        %v1127 = vrot.slane %v1126, 4
        %v1129 = vshll.u32 %v984, 16
        %v1131 = vrot.slane %v1129, 5
        %v1132 = vsel %vm410, %v1127, %v1131
        %v1133 = vshrl.u32 %v984, 16
        %v1135 = vrot.slane %v1133, 4
        %v1136 = vor.u32 %v1135, %v1131
        %v1137 = vrot.slane %v1136, 4
        %v1139 = vshll.u32 %v1011, 16
        %v1141 = vrot.slane %v1139, 5
        %v1142 = vsel %vm410, %v1137, %v1141
        %v1144 = vshrl.u32 %v985, 16
        %v1146 = vrot.slane %v1144, 4
        %v1147 = vshll.u32 %v985, 16
        %v1149 = vrot.slane %v1147, 5
        %v1150 = vor.u32 %v1146, %v1149
        %v1151 = vrot.slane %v1150, 4
        %v1153 = vshll.u32 %v986, 16
        %v1155 = vrot.slane %v1153, 5
        %v1156 = vsel %vm410, %v1151, %v1155
        %v1157 = vshrl.u32 %v986, 16
        %v1159 = vrot.slane %v1157, 4
        %v1160 = vor.u32 %v1159, %v1155
        %v1161 = vrot.slane %v1160, 4
        %v1163 = vshll.u32 %v1012, 16
        %v1165 = vrot.slane %v1163, 5
        %v1166 = vsel %vm410, %v1161, %v1165
        %v1168 = vshrl.u32 %v987, 16
        %v1170 = vrot.slane %v1168, 4
        %v1171 = vshll.u32 %v987, 16
        %v1173 = vrot.slane %v1171, 5
        %v1174 = vor.u32 %v1170, %v1173
        %v1175 = vrot.slane %v1174, 4
        %v1177 = vshll.u32 %v988, 16
        %v1179 = vrot.slane %v1177, 5
        %v1180 = vsel %vm410, %v1175, %v1179
        %v1181 = vshrl.u32 %v988, 16
        %v1183 = vrot.slane %v1181, 4
        %v1184 = vor.u32 %v1183, %v1179
        %v1185 = vrot.slane %v1184, 4
        %v1187 = vshll.u32 %v1013, 16
        %v1189 = vrot.slane %v1187, 5
        %v1190 = vsel %vm410, %v1185, %v1189
        %v1192 = vshrl.u32 %v989, 16
        %v1194 = vrot.slane %v1192, 4
        %v1195 = vshll.u32 %v989, 16
        %v1197 = vrot.slane %v1195, 5
        %v1198 = vor.u32 %v1194, %v1197
        %v1199 = vrot.slane %v1198, 4
        %v1201 = vshll.u32 %v990, 16
        %v1203 = vrot.slane %v1201, 5
        %v1204 = vsel %vm410, %v1199, %v1203
        %v1205 = vshrl.u32 %v990, 16
        %v1207 = vrot.slane %v1205, 4
        %v1208 = vor.u32 %v1207, %v1203
        %v1209 = vrot.slane %v1208, 4
        %v1211 = vshll.u32 %v1014, 16
        %v1213 = vrot.slane %v1211, 5
        %v1214 = vsel %vm410, %v1209, %v1213
        %v1216 = vshrl.u32 %v991, 16
        %v1218 = vrot.slane %v1216, 4
        %v1219 = vshll.u32 %v991, 16
        %v1221 = vrot.slane %v1219, 5
        %v1222 = vor.u32 %v1218, %v1221
        %v1223 = vrot.slane %v1222, 4
        %v1225 = vshll.u32 %v992, 16
        %v1227 = vrot.slane %v1225, 5
        %v1228 = vsel %vm410, %v1223, %v1227
        %v1229 = vshrl.u32 %v992, 16
        %v1231 = vrot.slane %v1229, 4
        %v1232 = vor.u32 %v1231, %v1227
        %v1233 = vrot.slane %v1232, 4
        %v1235 = vshll.u32 %v1015, 16
        %v1237 = vrot.slane %v1235, 5
        %v1238 = vsel %vm410, %v1233, %v1237
        %v1240 = vshrl.u32 %v993, 16
        %v1242 = vrot.slane %v1240, 4
        %v1243 = vshll.u32 %v993, 16
        %v1245 = vrot.slane %v1243, 5
        %v1246 = vor.u32 %v1242, %v1245
        %v1247 = vrot.slane %v1246, 4
        %v1249 = vshll.u32 %v994, 16
        %v1251 = vrot.slane %v1249, 5
        %v1252 = vsel %vm410, %v1247, %v1251
        %v1253 = vshrl.u32 %v994, 16
        %v1255 = vrot.slane %v1253, 4
        %v1256 = vor.u32 %v1255, %v1251
        %v1257 = vrot.slane %v1256, 4
        %v1259 = vshll.u32 %v1016, 16
        %v1261 = vrot.slane %v1259, 5
        %v1262 = vsel %vm410, %v1257, %v1261
        %v1264 = vshrl.u32 %v995, 16
        %v1266 = vrot.slane %v1264, 4
        %v1267 = vshll.u32 %v995, 16
        %v1269 = vrot.slane %v1267, 5
        %v1270 = vor.u32 %v1266, %v1269
        %v1271 = vrot.slane %v1270, 4
        %v1273 = vshll.u32 %v996, 16
        %v1275 = vrot.slane %v1273, 5
        %v1276 = vsel %vm410, %v1271, %v1275
        %v1277 = vshrl.u32 %v996, 16
        %v1279 = vrot.slane %v1277, 4
        %v1280 = vor.u32 %v1279, %v1275
        %v1281 = vrot.slane %v1280, 4
        %v1283 = vshll.u32 %v1017, 16
        %v1285 = vrot.slane %v1283, 5
        %v1286 = vsel %vm410, %v1281, %v1285
        %v1288 = vshrl.u32 %v997, 16
        %v1290 = vrot.slane %v1288, 4
        %v1291 = vshll.u32 %v997, 16
        %v1293 = vrot.slane %v1291, 5
        %v1294 = vor.u32 %v1290, %v1293
        %v1295 = vrot.slane %v1294, 4
        %v1297 = vshll.u32 %v998, 16
        %v1299 = vrot.slane %v1297, 5
        %v1300 = vsel %vm410, %v1295, %v1299
        %v1301 = vshrl.u32 %v998, 16
        %v1303 = vrot.slane %v1301, 4
        %v1304 = vor.u32 %v1303, %v1299
        %v1305 = vrot.slane %v1304, 4
        %v1307 = vshll.u32 %v1018, 16
        %v1309 = vrot.slane %v1307, 5
        %v1310 = vsel %vm410, %v1305, %v1309
        %v1312 = vshrl.u32 %v999, 16
        %v1314 = vrot.slane %v1312, 4
        %v1315 = vshll.u32 %v999, 16
        %v1317 = vrot.slane %v1315, 5
        %v1318 = vor.u32 %v1314, %v1317
        %v1319 = vrot.slane %v1318, 4
        %v1321 = vshll.u32 %v1000, 16
        %v1323 = vrot.slane %v1321, 5
        %v1324 = vsel %vm410, %v1319, %v1323
        %v1325 = vshrl.u32 %v1000, 16
        %v1327 = vrot.slane %v1325, 4
        %v1328 = vor.u32 %v1327, %v1323
        %v1329 = vrot.slane %v1328, 4
        %v1331 = vshll.u32 %v1019, 16
        %v1333 = vrot.slane %v1331, 5
        %v1334 = vsel %vm410, %v1329, %v1333
        %v1336 = vshrl.u32 %v1001, 16
        %v1338 = vrot.slane %v1336, 4
        %v1339 = vshll.u32 %v1001, 16
        %v1341 = vrot.slane %v1339, 5
        %v1342 = vor.u32 %v1338, %v1341
        %v1343 = vrot.slane %v1342, 4
        %v1345 = vshll.u32 %v1002, 16
        %v1347 = vrot.slane %v1345, 5
        %v1348 = vsel %vm410, %v1343, %v1347
        %v1349 = vshrl.u32 %v1002, 16
        %v1351 = vrot.slane %v1349, 4
        %v1352 = vor.u32 %v1351, %v1347
        %v1353 = vrot.slane %v1352, 4
        %v1355 = vshll.u32 %v1020, 16
        %v1357 = vrot.slane %v1355, 5
        %v1358 = vsel %vm410, %v1353, %v1357
        %v1360 = vshrl.u32 %v1003, 16
        %v1362 = vrot.slane %v1360, 4
        %v1363 = vshll.u32 %v1003, 16
        %v1365 = vrot.slane %v1363, 5
        %v1366 = vor.u32 %v1362, %v1365
        %v1367 = vrot.slane %v1366, 4
        %v1369 = vshll.u32 %v1004, 16
        %v1371 = vrot.slane %v1369, 5
        %v1372 = vsel %vm410, %v1367, %v1371
        %v1373 = vshrl.u32 %v1004, 16
        %v1375 = vrot.slane %v1373, 4
        %v1376 = vor.u32 %v1375, %v1371
        %v1377 = vrot.slane %v1376, 4
        %v1379 = vshll.u32 %v1021, 16
        %v1381 = vrot.slane %v1379, 5
        %v1382 = vsel %vm410, %v1377, %v1381
        %v1384 = vshrl.u32 %v1005, 16
        %v1386 = vrot.slane %v1384, 4
        %v1387 = vshll.u32 %v1005, 16
        %v1389 = vrot.slane %v1387, 5
        %v1390 = vor.u32 %v1386, %v1389
        %v1391 = vrot.slane %v1390, 4
        %v1393 = vshll.u32 %v1006, 16
        %v1395 = vrot.slane %v1393, 5
        %v1396 = vsel %vm410, %v1391, %v1395
        %v1397 = vshrl.u32 %v1006, 16
        %v1399 = vrot.slane %v1397, 4
        %v1400 = vor.u32 %v1399, %v1395
        %v1401 = vrot.slane %v1400, 4
        %v1403 = vshll.u32 %v1022, 16
        %v1405 = vrot.slane %v1403, 5
        %v1406 = vsel %vm410, %v1401, %v1405
        %v1407 = vld [vmem:[%s974] sm:$0xe]
        %v1408 = vld [vmem:[%s974 + $0xc] sm:$0xe]
        %v1409 = vld [vmem:[%s974 + $0x18] sm:$0xe]
        %v1410 = vld [vmem:[%s974 + $0x24] sm:$0xe]
        %v1411 = vld [vmem:[%s974 + $0x30] sm:$0xe]
        %v1412 = vld [vmem:[%s974 + $0x3c] sm:$0xe]
        %v1413 = vld [vmem:[%s974 + $0x48] sm:$0xe]
        %v1414 = vld [vmem:[%s974 + $0x54] sm:$0xe]
        %v1415 = vld [vmem:[%s974 + $0x60] sm:$0xe]
        %v1416 = vld [vmem:[%s974 + $0x6c] sm:$0xe]
        %v1417 = vld [vmem:[%s974 + $0x78] sm:$0xe]
        %v1418 = vld [vmem:[%s974 + $0x84] sm:$0xe]
        %v1419 = vld [vmem:[%s974 + $0x90] sm:$0xe]
        %v1420 = vld [vmem:[%s974 + $0x9c] sm:$0xe]
        %v1421 = vld [vmem:[%s974 + $0xa8] sm:$0xe]
        %v1422 = vld [vmem:[%s974 + $0xb4] sm:$0xe]
        %v1471 = vrot.slane %v1407, 5
        %v1472 = vrot.slane %v1471, 4
        %v1473 = vrot.slane %v976, 5
        %v1474 = vsel %vm861, %v1472, %v1473
        %v1475 = vrot.slane %v1473, 4
        %v1476 = vrot.slane %v1007, 5
        %v1477 = vsel %vm861, %v1475, %v1476
        %v1478 = vrot.slane %v1408, 5
        %v1479 = vrot.slane %v1478, 4
        %v1480 = vrot.slane %v978, 5
        %v1481 = vsel %vm861, %v1479, %v1480
        %v1482 = vrot.slane %v1480, 4
        %v1483 = vrot.slane %v1008, 5
        %v1484 = vsel %vm861, %v1482, %v1483
        %v1485 = vrot.slane %v1409, 5
        %v1486 = vrot.slane %v1485, 4
        %v1487 = vrot.slane %v980, 5
        %v1488 = vsel %vm861, %v1486, %v1487
        %v1489 = vrot.slane %v1487, 4
        %v1490 = vrot.slane %v1009, 5
        %v1491 = vsel %vm861, %v1489, %v1490
        %v1492 = vrot.slane %v1410, 5
        %v1493 = vrot.slane %v1492, 4
        %v1494 = vrot.slane %v982, 5
        %v1495 = vsel %vm861, %v1493, %v1494
        %v1496 = vrot.slane %v1494, 4
        %v1497 = vrot.slane %v1010, 5
        %v1498 = vsel %vm861, %v1496, %v1497
        %v1499 = vrot.slane %v1411, 5
        %v1500 = vrot.slane %v1499, 4
        %v1501 = vrot.slane %v984, 5
        %v1502 = vsel %vm861, %v1500, %v1501
        %v1503 = vrot.slane %v1501, 4
        %v1504 = vrot.slane %v1011, 5
        %v1505 = vsel %vm861, %v1503, %v1504
        %v1506 = vrot.slane %v1412, 5
        %v1507 = vrot.slane %v1506, 4
        %v1508 = vrot.slane %v986, 5
        %v1509 = vsel %vm861, %v1507, %v1508
        %v1510 = vrot.slane %v1508, 4
        %v1511 = vrot.slane %v1012, 5
        %v1512 = vsel %vm861, %v1510, %v1511
        %v1513 = vrot.slane %v1413, 5
        %v1514 = vrot.slane %v1513, 4
        %v1515 = vrot.slane %v988, 5
        %v1516 = vsel %vm861, %v1514, %v1515
        %v1517 = vrot.slane %v1515, 4
        %v1518 = vrot.slane %v1013, 5
        %v1519 = vsel %vm861, %v1517, %v1518
        %v1520 = vrot.slane %v1414, 5
        %v1521 = vrot.slane %v1520, 4
        %v1522 = vrot.slane %v990, 5
        %v1523 = vsel %vm861, %v1521, %v1522
        %v1524 = vrot.slane %v1522, 4
        %v1525 = vrot.slane %v1014, 5
        %v1526 = vsel %vm861, %v1524, %v1525
        %v1527 = vrot.slane %v1415, 5
        %v1528 = vrot.slane %v1527, 4
        %v1529 = vrot.slane %v992, 5
        %v1530 = vsel %vm861, %v1528, %v1529
        %v1531 = vrot.slane %v1529, 4
        %v1532 = vrot.slane %v1015, 5
        %v1533 = vsel %vm861, %v1531, %v1532
        %v1534 = vrot.slane %v1416, 5
        %v1535 = vrot.slane %v1534, 4
        %v1536 = vrot.slane %v994, 5
        %v1537 = vsel %vm861, %v1535, %v1536
        %v1538 = vrot.slane %v1536, 4
        %v1539 = vrot.slane %v1016, 5
        %v1540 = vsel %vm861, %v1538, %v1539
        %v1541 = vrot.slane %v1417, 5
        %v1542 = vrot.slane %v1541, 4
        %v1543 = vrot.slane %v996, 5
        %v1544 = vsel %vm861, %v1542, %v1543
        %v1545 = vrot.slane %v1543, 4
        %v1546 = vrot.slane %v1017, 5
        %v1547 = vsel %vm861, %v1545, %v1546
        %v1548 = vrot.slane %v1418, 5
        %v1549 = vrot.slane %v1548, 4
        %v1550 = vrot.slane %v998, 5
        %v1551 = vsel %vm861, %v1549, %v1550
        %v1552 = vrot.slane %v1550, 4
        %v1553 = vrot.slane %v1018, 5
        %v1554 = vsel %vm861, %v1552, %v1553
        %v1555 = vrot.slane %v1419, 5
        %v1556 = vrot.slane %v1555, 4
        %v1557 = vrot.slane %v1000, 5
        %v1558 = vsel %vm861, %v1556, %v1557
        %v1559 = vrot.slane %v1557, 4
        %v1560 = vrot.slane %v1019, 5
        %v1561 = vsel %vm861, %v1559, %v1560
        %v1562 = vrot.slane %v1420, 5
        %v1563 = vrot.slane %v1562, 4
        %v1564 = vrot.slane %v1002, 5
        %v1565 = vsel %vm861, %v1563, %v1564
        %v1566 = vrot.slane %v1564, 4
        %v1567 = vrot.slane %v1020, 5
        %v1568 = vsel %vm861, %v1566, %v1567
        %v1569 = vrot.slane %v1421, 5
        %v1570 = vrot.slane %v1569, 4
        %v1571 = vrot.slane %v1004, 5
        %v1572 = vsel %vm861, %v1570, %v1571
        %v1573 = vrot.slane %v1571, 4
        %v1574 = vrot.slane %v1021, 5
        %v1575 = vsel %vm861, %v1573, %v1574
        %v1576 = vrot.slane %v1422, 5
        %v1577 = vrot.slane %v1576, 4
        %v1578 = vrot.slane %v1006, 5
        %v1579 = vsel %vm861, %v1577, %v1578
        %v1580 = vrot.slane %v1578, 4
        %v1581 = vrot.slane %v1022, 5
        %v1582 = vsel %vm861, %v1580, %v1581
        %s1583 = scalar_lea.vmem %s358, 24
        %v1584 = vld [vmem:[%s1583] sm:$0xf]
        %v1585 = vld [vmem:[%s1583 + $0x4] sm:$0xf]
        %v1586 = vld [vmem:[%s1583 + $0xc] sm:$0xf]
        %v1587 = vld [vmem:[%s1583 + $0x10] sm:$0xf]
        %v1588 = vld [vmem:[%s1583 + $0x18] sm:$0xf]
        %v1589 = vld [vmem:[%s1583 + $0x1c] sm:$0xf]
        %v1590 = vld [vmem:[%s1583 + $0x24] sm:$0xf]
        %v1591 = vld [vmem:[%s1583 + $0x28] sm:$0xf]
        %v1592 = vld [vmem:[%s1583 + $0x30] sm:$0xf]
        %v1593 = vld [vmem:[%s1583 + $0x34] sm:$0xf]
        %v1594 = vld [vmem:[%s1583 + $0x3c] sm:$0xf]
        %v1595 = vld [vmem:[%s1583 + $0x40] sm:$0xf]
        %v1596 = vld [vmem:[%s1583 + $0x48] sm:$0xf]
        %v1597 = vld [vmem:[%s1583 + $0x4c] sm:$0xf]
        %v1598 = vld [vmem:[%s1583 + $0x54] sm:$0xf]
        %v1599 = vld [vmem:[%s1583 + $0x58] sm:$0xf]
        %v1600 = vld [vmem:[%s1583 + $0x60] sm:$0xf]
        %v1601 = vld [vmem:[%s1583 + $0x64] sm:$0xf]
        %v1602 = vld [vmem:[%s1583 + $0x6c] sm:$0xf]
        %v1603 = vld [vmem:[%s1583 + $0x70] sm:$0xf]
        %v1604 = vld [vmem:[%s1583 + $0x78] sm:$0xf]
        %v1605 = vld [vmem:[%s1583 + $0x7c] sm:$0xf]
        %v1606 = vld [vmem:[%s1583 + $0x84] sm:$0xf]
        %v1607 = vld [vmem:[%s1583 + $0x88] sm:$0xf]
        %v1608 = vld [vmem:[%s1583 + $0x90] sm:$0xf]
        %v1609 = vld [vmem:[%s1583 + $0x94] sm:$0xf]
        %v1610 = vld [vmem:[%s1583 + $0x9c] sm:$0xf]
        %v1611 = vld [vmem:[%s1583 + $0xa0] sm:$0xf]
        %v1612 = vld [vmem:[%s1583 + $0xa8] sm:$0xf]
        %v1613 = vld [vmem:[%s1583 + $0xac] sm:$0xf]
        %v1614 = vld [vmem:[%s1583 + $0xb4] sm:$0xf]
        %v1615 = vld [vmem:[%s1583 + $0xb8] sm:$0xf]
        %v1616 = vld [vmem:[%s1583 + $0x8] sm:$0x1]
        %v1617 = vld [vmem:[%s1583 + $0x14] sm:$0x1]
        %v1618 = vld [vmem:[%s1583 + $0x20] sm:$0x1]
        %v1619 = vld [vmem:[%s1583 + $0x2c] sm:$0x1]
        %v1620 = vld [vmem:[%s1583 + $0x38] sm:$0x1]
        %v1621 = vld [vmem:[%s1583 + $0x44] sm:$0x1]
        %v1622 = vld [vmem:[%s1583 + $0x50] sm:$0x1]
        %v1623 = vld [vmem:[%s1583 + $0x5c] sm:$0x1]
        %v1624 = vld [vmem:[%s1583 + $0x68] sm:$0x1]
        %v1625 = vld [vmem:[%s1583 + $0x74] sm:$0x1]
        %v1626 = vld [vmem:[%s1583 + $0x80] sm:$0x1]
        %v1627 = vld [vmem:[%s1583 + $0x8c] sm:$0x1]
        %v1628 = vld [vmem:[%s1583 + $0x98] sm:$0x1]
        %v1629 = vld [vmem:[%s1583 + $0xa4] sm:$0x1]
        %v1630 = vld [vmem:[%s1583 + $0xb0] sm:$0x1]
        %v1631 = vld [vmem:[%s1583 + $0xbc] sm:$0x1]
        %v1633 = vshrl.u32 %v1584, 16
        %v1635 = vrot.slane %v1633, 4
        %v1636 = vshll.u32 %v1584, 16
        %v1638 = vrot.slane %v1636, 5
        %v1639 = vor.u32 %v1635, %v1638
        %v1640 = vrot.slane %v1639, 4
        %v1642 = vshll.u32 %v1585, 16
        %v1644 = vrot.slane %v1642, 5
        %v1645 = vsel %vm410, %v1640, %v1644
        %v1646 = vshrl.u32 %v1585, 16
        %v1648 = vrot.slane %v1646, 4
        %v1649 = vor.u32 %v1648, %v1644
        %v1650 = vrot.slane %v1649, 4
        %v1652 = vshll.u32 %v1616, 16
        %v1654 = vrot.slane %v1652, 5
        %v1655 = vsel %vm410, %v1650, %v1654
        %v1657 = vshrl.u32 %v1586, 16
        %v1659 = vrot.slane %v1657, 4
        %v1660 = vshll.u32 %v1586, 16
        %v1662 = vrot.slane %v1660, 5
        %v1663 = vor.u32 %v1659, %v1662
        %v1664 = vrot.slane %v1663, 4
        %v1666 = vshll.u32 %v1587, 16
        %v1668 = vrot.slane %v1666, 5
        %v1669 = vsel %vm410, %v1664, %v1668
        %v1670 = vshrl.u32 %v1587, 16
        %v1672 = vrot.slane %v1670, 4
        %v1673 = vor.u32 %v1672, %v1668
        %v1674 = vrot.slane %v1673, 4
        %v1676 = vshll.u32 %v1617, 16
        %v1678 = vrot.slane %v1676, 5
        %v1679 = vsel %vm410, %v1674, %v1678
        %v1681 = vshrl.u32 %v1588, 16
        %v1683 = vrot.slane %v1681, 4
        %v1684 = vshll.u32 %v1588, 16
        %v1686 = vrot.slane %v1684, 5
        %v1687 = vor.u32 %v1683, %v1686
        %v1688 = vrot.slane %v1687, 4
        %v1690 = vshll.u32 %v1589, 16
        %v1692 = vrot.slane %v1690, 5
        %v1693 = vsel %vm410, %v1688, %v1692
        %v1694 = vshrl.u32 %v1589, 16
        %v1696 = vrot.slane %v1694, 4
        %v1697 = vor.u32 %v1696, %v1692
        %v1698 = vrot.slane %v1697, 4
        %v1700 = vshll.u32 %v1618, 16
        %v1702 = vrot.slane %v1700, 5
        %v1703 = vsel %vm410, %v1698, %v1702
        %v1705 = vshrl.u32 %v1590, 16
        %v1707 = vrot.slane %v1705, 4
        %v1708 = vshll.u32 %v1590, 16
        %v1710 = vrot.slane %v1708, 5
        %v1711 = vor.u32 %v1707, %v1710
        %v1712 = vrot.slane %v1711, 4
        %v1714 = vshll.u32 %v1591, 16
        %v1716 = vrot.slane %v1714, 5
        %v1717 = vsel %vm410, %v1712, %v1716
        %v1718 = vshrl.u32 %v1591, 16
        %v1720 = vrot.slane %v1718, 4
        %v1721 = vor.u32 %v1720, %v1716
        %v1722 = vrot.slane %v1721, 4
        %v1724 = vshll.u32 %v1619, 16
        %v1726 = vrot.slane %v1724, 5
        %v1727 = vsel %vm410, %v1722, %v1726
        %v1729 = vshrl.u32 %v1592, 16
        %v1731 = vrot.slane %v1729, 4
        %v1732 = vshll.u32 %v1592, 16
        %v1734 = vrot.slane %v1732, 5
        %v1735 = vor.u32 %v1731, %v1734
        %v1736 = vrot.slane %v1735, 4
        %v1738 = vshll.u32 %v1593, 16
        %v1740 = vrot.slane %v1738, 5
        %v1741 = vsel %vm410, %v1736, %v1740
        %v1742 = vshrl.u32 %v1593, 16
        %v1744 = vrot.slane %v1742, 4
        %v1745 = vor.u32 %v1744, %v1740
        %v1746 = vrot.slane %v1745, 4
        %v1748 = vshll.u32 %v1620, 16
        %v1750 = vrot.slane %v1748, 5
        %v1751 = vsel %vm410, %v1746, %v1750
        %v1753 = vshrl.u32 %v1594, 16
        %v1755 = vrot.slane %v1753, 4
        %v1756 = vshll.u32 %v1594, 16
        %v1758 = vrot.slane %v1756, 5
        %v1759 = vor.u32 %v1755, %v1758
        %v1760 = vrot.slane %v1759, 4
        %v1762 = vshll.u32 %v1595, 16
        %v1764 = vrot.slane %v1762, 5
        %v1765 = vsel %vm410, %v1760, %v1764
        %v1766 = vshrl.u32 %v1595, 16
        %v1768 = vrot.slane %v1766, 4
        %v1769 = vor.u32 %v1768, %v1764
        %v1770 = vrot.slane %v1769, 4
        %v1772 = vshll.u32 %v1621, 16
        %v1774 = vrot.slane %v1772, 5
        %v1775 = vsel %vm410, %v1770, %v1774
        %v1777 = vshrl.u32 %v1596, 16
        %v1779 = vrot.slane %v1777, 4
        %v1780 = vshll.u32 %v1596, 16
        %v1782 = vrot.slane %v1780, 5
        %v1783 = vor.u32 %v1779, %v1782
        %v1784 = vrot.slane %v1783, 4
        %v1786 = vshll.u32 %v1597, 16
        %v1788 = vrot.slane %v1786, 5
        %v1789 = vsel %vm410, %v1784, %v1788
        %v1790 = vshrl.u32 %v1597, 16
        %v1792 = vrot.slane %v1790, 4
        %v1793 = vor.u32 %v1792, %v1788
        %v1794 = vrot.slane %v1793, 4
        %v1796 = vshll.u32 %v1622, 16
        %v1798 = vrot.slane %v1796, 5
        %v1799 = vsel %vm410, %v1794, %v1798
        %v1801 = vshrl.u32 %v1598, 16
        %v1803 = vrot.slane %v1801, 4
        %v1804 = vshll.u32 %v1598, 16
        %v1806 = vrot.slane %v1804, 5
        %v1807 = vor.u32 %v1803, %v1806
        %v1808 = vrot.slane %v1807, 4
        %v1810 = vshll.u32 %v1599, 16
        %v1812 = vrot.slane %v1810, 5
        %v1813 = vsel %vm410, %v1808, %v1812
        %v1814 = vshrl.u32 %v1599, 16
        %v1816 = vrot.slane %v1814, 4
        %v1817 = vor.u32 %v1816, %v1812
        %v1818 = vrot.slane %v1817, 4
        %v1820 = vshll.u32 %v1623, 16
        %v1822 = vrot.slane %v1820, 5
        %v1823 = vsel %vm410, %v1818, %v1822
        %v1825 = vshrl.u32 %v1600, 16
        %v1827 = vrot.slane %v1825, 4
        %v1828 = vshll.u32 %v1600, 16
        %v1830 = vrot.slane %v1828, 5
        %v1831 = vor.u32 %v1827, %v1830
        %v1832 = vrot.slane %v1831, 4
        %v1834 = vshll.u32 %v1601, 16
        %v1836 = vrot.slane %v1834, 5
        %v1837 = vsel %vm410, %v1832, %v1836
        %v1838 = vshrl.u32 %v1601, 16
        %v1840 = vrot.slane %v1838, 4
        %v1841 = vor.u32 %v1840, %v1836
        %v1842 = vrot.slane %v1841, 4
        %v1844 = vshll.u32 %v1624, 16
        %v1846 = vrot.slane %v1844, 5
        %v1847 = vsel %vm410, %v1842, %v1846
        %v1849 = vshrl.u32 %v1602, 16
        %v1851 = vrot.slane %v1849, 4
        %v1852 = vshll.u32 %v1602, 16
        %v1854 = vrot.slane %v1852, 5
        %v1855 = vor.u32 %v1851, %v1854
        %v1856 = vrot.slane %v1855, 4
        %v1858 = vshll.u32 %v1603, 16
        %v1860 = vrot.slane %v1858, 5
        %v1861 = vsel %vm410, %v1856, %v1860
        %v1862 = vshrl.u32 %v1603, 16
        %v1864 = vrot.slane %v1862, 4
        %v1865 = vor.u32 %v1864, %v1860
        %v1866 = vrot.slane %v1865, 4
        %v1868 = vshll.u32 %v1625, 16
        %v1870 = vrot.slane %v1868, 5
        %v1871 = vsel %vm410, %v1866, %v1870
        %v1873 = vshrl.u32 %v1604, 16
        %v1875 = vrot.slane %v1873, 4
        %v1876 = vshll.u32 %v1604, 16
        %v1878 = vrot.slane %v1876, 5
        %v1879 = vor.u32 %v1875, %v1878
        %v1880 = vrot.slane %v1879, 4
        %v1882 = vshll.u32 %v1605, 16
        %v1884 = vrot.slane %v1882, 5
        %v1885 = vsel %vm410, %v1880, %v1884
        %v1886 = vshrl.u32 %v1605, 16
        %v1888 = vrot.slane %v1886, 4
        %v1889 = vor.u32 %v1888, %v1884
        %v1890 = vrot.slane %v1889, 4
        %v1892 = vshll.u32 %v1626, 16
        %v1894 = vrot.slane %v1892, 5
        %v1895 = vsel %vm410, %v1890, %v1894
        %v1897 = vshrl.u32 %v1606, 16
        %v1899 = vrot.slane %v1897, 4
        %v1900 = vshll.u32 %v1606, 16
        %v1902 = vrot.slane %v1900, 5
        %v1903 = vor.u32 %v1899, %v1902
        %v1904 = vrot.slane %v1903, 4
        %v1906 = vshll.u32 %v1607, 16
        %v1908 = vrot.slane %v1906, 5
        %v1909 = vsel %vm410, %v1904, %v1908
        %v1910 = vshrl.u32 %v1607, 16
        %v1912 = vrot.slane %v1910, 4
        %v1913 = vor.u32 %v1912, %v1908
        %v1914 = vrot.slane %v1913, 4
        %v1916 = vshll.u32 %v1627, 16
        %v1918 = vrot.slane %v1916, 5
        %v1919 = vsel %vm410, %v1914, %v1918
        %v1921 = vshrl.u32 %v1608, 16
        %v1923 = vrot.slane %v1921, 4
        %v1924 = vshll.u32 %v1608, 16
        %v1926 = vrot.slane %v1924, 5
        %v1927 = vor.u32 %v1923, %v1926
        %v1928 = vrot.slane %v1927, 4
        %v1930 = vshll.u32 %v1609, 16
        %v1932 = vrot.slane %v1930, 5
        %v1933 = vsel %vm410, %v1928, %v1932
        %v1934 = vshrl.u32 %v1609, 16
        %v1936 = vrot.slane %v1934, 4
        %v1937 = vor.u32 %v1936, %v1932
        %v1938 = vrot.slane %v1937, 4
        %v1940 = vshll.u32 %v1628, 16
        %v1942 = vrot.slane %v1940, 5
        %v1943 = vsel %vm410, %v1938, %v1942
        %v1945 = vshrl.u32 %v1610, 16
        %v1947 = vrot.slane %v1945, 4
        %v1948 = vshll.u32 %v1610, 16
        %v1950 = vrot.slane %v1948, 5
        %v1951 = vor.u32 %v1947, %v1950
        %v1952 = vrot.slane %v1951, 4
        %v1954 = vshll.u32 %v1611, 16
        %v1956 = vrot.slane %v1954, 5
        %v1957 = vsel %vm410, %v1952, %v1956
        %v1958 = vshrl.u32 %v1611, 16
        %v1960 = vrot.slane %v1958, 4
        %v1961 = vor.u32 %v1960, %v1956
        %v1962 = vrot.slane %v1961, 4
        %v1964 = vshll.u32 %v1629, 16
        %v1966 = vrot.slane %v1964, 5
        %v1967 = vsel %vm410, %v1962, %v1966
        %v1969 = vshrl.u32 %v1612, 16
        %v1971 = vrot.slane %v1969, 4
        %v1972 = vshll.u32 %v1612, 16
        %v1974 = vrot.slane %v1972, 5
        %v1975 = vor.u32 %v1971, %v1974
        %v1976 = vrot.slane %v1975, 4
        %v1978 = vshll.u32 %v1613, 16
        %v1980 = vrot.slane %v1978, 5
        %v1981 = vsel %vm410, %v1976, %v1980
        %v1982 = vshrl.u32 %v1613, 16
        %v1984 = vrot.slane %v1982, 4
        %v1985 = vor.u32 %v1984, %v1980
        %v1986 = vrot.slane %v1985, 4
        %v1988 = vshll.u32 %v1630, 16
        %v1990 = vrot.slane %v1988, 5
        %v1991 = vsel %vm410, %v1986, %v1990
        %v1993 = vshrl.u32 %v1614, 16
        %v1995 = vrot.slane %v1993, 4
        %v1996 = vshll.u32 %v1614, 16
        %v1998 = vrot.slane %v1996, 5
        %v1999 = vor.u32 %v1995, %v1998
        %v2000 = vrot.slane %v1999, 4
        %v2002 = vshll.u32 %v1615, 16
        %v2004 = vrot.slane %v2002, 5
        %v2005 = vsel %vm410, %v2000, %v2004
        %v2006 = vshrl.u32 %v1615, 16
        %v2008 = vrot.slane %v2006, 4
        %v2009 = vor.u32 %v2008, %v2004
        %v2010 = vrot.slane %v2009, 4
        %v2012 = vshll.u32 %v1631, 16
        %v2014 = vrot.slane %v2012, 5
        %v2015 = vsel %vm410, %v2010, %v2014
        %v2016 = vld [vmem:[%s1583] sm:$0xe]
        %v2017 = vld [vmem:[%s1583 + $0xc] sm:$0xe]
        %v2018 = vld [vmem:[%s1583 + $0x18] sm:$0xe]
        %v2019 = vld [vmem:[%s1583 + $0x24] sm:$0xe]
        %v2020 = vld [vmem:[%s1583 + $0x30] sm:$0xe]
        %v2021 = vld [vmem:[%s1583 + $0x3c] sm:$0xe]
        %v2022 = vld [vmem:[%s1583 + $0x48] sm:$0xe]
        %v2023 = vld [vmem:[%s1583 + $0x54] sm:$0xe]
        %v2024 = vld [vmem:[%s1583 + $0x60] sm:$0xe]
        %v2025 = vld [vmem:[%s1583 + $0x6c] sm:$0xe]
        %v2026 = vld [vmem:[%s1583 + $0x78] sm:$0xe]
        %v2027 = vld [vmem:[%s1583 + $0x84] sm:$0xe]
        %v2028 = vld [vmem:[%s1583 + $0x90] sm:$0xe]
        %v2029 = vld [vmem:[%s1583 + $0x9c] sm:$0xe]
        %v2030 = vld [vmem:[%s1583 + $0xa8] sm:$0xe]
        %v2031 = vld [vmem:[%s1583 + $0xb4] sm:$0xe]
        %v2080 = vrot.slane %v2016, 5
        %v2081 = vrot.slane %v2080, 4
        %v2082 = vrot.slane %v1585, 5
        %v2083 = vsel %vm861, %v2081, %v2082
        %v2084 = vrot.slane %v2082, 4
        %v2085 = vrot.slane %v1616, 5
        %v2086 = vsel %vm861, %v2084, %v2085
        %v2087 = vrot.slane %v2017, 5
        %v2088 = vrot.slane %v2087, 4
        %v2089 = vrot.slane %v1587, 5
        %v2090 = vsel %vm861, %v2088, %v2089
        %v2091 = vrot.slane %v2089, 4
        %v2092 = vrot.slane %v1617, 5
        %v2093 = vsel %vm861, %v2091, %v2092
        %v2094 = vrot.slane %v2018, 5
        %v2095 = vrot.slane %v2094, 4
        %v2096 = vrot.slane %v1589, 5
        %v2097 = vsel %vm861, %v2095, %v2096
        %v2098 = vrot.slane %v2096, 4
        %v2099 = vrot.slane %v1618, 5
        %v2100 = vsel %vm861, %v2098, %v2099
        %v2101 = vrot.slane %v2019, 5
        %v2102 = vrot.slane %v2101, 4
        %v2103 = vrot.slane %v1591, 5
        %v2104 = vsel %vm861, %v2102, %v2103
        %v2105 = vrot.slane %v2103, 4
        %v2106 = vrot.slane %v1619, 5
        %v2107 = vsel %vm861, %v2105, %v2106
        %v2108 = vrot.slane %v2020, 5
        %v2109 = vrot.slane %v2108, 4
        %v2110 = vrot.slane %v1593, 5
        %v2111 = vsel %vm861, %v2109, %v2110
        %v2112 = vrot.slane %v2110, 4
        %v2113 = vrot.slane %v1620, 5
        %v2114 = vsel %vm861, %v2112, %v2113
        %v2115 = vrot.slane %v2021, 5
        %v2116 = vrot.slane %v2115, 4
        %v2117 = vrot.slane %v1595, 5
        %v2118 = vsel %vm861, %v2116, %v2117
        %v2119 = vrot.slane %v2117, 4
        %v2120 = vrot.slane %v1621, 5
        %v2121 = vsel %vm861, %v2119, %v2120
        %v2122 = vrot.slane %v2022, 5
        %v2123 = vrot.slane %v2122, 4
        %v2124 = vrot.slane %v1597, 5
        %v2125 = vsel %vm861, %v2123, %v2124
        %v2126 = vrot.slane %v2124, 4
        %v2127 = vrot.slane %v1622, 5
        %v2128 = vsel %vm861, %v2126, %v2127
        %v2129 = vrot.slane %v2023, 5
        %v2130 = vrot.slane %v2129, 4
        %v2131 = vrot.slane %v1599, 5
        %v2132 = vsel %vm861, %v2130, %v2131
        %v2133 = vrot.slane %v2131, 4
        %v2134 = vrot.slane %v1623, 5
        %v2135 = vsel %vm861, %v2133, %v2134
        %v2136 = vrot.slane %v2024, 5
        %v2137 = vrot.slane %v2136, 4
        %v2138 = vrot.slane %v1601, 5
        %v2139 = vsel %vm861, %v2137, %v2138
        %v2140 = vrot.slane %v2138, 4
        %v2141 = vrot.slane %v1624, 5
        %v2142 = vsel %vm861, %v2140, %v2141
        %v2143 = vrot.slane %v2025, 5
        %v2144 = vrot.slane %v2143, 4
        %v2145 = vrot.slane %v1603, 5
        %v2146 = vsel %vm861, %v2144, %v2145
        %v2147 = vrot.slane %v2145, 4
        %v2148 = vrot.slane %v1625, 5
        %v2149 = vsel %vm861, %v2147, %v2148
        %v2150 = vrot.slane %v2026, 5
        %v2151 = vrot.slane %v2150, 4
        %v2152 = vrot.slane %v1605, 5
        %v2153 = vsel %vm861, %v2151, %v2152
        %v2154 = vrot.slane %v2152, 4
        %v2155 = vrot.slane %v1626, 5
        %v2156 = vsel %vm861, %v2154, %v2155
        %v2157 = vrot.slane %v2027, 5
        %v2158 = vrot.slane %v2157, 4
        %v2159 = vrot.slane %v1607, 5
        %v2160 = vsel %vm861, %v2158, %v2159
        %v2161 = vrot.slane %v2159, 4
        %v2162 = vrot.slane %v1627, 5
        %v2163 = vsel %vm861, %v2161, %v2162
        %v2164 = vrot.slane %v2028, 5
        %v2165 = vrot.slane %v2164, 4
        %v2166 = vrot.slane %v1609, 5
        %v2167 = vsel %vm861, %v2165, %v2166
        %v2168 = vrot.slane %v2166, 4
        %v2169 = vrot.slane %v1628, 5
        %v2170 = vsel %vm861, %v2168, %v2169
        %v2171 = vrot.slane %v2029, 5
        %v2172 = vrot.slane %v2171, 4
        %v2173 = vrot.slane %v1611, 5
        %v2174 = vsel %vm861, %v2172, %v2173
        %v2175 = vrot.slane %v2173, 4
        %v2176 = vrot.slane %v1629, 5
        %v2177 = vsel %vm861, %v2175, %v2176
        %v2178 = vrot.slane %v2030, 5
        %v2179 = vrot.slane %v2178, 4
        %v2180 = vrot.slane %v1613, 5
        %v2181 = vsel %vm861, %v2179, %v2180
        %v2182 = vrot.slane %v2180, 4
        %v2183 = vrot.slane %v1630, 5
        %v2184 = vsel %vm861, %v2182, %v2183
        %v2185 = vrot.slane %v2031, 5
        %v2186 = vrot.slane %v2185, 4
        %v2187 = vrot.slane %v1615, 5
        %v2188 = vsel %vm861, %v2186, %v2187
        %v2189 = vrot.slane %v2187, 4
        %v2190 = vrot.slane %v1631, 5
        %v2191 = vsel %vm861, %v2189, %v2190
        %v2208 = vunpack.c.l.b16 %v360
        %v2209 = vunpack.c.l.b16 %v361
        %v2210 = vunpack.c.l.b16 %v362
        %v2211 = vunpack.c.l.b16 %v363
        %v2212 = vunpack.c.l.b16 %v364
        %v2213 = vunpack.c.l.b16 %v365
        %v2214 = vunpack.c.l.b16 %v366
        %v2215 = vunpack.c.l.b16 %v367
        %v2216 = vunpack.c.l.b16 %v368
        %v2217 = vunpack.c.l.b16 %v369
        %v2218 = vunpack.c.l.b16 %v370
        %v2219 = vunpack.c.l.b16 %v371
        %v2220 = vunpack.c.l.b16 %v372
        %v2221 = vunpack.c.l.b16 %v373
        %v2222 = vunpack.c.l.b16 %v374
        %v2223 = vunpack.c.l.b16 %v375
        %v2224 = vunpack.c.l.b16 %v376
        %v2225 = vunpack.c.l.b16 %v377
        %v2226 = vunpack.c.l.b16 %v378
        %v2227 = vunpack.c.l.b16 %v379
        %v2228 = vunpack.c.l.b16 %v380
        %v2229 = vunpack.c.l.b16 %v381
        %v2230 = vunpack.c.l.b16 %v382
        %v2231 = vunpack.c.l.b16 %v383
        %v2232 = vunpack.c.l.b16 %v384
        %v2233 = vunpack.c.l.b16 %v385
        %v2234 = vunpack.c.l.b16 %v386
        %v2235 = vunpack.c.l.b16 %v387
        %v2236 = vunpack.c.l.b16 %v388
        %v2237 = vunpack.c.l.b16 %v389
        %v2238 = vunpack.c.l.b16 %v390
        %v2239 = vunpack.c.l.b16 %v391
        %v2240 = vpack.c.b16 %v2209, %v2208
        %v2241 = vpack.c.b16 %v2211, %v2210
        %v2242 = vpack.c.b16 %v2213, %v2212
        %v2243 = vpack.c.b16 %v2215, %v2214
        %v2244 = vpack.c.b16 %v2217, %v2216
        %v2245 = vpack.c.b16 %v2219, %v2218
        %v2246 = vpack.c.b16 %v2221, %v2220
        %v2247 = vpack.c.b16 %v2223, %v2222
        %v2248 = vpack.c.b16 %v2225, %v2224
        %v2249 = vpack.c.b16 %v2227, %v2226
        %v2250 = vpack.c.b16 %v2229, %v2228
        %v2251 = vpack.c.b16 %v2231, %v2230
        %v2252 = vpack.c.b16 %v2233, %v2232
        %v2253 = vpack.c.b16 %v2235, %v2234
        %v2254 = vpack.c.b16 %v2237, %v2236
        %v2255 = vpack.c.b16 %v2239, %v2238
        %v2272 = vunpack.c.l.b16 %v424
        %v2273 = vunpack.c.l.b16 %v434
        %v2274 = vunpack.c.l.b16 %v448
        %v2275 = vunpack.c.l.b16 %v458
        %v2276 = vunpack.c.l.b16 %v472
        %v2277 = vunpack.c.l.b16 %v482
        %v2278 = vunpack.c.l.b16 %v496
        %v2279 = vunpack.c.l.b16 %v506
        %v2280 = vunpack.c.l.b16 %v520
        %v2281 = vunpack.c.l.b16 %v530
        %v2282 = vunpack.c.l.b16 %v544
        %v2283 = vunpack.c.l.b16 %v554
        %v2284 = vunpack.c.l.b16 %v568
        %v2285 = vunpack.c.l.b16 %v578
        %v2286 = vunpack.c.l.b16 %v592
        %v2287 = vunpack.c.l.b16 %v602
        %v2288 = vunpack.c.l.b16 %v616
        %v2289 = vunpack.c.l.b16 %v626
        %v2290 = vunpack.c.l.b16 %v640
        %v2291 = vunpack.c.l.b16 %v650
        %v2292 = vunpack.c.l.b16 %v664
        %v2293 = vunpack.c.l.b16 %v674
        %v2294 = vunpack.c.l.b16 %v688
        %v2295 = vunpack.c.l.b16 %v698
        %v2296 = vunpack.c.l.b16 %v712
        %v2297 = vunpack.c.l.b16 %v722
        %v2298 = vunpack.c.l.b16 %v736
        %v2299 = vunpack.c.l.b16 %v746
        %v2300 = vunpack.c.l.b16 %v760
        %v2301 = vunpack.c.l.b16 %v770
        %v2302 = vunpack.c.l.b16 %v784
        %v2303 = vunpack.c.l.b16 %v794
        %v2304 = vpack.c.b16 %v2273, %v2272
        %v2305 = vpack.c.b16 %v2275, %v2274
        %v2306 = vpack.c.b16 %v2277, %v2276
        %v2307 = vpack.c.b16 %v2279, %v2278
        %v2308 = vpack.c.b16 %v2281, %v2280
        %v2309 = vpack.c.b16 %v2283, %v2282
        %v2310 = vpack.c.b16 %v2285, %v2284
        %v2311 = vpack.c.b16 %v2287, %v2286
        %v2312 = vpack.c.b16 %v2289, %v2288
        %v2313 = vpack.c.b16 %v2291, %v2290
        %v2314 = vpack.c.b16 %v2293, %v2292
        %v2315 = vpack.c.b16 %v2295, %v2294
        %v2316 = vpack.c.b16 %v2297, %v2296
        %v2317 = vpack.c.b16 %v2299, %v2298
        %v2318 = vpack.c.b16 %v2301, %v2300
        %v2319 = vpack.c.b16 %v2303, %v2302
        %v2336 = vunpack.c.l.b16 %v865
        %v2337 = vunpack.c.l.b16 %v868
        %v2338 = vunpack.c.l.b16 %v872
        %v2339 = vunpack.c.l.b16 %v875
        %v2340 = vunpack.c.l.b16 %v879
        %v2341 = vunpack.c.l.b16 %v882
        %v2342 = vunpack.c.l.b16 %v886
        %v2343 = vunpack.c.l.b16 %v889
        %v2344 = vunpack.c.l.b16 %v893
        %v2345 = vunpack.c.l.b16 %v896
        %v2346 = vunpack.c.l.b16 %v900
        %v2347 = vunpack.c.l.b16 %v903
        %v2348 = vunpack.c.l.b16 %v907
        %v2349 = vunpack.c.l.b16 %v910
        %v2350 = vunpack.c.l.b16 %v914
        %v2351 = vunpack.c.l.b16 %v917
        %v2352 = vunpack.c.l.b16 %v921
        %v2353 = vunpack.c.l.b16 %v924
        %v2354 = vunpack.c.l.b16 %v928
        %v2355 = vunpack.c.l.b16 %v931
        %v2356 = vunpack.c.l.b16 %v935
        %v2357 = vunpack.c.l.b16 %v938
        %v2358 = vunpack.c.l.b16 %v942
        %v2359 = vunpack.c.l.b16 %v945
        %v2360 = vunpack.c.l.b16 %v949
        %v2361 = vunpack.c.l.b16 %v952
        %v2362 = vunpack.c.l.b16 %v956
        %v2363 = vunpack.c.l.b16 %v959
        %v2364 = vunpack.c.l.b16 %v963
        %v2365 = vunpack.c.l.b16 %v966
        %v2366 = vunpack.c.l.b16 %v970
        %v2367 = vunpack.c.l.b16 %v973
        %v2368 = vpack.c.b16 %v2337, %v2336
        %v2369 = vpack.c.b16 %v2339, %v2338
        %v2370 = vpack.c.b16 %v2341, %v2340
        %v2371 = vpack.c.b16 %v2343, %v2342
        %v2372 = vpack.c.b16 %v2345, %v2344
        %v2373 = vpack.c.b16 %v2347, %v2346
        %v2374 = vpack.c.b16 %v2349, %v2348
        %v2375 = vpack.c.b16 %v2351, %v2350
        %v2376 = vpack.c.b16 %v2353, %v2352
        %v2377 = vpack.c.b16 %v2355, %v2354
        %v2378 = vpack.c.b16 %v2357, %v2356
        %v2379 = vpack.c.b16 %v2359, %v2358
        %v2380 = vpack.c.b16 %v2361, %v2360
        %v2381 = vpack.c.b16 %v2363, %v2362
        %v2382 = vpack.c.b16 %v2365, %v2364
        %v2383 = vpack.c.b16 %v2367, %v2366
        %v2416 = vunpack.c.l.b16 %v975
        %v2417 = vunpack.c.l.b16 %v976
        %v2418 = vunpack.c.l.b16 %v977
        %v2419 = vunpack.c.l.b16 %v978
        %v2420 = vunpack.c.l.b16 %v979
        %v2421 = vunpack.c.l.b16 %v980
        %v2422 = vunpack.c.l.b16 %v981
        %v2423 = vunpack.c.l.b16 %v982
        %v2424 = vunpack.c.l.b16 %v983
        %v2425 = vunpack.c.l.b16 %v984
        %v2426 = vunpack.c.l.b16 %v985
        %v2427 = vunpack.c.l.b16 %v986
        %v2428 = vunpack.c.l.b16 %v987
        %v2429 = vunpack.c.l.b16 %v988
        %v2430 = vunpack.c.l.b16 %v989
        %v2431 = vunpack.c.l.b16 %v990
        %v2432 = vunpack.c.l.b16 %v991
        %v2433 = vunpack.c.l.b16 %v992
        %v2434 = vunpack.c.l.b16 %v993
        %v2435 = vunpack.c.l.b16 %v994
        %v2436 = vunpack.c.l.b16 %v995
        %v2437 = vunpack.c.l.b16 %v996
        %v2438 = vunpack.c.l.b16 %v997
        %v2439 = vunpack.c.l.b16 %v998
        %v2440 = vunpack.c.l.b16 %v999
        %v2441 = vunpack.c.l.b16 %v1000
        %v2442 = vunpack.c.l.b16 %v1001
        %v2443 = vunpack.c.l.b16 %v1002
        %v2444 = vunpack.c.l.b16 %v1003
        %v2445 = vunpack.c.l.b16 %v1004
        %v2446 = vunpack.c.l.b16 %v1005
        %v2447 = vunpack.c.l.b16 %v1006
        %v2448 = vpack.c.b16 %v2417, %v2416
        %v2449 = vpack.c.b16 %v2419, %v2418
        %v2450 = vpack.c.b16 %v2421, %v2420
        %v2451 = vpack.c.b16 %v2423, %v2422
        %v2452 = vpack.c.b16 %v2425, %v2424
        %v2453 = vpack.c.b16 %v2427, %v2426
        %v2454 = vpack.c.b16 %v2429, %v2428
        %v2455 = vpack.c.b16 %v2431, %v2430
        %v2456 = vpack.c.b16 %v2433, %v2432
        %v2457 = vpack.c.b16 %v2435, %v2434
        %v2458 = vpack.c.b16 %v2437, %v2436
        %v2459 = vpack.c.b16 %v2439, %v2438
        %v2460 = vpack.c.b16 %v2441, %v2440
        %v2461 = vpack.c.b16 %v2443, %v2442
        %v2462 = vpack.c.b16 %v2445, %v2444
        %v2463 = vpack.c.b16 %v2447, %v2446
        %v2480 = vunpack.c.l.b16 %v1036
        %v2481 = vunpack.c.l.b16 %v1046
        %v2482 = vunpack.c.l.b16 %v1060
        %v2483 = vunpack.c.l.b16 %v1070
        %v2484 = vunpack.c.l.b16 %v1084
        %v2485 = vunpack.c.l.b16 %v1094
        %v2486 = vunpack.c.l.b16 %v1108
        %v2487 = vunpack.c.l.b16 %v1118
        %v2488 = vunpack.c.l.b16 %v1132
        %v2489 = vunpack.c.l.b16 %v1142
        %v2490 = vunpack.c.l.b16 %v1156
        %v2491 = vunpack.c.l.b16 %v1166
        %v2492 = vunpack.c.l.b16 %v1180
        %v2493 = vunpack.c.l.b16 %v1190
        %v2494 = vunpack.c.l.b16 %v1204
        %v2495 = vunpack.c.l.b16 %v1214
        %v2496 = vunpack.c.l.b16 %v1228
        %v2497 = vunpack.c.l.b16 %v1238
        %v2498 = vunpack.c.l.b16 %v1252
        %v2499 = vunpack.c.l.b16 %v1262
        %v2500 = vunpack.c.l.b16 %v1276
        %v2501 = vunpack.c.l.b16 %v1286
        %v2502 = vunpack.c.l.b16 %v1300
        %v2503 = vunpack.c.l.b16 %v1310
        %v2504 = vunpack.c.l.b16 %v1324
        %v2505 = vunpack.c.l.b16 %v1334
        %v2506 = vunpack.c.l.b16 %v1348
        %v2507 = vunpack.c.l.b16 %v1358
        %v2508 = vunpack.c.l.b16 %v1372
        %v2509 = vunpack.c.l.b16 %v1382
        %v2510 = vunpack.c.l.b16 %v1396
        %v2511 = vunpack.c.l.b16 %v1406
        %v2512 = vpack.c.b16 %v2481, %v2480
        %v2513 = vpack.c.b16 %v2483, %v2482
        %v2514 = vpack.c.b16 %v2485, %v2484
        %v2515 = vpack.c.b16 %v2487, %v2486
        %v2516 = vpack.c.b16 %v2489, %v2488
        %v2517 = vpack.c.b16 %v2491, %v2490
        %v2518 = vpack.c.b16 %v2493, %v2492
        %v2519 = vpack.c.b16 %v2495, %v2494
        %v2520 = vpack.c.b16 %v2497, %v2496
        %v2521 = vpack.c.b16 %v2499, %v2498
        %v2522 = vpack.c.b16 %v2501, %v2500
        %v2523 = vpack.c.b16 %v2503, %v2502
        %v2524 = vpack.c.b16 %v2505, %v2504
        %v2525 = vpack.c.b16 %v2507, %v2506
        %v2526 = vpack.c.b16 %v2509, %v2508
        %v2527 = vpack.c.b16 %v2511, %v2510
        %v2544 = vunpack.c.l.b16 %v1474
        %v2545 = vunpack.c.l.b16 %v1477
        %v2546 = vunpack.c.l.b16 %v1481
        %v2547 = vunpack.c.l.b16 %v1484
        %v2548 = vunpack.c.l.b16 %v1488
        %v2549 = vunpack.c.l.b16 %v1491
        %v2550 = vunpack.c.l.b16 %v1495
        %v2551 = vunpack.c.l.b16 %v1498
        %v2552 = vunpack.c.l.b16 %v1502
        %v2553 = vunpack.c.l.b16 %v1505
        %v2554 = vunpack.c.l.b16 %v1509
        %v2555 = vunpack.c.l.b16 %v1512
        %v2556 = vunpack.c.l.b16 %v1516
        %v2557 = vunpack.c.l.b16 %v1519
        %v2558 = vunpack.c.l.b16 %v1523
        %v2559 = vunpack.c.l.b16 %v1526
        %v2560 = vunpack.c.l.b16 %v1530
        %v2561 = vunpack.c.l.b16 %v1533
        %v2562 = vunpack.c.l.b16 %v1537
        %v2563 = vunpack.c.l.b16 %v1540
        %v2564 = vunpack.c.l.b16 %v1544
        %v2565 = vunpack.c.l.b16 %v1547
        %v2566 = vunpack.c.l.b16 %v1551
        %v2567 = vunpack.c.l.b16 %v1554
        %v2568 = vunpack.c.l.b16 %v1558
        %v2569 = vunpack.c.l.b16 %v1561
        %v2570 = vunpack.c.l.b16 %v1565
        %v2571 = vunpack.c.l.b16 %v1568
        %v2572 = vunpack.c.l.b16 %v1572
        %v2573 = vunpack.c.l.b16 %v1575
        %v2574 = vunpack.c.l.b16 %v1579
        %v2575 = vunpack.c.l.b16 %v1582
        %v2576 = vpack.c.b16 %v2545, %v2544
        %v2577 = vpack.c.b16 %v2547, %v2546
        %v2578 = vpack.c.b16 %v2549, %v2548
        %v2579 = vpack.c.b16 %v2551, %v2550
        %v2580 = vpack.c.b16 %v2553, %v2552
        %v2581 = vpack.c.b16 %v2555, %v2554
        %v2582 = vpack.c.b16 %v2557, %v2556
        %v2583 = vpack.c.b16 %v2559, %v2558
        %v2584 = vpack.c.b16 %v2561, %v2560
        %v2585 = vpack.c.b16 %v2563, %v2562
        %v2586 = vpack.c.b16 %v2565, %v2564
        %v2587 = vpack.c.b16 %v2567, %v2566
        %v2588 = vpack.c.b16 %v2569, %v2568
        %v2589 = vpack.c.b16 %v2571, %v2570
        %v2590 = vpack.c.b16 %v2573, %v2572
        %v2591 = vpack.c.b16 %v2575, %v2574
        %v2624 = vunpack.c.l.b16 %v1584
        %v2625 = vunpack.c.l.b16 %v1585
        %v2626 = vunpack.c.l.b16 %v1586
        %v2627 = vunpack.c.l.b16 %v1587
        %v2628 = vunpack.c.l.b16 %v1588
        %v2629 = vunpack.c.l.b16 %v1589
        %v2630 = vunpack.c.l.b16 %v1590
        %v2631 = vunpack.c.l.b16 %v1591
        %v2632 = vunpack.c.l.b16 %v1592
        %v2633 = vunpack.c.l.b16 %v1593
        %v2634 = vunpack.c.l.b16 %v1594
        %v2635 = vunpack.c.l.b16 %v1595
        %v2636 = vunpack.c.l.b16 %v1596
        %v2637 = vunpack.c.l.b16 %v1597
        %v2638 = vunpack.c.l.b16 %v1598
        %v2639 = vunpack.c.l.b16 %v1599
        %v2640 = vunpack.c.l.b16 %v1600
        %v2641 = vunpack.c.l.b16 %v1601
        %v2642 = vunpack.c.l.b16 %v1602
        %v2643 = vunpack.c.l.b16 %v1603
        %v2644 = vunpack.c.l.b16 %v1604
        %v2645 = vunpack.c.l.b16 %v1605
        %v2646 = vunpack.c.l.b16 %v1606
        %v2647 = vunpack.c.l.b16 %v1607
        %v2648 = vunpack.c.l.b16 %v1608
        %v2649 = vunpack.c.l.b16 %v1609
        %v2650 = vunpack.c.l.b16 %v1610
        %v2651 = vunpack.c.l.b16 %v1611
        %v2652 = vunpack.c.l.b16 %v1612
        %v2653 = vunpack.c.l.b16 %v1613
        %v2654 = vunpack.c.l.b16 %v1614
        %v2655 = vunpack.c.l.b16 %v1615
        %v2656 = vpack.c.b16 %v2625, %v2624
        %v2657 = vpack.c.b16 %v2627, %v2626
        %v2658 = vpack.c.b16 %v2629, %v2628
        %v2659 = vpack.c.b16 %v2631, %v2630
        %v2660 = vpack.c.b16 %v2633, %v2632
        %v2661 = vpack.c.b16 %v2635, %v2634
        %v2662 = vpack.c.b16 %v2637, %v2636
        %v2663 = vpack.c.b16 %v2639, %v2638
        %v2664 = vpack.c.b16 %v2641, %v2640
        %v2665 = vpack.c.b16 %v2643, %v2642
        %v2666 = vpack.c.b16 %v2645, %v2644
        %v2667 = vpack.c.b16 %v2647, %v2646
        %v2668 = vpack.c.b16 %v2649, %v2648
        %v2669 = vpack.c.b16 %v2651, %v2650
        %v2670 = vpack.c.b16 %v2653, %v2652
        %v2671 = vpack.c.b16 %v2655, %v2654
        %v2688 = vunpack.c.l.b16 %v1645
        %v2689 = vunpack.c.l.b16 %v1655
        %v2690 = vunpack.c.l.b16 %v1669
        %v2691 = vunpack.c.l.b16 %v1679
        %v2692 = vunpack.c.l.b16 %v1693
        %v2693 = vunpack.c.l.b16 %v1703
        %v2694 = vunpack.c.l.b16 %v1717
        %v2695 = vunpack.c.l.b16 %v1727
        %v2696 = vunpack.c.l.b16 %v1741
        %v2697 = vunpack.c.l.b16 %v1751
        %v2698 = vunpack.c.l.b16 %v1765
        %v2699 = vunpack.c.l.b16 %v1775
        %v2700 = vunpack.c.l.b16 %v1789
        %v2701 = vunpack.c.l.b16 %v1799
        %v2702 = vunpack.c.l.b16 %v1813
        %v2703 = vunpack.c.l.b16 %v1823
        %v2704 = vunpack.c.l.b16 %v1837
        %v2705 = vunpack.c.l.b16 %v1847
        %v2706 = vunpack.c.l.b16 %v1861
        %v2707 = vunpack.c.l.b16 %v1871
        %v2708 = vunpack.c.l.b16 %v1885
        %v2709 = vunpack.c.l.b16 %v1895
        %v2710 = vunpack.c.l.b16 %v1909
        %v2711 = vunpack.c.l.b16 %v1919
        %v2712 = vunpack.c.l.b16 %v1933
        %v2713 = vunpack.c.l.b16 %v1943
        %v2714 = vunpack.c.l.b16 %v1957
        %v2715 = vunpack.c.l.b16 %v1967
        %v2716 = vunpack.c.l.b16 %v1981
        %v2717 = vunpack.c.l.b16 %v1991
        %v2718 = vunpack.c.l.b16 %v2005
        %v2719 = vunpack.c.l.b16 %v2015
        %v2720 = vpack.c.b16 %v2689, %v2688
        %v2721 = vpack.c.b16 %v2691, %v2690
        %v2722 = vpack.c.b16 %v2693, %v2692
        %v2723 = vpack.c.b16 %v2695, %v2694
        %v2724 = vpack.c.b16 %v2697, %v2696
        %v2725 = vpack.c.b16 %v2699, %v2698
        %v2726 = vpack.c.b16 %v2701, %v2700
        %v2727 = vpack.c.b16 %v2703, %v2702
        %v2728 = vpack.c.b16 %v2705, %v2704
        %v2729 = vpack.c.b16 %v2707, %v2706
        %v2730 = vpack.c.b16 %v2709, %v2708
        %v2731 = vpack.c.b16 %v2711, %v2710
        %v2732 = vpack.c.b16 %v2713, %v2712
        %v2733 = vpack.c.b16 %v2715, %v2714
        %v2734 = vpack.c.b16 %v2717, %v2716
        %v2735 = vpack.c.b16 %v2719, %v2718
        %v2752 = vunpack.c.l.b16 %v2083
        %v2753 = vunpack.c.l.b16 %v2086
        %v2754 = vunpack.c.l.b16 %v2090
        %v2755 = vunpack.c.l.b16 %v2093
        %v2756 = vunpack.c.l.b16 %v2097
        %v2757 = vunpack.c.l.b16 %v2100
        %v2758 = vunpack.c.l.b16 %v2104
        %v2759 = vunpack.c.l.b16 %v2107
        %v2760 = vunpack.c.l.b16 %v2111
        %v2761 = vunpack.c.l.b16 %v2114
        %v2762 = vunpack.c.l.b16 %v2118
        %v2763 = vunpack.c.l.b16 %v2121
        %v2764 = vunpack.c.l.b16 %v2125
        %v2765 = vunpack.c.l.b16 %v2128
        %v2766 = vunpack.c.l.b16 %v2132
        %v2767 = vunpack.c.l.b16 %v2135
        %v2768 = vunpack.c.l.b16 %v2139
        %v2769 = vunpack.c.l.b16 %v2142
        %v2770 = vunpack.c.l.b16 %v2146
        %v2771 = vunpack.c.l.b16 %v2149
        %v2772 = vunpack.c.l.b16 %v2153
        %v2773 = vunpack.c.l.b16 %v2156
        %v2774 = vunpack.c.l.b16 %v2160
        %v2775 = vunpack.c.l.b16 %v2163
        %v2776 = vunpack.c.l.b16 %v2167
        %v2777 = vunpack.c.l.b16 %v2170
        %v2778 = vunpack.c.l.b16 %v2174
        %v2779 = vunpack.c.l.b16 %v2177
        %v2780 = vunpack.c.l.b16 %v2181
        %v2781 = vunpack.c.l.b16 %v2184
        %v2782 = vunpack.c.l.b16 %v2188
        %v2783 = vunpack.c.l.b16 %v2191
        %v2784 = vpack.c.b16 %v2753, %v2752
        %v2785 = vpack.c.b16 %v2755, %v2754
        %v2786 = vpack.c.b16 %v2757, %v2756
        %v2787 = vpack.c.b16 %v2759, %v2758
        %v2788 = vpack.c.b16 %v2761, %v2760
        %v2789 = vpack.c.b16 %v2763, %v2762
        %v2790 = vpack.c.b16 %v2765, %v2764
        %v2791 = vpack.c.b16 %v2767, %v2766
        %v2792 = vpack.c.b16 %v2769, %v2768
        %v2793 = vpack.c.b16 %v2771, %v2770
        %v2794 = vpack.c.b16 %v2773, %v2772
        %v2795 = vpack.c.b16 %v2775, %v2774
        %v2796 = vpack.c.b16 %v2777, %v2776
        %v2797 = vpack.c.b16 %v2779, %v2778
        %v2798 = vpack.c.b16 %v2781, %v2780
        %v2799 = vpack.c.b16 %v2783, %v2782
        %v2816 = vld [vmem:[%s2] sm:$0xf]
        %v2817 = vld [vmem:[%s2 + $0x4] sm:$0xf]
        %v2818 = vld [vmem:[%s2 + $0x8] sm:$0xf]
        %v2819 = vld [vmem:[%s2 + $0xc] sm:$0xf]
        %v2820 = vld [vmem:[%s2 + $0x10] sm:$0xf]
        %v2821 = vld [vmem:[%s2 + $0x14] sm:$0xf]
        %v2822 = vld [vmem:[%s2 + $0x18] sm:$0xf]
        %v2823 = vld [vmem:[%s2 + $0x1c] sm:$0xf]
        %v2824 = vld [vmem:[%s2 + $0x20] sm:$0xf]
        %v2825 = vld [vmem:[%s2 + $0x24] sm:$0xf]
        %v2826 = vld [vmem:[%s2 + $0x28] sm:$0xf]
        %v2827 = vld [vmem:[%s2 + $0x2c] sm:$0xf]
        %v2828 = vld [vmem:[%s2 + $0x30] sm:$0xf]
        %v2829 = vld [vmem:[%s2 + $0x34] sm:$0xf]
        %v2830 = vld [vmem:[%s2 + $0x38] sm:$0xf]
        %v2831 = vld [vmem:[%s2 + $0x3c] sm:$0xf]
        %v2832 = vld [vmem:[%s2 + $0x40] sm:$0xf]
        %v2833 = vld [vmem:[%s2 + $0x44] sm:$0xf]
        %v2834 = vld [vmem:[%s2 + $0x48] sm:$0xf]
        %v2835 = vld [vmem:[%s2 + $0x4c] sm:$0xf]
        %v2836 = vld [vmem:[%s2 + $0x50] sm:$0xf]
        %v2837 = vld [vmem:[%s2 + $0x54] sm:$0xf]
        %v2838 = vld [vmem:[%s2 + $0x58] sm:$0xf]
        %v2839 = vld [vmem:[%s2 + $0x5c] sm:$0xf]
        %v2840 = vld [vmem:[%s2 + $0x60] sm:$0xf]
        %v2841 = vld [vmem:[%s2 + $0x64] sm:$0xf]
        %v2842 = vld [vmem:[%s2 + $0x68] sm:$0xf]
        %v2843 = vld [vmem:[%s2 + $0x6c] sm:$0xf]
        %v2844 = vld [vmem:[%s2 + $0x70] sm:$0xf]
        %v2845 = vld [vmem:[%s2 + $0x74] sm:$0xf]
        %v2846 = vld [vmem:[%s2 + $0x78] sm:$0xf]
        %v2847 = vld [vmem:[%s2 + $0x7c] sm:$0xf]
        %v2848 = vld [vmem:[%s2 + $0x80] sm:$0xf]
        %v2849 = vld [vmem:[%s2 + $0x84] sm:$0xf]
        %v2850 = vld [vmem:[%s2 + $0x88] sm:$0xf]
        %v2851 = vld [vmem:[%s2 + $0x8c] sm:$0xf]
        %v2852 = vld [vmem:[%s2 + $0x90] sm:$0xf]
        %v2853 = vld [vmem:[%s2 + $0x94] sm:$0xf]
        %v2854 = vld [vmem:[%s2 + $0x98] sm:$0xf]
        %v2855 = vld [vmem:[%s2 + $0x9c] sm:$0xf]
        %v2856 = vld [vmem:[%s2 + $0xa0] sm:$0xf]
        %v2857 = vld [vmem:[%s2 + $0xa4] sm:$0xf]
        %v2858 = vld [vmem:[%s2 + $0xa8] sm:$0xf]
        %v2859 = vld [vmem:[%s2 + $0xac] sm:$0xf]
        %v2860 = vld [vmem:[%s2 + $0xb0] sm:$0xf]
        %v2861 = vld [vmem:[%s2 + $0xb4] sm:$0xf]
        %v2862 = vld [vmem:[%s2 + $0xb8] sm:$0xf]
        %v2863 = vld [vmem:[%s2 + $0xbc] sm:$0xf]
        %v2864 = vld [vmem:[%s2 + $0xc0] sm:$0xf]
        %v2865 = vld [vmem:[%s2 + $0xc4] sm:$0xf]
        %v2866 = vld [vmem:[%s2 + $0xc8] sm:$0xf]
        %v2867 = vld [vmem:[%s2 + $0xcc] sm:$0xf]
        %v2868 = vld [vmem:[%s2 + $0xd0] sm:$0xf]
        %v2869 = vld [vmem:[%s2 + $0xd4] sm:$0xf]
        %v2870 = vld [vmem:[%s2 + $0xd8] sm:$0xf]
        %v2871 = vld [vmem:[%s2 + $0xdc] sm:$0xf]
        %v2872 = vld [vmem:[%s2 + $0xe0] sm:$0xf]
        %v2873 = vld [vmem:[%s2 + $0xe4] sm:$0xf]
        %v2874 = vld [vmem:[%s2 + $0xe8] sm:$0xf]
        %v2875 = vld [vmem:[%s2 + $0xec] sm:$0xf]
        %v2876 = vld [vmem:[%s2 + $0xf0] sm:$0xf]
        %v2877 = vld [vmem:[%s2 + $0xf4] sm:$0xf]
        %v2878 = vld [vmem:[%s2 + $0xf8] sm:$0xf]
        %v2879 = vld [vmem:[%s2 + $0xfc] sm:$0xf]
        %v2880 = vld [vmem:[%s2 + $0x100] sm:$0xf]
        %v2881 = vld [vmem:[%s2 + $0x104] sm:$0xf]
        %v2882 = vld [vmem:[%s2 + $0x108] sm:$0xf]
        %v2883 = vld [vmem:[%s2 + $0x10c] sm:$0xf]
        %v2884 = vld [vmem:[%s2 + $0x110] sm:$0xf]
        %v2885 = vld [vmem:[%s2 + $0x114] sm:$0xf]
        %v2886 = vld [vmem:[%s2 + $0x118] sm:$0xf]
        %v2887 = vld [vmem:[%s2 + $0x11c] sm:$0xf]
        %v2888 = vld [vmem:[%s2 + $0x120] sm:$0xf]
        %v2889 = vld [vmem:[%s2 + $0x124] sm:$0xf]
        %v2890 = vld [vmem:[%s2 + $0x128] sm:$0xf]
        %v2891 = vld [vmem:[%s2 + $0x12c] sm:$0xf]
        %v2892 = vld [vmem:[%s2 + $0x130] sm:$0xf]
        %v2893 = vld [vmem:[%s2 + $0x134] sm:$0xf]
        %v2894 = vld [vmem:[%s2 + $0x138] sm:$0xf]
        %v2895 = vld [vmem:[%s2 + $0x13c] sm:$0xf]
        %v2896 = vld [vmem:[%s2 + $0x140] sm:$0xf]
        %v2897 = vld [vmem:[%s2 + $0x144] sm:$0xf]
        %v2898 = vld [vmem:[%s2 + $0x148] sm:$0xf]
        %v2899 = vld [vmem:[%s2 + $0x14c] sm:$0xf]
        %v2900 = vld [vmem:[%s2 + $0x150] sm:$0xf]
        %v2901 = vld [vmem:[%s2 + $0x154] sm:$0xf]
        %v2902 = vld [vmem:[%s2 + $0x158] sm:$0xf]
        %v2903 = vld [vmem:[%s2 + $0x15c] sm:$0xf]
        %v2904 = vld [vmem:[%s2 + $0x160] sm:$0xf]
        %v2905 = vld [vmem:[%s2 + $0x164] sm:$0xf]
        %v2906 = vld [vmem:[%s2 + $0x168] sm:$0xf]
        %v2907 = vld [vmem:[%s2 + $0x16c] sm:$0xf]
        %v2908 = vld [vmem:[%s2 + $0x170] sm:$0xf]
        %v2909 = vld [vmem:[%s2 + $0x174] sm:$0xf]
        %v2910 = vld [vmem:[%s2 + $0x178] sm:$0xf]
        %v2911 = vld [vmem:[%s2 + $0x17c] sm:$0xf]
        %v2912 = vld [vmem:[%s2 + $0x180] sm:$0xf]
        %v2913 = vld [vmem:[%s2 + $0x184] sm:$0xf]
        %v2914 = vld [vmem:[%s2 + $0x188] sm:$0xf]
        %v2915 = vld [vmem:[%s2 + $0x18c] sm:$0xf]
        %v2916 = vld [vmem:[%s2 + $0x190] sm:$0xf]
        %v2917 = vld [vmem:[%s2 + $0x194] sm:$0xf]
        %v2918 = vld [vmem:[%s2 + $0x198] sm:$0xf]
        %v2919 = vld [vmem:[%s2 + $0x19c] sm:$0xf]
        %v2920 = vld [vmem:[%s2 + $0x1a0] sm:$0xf]
        %v2921 = vld [vmem:[%s2 + $0x1a4] sm:$0xf]
        %v2922 = vld [vmem:[%s2 + $0x1a8] sm:$0xf]
        %v2923 = vld [vmem:[%s2 + $0x1ac] sm:$0xf]
        %v2924 = vld [vmem:[%s2 + $0x1b0] sm:$0xf]
        %v2925 = vld [vmem:[%s2 + $0x1b4] sm:$0xf]
        %v2926 = vld [vmem:[%s2 + $0x1b8] sm:$0xf]
        %v2927 = vld [vmem:[%s2 + $0x1bc] sm:$0xf]
        %v2928 = vld [vmem:[%s2 + $0x1c0] sm:$0xf]
        %v2929 = vld [vmem:[%s2 + $0x1c4] sm:$0xf]
        %v2930 = vld [vmem:[%s2 + $0x1c8] sm:$0xf]
        %v2931 = vld [vmem:[%s2 + $0x1cc] sm:$0xf]
        %v2932 = vld [vmem:[%s2 + $0x1d0] sm:$0xf]
        %v2933 = vld [vmem:[%s2 + $0x1d4] sm:$0xf]
        %v2934 = vld [vmem:[%s2 + $0x1d8] sm:$0xf]
        %v2935 = vld [vmem:[%s2 + $0x1dc] sm:$0xf]
        %v2936 = vld [vmem:[%s2 + $0x1e0] sm:$0xf]
        %v2937 = vld [vmem:[%s2 + $0x1e4] sm:$0xf]
        %v2938 = vld [vmem:[%s2 + $0x1e8] sm:$0xf]
        %v2939 = vld [vmem:[%s2 + $0x1ec] sm:$0xf]
        %v2940 = vld [vmem:[%s2 + $0x1f0] sm:$0xf]
        %v2941 = vld [vmem:[%s2 + $0x1f4] sm:$0xf]
        %v2942 = vld [vmem:[%s2 + $0x1f8] sm:$0xf]
        %v2943 = vld [vmem:[%s2 + $0x1fc] sm:$0xf]
        %v2944 = vld [vmem:[%s2 + $0x200] sm:$0xf]
        %v2945 = vld [vmem:[%s2 + $0x204] sm:$0xf]
        %v2946 = vld [vmem:[%s2 + $0x208] sm:$0xf]
        %v2947 = vld [vmem:[%s2 + $0x20c] sm:$0xf]
        %v2948 = vld [vmem:[%s2 + $0x210] sm:$0xf]
        %v2949 = vld [vmem:[%s2 + $0x214] sm:$0xf]
        %v2950 = vld [vmem:[%s2 + $0x218] sm:$0xf]
        %v2951 = vld [vmem:[%s2 + $0x21c] sm:$0xf]
        %v2952 = vld [vmem:[%s2 + $0x220] sm:$0xf]
        %v2953 = vld [vmem:[%s2 + $0x224] sm:$0xf]
        %v2954 = vld [vmem:[%s2 + $0x228] sm:$0xf]
        %v2955 = vld [vmem:[%s2 + $0x22c] sm:$0xf]
        %v2956 = vld [vmem:[%s2 + $0x230] sm:$0xf]
        %v2957 = vld [vmem:[%s2 + $0x234] sm:$0xf]
        %v2958 = vld [vmem:[%s2 + $0x238] sm:$0xf]
        %v2959 = vld [vmem:[%s2 + $0x23c] sm:$0xf]
        %v3104 = vunpack.c.l.b16 %v2816
        %v3105 = vunpack.c.l.b16 %v2817
        %v3106 = vunpack.c.l.b16 %v2818
        %v3107 = vunpack.c.l.b16 %v2819
        %v3108 = vunpack.c.l.b16 %v2820
        %v3109 = vunpack.c.l.b16 %v2821
        %v3110 = vunpack.c.l.b16 %v2822
        %v3111 = vunpack.c.l.b16 %v2823
        %v3112 = vunpack.c.l.b16 %v2824
        %v3113 = vunpack.c.l.b16 %v2825
        %v3114 = vunpack.c.l.b16 %v2826
        %v3115 = vunpack.c.l.b16 %v2827
        %v3116 = vunpack.c.l.b16 %v2828
        %v3117 = vunpack.c.l.b16 %v2829
        %v3118 = vunpack.c.l.b16 %v2830
        %v3119 = vunpack.c.l.b16 %v2831
        %v3120 = vunpack.c.l.b16 %v2832
        %v3121 = vunpack.c.l.b16 %v2833
        %v3122 = vunpack.c.l.b16 %v2834
        %v3123 = vunpack.c.l.b16 %v2835
        %v3124 = vunpack.c.l.b16 %v2836
        %v3125 = vunpack.c.l.b16 %v2837
        %v3126 = vunpack.c.l.b16 %v2838
        %v3127 = vunpack.c.l.b16 %v2839
        %v3128 = vunpack.c.l.b16 %v2840
        %v3129 = vunpack.c.l.b16 %v2841
        %v3130 = vunpack.c.l.b16 %v2842
        %v3131 = vunpack.c.l.b16 %v2843
        %v3132 = vunpack.c.l.b16 %v2844
        %v3133 = vunpack.c.l.b16 %v2845
        %v3134 = vunpack.c.l.b16 %v2846
        %v3135 = vunpack.c.l.b16 %v2847
        %v3136 = vunpack.c.l.b16 %v2848
        %v3137 = vunpack.c.l.b16 %v2849
        %v3138 = vunpack.c.l.b16 %v2850
        %v3139 = vunpack.c.l.b16 %v2851
        %v3140 = vunpack.c.l.b16 %v2852
        %v3141 = vunpack.c.l.b16 %v2853
        %v3142 = vunpack.c.l.b16 %v2854
        %v3143 = vunpack.c.l.b16 %v2855
        %v3144 = vunpack.c.l.b16 %v2856
        %v3145 = vunpack.c.l.b16 %v2857
        %v3146 = vunpack.c.l.b16 %v2858
        %v3147 = vunpack.c.l.b16 %v2859
        %v3148 = vunpack.c.l.b16 %v2860
        %v3149 = vunpack.c.l.b16 %v2861
        %v3150 = vunpack.c.l.b16 %v2862
        %v3151 = vunpack.c.l.b16 %v2863
        %v3152 = vunpack.c.l.b16 %v2864
        %v3153 = vunpack.c.l.b16 %v2865
        %v3154 = vunpack.c.l.b16 %v2866
        %v3155 = vunpack.c.l.b16 %v2867
        %v3156 = vunpack.c.l.b16 %v2868
        %v3157 = vunpack.c.l.b16 %v2869
        %v3158 = vunpack.c.l.b16 %v2870
        %v3159 = vunpack.c.l.b16 %v2871
        %v3160 = vunpack.c.l.b16 %v2872
        %v3161 = vunpack.c.l.b16 %v2873
        %v3162 = vunpack.c.l.b16 %v2874
        %v3163 = vunpack.c.l.b16 %v2875
        %v3164 = vunpack.c.l.b16 %v2876
        %v3165 = vunpack.c.l.b16 %v2877
        %v3166 = vunpack.c.l.b16 %v2878
        %v3167 = vunpack.c.l.b16 %v2879
        %v3168 = vunpack.c.l.b16 %v2880
        %v3169 = vunpack.c.l.b16 %v2881
        %v3170 = vunpack.c.l.b16 %v2882
        %v3171 = vunpack.c.l.b16 %v2883
        %v3172 = vunpack.c.l.b16 %v2884
        %v3173 = vunpack.c.l.b16 %v2885
        %v3174 = vunpack.c.l.b16 %v2886
        %v3175 = vunpack.c.l.b16 %v2887
        %v3176 = vunpack.c.l.b16 %v2888
        %v3177 = vunpack.c.l.b16 %v2889
        %v3178 = vunpack.c.l.b16 %v2890
        %v3179 = vunpack.c.l.b16 %v2891
        %v3180 = vunpack.c.l.b16 %v2892
        %v3181 = vunpack.c.l.b16 %v2893
        %v3182 = vunpack.c.l.b16 %v2894
        %v3183 = vunpack.c.l.b16 %v2895
        %v3184 = vunpack.c.l.b16 %v2896
        %v3185 = vunpack.c.l.b16 %v2897
        %v3186 = vunpack.c.l.b16 %v2898
        %v3187 = vunpack.c.l.b16 %v2899
        %v3188 = vunpack.c.l.b16 %v2900
        %v3189 = vunpack.c.l.b16 %v2901
        %v3190 = vunpack.c.l.b16 %v2902
        %v3191 = vunpack.c.l.b16 %v2903
        %v3192 = vunpack.c.l.b16 %v2904
        %v3193 = vunpack.c.l.b16 %v2905
        %v3194 = vunpack.c.l.b16 %v2906
        %v3195 = vunpack.c.l.b16 %v2907
        %v3196 = vunpack.c.l.b16 %v2908
        %v3197 = vunpack.c.l.b16 %v2909
        %v3198 = vunpack.c.l.b16 %v2910
        %v3199 = vunpack.c.l.b16 %v2911
        %v3200 = vunpack.c.l.b16 %v2912
        %v3201 = vunpack.c.l.b16 %v2913
        %v3202 = vunpack.c.l.b16 %v2914
        %v3203 = vunpack.c.l.b16 %v2915
        %v3204 = vunpack.c.l.b16 %v2916
        %v3205 = vunpack.c.l.b16 %v2917
        %v3206 = vunpack.c.l.b16 %v2918
        %v3207 = vunpack.c.l.b16 %v2919
        %v3208 = vunpack.c.l.b16 %v2920
        %v3209 = vunpack.c.l.b16 %v2921
        %v3210 = vunpack.c.l.b16 %v2922
        %v3211 = vunpack.c.l.b16 %v2923
        %v3212 = vunpack.c.l.b16 %v2924
        %v3213 = vunpack.c.l.b16 %v2925
        %v3214 = vunpack.c.l.b16 %v2926
        %v3215 = vunpack.c.l.b16 %v2927
        %v3216 = vunpack.c.l.b16 %v2928
        %v3217 = vunpack.c.l.b16 %v2929
        %v3218 = vunpack.c.l.b16 %v2930
        %v3219 = vunpack.c.l.b16 %v2931
        %v3220 = vunpack.c.l.b16 %v2932
        %v3221 = vunpack.c.l.b16 %v2933
        %v3222 = vunpack.c.l.b16 %v2934
        %v3223 = vunpack.c.l.b16 %v2935
        %v3224 = vunpack.c.l.b16 %v2936
        %v3225 = vunpack.c.l.b16 %v2937
        %v3226 = vunpack.c.l.b16 %v2938
        %v3227 = vunpack.c.l.b16 %v2939
        %v3228 = vunpack.c.l.b16 %v2940
        %v3229 = vunpack.c.l.b16 %v2941
        %v3230 = vunpack.c.l.b16 %v2942
        %v3231 = vunpack.c.l.b16 %v2943
        %v3232 = vunpack.c.l.b16 %v2944
        %v3233 = vunpack.c.l.b16 %v2945
        %v3234 = vunpack.c.l.b16 %v2946
        %v3235 = vunpack.c.l.b16 %v2947
        %v3236 = vunpack.c.l.b16 %v2948
        %v3237 = vunpack.c.l.b16 %v2949
        %v3238 = vunpack.c.l.b16 %v2950
        %v3239 = vunpack.c.l.b16 %v2951
        %v3240 = vunpack.c.l.b16 %v2952
        %v3241 = vunpack.c.l.b16 %v2953
        %v3242 = vunpack.c.l.b16 %v2954
        %v3243 = vunpack.c.l.b16 %v2955
        %v3244 = vunpack.c.l.b16 %v2956
        %v3245 = vunpack.c.l.b16 %v2957
        %v3246 = vunpack.c.l.b16 %v2958
        %v3247 = vunpack.c.l.b16 %v2959
        %v3248 = vpack.c.b16 %v3105, %v3104
        %v3249 = vpack.c.b16 %v3107, %v3106
        %v3250 = vpack.c.b16 %v3109, %v3108
        %v3251 = vpack.c.b16 %v3111, %v3110
        %v3252 = vpack.c.b16 %v3113, %v3112
        %v3253 = vpack.c.b16 %v3115, %v3114
        %v3254 = vpack.c.b16 %v3117, %v3116
        %v3255 = vpack.c.b16 %v3119, %v3118
        %v3256 = vpack.c.b16 %v3121, %v3120
        %v3257 = vpack.c.b16 %v3123, %v3122
        %v3258 = vpack.c.b16 %v3125, %v3124
        %v3259 = vpack.c.b16 %v3127, %v3126
        %v3260 = vpack.c.b16 %v3129, %v3128
        %v3261 = vpack.c.b16 %v3131, %v3130
        %v3262 = vpack.c.b16 %v3133, %v3132
        %v3263 = vpack.c.b16 %v3135, %v3134
        %v3264 = vpack.c.b16 %v3137, %v3136
        %v3265 = vpack.c.b16 %v3139, %v3138
        %v3266 = vpack.c.b16 %v3141, %v3140
        %v3267 = vpack.c.b16 %v3143, %v3142
        %v3268 = vpack.c.b16 %v3145, %v3144
        %v3269 = vpack.c.b16 %v3147, %v3146
        %v3270 = vpack.c.b16 %v3149, %v3148
        %v3271 = vpack.c.b16 %v3151, %v3150
        %v3272 = vpack.c.b16 %v3153, %v3152
        %v3273 = vpack.c.b16 %v3155, %v3154
        %v3274 = vpack.c.b16 %v3157, %v3156
        %v3275 = vpack.c.b16 %v3159, %v3158
        %v3276 = vpack.c.b16 %v3161, %v3160
        %v3277 = vpack.c.b16 %v3163, %v3162
        %v3278 = vpack.c.b16 %v3165, %v3164
        %v3279 = vpack.c.b16 %v3167, %v3166
        %v3280 = vpack.c.b16 %v3169, %v3168
        %v3281 = vpack.c.b16 %v3171, %v3170
        %v3282 = vpack.c.b16 %v3173, %v3172
        %v3283 = vpack.c.b16 %v3175, %v3174
        %v3284 = vpack.c.b16 %v3177, %v3176
        %v3285 = vpack.c.b16 %v3179, %v3178
        %v3286 = vpack.c.b16 %v3181, %v3180
        %v3287 = vpack.c.b16 %v3183, %v3182
        %v3288 = vpack.c.b16 %v3185, %v3184
        %v3289 = vpack.c.b16 %v3187, %v3186
        %v3290 = vpack.c.b16 %v3189, %v3188
        %v3291 = vpack.c.b16 %v3191, %v3190
        %v3292 = vpack.c.b16 %v3193, %v3192
        %v3293 = vpack.c.b16 %v3195, %v3194
        %v3294 = vpack.c.b16 %v3197, %v3196
        %v3295 = vpack.c.b16 %v3199, %v3198
        %v3296 = vpack.c.b16 %v3201, %v3200
        %v3297 = vpack.c.b16 %v3203, %v3202
        %v3298 = vpack.c.b16 %v3205, %v3204
        %v3299 = vpack.c.b16 %v3207, %v3206
        %v3300 = vpack.c.b16 %v3209, %v3208
        %v3301 = vpack.c.b16 %v3211, %v3210
        %v3302 = vpack.c.b16 %v3213, %v3212
        %v3303 = vpack.c.b16 %v3215, %v3214
        %v3304 = vpack.c.b16 %v3217, %v3216
        %v3305 = vpack.c.b16 %v3219, %v3218
        %v3306 = vpack.c.b16 %v3221, %v3220
        %v3307 = vpack.c.b16 %v3223, %v3222
        %v3308 = vpack.c.b16 %v3225, %v3224
        %v3309 = vpack.c.b16 %v3227, %v3226
        %v3310 = vpack.c.b16 %v3229, %v3228
        %v3311 = vpack.c.b16 %v3231, %v3230
        %v3312 = vpack.c.b16 %v3233, %v3232
        %v3313 = vpack.c.b16 %v3235, %v3234
        %v3314 = vpack.c.b16 %v3237, %v3236
        %v3315 = vpack.c.b16 %v3239, %v3238
        %v3316 = vpack.c.b16 %v3241, %v3240
        %v3317 = vpack.c.b16 %v3243, %v3242
        %v3318 = vpack.c.b16 %v3245, %v3244
        %v3319 = vpack.c.b16 %v3247, %v3246
        %3392 = vmatprep.subr.bf16.mxu0 0
        %3393 = vmatpush1.bf16.msra.mxu0 %v3248
        %3394 = vmatprep.subr.bf16.mxu0 0
        %3395 = vmatpush1.bf16.msra.mxu0 %v3249
        %3396 = vmatprep.subr.bf16.mxu0 0
        %3397 = vmatpush1.bf16.msra.mxu0 %v3250
        %3398 = vmatprep.subr.bf16.mxu0 0
        %3399 = vmatpush1.bf16.msra.mxu0 %v3251
        %3400 = vmatprep.subr.bf16.mxu0 0
        %3401 = vmatpush1.bf16.msra.mxu0 %v3252
        %3402 = vmatprep.subr.bf16.mxu0 0
        %3403 = vmatpush1.bf16.msra.mxu0 %v3253
        %3404 = vmatprep.subr.bf16.mxu0 0
        %3405 = vmatpush1.bf16.msra.mxu0 %v3254
        %3406 = vmatprep.subr.bf16.mxu0 0
        %3407 = vmatpush1.bf16.msra.mxu0 %v3255
        %3408 = vmatprep.subr.bf16.mxu0 0
        %3409 = vmatpush1.bf16.msra.mxu0 %v3256
        %3410 = vmatprep.subr.bf16.mxu0 0
        %3411 = vmatpush1.bf16.msra.mxu0 %v3257
        %3412 = vmatprep.subr.bf16.mxu0 0
        %3413 = vmatpush1.bf16.msra.mxu0 %v3258
        %3414 = vmatprep.subr.bf16.mxu0 0
        %3415 = vmatpush1.bf16.msra.mxu0 %v3259
        %3416 = vmatprep.subr.bf16.mxu0 0
        %3417 = vmatpush1.bf16.msra.mxu0 %v3260
        %3418 = vmatprep.subr.bf16.mxu0 0
        %3419 = vmatpush1.bf16.msra.mxu0 %v3261
        %3420 = vmatprep.subr.bf16.mxu0 0
        %3421 = vmatpush1.bf16.msra.mxu0 %v3262
        %3422 = vmatprep.subr.bf16.mxu0 0
        %3423 = vmatpush1.bf16.msra.mxu0 %v3263
        %3424 = vmatprep.mubr.bf16.mxu0 %v2304
        %3425 = vmatmul.mubr.bf16.gmra.mrb[0].mxu0 %v2240
        %v3426 = vpop.f32.mrb[0].mxu0
        %v3427 = vadd.f32 0.0, %v3426
        %v3428 = vpop.f32.mrb[0].mxu0
        %v3429 = vpop.f32.mrb[0].mxu0
        %v3430 = vadd.f32 0.0, %v3429
        %v3431 = vpop.f32.mrb[0].mxu0
        %3432 = vmatprep.mubr.bf16.mxu0 %v2305
        %3433 = vmatmul.mubr.bf16.gmra.mrb[0].mxu0 %v2241
        %v3434 = vpop.f32.mrb[0].mxu0
        %v3435 = vadd.f32 0.0, %v3434
        %v3436 = vpop.f32.mrb[0].mxu0
        %v3437 = vpop.f32.mrb[0].mxu0
        %v3438 = vadd.f32 0.0, %v3437
        %v3439 = vpop.f32.mrb[0].mxu0
        %3440 = vmatprep.mubr.bf16.mxu0 %v2306
        %3441 = vmatmul.mubr.bf16.gmra.mrb[0].mxu0 %v2242
        %v3442 = vpop.f32.mrb[0].mxu0
        %v3443 = vadd.f32 0.0, %v3442
        %v3444 = vpop.f32.mrb[0].mxu0
        %v3445 = vpop.f32.mrb[0].mxu0
        %v3446 = vadd.f32 0.0, %v3445
        %v3447 = vpop.f32.mrb[0].mxu0
        %3448 = vmatprep.mubr.bf16.mxu0 %v2307
        %3449 = vmatmul.mubr.bf16.gmra.mrb[0].mxu0 %v2243
        %v3450 = vpop.f32.mrb[0].mxu0
        %v3451 = vadd.f32 0.0, %v3450
        %v3452 = vpop.f32.mrb[0].mxu0
        %v3453 = vpop.f32.mrb[0].mxu0
        %v3454 = vadd.f32 0.0, %v3453
        %v3455 = vpop.f32.mrb[0].mxu0
        %3456 = vmatprep.mubr.bf16.mxu0 %v2308
        %3457 = vmatmul.mubr.bf16.gmra.mrb[0].mxu0 %v2244
        %v3458 = vpop.f32.mrb[0].mxu0
        %v3459 = vadd.f32 0.0, %v3458
        %v3460 = vpop.f32.mrb[0].mxu0
        %v3461 = vpop.f32.mrb[0].mxu0
        %v3462 = vadd.f32 0.0, %v3461
        %v3463 = vpop.f32.mrb[0].mxu0
        %3464 = vmatprep.mubr.bf16.mxu0 %v2309
        %3465 = vmatmul.mubr.bf16.gmra.mrb[0].mxu0 %v2245
        %v3466 = vpop.f32.mrb[0].mxu0
        %v3467 = vadd.f32 0.0, %v3466
        %v3468 = vpop.f32.mrb[0].mxu0
        %v3469 = vpop.f32.mrb[0].mxu0
        %v3470 = vadd.f32 0.0, %v3469
        %v3471 = vpop.f32.mrb[0].mxu0
        %3472 = vmatprep.mubr.bf16.mxu0 %v2310
        %3473 = vmatmul.mubr.bf16.gmra.mrb[0].mxu0 %v2246
        %v3474 = vpop.f32.mrb[0].mxu0
        %v3475 = vadd.f32 0.0, %v3474
        %v3476 = vpop.f32.mrb[0].mxu0
        %v3477 = vpop.f32.mrb[0].mxu0
        %v3478 = vadd.f32 0.0, %v3477
        %v3479 = vpop.f32.mrb[0].mxu0
        %3480 = vmatprep.mubr.bf16.mxu0 %v2311
        %3481 = vmatmul.mubr.bf16.gmra.mrb[0].mxu0 %v2247
        %v3482 = vpop.f32.mrb[0].mxu0
        %v3483 = vadd.f32 0.0, %v3482
        %v3484 = vpop.f32.mrb[0].mxu0
        %v3485 = vpop.f32.mrb[0].mxu0
        %v3486 = vadd.f32 0.0, %v3485
        %v3487 = vpop.f32.mrb[0].mxu0
        %3488 = vmatprep.mubr.bf16.mxu0 %v2312
        %3489 = vmatmul.mubr.bf16.gmra.mrb[0].mxu0 %v2248
        %v3490 = vpop.f32.mrb[0].mxu0
        %v3491 = vadd.f32 0.0, %v3490
        %v3492 = vpop.f32.mrb[0].mxu0
        %v3493 = vpop.f32.mrb[0].mxu0
        %v3494 = vadd.f32 0.0, %v3493
        %v3495 = vpop.f32.mrb[0].mxu0
        %3496 = vmatprep.mubr.bf16.mxu0 %v2313
        %3497 = vmatmul.mubr.bf16.gmra.mrb[0].mxu0 %v2249
        %v3498 = vpop.f32.mrb[0].mxu0
        %v3499 = vadd.f32 0.0, %v3498
        %v3500 = vpop.f32.mrb[0].mxu0
        %v3501 = vpop.f32.mrb[0].mxu0
        %v3502 = vadd.f32 0.0, %v3501
        %v3503 = vpop.f32.mrb[0].mxu0
        %3504 = vmatprep.mubr.bf16.mxu0 %v2314
        %3505 = vmatmul.mubr.bf16.gmra.mrb[0].mxu0 %v2250
        %v3506 = vpop.f32.mrb[0].mxu0
        %v3507 = vadd.f32 0.0, %v3506
        %v3508 = vpop.f32.mrb[0].mxu0
        %v3509 = vpop.f32.mrb[0].mxu0
        %v3510 = vadd.f32 0.0, %v3509
        %v3511 = vpop.f32.mrb[0].mxu0
        %3512 = vmatprep.mubr.bf16.mxu0 %v2315
        %3513 = vmatmul.mubr.bf16.gmra.mrb[0].mxu0 %v2251
        %v3514 = vpop.f32.mrb[0].mxu0
        %v3515 = vadd.f32 0.0, %v3514
        %v3516 = vpop.f32.mrb[0].mxu0
        %v3517 = vpop.f32.mrb[0].mxu0
        %v3518 = vadd.f32 0.0, %v3517
        %v3519 = vpop.f32.mrb[0].mxu0
        %3520 = vmatprep.mubr.bf16.mxu0 %v2316
        %3521 = vmatmul.mubr.bf16.gmra.mrb[0].mxu0 %v2252
        %v3522 = vpop.f32.mrb[0].mxu0
        %v3523 = vadd.f32 0.0, %v3522
        %v3524 = vpop.f32.mrb[0].mxu0
        %v3525 = vpop.f32.mrb[0].mxu0
        %v3526 = vadd.f32 0.0, %v3525
        %v3527 = vpop.f32.mrb[0].mxu0
        %3528 = vmatprep.mubr.bf16.mxu0 %v2317
        %3529 = vmatmul.mubr.bf16.gmra.mrb[0].mxu0 %v2253
        %v3530 = vpop.f32.mrb[0].mxu0
        %v3531 = vadd.f32 0.0, %v3530
        %v3532 = vpop.f32.mrb[0].mxu0
        %v3533 = vpop.f32.mrb[0].mxu0
        %v3534 = vadd.f32 0.0, %v3533
        %v3535 = vpop.f32.mrb[0].mxu0
        %3536 = vmatprep.mubr.bf16.mxu0 %v2318
        %3537 = vmatmul.mubr.bf16.gmra.mrb[0].mxu0 %v2254
        %v3538 = vpop.f32.mrb[0].mxu0
        %v3539 = vadd.f32 0.0, %v3538
        %v3540 = vpop.f32.mrb[0].mxu0
        %v3541 = vpop.f32.mrb[0].mxu0
        %v3542 = vadd.f32 0.0, %v3541
        %v3543 = vpop.f32.mrb[0].mxu0
        %3544 = vmatprep.mubr.bf16.mxu0 %v2319
        %3545 = vmatmul.mubr.bf16.gmra.mrb[0].mxu0 %v2255
        %v3546 = vpop.f32.mrb[0].mxu0
        %v3547 = vadd.f32 0.0, %v3546
        %v3548 = vpop.f32.mrb[0].mxu0
        %v3549 = vpop.f32.mrb[0].mxu0
        %v3550 = vadd.f32 0.0, %v3549
        %v3551 = vpop.f32.mrb[0].mxu0
        %3552 = vdwg.mxu0
        %3553 = vmatprep.subr.bf16.mxu0 0
        %3554 = vmatpush1.bf16.msra.mxu0 %v3264
        %3555 = vmatprep.subr.bf16.mxu0 0
        %3556 = vmatpush1.bf16.msra.mxu0 %v3265
        %3557 = vmatprep.subr.bf16.mxu0 0
        %3558 = vmatpush1.bf16.msra.mxu0 %v3266
        %3559 = vmatprep.subr.bf16.mxu0 0
        %3560 = vmatpush1.bf16.msra.mxu0 %v3267
        %3561 = vmatprep.subr.bf16.mxu0 0
        %3562 = vmatpush1.bf16.msra.mxu0 %v3268
        %3563 = vmatprep.subr.bf16.mxu0 0
        %3564 = vmatpush1.bf16.msra.mxu0 %v3269
        %3565 = vmatprep.subr.bf16.mxu0 0
        %3566 = vmatpush1.bf16.msra.mxu0 %v3270
        %3567 = vmatprep.subr.bf16.mxu0 0
        %3568 = vmatpush1.bf16.msra.mxu0 %v3271
        %3569 = vmatprep.subr.bf16.mxu0 0
        %3570 = vmatpush1.bf16.msra.mxu0 %v3272
        %3571 = vmatprep.subr.bf16.mxu0 0
        %3572 = vmatpush1.bf16.msra.mxu0 %v3273
        %3573 = vmatprep.subr.bf16.mxu0 0
        %3574 = vmatpush1.bf16.msra.mxu0 %v3274
        %3575 = vmatprep.subr.bf16.mxu0 0
        %3576 = vmatpush1.bf16.msra.mxu0 %v3275
        %3577 = vmatprep.subr.bf16.mxu0 0
        %3578 = vmatpush1.bf16.msra.mxu0 %v3276
        %3579 = vmatprep.subr.bf16.mxu0 0
        %3580 = vmatpush1.bf16.msra.mxu0 %v3277
        %3581 = vmatprep.subr.bf16.mxu0 0
        %3582 = vmatpush1.bf16.msra.mxu0 %v3278
        %3583 = vmatprep.subr.bf16.mxu0 0
        %3584 = vmatpush1.bf16.msra.mxu0 %v3279
        %3585 = vmatprep.mubr.bf16.mxu0 %v2448
        %3586 = vmatmul.mubr.bf16.gmra.mrb[0].mxu0 %v2368
        %v3587 = vpop.f32.mrb[0].mxu0
        %v3588 = vadd.f32 %v3427, %v3587
        %v3589 = vpop.f32.mrb[0].mxu0
        %v3590 = vpop.f32.mrb[0].mxu0
        %v3591 = vadd.f32 %v3430, %v3590
        %v3592 = vpop.f32.mrb[0].mxu0
        %3593 = vmatprep.mubr.bf16.mxu0 %v2449
        %3594 = vmatmul.mubr.bf16.gmra.mrb[0].mxu0 %v2369
        %v3595 = vpop.f32.mrb[0].mxu0
        %v3596 = vadd.f32 %v3435, %v3595
        %v3597 = vpop.f32.mrb[0].mxu0
        %v3598 = vpop.f32.mrb[0].mxu0
        %v3599 = vadd.f32 %v3438, %v3598
        %v3600 = vpop.f32.mrb[0].mxu0
        %3601 = vmatprep.mubr.bf16.mxu0 %v2450
        %3602 = vmatmul.mubr.bf16.gmra.mrb[0].mxu0 %v2370
        %v3603 = vpop.f32.mrb[0].mxu0
        %v3604 = vadd.f32 %v3443, %v3603
        %v3605 = vpop.f32.mrb[0].mxu0
        %v3606 = vpop.f32.mrb[0].mxu0
        %v3607 = vadd.f32 %v3446, %v3606
        %v3608 = vpop.f32.mrb[0].mxu0
        %3609 = vmatprep.mubr.bf16.mxu0 %v2451
        %3610 = vmatmul.mubr.bf16.gmra.mrb[0].mxu0 %v2371
        %v3611 = vpop.f32.mrb[0].mxu0
        %v3612 = vadd.f32 %v3451, %v3611
        %v3613 = vpop.f32.mrb[0].mxu0
        %v3614 = vpop.f32.mrb[0].mxu0
        %v3615 = vadd.f32 %v3454, %v3614
        %v3616 = vpop.f32.mrb[0].mxu0
        %3617 = vmatprep.mubr.bf16.mxu0 %v2452
        %3618 = vmatmul.mubr.bf16.gmra.mrb[0].mxu0 %v2372
        %v3619 = vpop.f32.mrb[0].mxu0
        %v3620 = vadd.f32 %v3459, %v3619
        %v3621 = vpop.f32.mrb[0].mxu0
        %v3622 = vpop.f32.mrb[0].mxu0
        %v3623 = vadd.f32 %v3462, %v3622
        %v3624 = vpop.f32.mrb[0].mxu0
        %3625 = vmatprep.mubr.bf16.mxu0 %v2453
        %3626 = vmatmul.mubr.bf16.gmra.mrb[0].mxu0 %v2373
        %v3627 = vpop.f32.mrb[0].mxu0
        %v3628 = vadd.f32 %v3467, %v3627
        %v3629 = vpop.f32.mrb[0].mxu0
        %v3630 = vpop.f32.mrb[0].mxu0
        %v3631 = vadd.f32 %v3470, %v3630
        %v3632 = vpop.f32.mrb[0].mxu0
        %3633 = vmatprep.mubr.bf16.mxu0 %v2454
        %3634 = vmatmul.mubr.bf16.gmra.mrb[0].mxu0 %v2374
        %v3635 = vpop.f32.mrb[0].mxu0
        %v3636 = vadd.f32 %v3475, %v3635
        %v3637 = vpop.f32.mrb[0].mxu0
        %v3638 = vpop.f32.mrb[0].mxu0
        %v3639 = vadd.f32 %v3478, %v3638
        %v3640 = vpop.f32.mrb[0].mxu0
        %3641 = vmatprep.mubr.bf16.mxu0 %v2455
        %3642 = vmatmul.mubr.bf16.gmra.mrb[0].mxu0 %v2375
        %v3643 = vpop.f32.mrb[0].mxu0
        %v3644 = vadd.f32 %v3483, %v3643
        %v3645 = vpop.f32.mrb[0].mxu0
        %v3646 = vpop.f32.mrb[0].mxu0
        %v3647 = vadd.f32 %v3486, %v3646
        %v3648 = vpop.f32.mrb[0].mxu0
        %3649 = vmatprep.mubr.bf16.mxu0 %v2456
        %3650 = vmatmul.mubr.bf16.gmra.mrb[0].mxu0 %v2376
        %v3651 = vpop.f32.mrb[0].mxu0
        %v3652 = vadd.f32 %v3491, %v3651
        %v3653 = vpop.f32.mrb[0].mxu0
        %v3654 = vpop.f32.mrb[0].mxu0
        %v3655 = vadd.f32 %v3494, %v3654
        %v3656 = vpop.f32.mrb[0].mxu0
        %3657 = vmatprep.mubr.bf16.mxu0 %v2457
        %3658 = vmatmul.mubr.bf16.gmra.mrb[0].mxu0 %v2377
        %v3659 = vpop.f32.mrb[0].mxu0
        %v3660 = vadd.f32 %v3499, %v3659
        %v3661 = vpop.f32.mrb[0].mxu0
        %v3662 = vpop.f32.mrb[0].mxu0
        %v3663 = vadd.f32 %v3502, %v3662
        %v3664 = vpop.f32.mrb[0].mxu0
        %3665 = vmatprep.mubr.bf16.mxu0 %v2458
        %3666 = vmatmul.mubr.bf16.gmra.mrb[0].mxu0 %v2378
        %v3667 = vpop.f32.mrb[0].mxu0
        %v3668 = vadd.f32 %v3507, %v3667
        %v3669 = vpop.f32.mrb[0].mxu0
        %v3670 = vpop.f32.mrb[0].mxu0
        %v3671 = vadd.f32 %v3510, %v3670
        %v3672 = vpop.f32.mrb[0].mxu0
        %3673 = vmatprep.mubr.bf16.mxu0 %v2459
        %3674 = vmatmul.mubr.bf16.gmra.mrb[0].mxu0 %v2379
        %v3675 = vpop.f32.mrb[0].mxu0
        %v3676 = vadd.f32 %v3515, %v3675
        %v3677 = vpop.f32.mrb[0].mxu0
        %v3678 = vpop.f32.mrb[0].mxu0
        %v3679 = vadd.f32 %v3518, %v3678
        %v3680 = vpop.f32.mrb[0].mxu0
        %3681 = vmatprep.mubr.bf16.mxu0 %v2460
        %3682 = vmatmul.mubr.bf16.gmra.mrb[0].mxu0 %v2380
        %v3683 = vpop.f32.mrb[0].mxu0
        %v3684 = vadd.f32 %v3523, %v3683
        %v3685 = vpop.f32.mrb[0].mxu0
        %v3686 = vpop.f32.mrb[0].mxu0
        %v3687 = vadd.f32 %v3526, %v3686
        %v3688 = vpop.f32.mrb[0].mxu0
        %3689 = vmatprep.mubr.bf16.mxu0 %v2461
        %3690 = vmatmul.mubr.bf16.gmra.mrb[0].mxu0 %v2381
        %v3691 = vpop.f32.mrb[0].mxu0
        %v3692 = vadd.f32 %v3531, %v3691
        %v3693 = vpop.f32.mrb[0].mxu0
        %v3694 = vpop.f32.mrb[0].mxu0
        %v3695 = vadd.f32 %v3534, %v3694
        %v3696 = vpop.f32.mrb[0].mxu0
        %3697 = vmatprep.mubr.bf16.mxu0 %v2462
        %3698 = vmatmul.mubr.bf16.gmra.mrb[0].mxu0 %v2382
        %v3699 = vpop.f32.mrb[0].mxu0
        %v3700 = vadd.f32 %v3539, %v3699
        %v3701 = vpop.f32.mrb[0].mxu0
        %v3702 = vpop.f32.mrb[0].mxu0
        %v3703 = vadd.f32 %v3542, %v3702
        %v3704 = vpop.f32.mrb[0].mxu0
        %3705 = vmatprep.mubr.bf16.mxu0 %v2463
        %3706 = vmatmul.mubr.bf16.gmra.mrb[0].mxu0 %v2383
        %v3707 = vpop.f32.mrb[0].mxu0
        %v3708 = vadd.f32 %v3547, %v3707
        %v3709 = vpop.f32.mrb[0].mxu0
        %v3710 = vpop.f32.mrb[0].mxu0
        %v3711 = vadd.f32 %v3550, %v3710
        %v3712 = vpop.f32.mrb[0].mxu0
        %3713 = vdwg.mxu0
        %3714 = vmatprep.subr.bf16.mxu0 0
        %3715 = vmatpush1.bf16.msra.mxu0 %v3280
        %3716 = vmatprep.subr.bf16.mxu0 0
        %3717 = vmatpush1.bf16.msra.mxu0 %v3281
        %3718 = vmatprep.subr.bf16.mxu0 0
        %3719 = vmatpush1.bf16.msra.mxu0 %v3282
        %3720 = vmatprep.subr.bf16.mxu0 0
        %3721 = vmatpush1.bf16.msra.mxu0 %v3283
        %3722 = vmatprep.subr.bf16.mxu0 0
        %3723 = vmatpush1.bf16.msra.mxu0 %v3284
        %3724 = vmatprep.subr.bf16.mxu0 0
        %3725 = vmatpush1.bf16.msra.mxu0 %v3285
        %3726 = vmatprep.subr.bf16.mxu0 0
        %3727 = vmatpush1.bf16.msra.mxu0 %v3286
        %3728 = vmatprep.subr.bf16.mxu0 0
        %3729 = vmatpush1.bf16.msra.mxu0 %v3287
        %3730 = vmatprep.subr.bf16.mxu0 0
        %3731 = vmatpush1.bf16.msra.mxu0 %v3288
        %3732 = vmatprep.subr.bf16.mxu0 0
        %3733 = vmatpush1.bf16.msra.mxu0 %v3289
        %3734 = vmatprep.subr.bf16.mxu0 0
        %3735 = vmatpush1.bf16.msra.mxu0 %v3290
        %3736 = vmatprep.subr.bf16.mxu0 0
        %3737 = vmatpush1.bf16.msra.mxu0 %v3291
        %3738 = vmatprep.subr.bf16.mxu0 0
        %3739 = vmatpush1.bf16.msra.mxu0 %v3292
        %3740 = vmatprep.subr.bf16.mxu0 0
        %3741 = vmatpush1.bf16.msra.mxu0 %v3293
        %3742 = vmatprep.subr.bf16.mxu0 0
        %3743 = vmatpush1.bf16.msra.mxu0 %v3294
        %3744 = vmatprep.subr.bf16.mxu0 0
        %3745 = vmatpush1.bf16.msra.mxu0 %v3295
        %3746 = vmatprep.mubr.bf16.mxu0 %v2576
        %3747 = vmatmul.mubr.bf16.gmra.mrb[0].mxu0 %v2512
        %v3748 = vpop.f32.mrb[0].mxu0
        %v3749 = vadd.f32 %v3588, %v3748
        %v3750 = vpop.f32.mrb[0].mxu0
        %v3751 = vpop.f32.mrb[0].mxu0
        %v3752 = vadd.f32 %v3591, %v3751
        %v3753 = vpop.f32.mrb[0].mxu0
        %3754 = vmatprep.mubr.bf16.mxu0 %v2577
        %3755 = vmatmul.mubr.bf16.gmra.mrb[0].mxu0 %v2513
        %v3756 = vpop.f32.mrb[0].mxu0
        %v3757 = vadd.f32 %v3596, %v3756
        %v3758 = vpop.f32.mrb[0].mxu0
        %v3759 = vpop.f32.mrb[0].mxu0
        %v3760 = vadd.f32 %v3599, %v3759
        %v3761 = vpop.f32.mrb[0].mxu0
        %3762 = vmatprep.mubr.bf16.mxu0 %v2578
        %3763 = vmatmul.mubr.bf16.gmra.mrb[0].mxu0 %v2514
        %v3764 = vpop.f32.mrb[0].mxu0
        %v3765 = vadd.f32 %v3604, %v3764
        %v3766 = vpop.f32.mrb[0].mxu0
        %v3767 = vpop.f32.mrb[0].mxu0
        %v3768 = vadd.f32 %v3607, %v3767
        %v3769 = vpop.f32.mrb[0].mxu0
        %3770 = vmatprep.mubr.bf16.mxu0 %v2579
        %3771 = vmatmul.mubr.bf16.gmra.mrb[0].mxu0 %v2515
        %v3772 = vpop.f32.mrb[0].mxu0
        %v3773 = vadd.f32 %v3612, %v3772
        %v3774 = vpop.f32.mrb[0].mxu0
        %v3775 = vpop.f32.mrb[0].mxu0
        %v3776 = vadd.f32 %v3615, %v3775
        %v3777 = vpop.f32.mrb[0].mxu0
        %3778 = vmatprep.mubr.bf16.mxu0 %v2580
        %3779 = vmatmul.mubr.bf16.gmra.mrb[0].mxu0 %v2516
        %v3780 = vpop.f32.mrb[0].mxu0
        %v3781 = vadd.f32 %v3620, %v3780
        %v3782 = vpop.f32.mrb[0].mxu0
        %v3783 = vpop.f32.mrb[0].mxu0
        %v3784 = vadd.f32 %v3623, %v3783
        %v3785 = vpop.f32.mrb[0].mxu0
        %3786 = vmatprep.mubr.bf16.mxu0 %v2581
        %3787 = vmatmul.mubr.bf16.gmra.mrb[0].mxu0 %v2517
        %v3788 = vpop.f32.mrb[0].mxu0
        %v3789 = vadd.f32 %v3628, %v3788
        %v3790 = vpop.f32.mrb[0].mxu0
        %v3791 = vpop.f32.mrb[0].mxu0
        %v3792 = vadd.f32 %v3631, %v3791
        %v3793 = vpop.f32.mrb[0].mxu0
        %3794 = vmatprep.mubr.bf16.mxu0 %v2582
        %3795 = vmatmul.mubr.bf16.gmra.mrb[0].mxu0 %v2518
        %v3796 = vpop.f32.mrb[0].mxu0
        %v3797 = vadd.f32 %v3636, %v3796
        %v3798 = vpop.f32.mrb[0].mxu0
        %v3799 = vpop.f32.mrb[0].mxu0
        %v3800 = vadd.f32 %v3639, %v3799
        %v3801 = vpop.f32.mrb[0].mxu0
        %3802 = vmatprep.mubr.bf16.mxu0 %v2583
        %3803 = vmatmul.mubr.bf16.gmra.mrb[0].mxu0 %v2519
        %v3804 = vpop.f32.mrb[0].mxu0
        %v3805 = vadd.f32 %v3644, %v3804
        %v3806 = vpop.f32.mrb[0].mxu0
        %v3807 = vpop.f32.mrb[0].mxu0
        %v3808 = vadd.f32 %v3647, %v3807
        %v3809 = vpop.f32.mrb[0].mxu0
        %3810 = vmatprep.mubr.bf16.mxu0 %v2584
        %3811 = vmatmul.mubr.bf16.gmra.mrb[0].mxu0 %v2520
        %v3812 = vpop.f32.mrb[0].mxu0
        %v3813 = vadd.f32 %v3652, %v3812
        %v3814 = vpop.f32.mrb[0].mxu0
        %v3815 = vpop.f32.mrb[0].mxu0
        %v3816 = vadd.f32 %v3655, %v3815
        %v3817 = vpop.f32.mrb[0].mxu0
        %3818 = vmatprep.mubr.bf16.mxu0 %v2585
        %3819 = vmatmul.mubr.bf16.gmra.mrb[0].mxu0 %v2521
        %v3820 = vpop.f32.mrb[0].mxu0
        %v3821 = vadd.f32 %v3660, %v3820
        %v3822 = vpop.f32.mrb[0].mxu0
        %v3823 = vpop.f32.mrb[0].mxu0
        %v3824 = vadd.f32 %v3663, %v3823
        %v3825 = vpop.f32.mrb[0].mxu0
        %3826 = vmatprep.mubr.bf16.mxu0 %v2586
        %3827 = vmatmul.mubr.bf16.gmra.mrb[0].mxu0 %v2522
        %v3828 = vpop.f32.mrb[0].mxu0
        %v3829 = vadd.f32 %v3668, %v3828
        %v3830 = vpop.f32.mrb[0].mxu0
        %v3831 = vpop.f32.mrb[0].mxu0
        %v3832 = vadd.f32 %v3671, %v3831
        %v3833 = vpop.f32.mrb[0].mxu0
        %3834 = vmatprep.mubr.bf16.mxu0 %v2587
        %3835 = vmatmul.mubr.bf16.gmra.mrb[0].mxu0 %v2523
        %v3836 = vpop.f32.mrb[0].mxu0
        %v3837 = vadd.f32 %v3676, %v3836
        %v3838 = vpop.f32.mrb[0].mxu0
        %v3839 = vpop.f32.mrb[0].mxu0
        %v3840 = vadd.f32 %v3679, %v3839
        %v3841 = vpop.f32.mrb[0].mxu0
        %3842 = vmatprep.mubr.bf16.mxu0 %v2588
        %3843 = vmatmul.mubr.bf16.gmra.mrb[0].mxu0 %v2524
        %v3844 = vpop.f32.mrb[0].mxu0
        %v3845 = vadd.f32 %v3684, %v3844
        %v3846 = vpop.f32.mrb[0].mxu0
        %v3847 = vpop.f32.mrb[0].mxu0
        %v3848 = vadd.f32 %v3687, %v3847
        %v3849 = vpop.f32.mrb[0].mxu0
        %3850 = vmatprep.mubr.bf16.mxu0 %v2589
        %3851 = vmatmul.mubr.bf16.gmra.mrb[0].mxu0 %v2525
        %v3852 = vpop.f32.mrb[0].mxu0
        %v3853 = vadd.f32 %v3692, %v3852
        %v3854 = vpop.f32.mrb[0].mxu0
        %v3855 = vpop.f32.mrb[0].mxu0
        %v3856 = vadd.f32 %v3695, %v3855
        %v3857 = vpop.f32.mrb[0].mxu0
        %3858 = vmatprep.mubr.bf16.mxu0 %v2590
        %3859 = vmatmul.mubr.bf16.gmra.mrb[0].mxu0 %v2526
        %v3860 = vpop.f32.mrb[0].mxu0
        %v3861 = vadd.f32 %v3700, %v3860
        %v3862 = vpop.f32.mrb[0].mxu0
        %v3863 = vpop.f32.mrb[0].mxu0
        %v3864 = vadd.f32 %v3703, %v3863
        %v3865 = vpop.f32.mrb[0].mxu0
        %3866 = vmatprep.mubr.bf16.mxu0 %v2591
        %3867 = vmatmul.mubr.bf16.gmra.mrb[0].mxu0 %v2527
        %v3868 = vpop.f32.mrb[0].mxu0
        %v3869 = vadd.f32 %v3708, %v3868
        %v3870 = vpop.f32.mrb[0].mxu0
        %v3871 = vpop.f32.mrb[0].mxu0
        %v3872 = vadd.f32 %v3711, %v3871
        %v3873 = vpop.f32.mrb[0].mxu0
        %3874 = vdwg.mxu0
        %3875 = vmatprep.subr.bf16.mxu0 0
        %3876 = vmatpush1.bf16.msra.mxu0 %v3296
        %3877 = vmatprep.subr.bf16.mxu0 0
        %3878 = vmatpush1.bf16.msra.mxu0 %v3297
        %3879 = vmatprep.subr.bf16.mxu0 0
        %3880 = vmatpush1.bf16.msra.mxu0 %v3298
        %3881 = vmatprep.subr.bf16.mxu0 0
        %3882 = vmatpush1.bf16.msra.mxu0 %v3299
        %3883 = vmatprep.subr.bf16.mxu0 0
        %3884 = vmatpush1.bf16.msra.mxu0 %v3300
        %3885 = vmatprep.subr.bf16.mxu0 0
        %3886 = vmatpush1.bf16.msra.mxu0 %v3301
        %3887 = vmatprep.subr.bf16.mxu0 0
        %3888 = vmatpush1.bf16.msra.mxu0 %v3302
        %3889 = vmatprep.subr.bf16.mxu0 0
        %3890 = vmatpush1.bf16.msra.mxu0 %v3303
        %3891 = vmatprep.subr.bf16.mxu0 0
        %3892 = vmatpush1.bf16.msra.mxu0 %v3304
        %3893 = vmatprep.subr.bf16.mxu0 0
        %3894 = vmatpush1.bf16.msra.mxu0 %v3305
        %3895 = vmatprep.subr.bf16.mxu0 0
        %3896 = vmatpush1.bf16.msra.mxu0 %v3306
        %3897 = vmatprep.subr.bf16.mxu0 0
        %3898 = vmatpush1.bf16.msra.mxu0 %v3307
        %3899 = vmatprep.subr.bf16.mxu0 0
        %3900 = vmatpush1.bf16.msra.mxu0 %v3308
        %3901 = vmatprep.subr.bf16.mxu0 0
        %3902 = vmatpush1.bf16.msra.mxu0 %v3309
        %3903 = vmatprep.subr.bf16.mxu0 0
        %3904 = vmatpush1.bf16.msra.mxu0 %v3310
        %3905 = vmatprep.subr.bf16.mxu0 0
        %3906 = vmatpush1.bf16.msra.mxu0 %v3311
        %3907 = vmatprep.mubr.bf16.mxu0 %v2720
        %3908 = vmatmul.mubr.bf16.gmra.mrb[0].mxu0 %v2656
        %v3909 = vpop.f32.mrb[0].mxu0
        %v3910 = vadd.f32 %v3749, %v3909
        %v3911 = vpop.f32.mrb[0].mxu0
        %v3912 = vpop.f32.mrb[0].mxu0
        %v3913 = vadd.f32 %v3752, %v3912
        %v3914 = vpop.f32.mrb[0].mxu0
        %3915 = vmatprep.mubr.bf16.mxu0 %v2721
        %3916 = vmatmul.mubr.bf16.gmra.mrb[0].mxu0 %v2657
        %v3917 = vpop.f32.mrb[0].mxu0
        %v3918 = vadd.f32 %v3757, %v3917
        %v3919 = vpop.f32.mrb[0].mxu0
        %v3920 = vpop.f32.mrb[0].mxu0
        %v3921 = vadd.f32 %v3760, %v3920
        %v3922 = vpop.f32.mrb[0].mxu0
        %3923 = vmatprep.mubr.bf16.mxu0 %v2722
        %3924 = vmatmul.mubr.bf16.gmra.mrb[0].mxu0 %v2658
        %v3925 = vpop.f32.mrb[0].mxu0
        %v3926 = vadd.f32 %v3765, %v3925
        %v3927 = vpop.f32.mrb[0].mxu0
        %v3928 = vpop.f32.mrb[0].mxu0
        %v3929 = vadd.f32 %v3768, %v3928
        %v3930 = vpop.f32.mrb[0].mxu0
        %3931 = vmatprep.mubr.bf16.mxu0 %v2723
        %3932 = vmatmul.mubr.bf16.gmra.mrb[0].mxu0 %v2659
        %v3933 = vpop.f32.mrb[0].mxu0
        %v3934 = vadd.f32 %v3773, %v3933
        %v3935 = vpop.f32.mrb[0].mxu0
        %v3936 = vpop.f32.mrb[0].mxu0
        %v3937 = vadd.f32 %v3776, %v3936
        %v3938 = vpop.f32.mrb[0].mxu0
        %3939 = vmatprep.mubr.bf16.mxu0 %v2724
        %3940 = vmatmul.mubr.bf16.gmra.mrb[0].mxu0 %v2660
        %v3941 = vpop.f32.mrb[0].mxu0
        %v3942 = vadd.f32 %v3781, %v3941
        %v3943 = vpop.f32.mrb[0].mxu0
        %v3944 = vpop.f32.mrb[0].mxu0
        %v3945 = vadd.f32 %v3784, %v3944
        %v3946 = vpop.f32.mrb[0].mxu0
        %3947 = vmatprep.mubr.bf16.mxu0 %v2725
        %3948 = vmatmul.mubr.bf16.gmra.mrb[0].mxu0 %v2661
        %v3949 = vpop.f32.mrb[0].mxu0
        %v3950 = vadd.f32 %v3789, %v3949
        %v3951 = vpop.f32.mrb[0].mxu0
        %v3952 = vpop.f32.mrb[0].mxu0
        %v3953 = vadd.f32 %v3792, %v3952
        %v3954 = vpop.f32.mrb[0].mxu0
        %3955 = vmatprep.mubr.bf16.mxu0 %v2726
        %3956 = vmatmul.mubr.bf16.gmra.mrb[0].mxu0 %v2662
        %v3957 = vpop.f32.mrb[0].mxu0
        %v3958 = vadd.f32 %v3797, %v3957
        %v3959 = vpop.f32.mrb[0].mxu0
        %v3960 = vpop.f32.mrb[0].mxu0
        %v3961 = vadd.f32 %v3800, %v3960
        %v3962 = vpop.f32.mrb[0].mxu0
        %3963 = vmatprep.mubr.bf16.mxu0 %v2727
        %3964 = vmatmul.mubr.bf16.gmra.mrb[0].mxu0 %v2663
        %v3965 = vpop.f32.mrb[0].mxu0
        %v3966 = vadd.f32 %v3805, %v3965
        %v3967 = vpop.f32.mrb[0].mxu0
        %v3968 = vpop.f32.mrb[0].mxu0
        %v3969 = vadd.f32 %v3808, %v3968
        %v3970 = vpop.f32.mrb[0].mxu0
        %3971 = vmatprep.mubr.bf16.mxu0 %v2728
        %3972 = vmatmul.mubr.bf16.gmra.mrb[0].mxu0 %v2664
        %v3973 = vpop.f32.mrb[0].mxu0
        %v3974 = vadd.f32 %v3813, %v3973
        %v3975 = vpop.f32.mrb[0].mxu0
        %v3976 = vpop.f32.mrb[0].mxu0
        %v3977 = vadd.f32 %v3816, %v3976
        %v3978 = vpop.f32.mrb[0].mxu0
        %3979 = vmatprep.mubr.bf16.mxu0 %v2729
        %3980 = vmatmul.mubr.bf16.gmra.mrb[0].mxu0 %v2665
        %v3981 = vpop.f32.mrb[0].mxu0
        %v3982 = vadd.f32 %v3821, %v3981
        %v3983 = vpop.f32.mrb[0].mxu0
        %v3984 = vpop.f32.mrb[0].mxu0
        %v3985 = vadd.f32 %v3824, %v3984
        %v3986 = vpop.f32.mrb[0].mxu0
        %3987 = vmatprep.mubr.bf16.mxu0 %v2730
        %3988 = vmatmul.mubr.bf16.gmra.mrb[0].mxu0 %v2666
        %v3989 = vpop.f32.mrb[0].mxu0
        %v3990 = vadd.f32 %v3829, %v3989
        %v3991 = vpop.f32.mrb[0].mxu0
        %v3992 = vpop.f32.mrb[0].mxu0
        %v3993 = vadd.f32 %v3832, %v3992
        %v3994 = vpop.f32.mrb[0].mxu0
        %3995 = vmatprep.mubr.bf16.mxu0 %v2731
        %3996 = vmatmul.mubr.bf16.gmra.mrb[0].mxu0 %v2667
        %v3997 = vpop.f32.mrb[0].mxu0
        %v3998 = vadd.f32 %v3837, %v3997
        %v3999 = vpop.f32.mrb[0].mxu0
        %v4000 = vpop.f32.mrb[0].mxu0
        %v4001 = vadd.f32 %v3840, %v4000
        %v4002 = vpop.f32.mrb[0].mxu0
        %4003 = vmatprep.mubr.bf16.mxu0 %v2732
        %4004 = vmatmul.mubr.bf16.gmra.mrb[0].mxu0 %v2668
        %v4005 = vpop.f32.mrb[0].mxu0
        %v4006 = vadd.f32 %v3845, %v4005
        %v4007 = vpop.f32.mrb[0].mxu0
        %v4008 = vpop.f32.mrb[0].mxu0
        %v4009 = vadd.f32 %v3848, %v4008
        %v4010 = vpop.f32.mrb[0].mxu0
        %4011 = vmatprep.mubr.bf16.mxu0 %v2733
        %4012 = vmatmul.mubr.bf16.gmra.mrb[0].mxu0 %v2669
        %v4013 = vpop.f32.mrb[0].mxu0
        %v4014 = vadd.f32 %v3853, %v4013
        %v4015 = vpop.f32.mrb[0].mxu0
        %v4016 = vpop.f32.mrb[0].mxu0
        %v4017 = vadd.f32 %v3856, %v4016
        %v4018 = vpop.f32.mrb[0].mxu0
        %4019 = vmatprep.mubr.bf16.mxu0 %v2734
        %4020 = vmatmul.mubr.bf16.gmra.mrb[0].mxu0 %v2670
        %v4021 = vpop.f32.mrb[0].mxu0
        %v4022 = vadd.f32 %v3861, %v4021
        %v4023 = vpop.f32.mrb[0].mxu0
        %v4024 = vpop.f32.mrb[0].mxu0
        %v4025 = vadd.f32 %v3864, %v4024
        %v4026 = vpop.f32.mrb[0].mxu0
        %4027 = vmatprep.mubr.bf16.mxu0 %v2735
        %4028 = vmatmul.mubr.bf16.gmra.mrb[0].mxu0 %v2671
        %v4029 = vpop.f32.mrb[0].mxu0
        %v4030 = vadd.f32 %v3869, %v4029
        %v4031 = vpop.f32.mrb[0].mxu0
        %v4032 = vpop.f32.mrb[0].mxu0
        %v4033 = vadd.f32 %v3872, %v4032
        %v4034 = vpop.f32.mrb[0].mxu0
        %4035 = vdwg.mxu0
        %4036 = vmatprep.subr.bf16.mxu0 0
        %4037 = vmatpush1.bf16.msra.mxu0 %v3312
        %4038 = vmatprep.subr.bf16.mxu0 0
        %4039 = vmatpush1.bf16.msra.mxu0 %v3313
        %4040 = vmatprep.subr.bf16.mxu0 0
        %4041 = vmatpush1.bf16.msra.mxu0 %v3314
        %4042 = vmatprep.subr.bf16.mxu0 0
        %4043 = vmatpush1.bf16.msra.mxu0 %v3315
        %4044 = vmatprep.subr.bf16.mxu0 0
        %4045 = vmatpush1.bf16.msra.mxu0 %v3316
        %4046 = vmatprep.subr.bf16.mxu0 0
        %4047 = vmatpush1.bf16.msra.mxu0 %v3317
        %4048 = vmatprep.subr.bf16.mxu0 0
        %4049 = vmatpush1.bf16.msra.mxu0 %v3318
        %4050 = vmatprep.subr.bf16.mxu0 0
        %4051 = vmatpush1.bf16.msra.mxu0 %v3319
        %4052 = vmatprep.subr.bf16.mxu0 0
        %4053 = vmatpush1.bf16.msra.mxu0 0
        %4054 = vmatprep.subr.bf16.mxu0 0
        %4055 = vmatpush1.bf16.msra.mxu0 0
        %4056 = vmatprep.subr.bf16.mxu0 0
        %4057 = vmatpush1.bf16.msra.mxu0 0
        %4058 = vmatprep.subr.bf16.mxu0 0
        %4059 = vmatpush1.bf16.msra.mxu0 0
        %4060 = vmatprep.subr.bf16.mxu0 0
        %4061 = vmatpush1.bf16.msra.mxu0 0
        %4062 = vmatprep.subr.bf16.mxu0 0
        %4063 = vmatpush1.bf16.msra.mxu0 0
        %4064 = vmatprep.subr.bf16.mxu0 0
        %4065 = vmatpush1.bf16.msra.mxu0 0
        %4066 = vmatprep.subr.bf16.mxu0 0
        %4067 = vmatpush1.bf16.msra.mxu0 0
        %4068 = vmatprep.mubr.bf16.mxu0 0
        %4069 = vmatmul.mubr.bf16.gmra.mrb[0].mxu0 %v2784
        %v4070 = vpop.f32.mrb[0].mxu0
        %v4071 = vadd.f32 %v3910, %v4070
        %v4072 = vpop.f32.mrb[0].mxu0
        %v4073 = vpop.f32.mrb[0].mxu0
        %v4074 = vadd.f32 %v3913, %v4073
        %v4075 = vpop.f32.mrb[0].mxu0
        %4076 = vmatprep.mubr.bf16.mxu0 0
        %4077 = vmatmul.mubr.bf16.gmra.mrb[0].mxu0 %v2785
        %v4078 = vpop.f32.mrb[0].mxu0
        %v4079 = vadd.f32 %v3918, %v4078
        %v4080 = vpop.f32.mrb[0].mxu0
        %v4081 = vpop.f32.mrb[0].mxu0
        %v4082 = vadd.f32 %v3921, %v4081
        %v4083 = vpop.f32.mrb[0].mxu0
        %4084 = vmatprep.mubr.bf16.mxu0 0
        %4085 = vmatmul.mubr.bf16.gmra.mrb[0].mxu0 %v2786
        %v4086 = vpop.f32.mrb[0].mxu0
        %v4087 = vadd.f32 %v3926, %v4086
        %v4088 = vpop.f32.mrb[0].mxu0
        %v4089 = vpop.f32.mrb[0].mxu0
        %v4090 = vadd.f32 %v3929, %v4089
        %v4091 = vpop.f32.mrb[0].mxu0
        %4092 = vmatprep.mubr.bf16.mxu0 0
        %4093 = vmatmul.mubr.bf16.gmra.mrb[0].mxu0 %v2787
        %v4094 = vpop.f32.mrb[0].mxu0
        %v4095 = vadd.f32 %v3934, %v4094
        %v4096 = vpop.f32.mrb[0].mxu0
        %v4097 = vpop.f32.mrb[0].mxu0
        %v4098 = vadd.f32 %v3937, %v4097
        %v4099 = vpop.f32.mrb[0].mxu0
        %4100 = vmatprep.mubr.bf16.mxu0 0
        %4101 = vmatmul.mubr.bf16.gmra.mrb[0].mxu0 %v2788
        %v4102 = vpop.f32.mrb[0].mxu0
        %v4103 = vadd.f32 %v3942, %v4102
        %v4104 = vpop.f32.mrb[0].mxu0
        %v4105 = vpop.f32.mrb[0].mxu0
        %v4106 = vadd.f32 %v3945, %v4105
        %v4107 = vpop.f32.mrb[0].mxu0
        %4108 = vmatprep.mubr.bf16.mxu0 0
        %4109 = vmatmul.mubr.bf16.gmra.mrb[0].mxu0 %v2789
        %v4110 = vpop.f32.mrb[0].mxu0
        %v4111 = vadd.f32 %v3950, %v4110
        %v4112 = vpop.f32.mrb[0].mxu0
        %v4113 = vpop.f32.mrb[0].mxu0
        %v4114 = vadd.f32 %v3953, %v4113
        %v4115 = vpop.f32.mrb[0].mxu0
        %4116 = vmatprep.mubr.bf16.mxu0 0
        %4117 = vmatmul.mubr.bf16.gmra.mrb[0].mxu0 %v2790
        %v4118 = vpop.f32.mrb[0].mxu0
        %v4119 = vadd.f32 %v3958, %v4118
        %v4120 = vpop.f32.mrb[0].mxu0
        %v4121 = vpop.f32.mrb[0].mxu0
        %v4122 = vadd.f32 %v3961, %v4121
        %v4123 = vpop.f32.mrb[0].mxu0
        %4124 = vmatprep.mubr.bf16.mxu0 0
        %4125 = vmatmul.mubr.bf16.gmra.mrb[0].mxu0 %v2791
        %v4126 = vpop.f32.mrb[0].mxu0
        %v4127 = vadd.f32 %v3966, %v4126
        %v4128 = vpop.f32.mrb[0].mxu0
        %v4129 = vpop.f32.mrb[0].mxu0
        %v4130 = vadd.f32 %v3969, %v4129
        %v4131 = vpop.f32.mrb[0].mxu0
        %4132 = vmatprep.mubr.bf16.mxu0 0
        %4133 = vmatmul.mubr.bf16.gmra.mrb[0].mxu0 %v2792
        %v4134 = vpop.f32.mrb[0].mxu0
        %v4135 = vadd.f32 %v3974, %v4134
        %v4136 = vpop.f32.mrb[0].mxu0
        %v4137 = vpop.f32.mrb[0].mxu0
        %v4138 = vadd.f32 %v3977, %v4137
        %v4139 = vpop.f32.mrb[0].mxu0
        %4140 = vmatprep.mubr.bf16.mxu0 0
        %4141 = vmatmul.mubr.bf16.gmra.mrb[0].mxu0 %v2793
        %v4142 = vpop.f32.mrb[0].mxu0
        %v4143 = vadd.f32 %v3982, %v4142
        %v4144 = vpop.f32.mrb[0].mxu0
        %v4145 = vpop.f32.mrb[0].mxu0
        %v4146 = vadd.f32 %v3985, %v4145
        %v4147 = vpop.f32.mrb[0].mxu0
        %4148 = vmatprep.mubr.bf16.mxu0 0
        %4149 = vmatmul.mubr.bf16.gmra.mrb[0].mxu0 %v2794
        %v4150 = vpop.f32.mrb[0].mxu0
        %v4151 = vadd.f32 %v3990, %v4150
        %v4152 = vpop.f32.mrb[0].mxu0
        %v4153 = vpop.f32.mrb[0].mxu0
        %v4154 = vadd.f32 %v3993, %v4153
        %v4155 = vpop.f32.mrb[0].mxu0
        %4156 = vmatprep.mubr.bf16.mxu0 0
        %4157 = vmatmul.mubr.bf16.gmra.mrb[0].mxu0 %v2795
        %v4158 = vpop.f32.mrb[0].mxu0
        %v4159 = vadd.f32 %v3998, %v4158
        %v4160 = vpop.f32.mrb[0].mxu0
        %v4161 = vpop.f32.mrb[0].mxu0
        %v4162 = vadd.f32 %v4001, %v4161
        %v4163 = vpop.f32.mrb[0].mxu0
        %4164 = vmatprep.mubr.bf16.mxu0 0
        %4165 = vmatmul.mubr.bf16.gmra.mrb[0].mxu0 %v2796
        %v4166 = vpop.f32.mrb[0].mxu0
        %v4167 = vadd.f32 %v4006, %v4166
        %v4168 = vpop.f32.mrb[0].mxu0
        %v4169 = vpop.f32.mrb[0].mxu0
        %v4170 = vadd.f32 %v4009, %v4169
        %v4171 = vpop.f32.mrb[0].mxu0
        %4172 = vmatprep.mubr.bf16.mxu0 0
        %4173 = vmatmul.mubr.bf16.gmra.mrb[0].mxu0 %v2797
        %v4174 = vpop.f32.mrb[0].mxu0
        %v4175 = vadd.f32 %v4014, %v4174
        %v4176 = vpop.f32.mrb[0].mxu0
        %v4177 = vpop.f32.mrb[0].mxu0
        %v4178 = vadd.f32 %v4017, %v4177
        %v4179 = vpop.f32.mrb[0].mxu0
        %4180 = vmatprep.mubr.bf16.mxu0 0
        %4181 = vmatmul.mubr.bf16.gmra.mrb[0].mxu0 %v2798
        %v4182 = vpop.f32.mrb[0].mxu0
        %v4183 = vadd.f32 %v4022, %v4182
        %v4184 = vpop.f32.mrb[0].mxu0
        %v4185 = vpop.f32.mrb[0].mxu0
        %v4186 = vadd.f32 %v4025, %v4185
        %v4187 = vpop.f32.mrb[0].mxu0
        %4188 = vmatprep.mubr.bf16.mxu0 0
        %4189 = vmatmul.mubr.bf16.gmra.mrb[0].mxu0 %v2799
        %v4190 = vpop.f32.mrb[0].mxu0
        %v4191 = vadd.f32 %v4030, %v4190
        %v4192 = vpop.f32.mrb[0].mxu0
        %v4193 = vpop.f32.mrb[0].mxu0
        %v4194 = vadd.f32 %v4033, %v4193
        %v4195 = vpop.f32.mrb[0].mxu0
        %4196 = vdwg.mxu0
        %v4197 = vld [vmem:[%s4] sm:$0x1]
        %v4199 = vlaneseq
        %v4200 = vshrl.u32 %v4199, 7
        %v4201 = vsub.s32 0, %v4200
        %v4202 = vrot.slane %v4197, %v4201
        %v4204 = vmul.f32 %v4071, %v4202
        %v4205 = vmul.f32 %v4074, %v4202
        %v4206 = vmul.f32 %v4079, %v4202
        %v4207 = vmul.f32 %v4082, %v4202
        %v4208 = vmul.f32 %v4087, %v4202
        %v4209 = vmul.f32 %v4090, %v4202
        %v4210 = vmul.f32 %v4095, %v4202
        %v4211 = vmul.f32 %v4098, %v4202
        %v4212 = vmul.f32 %v4103, %v4202
        %v4213 = vmul.f32 %v4106, %v4202
        %v4214 = vmul.f32 %v4111, %v4202
        %v4215 = vmul.f32 %v4114, %v4202
        %v4216 = vmul.f32 %v4119, %v4202
        %v4217 = vmul.f32 %v4122, %v4202
        %v4218 = vmul.f32 %v4127, %v4202
        %v4219 = vmul.f32 %v4130, %v4202
        %v4220 = vmul.f32 %v4135, %v4202
        %v4221 = vmul.f32 %v4138, %v4202
        %v4222 = vmul.f32 %v4143, %v4202
        %v4223 = vmul.f32 %v4146, %v4202
        %v4224 = vmul.f32 %v4151, %v4202
        %v4225 = vmul.f32 %v4154, %v4202
        %v4226 = vmul.f32 %v4159, %v4202
        %v4227 = vmul.f32 %v4162, %v4202
        %v4228 = vmul.f32 %v4167, %v4202
        %v4229 = vmul.f32 %v4170, %v4202
        %v4230 = vmul.f32 %v4175, %v4202
        %v4231 = vmul.f32 %v4178, %v4202
        %v4232 = vmul.f32 %v4183, %v4202
        %v4233 = vmul.f32 %v4186, %v4202
        %v4234 = vmul.f32 %v4191, %v4202
        %v4235 = vmul.f32 %v4194, %v4202
        %v4236 = vld [vmem:[%s5] sm:$0x1]
        %v4238 = vlaneseq
        %v4239 = vshrl.u32 %v4238, 7
        %v4240 = vsub.s32 0, %v4239
        %v4241 = vrot.slane %v4236, %v4240
        %v4243 = vadd.f32 %v4204, %v4241
        %v4244 = vadd.f32 %v4205, %v4241
        %v4245 = vadd.f32 %v4206, %v4241
        %v4246 = vadd.f32 %v4207, %v4241
        %v4247 = vadd.f32 %v4208, %v4241
        %v4248 = vadd.f32 %v4209, %v4241
        %v4249 = vadd.f32 %v4210, %v4241
        %v4250 = vadd.f32 %v4211, %v4241
        %v4251 = vadd.f32 %v4212, %v4241
        %v4252 = vadd.f32 %v4213, %v4241
        %v4253 = vadd.f32 %v4214, %v4241
        %v4254 = vadd.f32 %v4215, %v4241
        %v4255 = vadd.f32 %v4216, %v4241
        %v4256 = vadd.f32 %v4217, %v4241
        %v4257 = vadd.f32 %v4218, %v4241
        %v4258 = vadd.f32 %v4219, %v4241
        %v4259 = vadd.f32 %v4220, %v4241
        %v4260 = vadd.f32 %v4221, %v4241
        %v4261 = vadd.f32 %v4222, %v4241
        %v4262 = vadd.f32 %v4223, %v4241
        %v4263 = vadd.f32 %v4224, %v4241
        %v4264 = vadd.f32 %v4225, %v4241
        %v4265 = vadd.f32 %v4226, %v4241
        %v4266 = vadd.f32 %v4227, %v4241
        %v4267 = vadd.f32 %v4228, %v4241
        %v4268 = vadd.f32 %v4229, %v4241
        %v4269 = vadd.f32 %v4230, %v4241
        %v4270 = vadd.f32 %v4231, %v4241
        %v4271 = vadd.f32 %v4232, %v4241
        %v4272 = vadd.f32 %v4233, %v4241
        %v4273 = vadd.f32 %v4234, %v4241
        %v4274 = vadd.f32 %v4235, %v4241
        %vm4275 = vcmp.gt.f32.partialorder %v4243, 0.0
        %vm4276 = vcmp.gt.f32.partialorder %v4244, 0.0
        %vm4277 = vcmp.gt.f32.partialorder %v4245, 0.0
        %vm4278 = vcmp.gt.f32.partialorder %v4246, 0.0
        %vm4279 = vcmp.gt.f32.partialorder %v4247, 0.0
        %vm4280 = vcmp.gt.f32.partialorder %v4248, 0.0
        %vm4281 = vcmp.gt.f32.partialorder %v4249, 0.0
        %vm4282 = vcmp.gt.f32.partialorder %v4250, 0.0
        %vm4283 = vcmp.gt.f32.partialorder %v4251, 0.0
        %vm4284 = vcmp.gt.f32.partialorder %v4252, 0.0
        %vm4285 = vcmp.gt.f32.partialorder %v4253, 0.0
        %vm4286 = vcmp.gt.f32.partialorder %v4254, 0.0
        %vm4287 = vcmp.gt.f32.partialorder %v4255, 0.0
        %vm4288 = vcmp.gt.f32.partialorder %v4256, 0.0
        %vm4289 = vcmp.gt.f32.partialorder %v4257, 0.0
        %vm4290 = vcmp.gt.f32.partialorder %v4258, 0.0
        %vm4291 = vcmp.gt.f32.partialorder %v4259, 0.0
        %vm4292 = vcmp.gt.f32.partialorder %v4260, 0.0
        %vm4293 = vcmp.gt.f32.partialorder %v4261, 0.0
        %vm4294 = vcmp.gt.f32.partialorder %v4262, 0.0
        %vm4295 = vcmp.gt.f32.partialorder %v4263, 0.0
        %vm4296 = vcmp.gt.f32.partialorder %v4264, 0.0
        %vm4297 = vcmp.gt.f32.partialorder %v4265, 0.0
        %vm4298 = vcmp.gt.f32.partialorder %v4266, 0.0
        %vm4299 = vcmp.gt.f32.partialorder %v4267, 0.0
        %vm4300 = vcmp.gt.f32.partialorder %v4268, 0.0
        %vm4301 = vcmp.gt.f32.partialorder %v4269, 0.0
        %vm4302 = vcmp.gt.f32.partialorder %v4270, 0.0
        %vm4303 = vcmp.gt.f32.partialorder %v4271, 0.0
        %vm4304 = vcmp.gt.f32.partialorder %v4272, 0.0
        %vm4305 = vcmp.gt.f32.partialorder %v4273, 0.0
        %vm4306 = vcmp.gt.f32.partialorder %v4274, 0.0
        %v4307 = vmin.f32 %v4243, 0.0
        %v4308 = vmin.f32 %v4244, 0.0
        %v4309 = vmin.f32 %v4245, 0.0
        %v4310 = vmin.f32 %v4246, 0.0
        %v4311 = vmin.f32 %v4247, 0.0
        %v4312 = vmin.f32 %v4248, 0.0
        %v4313 = vmin.f32 %v4249, 0.0
        %v4314 = vmin.f32 %v4250, 0.0
        %v4315 = vmin.f32 %v4251, 0.0
        %v4316 = vmin.f32 %v4252, 0.0
        %v4317 = vmin.f32 %v4253, 0.0
        %v4318 = vmin.f32 %v4254, 0.0
        %v4319 = vmin.f32 %v4255, 0.0
        %v4320 = vmin.f32 %v4256, 0.0
        %v4321 = vmin.f32 %v4257, 0.0
        %v4322 = vmin.f32 %v4258, 0.0
        %v4323 = vmin.f32 %v4259, 0.0
        %v4324 = vmin.f32 %v4260, 0.0
        %v4325 = vmin.f32 %v4261, 0.0
        %v4326 = vmin.f32 %v4262, 0.0
        %v4327 = vmin.f32 %v4263, 0.0
        %v4328 = vmin.f32 %v4264, 0.0
        %v4329 = vmin.f32 %v4265, 0.0
        %v4330 = vmin.f32 %v4266, 0.0
        %v4331 = vmin.f32 %v4267, 0.0
        %v4332 = vmin.f32 %v4268, 0.0
        %v4333 = vmin.f32 %v4269, 0.0
        %v4334 = vmin.f32 %v4270, 0.0
        %v4335 = vmin.f32 %v4271, 0.0
        %v4336 = vmin.f32 %v4272, 0.0
        %v4337 = vmin.f32 %v4273, 0.0
        %v4338 = vmin.f32 %v4274, 0.0
        %v4339 = vmul.f32 %v4307, 1.442695
        %v4340 = vpow.pop %v4339
        %v4341 = vmul.f32 %v4308, 1.442695
        %v4342 = vpow.pop %v4341
        %v4343 = vmul.f32 %v4309, 1.442695
        %v4344 = vpow.pop %v4343
        %v4345 = vmul.f32 %v4310, 1.442695
        %v4346 = vpow.pop %v4345
        %v4347 = vmul.f32 %v4311, 1.442695
        %v4348 = vpow.pop %v4347
        %v4349 = vmul.f32 %v4312, 1.442695
        %v4350 = vpow.pop %v4349
        %v4351 = vmul.f32 %v4313, 1.442695
        %v4352 = vpow.pop %v4351
        %v4353 = vmul.f32 %v4314, 1.442695
        %v4354 = vpow.pop %v4353
        %v4355 = vmul.f32 %v4315, 1.442695
        %v4356 = vpow.pop %v4355
        %v4357 = vmul.f32 %v4316, 1.442695
        %v4358 = vpow.pop %v4357
        %v4359 = vmul.f32 %v4317, 1.442695
        %v4360 = vpow.pop %v4359
        %v4361 = vmul.f32 %v4318, 1.442695
        %v4362 = vpow.pop %v4361
        %v4363 = vmul.f32 %v4319, 1.442695
        %v4364 = vpow.pop %v4363
        %v4365 = vmul.f32 %v4320, 1.442695
        %v4366 = vpow.pop %v4365
        %v4367 = vmul.f32 %v4321, 1.442695
        %v4368 = vpow.pop %v4367
        %v4369 = vmul.f32 %v4322, 1.442695
        %v4370 = vpow.pop %v4369
        %v4371 = vmul.f32 %v4323, 1.442695
        %v4372 = vpow.pop %v4371
        %v4373 = vmul.f32 %v4324, 1.442695
        %v4374 = vpow.pop %v4373
        %v4375 = vmul.f32 %v4325, 1.442695
        %v4376 = vpow.pop %v4375
        %v4377 = vmul.f32 %v4326, 1.442695
        %v4378 = vpow.pop %v4377
        %v4379 = vmul.f32 %v4327, 1.442695
        %v4380 = vpow.pop %v4379
        %v4381 = vmul.f32 %v4328, 1.442695
        %v4382 = vpow.pop %v4381
        %v4383 = vmul.f32 %v4329, 1.442695
        %v4384 = vpow.pop %v4383
        %v4385 = vmul.f32 %v4330, 1.442695
        %v4386 = vpow.pop %v4385
        %v4387 = vmul.f32 %v4331, 1.442695
        %v4388 = vpow.pop %v4387
        %v4389 = vmul.f32 %v4332, 1.442695
        %v4390 = vpow.pop %v4389
        %v4391 = vmul.f32 %v4333, 1.442695
        %v4392 = vpow.pop %v4391
        %v4393 = vmul.f32 %v4334, 1.442695
        %v4394 = vpow.pop %v4393
        %v4395 = vmul.f32 %v4335, 1.442695
        %v4396 = vpow.pop %v4395
        %v4397 = vmul.f32 %v4336, 1.442695
        %v4398 = vpow.pop %v4397
        %v4399 = vmul.f32 %v4337, 1.442695
        %v4400 = vpow.pop %v4399
        %v4401 = vmul.f32 %v4338, 1.442695
        %v4402 = vpow.pop %v4401
        %v4403 = vsub.f32 %v4340, 1.0
        %v4404 = vsub.f32 %v4342, 1.0
        %v4405 = vsub.f32 %v4344, 1.0
        %v4406 = vsub.f32 %v4346, 1.0
        %v4407 = vsub.f32 %v4348, 1.0
        %v4408 = vsub.f32 %v4350, 1.0
        %v4409 = vsub.f32 %v4352, 1.0
        %v4410 = vsub.f32 %v4354, 1.0
        %v4411 = vsub.f32 %v4356, 1.0
        %v4412 = vsub.f32 %v4358, 1.0
        %v4413 = vsub.f32 %v4360, 1.0
        %v4414 = vsub.f32 %v4362, 1.0
        %v4415 = vsub.f32 %v4364, 1.0
        %v4416 = vsub.f32 %v4366, 1.0
        %v4417 = vsub.f32 %v4368, 1.0
        %v4418 = vsub.f32 %v4370, 1.0
        %v4419 = vsub.f32 %v4372, 1.0
        %v4420 = vsub.f32 %v4374, 1.0
        %v4421 = vsub.f32 %v4376, 1.0
        %v4422 = vsub.f32 %v4378, 1.0
        %v4423 = vsub.f32 %v4380, 1.0
        %v4424 = vsub.f32 %v4382, 1.0
        %v4425 = vsub.f32 %v4384, 1.0
        %v4426 = vsub.f32 %v4386, 1.0
        %v4427 = vsub.f32 %v4388, 1.0
        %v4428 = vsub.f32 %v4390, 1.0
        %v4429 = vsub.f32 %v4392, 1.0
        %v4430 = vsub.f32 %v4394, 1.0
        %v4431 = vsub.f32 %v4396, 1.0
        %v4432 = vsub.f32 %v4398, 1.0
        %v4433 = vsub.f32 %v4400, 1.0
        %v4434 = vsub.f32 %v4402, 1.0
        %v4435 = vsel %vm4275, %v4243, %v4403
        %v4436 = vsel %vm4276, %v4244, %v4404
        %v4437 = vsel %vm4277, %v4245, %v4405
        %v4438 = vsel %vm4278, %v4246, %v4406
        %v4439 = vsel %vm4279, %v4247, %v4407
        %v4440 = vsel %vm4280, %v4248, %v4408
        %v4441 = vsel %vm4281, %v4249, %v4409
        %v4442 = vsel %vm4282, %v4250, %v4410
        %v4443 = vsel %vm4283, %v4251, %v4411
        %v4444 = vsel %vm4284, %v4252, %v4412
        %v4445 = vsel %vm4285, %v4253, %v4413
        %v4446 = vsel %vm4286, %v4254, %v4414
        %v4447 = vsel %vm4287, %v4255, %v4415
        %v4448 = vsel %vm4288, %v4256, %v4416
        %v4449 = vsel %vm4289, %v4257, %v4417
        %v4450 = vsel %vm4290, %v4258, %v4418
        %v4451 = vsel %vm4291, %v4259, %v4419
        %v4452 = vsel %vm4292, %v4260, %v4420
        %v4453 = vsel %vm4293, %v4261, %v4421
        %v4454 = vsel %vm4294, %v4262, %v4422
        %v4455 = vsel %vm4295, %v4263, %v4423
        %v4456 = vsel %vm4296, %v4264, %v4424
        %v4457 = vsel %vm4297, %v4265, %v4425
        %v4458 = vsel %vm4298, %v4266, %v4426
        %v4459 = vsel %vm4299, %v4267, %v4427
        %v4460 = vsel %vm4300, %v4268, %v4428
        %v4461 = vsel %vm4301, %v4269, %v4429
        %v4462 = vsel %vm4302, %v4270, %v4430
        %v4463 = vsel %vm4303, %v4271, %v4431
        %v4464 = vsel %vm4304, %v4272, %v4432
        %v4465 = vsel %vm4305, %v4273, %v4433
        %v4466 = vsel %vm4306, %v4274, %v4434
        %4467 = vst [vmem:[#allocation2] sm:$0xf] 0
        %4468 = vst [vmem:[#allocation2 + $0x4] sm:$0xf] 0
        %4469 = vst [vmem:[#allocation2 + $0x8] sm:$0x1] 0
        %s4470 = scalar_lea.vmem [#allocation2], 204
        %4471 = vst [vmem:[%s4470] sm:$0xf] 0
        %4472 = vst [vmem:[%s4470 + $0x4] sm:$0xf] 0
        %4473 = vst [vmem:[%s4470 + $0x8] sm:$0x1] 0
        %s4474 = scalar_lea.vmem [#allocation2], 12
        %vm4475 = vcmask 1040384
        %vm4476 = vsmask.f32 256
        %vm4477 = vmand %vm4475, %vm4476
        %v4478 = vld [vmem:[%s4474] sm:$0x1]
        %v4479 = vsel %vm4477, 0, %v4478
        %4480 = vst [vmem:[%s4474] sm:$0x1] %v4479
        %v4481 = vld [vmem:[%s4474 + $0xc] sm:$0x1]
        %v4482 = vsel %vm4477, 0, %v4481
        %4483 = vst [vmem:[%s4474 + $0xc] sm:$0x1] %v4482
        %v4484 = vld [vmem:[%s4474 + $0x18] sm:$0x1]
        %v4485 = vsel %vm4477, 0, %v4484
        %4486 = vst [vmem:[%s4474 + $0x18] sm:$0x1] %v4485
        %v4487 = vld [vmem:[%s4474 + $0x24] sm:$0x1]
        %v4488 = vsel %vm4477, 0, %v4487
        %4489 = vst [vmem:[%s4474 + $0x24] sm:$0x1] %v4488
        %v4490 = vld [vmem:[%s4474 + $0x30] sm:$0x1]
        %v4491 = vsel %vm4477, 0, %v4490
        %4492 = vst [vmem:[%s4474 + $0x30] sm:$0x1] %v4491
        %v4493 = vld [vmem:[%s4474 + $0x3c] sm:$0x1]
        %v4494 = vsel %vm4477, 0, %v4493
        %4495 = vst [vmem:[%s4474 + $0x3c] sm:$0x1] %v4494
        %v4496 = vld [vmem:[%s4474 + $0x48] sm:$0x1]
        %v4497 = vsel %vm4477, 0, %v4496
        %4498 = vst [vmem:[%s4474 + $0x48] sm:$0x1] %v4497
        %v4499 = vld [vmem:[%s4474 + $0x54] sm:$0x1]
        %v4500 = vsel %vm4477, 0, %v4499
        %4501 = vst [vmem:[%s4474 + $0x54] sm:$0x1] %v4500
        %v4502 = vld [vmem:[%s4474 + $0x60] sm:$0x1]
        %v4503 = vsel %vm4477, 0, %v4502
        %4504 = vst [vmem:[%s4474 + $0x60] sm:$0x1] %v4503
        %v4505 = vld [vmem:[%s4474 + $0x6c] sm:$0x1]
        %v4506 = vsel %vm4477, 0, %v4505
        %4507 = vst [vmem:[%s4474 + $0x6c] sm:$0x1] %v4506
        %v4508 = vld [vmem:[%s4474 + $0x78] sm:$0x1]
        %v4509 = vsel %vm4477, 0, %v4508
        %4510 = vst [vmem:[%s4474 + $0x78] sm:$0x1] %v4509
        %v4511 = vld [vmem:[%s4474 + $0x84] sm:$0x1]
        %v4512 = vsel %vm4477, 0, %v4511
        %4513 = vst [vmem:[%s4474 + $0x84] sm:$0x1] %v4512
        %v4514 = vld [vmem:[%s4474 + $0x90] sm:$0x1]
        %v4515 = vsel %vm4477, 0, %v4514
        %4516 = vst [vmem:[%s4474 + $0x90] sm:$0x1] %v4515
        %v4517 = vld [vmem:[%s4474 + $0x9c] sm:$0x1]
        %v4518 = vsel %vm4477, 0, %v4517
        %4519 = vst [vmem:[%s4474 + $0x9c] sm:$0x1] %v4518
        %v4520 = vld [vmem:[%s4474 + $0xa8] sm:$0x1]
        %v4521 = vsel %vm4477, 0, %v4520
        %4522 = vst [vmem:[%s4474 + $0xa8] sm:$0x1] %v4521
        %v4523 = vld [vmem:[%s4474 + $0xb4] sm:$0x1]
        %v4524 = vsel %vm4477, 0, %v4523
        %4525 = vst [vmem:[%s4474 + $0xb4] sm:$0x1] %v4524
        %vm4526 = vsmask.f32 7938
        %vm4527 = vmand %vm4475, %vm4526
        %v4528 = vld [vmem:[%s4474 + $0x8] sm:$0x1]
        %v4529 = vsel %vm4527, 0, %v4528
        %4530 = vst [vmem:[%s4474 + $0x8] sm:$0x1] %v4529
        %v4531 = vld [vmem:[%s4474 + $0x14] sm:$0x1]
        %v4532 = vsel %vm4527, 0, %v4531
        %4533 = vst [vmem:[%s4474 + $0x14] sm:$0x1] %v4532
        %v4534 = vld [vmem:[%s4474 + $0x20] sm:$0x1]
        %v4535 = vsel %vm4527, 0, %v4534
        %4536 = vst [vmem:[%s4474 + $0x20] sm:$0x1] %v4535
        %v4537 = vld [vmem:[%s4474 + $0x2c] sm:$0x1]
        %v4538 = vsel %vm4527, 0, %v4537
        %4539 = vst [vmem:[%s4474 + $0x2c] sm:$0x1] %v4538
        %v4540 = vld [vmem:[%s4474 + $0x38] sm:$0x1]
        %v4541 = vsel %vm4527, 0, %v4540
        %4542 = vst [vmem:[%s4474 + $0x38] sm:$0x1] %v4541
        %v4543 = vld [vmem:[%s4474 + $0x44] sm:$0x1]
        %v4544 = vsel %vm4527, 0, %v4543
        %4545 = vst [vmem:[%s4474 + $0x44] sm:$0x1] %v4544
        %v4546 = vld [vmem:[%s4474 + $0x50] sm:$0x1]
        %v4547 = vsel %vm4527, 0, %v4546
        %4548 = vst [vmem:[%s4474 + $0x50] sm:$0x1] %v4547
        %v4549 = vld [vmem:[%s4474 + $0x5c] sm:$0x1]
        %v4550 = vsel %vm4527, 0, %v4549
        %4551 = vst [vmem:[%s4474 + $0x5c] sm:$0x1] %v4550
        %v4552 = vld [vmem:[%s4474 + $0x68] sm:$0x1]
        %v4553 = vsel %vm4527, 0, %v4552
        %4554 = vst [vmem:[%s4474 + $0x68] sm:$0x1] %v4553
        %v4555 = vld [vmem:[%s4474 + $0x74] sm:$0x1]
        %v4556 = vsel %vm4527, 0, %v4555
        %4557 = vst [vmem:[%s4474 + $0x74] sm:$0x1] %v4556
        %v4558 = vld [vmem:[%s4474 + $0x80] sm:$0x1]
        %v4559 = vsel %vm4527, 0, %v4558
        %4560 = vst [vmem:[%s4474 + $0x80] sm:$0x1] %v4559
        %v4561 = vld [vmem:[%s4474 + $0x8c] sm:$0x1]
        %v4562 = vsel %vm4527, 0, %v4561
        %4563 = vst [vmem:[%s4474 + $0x8c] sm:$0x1] %v4562
        %v4564 = vld [vmem:[%s4474 + $0x98] sm:$0x1]
        %v4565 = vsel %vm4527, 0, %v4564
        %4566 = vst [vmem:[%s4474 + $0x98] sm:$0x1] %v4565
        %v4567 = vld [vmem:[%s4474 + $0xa4] sm:$0x1]
        %v4568 = vsel %vm4527, 0, %v4567
        %4569 = vst [vmem:[%s4474 + $0xa4] sm:$0x1] %v4568
        %v4570 = vld [vmem:[%s4474 + $0xb0] sm:$0x1]
        %v4571 = vsel %vm4527, 0, %v4570
        %4572 = vst [vmem:[%s4474 + $0xb0] sm:$0x1] %v4571
        %v4573 = vld [vmem:[%s4474 + $0xbc] sm:$0x1]
        %v4574 = vsel %vm4527, 0, %v4573
        %4575 = vst [vmem:[%s4474 + $0xbc] sm:$0x1] %v4574
        %v4576 = vpack.c.bf16 %v4436, %v4435
        %v4577 = vpack.c.bf16 %v4438, %v4437
        %v4578 = vpack.c.bf16 %v4440, %v4439
        %v4579 = vpack.c.bf16 %v4442, %v4441
        %v4580 = vpack.c.bf16 %v4444, %v4443
        %v4581 = vpack.c.bf16 %v4446, %v4445
        %v4582 = vpack.c.bf16 %v4448, %v4447
        %v4583 = vpack.c.bf16 %v4450, %v4449
        %v4584 = vpack.c.bf16 %v4452, %v4451
        %v4585 = vpack.c.bf16 %v4454, %v4453
        %v4586 = vpack.c.bf16 %v4456, %v4455
        %v4587 = vpack.c.bf16 %v4458, %v4457
        %v4588 = vpack.c.bf16 %v4460, %v4459
        %v4589 = vpack.c.bf16 %v4462, %v4461
        %v4590 = vpack.c.bf16 %v4464, %v4463
        %v4591 = vpack.c.bf16 %v4466, %v4465
        %v4608 = vunpack.c.l.b16 %v4576
        %v4609 = vunpack.c.h.b16 %v4576
        %v4610 = vunpack.c.l.b16 %v4577
        %v4611 = vunpack.c.h.b16 %v4577
        %v4612 = vunpack.c.l.b16 %v4578
        %v4613 = vunpack.c.h.b16 %v4578
        %v4614 = vunpack.c.l.b16 %v4579
        %v4615 = vunpack.c.h.b16 %v4579
        %v4616 = vunpack.c.l.b16 %v4580
        %v4617 = vunpack.c.h.b16 %v4580
        %v4618 = vunpack.c.l.b16 %v4581
        %v4619 = vunpack.c.h.b16 %v4581
        %v4620 = vunpack.c.l.b16 %v4582
        %v4621 = vunpack.c.h.b16 %v4582
        %v4622 = vunpack.c.l.b16 %v4583
        %v4623 = vunpack.c.h.b16 %v4583
        %v4624 = vunpack.c.l.b16 %v4584
        %v4625 = vunpack.c.h.b16 %v4584
        %v4626 = vunpack.c.l.b16 %v4585
        %v4627 = vunpack.c.h.b16 %v4585
        %v4628 = vunpack.c.l.b16 %v4586
        %v4629 = vunpack.c.h.b16 %v4586
        %v4630 = vunpack.c.l.b16 %v4587
        %v4631 = vunpack.c.h.b16 %v4587
        %v4632 = vunpack.c.l.b16 %v4588
        %v4633 = vunpack.c.h.b16 %v4588
        %v4634 = vunpack.c.l.b16 %v4589
        %v4635 = vunpack.c.h.b16 %v4589
        %v4636 = vunpack.c.l.b16 %v4590
        %v4637 = vunpack.c.h.b16 %v4590
        %v4638 = vunpack.c.l.b16 %v4591
        %v4639 = vunpack.c.h.b16 %v4591
        %v4640 = vpack.c.b16 %v4608, %v4608
        %v4641 = vpack.c.b16 %v4609, %v4609
        %v4642 = vpack.c.b16 %v4610, %v4610
        %v4643 = vpack.c.b16 %v4611, %v4611
        %v4644 = vpack.c.b16 %v4612, %v4612
        %v4645 = vpack.c.b16 %v4613, %v4613
        %v4646 = vpack.c.b16 %v4614, %v4614
        %v4647 = vpack.c.b16 %v4615, %v4615
        %v4648 = vpack.c.b16 %v4616, %v4616
        %v4649 = vpack.c.b16 %v4617, %v4617
        %v4650 = vpack.c.b16 %v4618, %v4618
        %v4651 = vpack.c.b16 %v4619, %v4619
        %v4652 = vpack.c.b16 %v4620, %v4620
        %v4653 = vpack.c.b16 %v4621, %v4621
        %v4654 = vpack.c.b16 %v4622, %v4622
        %v4655 = vpack.c.b16 %v4623, %v4623
        %v4656 = vpack.c.b16 %v4624, %v4624
        %v4657 = vpack.c.b16 %v4625, %v4625
        %v4658 = vpack.c.b16 %v4626, %v4626
        %v4659 = vpack.c.b16 %v4627, %v4627
        %v4660 = vpack.c.b16 %v4628, %v4628
        %v4661 = vpack.c.b16 %v4629, %v4629
        %v4662 = vpack.c.b16 %v4630, %v4630
        %v4663 = vpack.c.b16 %v4631, %v4631
        %v4664 = vpack.c.b16 %v4632, %v4632
        %v4665 = vpack.c.b16 %v4633, %v4633
        %v4666 = vpack.c.b16 %v4634, %v4634
        %v4667 = vpack.c.b16 %v4635, %v4635
        %v4668 = vpack.c.b16 %v4636, %v4636
        %v4669 = vpack.c.b16 %v4637, %v4637
        %v4670 = vpack.c.b16 %v4638, %v4638
        %v4671 = vpack.c.b16 %v4639, %v4639
        %vm4672 = vsmask.f32 4368
        %vm4673 = vmor %vm4476, %vm4672
        %v4675 = vshrl.u32 %v4640, 16
        %v4677 = vrot.slane %v4675, 7
        %v4678 = vshll.u32 %v4640, 16
        %v4680 = vor.u32 %v4677, %v4678
        %v4681 = vrot.slane %v4677, 4
        %v4683 = vshrl.u32 %v4641, 16
        %v4685 = vrot.slane %v4683, 7
        %v4686 = vshll.u32 %v4641, 16
        %v4688 = vor.u32 %v4685, %v4686
        %v4689 = vsel %vm4673, %v4681, %v4688
        %v4690 = vrot.slane %v4685, 4
        %v4692 = vshrl.u32 %v4642, 16
        %v4694 = vrot.slane %v4692, 7
        %v4695 = vshll.u32 %v4642, 16
        %v4697 = vor.u32 %v4694, %v4695
        %v4698 = vrot.slane %v4694, 4
        %v4700 = vshrl.u32 %v4643, 16
        %v4702 = vrot.slane %v4700, 7
        %v4703 = vshll.u32 %v4643, 16
        %v4705 = vor.u32 %v4702, %v4703
        %v4706 = vsel %vm4673, %v4698, %v4705
        %v4707 = vrot.slane %v4702, 4
        %v4709 = vshrl.u32 %v4644, 16
        %v4711 = vrot.slane %v4709, 7
        %v4712 = vshll.u32 %v4644, 16
        %v4714 = vor.u32 %v4711, %v4712
        %v4715 = vrot.slane %v4711, 4
        %v4717 = vshrl.u32 %v4645, 16
        %v4719 = vrot.slane %v4717, 7
        %v4720 = vshll.u32 %v4645, 16
        %v4722 = vor.u32 %v4719, %v4720
        %v4723 = vsel %vm4673, %v4715, %v4722
        %v4724 = vrot.slane %v4719, 4
        %v4726 = vshrl.u32 %v4646, 16
        %v4728 = vrot.slane %v4726, 7
        %v4729 = vshll.u32 %v4646, 16
        %v4731 = vor.u32 %v4728, %v4729
        %v4732 = vrot.slane %v4728, 4
        %v4734 = vshrl.u32 %v4647, 16
        %v4736 = vrot.slane %v4734, 7
        %v4737 = vshll.u32 %v4647, 16
        %v4739 = vor.u32 %v4736, %v4737
        %v4740 = vsel %vm4673, %v4732, %v4739
        %v4741 = vrot.slane %v4736, 4
        %v4743 = vshrl.u32 %v4648, 16
        %v4745 = vrot.slane %v4743, 7
        %v4746 = vshll.u32 %v4648, 16
        %v4748 = vor.u32 %v4745, %v4746
        %v4749 = vrot.slane %v4745, 4
        %v4751 = vshrl.u32 %v4649, 16
        %v4753 = vrot.slane %v4751, 7
        %v4754 = vshll.u32 %v4649, 16
        %v4756 = vor.u32 %v4753, %v4754
        %v4757 = vsel %vm4673, %v4749, %v4756
        %v4758 = vrot.slane %v4753, 4
        %v4760 = vshrl.u32 %v4650, 16
        %v4762 = vrot.slane %v4760, 7
        %v4763 = vshll.u32 %v4650, 16
        %v4765 = vor.u32 %v4762, %v4763
        %v4766 = vrot.slane %v4762, 4
        %v4768 = vshrl.u32 %v4651, 16
        %v4770 = vrot.slane %v4768, 7
        %v4771 = vshll.u32 %v4651, 16
        %v4773 = vor.u32 %v4770, %v4771
        %v4774 = vsel %vm4673, %v4766, %v4773
        %v4775 = vrot.slane %v4770, 4
        %v4777 = vshrl.u32 %v4652, 16
        %v4779 = vrot.slane %v4777, 7
        %v4780 = vshll.u32 %v4652, 16
        %v4782 = vor.u32 %v4779, %v4780
        %v4783 = vrot.slane %v4779, 4
        %v4785 = vshrl.u32 %v4653, 16
        %v4787 = vrot.slane %v4785, 7
        %v4788 = vshll.u32 %v4653, 16
        %v4790 = vor.u32 %v4787, %v4788
        %v4791 = vsel %vm4673, %v4783, %v4790
        %v4792 = vrot.slane %v4787, 4
        %v4794 = vshrl.u32 %v4654, 16
        %v4796 = vrot.slane %v4794, 7
        %v4797 = vshll.u32 %v4654, 16
        %v4799 = vor.u32 %v4796, %v4797
        %v4800 = vrot.slane %v4796, 4
        %v4802 = vshrl.u32 %v4655, 16
        %v4804 = vrot.slane %v4802, 7
        %v4805 = vshll.u32 %v4655, 16
        %v4807 = vor.u32 %v4804, %v4805
        %v4808 = vsel %vm4673, %v4800, %v4807
        %v4809 = vrot.slane %v4804, 4
        %v4811 = vshrl.u32 %v4656, 16
        %v4813 = vrot.slane %v4811, 7
        %v4814 = vshll.u32 %v4656, 16
        %v4816 = vor.u32 %v4813, %v4814
        %v4817 = vrot.slane %v4813, 4
        %v4819 = vshrl.u32 %v4657, 16
        %v4821 = vrot.slane %v4819, 7
        %v4822 = vshll.u32 %v4657, 16
        %v4824 = vor.u32 %v4821, %v4822
        %v4825 = vsel %vm4673, %v4817, %v4824
        %v4826 = vrot.slane %v4821, 4
        %v4828 = vshrl.u32 %v4658, 16
        %v4830 = vrot.slane %v4828, 7
        %v4831 = vshll.u32 %v4658, 16
        %v4833 = vor.u32 %v4830, %v4831
        %v4834 = vrot.slane %v4830, 4
        %v4836 = vshrl.u32 %v4659, 16
        %v4838 = vrot.slane %v4836, 7
        %v4839 = vshll.u32 %v4659, 16
        %v4841 = vor.u32 %v4838, %v4839
        %v4842 = vsel %vm4673, %v4834, %v4841
        %v4843 = vrot.slane %v4838, 4
        %v4845 = vshrl.u32 %v4660, 16
        %v4847 = vrot.slane %v4845, 7
        %v4848 = vshll.u32 %v4660, 16
        %v4850 = vor.u32 %v4847, %v4848
        %v4851 = vrot.slane %v4847, 4
        %v4853 = vshrl.u32 %v4661, 16
        %v4855 = vrot.slane %v4853, 7
        %v4856 = vshll.u32 %v4661, 16
        %v4858 = vor.u32 %v4855, %v4856
        %v4859 = vsel %vm4673, %v4851, %v4858
        %v4860 = vrot.slane %v4855, 4
        %v4862 = vshrl.u32 %v4662, 16
        %v4864 = vrot.slane %v4862, 7
        %v4865 = vshll.u32 %v4662, 16
        %v4867 = vor.u32 %v4864, %v4865
        %v4868 = vrot.slane %v4864, 4
        %v4870 = vshrl.u32 %v4663, 16
        %v4872 = vrot.slane %v4870, 7
        %v4873 = vshll.u32 %v4663, 16
        %v4875 = vor.u32 %v4872, %v4873
        %v4876 = vsel %vm4673, %v4868, %v4875
        %v4877 = vrot.slane %v4872, 4
        %v4879 = vshrl.u32 %v4664, 16
        %v4881 = vrot.slane %v4879, 7
        %v4882 = vshll.u32 %v4664, 16
        %v4884 = vor.u32 %v4881, %v4882
        %v4885 = vrot.slane %v4881, 4
        %v4887 = vshrl.u32 %v4665, 16
        %v4889 = vrot.slane %v4887, 7
        %v4890 = vshll.u32 %v4665, 16
        %v4892 = vor.u32 %v4889, %v4890
        %v4893 = vsel %vm4673, %v4885, %v4892
        %v4894 = vrot.slane %v4889, 4
        %v4896 = vshrl.u32 %v4666, 16
        %v4898 = vrot.slane %v4896, 7
        %v4899 = vshll.u32 %v4666, 16
        %v4901 = vor.u32 %v4898, %v4899
        %v4902 = vrot.slane %v4898, 4
        %v4904 = vshrl.u32 %v4667, 16
        %v4906 = vrot.slane %v4904, 7
        %v4907 = vshll.u32 %v4667, 16
        %v4909 = vor.u32 %v4906, %v4907
        %v4910 = vsel %vm4673, %v4902, %v4909
        %v4911 = vrot.slane %v4906, 4
        %v4913 = vshrl.u32 %v4668, 16
        %v4915 = vrot.slane %v4913, 7
        %v4916 = vshll.u32 %v4668, 16
        %v4918 = vor.u32 %v4915, %v4916
        %v4919 = vrot.slane %v4915, 4
        %v4921 = vshrl.u32 %v4669, 16
        %v4923 = vrot.slane %v4921, 7
        %v4924 = vshll.u32 %v4669, 16
        %v4926 = vor.u32 %v4923, %v4924
        %v4927 = vsel %vm4673, %v4919, %v4926
        %v4928 = vrot.slane %v4923, 4
        %v4930 = vshrl.u32 %v4670, 16
        %v4932 = vrot.slane %v4930, 7
        %v4933 = vshll.u32 %v4670, 16
        %v4935 = vor.u32 %v4932, %v4933
        %v4936 = vrot.slane %v4932, 4
        %v4938 = vshrl.u32 %v4671, 16
        %v4940 = vrot.slane %v4938, 7
        %v4941 = vshll.u32 %v4671, 16
        %v4943 = vor.u32 %v4940, %v4941
        %v4944 = vsel %vm4673, %v4936, %v4943
        %v4945 = vrot.slane %v4940, 4
        %vm4994 = vcmask 1043456
        %vm4995 = vmand %vm4994, %vm4526
        %v4996 = vld [vmem:[%s4474] sm:$0xf]
        %v4997 = vsel %vm4995, %v4680, %v4996
        %4998 = vst [vmem:[%s4474] sm:$0xf] %v4997
        %4999 = vst [vmem:[%s4474 + $0x4] sm:$0xf] %v4689
        %v5000 = vld [vmem:[%s4474 + $0x8] sm:$0x1]
        %v5001 = vsel %vm4477, %v4690, %v5000
        %5002 = vst [vmem:[%s4474 + $0x8] sm:$0x1] %v5001
        %v5003 = vld [vmem:[%s4474 + $0xc] sm:$0xf]
        %v5004 = vsel %vm4995, %v4697, %v5003
        %5005 = vst [vmem:[%s4474 + $0xc] sm:$0xf] %v5004
        %5006 = vst [vmem:[%s4474 + $0x10] sm:$0xf] %v4706
        %v5007 = vld [vmem:[%s4474 + $0x14] sm:$0x1]
        %v5008 = vsel %vm4477, %v4707, %v5007
        %5009 = vst [vmem:[%s4474 + $0x14] sm:$0x1] %v5008
        %v5010 = vld [vmem:[%s4474 + $0x18] sm:$0xf]
        %v5011 = vsel %vm4995, %v4714, %v5010
        %5012 = vst [vmem:[%s4474 + $0x18] sm:$0xf] %v5011
        %5013 = vst [vmem:[%s4474 + $0x1c] sm:$0xf] %v4723
        %v5014 = vld [vmem:[%s4474 + $0x20] sm:$0x1]
        %v5015 = vsel %vm4477, %v4724, %v5014
        %5016 = vst [vmem:[%s4474 + $0x20] sm:$0x1] %v5015
        %v5017 = vld [vmem:[%s4474 + $0x24] sm:$0xf]
        %v5018 = vsel %vm4995, %v4731, %v5017
        %5019 = vst [vmem:[%s4474 + $0x24] sm:$0xf] %v5018
        %5020 = vst [vmem:[%s4474 + $0x28] sm:$0xf] %v4740
        %v5021 = vld [vmem:[%s4474 + $0x2c] sm:$0x1]
        %v5022 = vsel %vm4477, %v4741, %v5021
        %5023 = vst [vmem:[%s4474 + $0x2c] sm:$0x1] %v5022
        %v5024 = vld [vmem:[%s4474 + $0x30] sm:$0xf]
        %v5025 = vsel %vm4995, %v4748, %v5024
        %5026 = vst [vmem:[%s4474 + $0x30] sm:$0xf] %v5025
        %5027 = vst [vmem:[%s4474 + $0x34] sm:$0xf] %v4757
        %v5028 = vld [vmem:[%s4474 + $0x38] sm:$0x1]
        %v5029 = vsel %vm4477, %v4758, %v5028
        %5030 = vst [vmem:[%s4474 + $0x38] sm:$0x1] %v5029
        %v5031 = vld [vmem:[%s4474 + $0x3c] sm:$0xf]
        %v5032 = vsel %vm4995, %v4765, %v5031
        %5033 = vst [vmem:[%s4474 + $0x3c] sm:$0xf] %v5032
        %5034 = vst [vmem:[%s4474 + $0x40] sm:$0xf] %v4774
        %v5035 = vld [vmem:[%s4474 + $0x44] sm:$0x1]
        %v5036 = vsel %vm4477, %v4775, %v5035
        %5037 = vst [vmem:[%s4474 + $0x44] sm:$0x1] %v5036
        %v5038 = vld [vmem:[%s4474 + $0x48] sm:$0xf]
        %v5039 = vsel %vm4995, %v4782, %v5038
        %5040 = vst [vmem:[%s4474 + $0x48] sm:$0xf] %v5039
        %5041 = vst [vmem:[%s4474 + $0x4c] sm:$0xf] %v4791
        %v5042 = vld [vmem:[%s4474 + $0x50] sm:$0x1]
        %v5043 = vsel %vm4477, %v4792, %v5042
        %5044 = vst [vmem:[%s4474 + $0x50] sm:$0x1] %v5043
        %v5045 = vld [vmem:[%s4474 + $0x54] sm:$0xf]
        %v5046 = vsel %vm4995, %v4799, %v5045
        %5047 = vst [vmem:[%s4474 + $0x54] sm:$0xf] %v5046
        %5048 = vst [vmem:[%s4474 + $0x58] sm:$0xf] %v4808
        %v5049 = vld [vmem:[%s4474 + $0x5c] sm:$0x1]
        %v5050 = vsel %vm4477, %v4809, %v5049
        %5051 = vst [vmem:[%s4474 + $0x5c] sm:$0x1] %v5050
        %v5052 = vld [vmem:[%s4474 + $0x60] sm:$0xf]
        %v5053 = vsel %vm4995, %v4816, %v5052
        %5054 = vst [vmem:[%s4474 + $0x60] sm:$0xf] %v5053
        %5055 = vst [vmem:[%s4474 + $0x64] sm:$0xf] %v4825
        %v5056 = vld [vmem:[%s4474 + $0x68] sm:$0x1]
        %v5057 = vsel %vm4477, %v4826, %v5056
        %5058 = vst [vmem:[%s4474 + $0x68] sm:$0x1] %v5057
        %v5059 = vld [vmem:[%s4474 + $0x6c] sm:$0xf]
        %v5060 = vsel %vm4995, %v4833, %v5059
        %5061 = vst [vmem:[%s4474 + $0x6c] sm:$0xf] %v5060
        %5062 = vst [vmem:[%s4474 + $0x70] sm:$0xf] %v4842
        %v5063 = vld [vmem:[%s4474 + $0x74] sm:$0x1]
        %v5064 = vsel %vm4477, %v4843, %v5063
        %5065 = vst [vmem:[%s4474 + $0x74] sm:$0x1] %v5064
        %v5066 = vld [vmem:[%s4474 + $0x78] sm:$0xf]
        %v5067 = vsel %vm4995, %v4850, %v5066
        %5068 = vst [vmem:[%s4474 + $0x78] sm:$0xf] %v5067
        %5069 = vst [vmem:[%s4474 + $0x7c] sm:$0xf] %v4859
        %v5070 = vld [vmem:[%s4474 + $0x80] sm:$0x1]
        %v5071 = vsel %vm4477, %v4860, %v5070
        %5072 = vst [vmem:[%s4474 + $0x80] sm:$0x1] %v5071
        %v5073 = vld [vmem:[%s4474 + $0x84] sm:$0xf]
        %v5074 = vsel %vm4995, %v4867, %v5073
        %5075 = vst [vmem:[%s4474 + $0x84] sm:$0xf] %v5074
        %5076 = vst [vmem:[%s4474 + $0x88] sm:$0xf] %v4876
        %v5077 = vld [vmem:[%s4474 + $0x8c] sm:$0x1]
        %v5078 = vsel %vm4477, %v4877, %v5077
        %5079 = vst [vmem:[%s4474 + $0x8c] sm:$0x1] %v5078
        %v5080 = vld [vmem:[%s4474 + $0x90] sm:$0xf]
        %v5081 = vsel %vm4995, %v4884, %v5080
        %5082 = vst [vmem:[%s4474 + $0x90] sm:$0xf] %v5081
        %5083 = vst [vmem:[%s4474 + $0x94] sm:$0xf] %v4893
        %v5084 = vld [vmem:[%s4474 + $0x98] sm:$0x1]
        %v5085 = vsel %vm4477, %v4894, %v5084
        %5086 = vst [vmem:[%s4474 + $0x98] sm:$0x1] %v5085
        %v5087 = vld [vmem:[%s4474 + $0x9c] sm:$0xf]
        %v5088 = vsel %vm4995, %v4901, %v5087
        %5089 = vst [vmem:[%s4474 + $0x9c] sm:$0xf] %v5088
        %5090 = vst [vmem:[%s4474 + $0xa0] sm:$0xf] %v4910
        %v5091 = vld [vmem:[%s4474 + $0xa4] sm:$0x1]
        %v5092 = vsel %vm4477, %v4911, %v5091
        %5093 = vst [vmem:[%s4474 + $0xa4] sm:$0x1] %v5092
        %v5094 = vld [vmem:[%s4474 + $0xa8] sm:$0xf]
        %v5095 = vsel %vm4995, %v4918, %v5094
        %5096 = vst [vmem:[%s4474 + $0xa8] sm:$0xf] %v5095
        %5097 = vst [vmem:[%s4474 + $0xac] sm:$0xf] %v4927
        %v5098 = vld [vmem:[%s4474 + $0xb0] sm:$0x1]
        %v5099 = vsel %vm4477, %v4928, %v5098
        %5100 = vst [vmem:[%s4474 + $0xb0] sm:$0x1] %v5099
        %v5101 = vld [vmem:[%s4474 + $0xb4] sm:$0xf]
        %v5102 = vsel %vm4995, %v4935, %v5101
        %5103 = vst [vmem:[%s4474 + $0xb4] sm:$0xf] %v5102
        %5104 = vst [vmem:[%s4474 + $0xb8] sm:$0xf] %v4944
        %v5105 = vld [vmem:[%s4474 + $0xbc] sm:$0x1]
        %v5106 = vsel %vm4477, %v4945, %v5105
        %5107 = vst [vmem:[%s4474 + $0xbc] sm:$0x1] %v5106
        %v5108 = vld [vmem:[#allocation2] sm:$0xf]
        %v5109 = vld [vmem:[#allocation2 + $0x4] sm:$0xf]
        %v5110 = vld [vmem:[#allocation2 + $0xc] sm:$0xf]
        %v5111 = vld [vmem:[#allocation2 + $0x10] sm:$0xf]
        %v5112 = vld [vmem:[#allocation2 + $0x18] sm:$0xf]
        %v5113 = vld [vmem:[#allocation2 + $0x1c] sm:$0xf]
        %v5114 = vld [vmem:[#allocation2 + $0x24] sm:$0xf]
        %v5115 = vld [vmem:[#allocation2 + $0x28] sm:$0xf]
        %v5116 = vld [vmem:[#allocation2 + $0x30] sm:$0xf]
        %v5117 = vld [vmem:[#allocation2 + $0x34] sm:$0xf]
        %v5118 = vld [vmem:[#allocation2 + $0x3c] sm:$0xf]
        %v5119 = vld [vmem:[#allocation2 + $0x40] sm:$0xf]
        %v5120 = vld [vmem:[#allocation2 + $0x48] sm:$0xf]
        %v5121 = vld [vmem:[#allocation2 + $0x4c] sm:$0xf]
        %v5122 = vld [vmem:[#allocation2 + $0x54] sm:$0xf]
        %v5123 = vld [vmem:[#allocation2 + $0x58] sm:$0xf]
        %v5124 = vld [vmem:[#allocation2 + $0x60] sm:$0xf]
        %v5125 = vld [vmem:[#allocation2 + $0x64] sm:$0xf]
        %v5126 = vld [vmem:[#allocation2 + $0x6c] sm:$0xf]
        %v5127 = vld [vmem:[#allocation2 + $0x70] sm:$0xf]
        %v5128 = vld [vmem:[#allocation2 + $0x78] sm:$0xf]
        %v5129 = vld [vmem:[#allocation2 + $0x7c] sm:$0xf]
        %v5130 = vld [vmem:[#allocation2 + $0x84] sm:$0xf]
        %v5131 = vld [vmem:[#allocation2 + $0x88] sm:$0xf]
        %v5132 = vld [vmem:[#allocation2 + $0x90] sm:$0xf]
        %v5133 = vld [vmem:[#allocation2 + $0x94] sm:$0xf]
        %v5134 = vld [vmem:[#allocation2 + $0x9c] sm:$0xf]
        %v5135 = vld [vmem:[#allocation2 + $0xa0] sm:$0xf]
        %v5136 = vld [vmem:[#allocation2 + $0xa8] sm:$0xf]
        %v5137 = vld [vmem:[#allocation2 + $0xac] sm:$0xf]
        %v5138 = vld [vmem:[#allocation2 + $0xb4] sm:$0xf]
        %v5139 = vld [vmem:[#allocation2 + $0xb8] sm:$0xf]
        %v5140 = vld [vmem:[#allocation2 + $0x8] sm:$0x1]
        %v5141 = vld [vmem:[#allocation2 + $0x14] sm:$0x1]
        %v5142 = vld [vmem:[#allocation2 + $0x20] sm:$0x1]
        %v5143 = vld [vmem:[#allocation2 + $0x2c] sm:$0x1]
        %v5144 = vld [vmem:[#allocation2 + $0x38] sm:$0x1]
        %v5145 = vld [vmem:[#allocation2 + $0x44] sm:$0x1]
        %v5146 = vld [vmem:[#allocation2 + $0x50] sm:$0x1]
        %v5147 = vld [vmem:[#allocation2 + $0x5c] sm:$0x1]
        %v5148 = vld [vmem:[#allocation2 + $0x68] sm:$0x1]
        %v5149 = vld [vmem:[#allocation2 + $0x74] sm:$0x1]
        %v5150 = vld [vmem:[#allocation2 + $0x80] sm:$0x1]
        %v5151 = vld [vmem:[#allocation2 + $0x8c] sm:$0x1]
        %v5152 = vld [vmem:[#allocation2 + $0x98] sm:$0x1]
        %v5153 = vld [vmem:[#allocation2 + $0xa4] sm:$0x1]
        %v5154 = vld [vmem:[#allocation2 + $0xb0] sm:$0x1]
        %v5155 = vld [vmem:[#allocation2 + $0xbc] sm:$0x1]
        %v5157 = vshrl.u32 %v5108, 16
        %v5159 = vrot.slane %v5157, 4
        %v5160 = vshll.u32 %v5108, 16
        %v5162 = vrot.slane %v5160, 5
        %v5163 = vor.u32 %v5159, %v5162
        %v5164 = vrot.slane %v5163, 4
        %v5166 = vshll.u32 %v5109, 16
        %v5168 = vrot.slane %v5166, 5
        %v5169 = vsel %vm410, %v5164, %v5168
        %v5170 = vshrl.u32 %v5109, 16
        %v5172 = vrot.slane %v5170, 4
        %v5173 = vor.u32 %v5172, %v5168
        %v5174 = vrot.slane %v5173, 4
        %v5176 = vshll.u32 %v5140, 16
        %v5178 = vrot.slane %v5176, 5
        %v5179 = vsel %vm410, %v5174, %v5178
        %v5181 = vshrl.u32 %v5110, 16
        %v5183 = vrot.slane %v5181, 4
        %v5184 = vshll.u32 %v5110, 16
        %v5186 = vrot.slane %v5184, 5
        %v5187 = vor.u32 %v5183, %v5186
        %v5188 = vrot.slane %v5187, 4
        %v5190 = vshll.u32 %v5111, 16
        %v5192 = vrot.slane %v5190, 5
        %v5193 = vsel %vm410, %v5188, %v5192
        %v5194 = vshrl.u32 %v5111, 16
        %v5196 = vrot.slane %v5194, 4
        %v5197 = vor.u32 %v5196, %v5192
        %v5198 = vrot.slane %v5197, 4
        %v5200 = vshll.u32 %v5141, 16
        %v5202 = vrot.slane %v5200, 5
        %v5203 = vsel %vm410, %v5198, %v5202
        %v5205 = vshrl.u32 %v5112, 16
        %v5207 = vrot.slane %v5205, 4
        %v5208 = vshll.u32 %v5112, 16
        %v5210 = vrot.slane %v5208, 5
        %v5211 = vor.u32 %v5207, %v5210
        %v5212 = vrot.slane %v5211, 4
        %v5214 = vshll.u32 %v5113, 16
        %v5216 = vrot.slane %v5214, 5
        %v5217 = vsel %vm410, %v5212, %v5216
        %v5218 = vshrl.u32 %v5113, 16
        %v5220 = vrot.slane %v5218, 4
        %v5221 = vor.u32 %v5220, %v5216
        %v5222 = vrot.slane %v5221, 4
        %v5224 = vshll.u32 %v5142, 16
        %v5226 = vrot.slane %v5224, 5
        %v5227 = vsel %vm410, %v5222, %v5226
        %v5229 = vshrl.u32 %v5114, 16
        %v5231 = vrot.slane %v5229, 4
        %v5232 = vshll.u32 %v5114, 16
        %v5234 = vrot.slane %v5232, 5
        %v5235 = vor.u32 %v5231, %v5234
        %v5236 = vrot.slane %v5235, 4
        %v5238 = vshll.u32 %v5115, 16
        %v5240 = vrot.slane %v5238, 5
        %v5241 = vsel %vm410, %v5236, %v5240
        %v5242 = vshrl.u32 %v5115, 16
        %v5244 = vrot.slane %v5242, 4
        %v5245 = vor.u32 %v5244, %v5240
        %v5246 = vrot.slane %v5245, 4
        %v5248 = vshll.u32 %v5143, 16
        %v5250 = vrot.slane %v5248, 5
        %v5251 = vsel %vm410, %v5246, %v5250
        %v5253 = vshrl.u32 %v5116, 16
        %v5255 = vrot.slane %v5253, 4
        %v5256 = vshll.u32 %v5116, 16
        %v5258 = vrot.slane %v5256, 5
        %v5259 = vor.u32 %v5255, %v5258
        %v5260 = vrot.slane %v5259, 4
        %v5262 = vshll.u32 %v5117, 16
        %v5264 = vrot.slane %v5262, 5
        %v5265 = vsel %vm410, %v5260, %v5264
        %v5266 = vshrl.u32 %v5117, 16
        %v5268 = vrot.slane %v5266, 4
        %v5269 = vor.u32 %v5268, %v5264
        %v5270 = vrot.slane %v5269, 4
        %v5272 = vshll.u32 %v5144, 16
        %v5274 = vrot.slane %v5272, 5
        %v5275 = vsel %vm410, %v5270, %v5274
        %v5277 = vshrl.u32 %v5118, 16
        %v5279 = vrot.slane %v5277, 4
        %v5280 = vshll.u32 %v5118, 16
        %v5282 = vrot.slane %v5280, 5
        %v5283 = vor.u32 %v5279, %v5282
        %v5284 = vrot.slane %v5283, 4
        %v5286 = vshll.u32 %v5119, 16
        %v5288 = vrot.slane %v5286, 5
        %v5289 = vsel %vm410, %v5284, %v5288
        %v5290 = vshrl.u32 %v5119, 16
        %v5292 = vrot.slane %v5290, 4
        %v5293 = vor.u32 %v5292, %v5288
        %v5294 = vrot.slane %v5293, 4
        %v5296 = vshll.u32 %v5145, 16
        %v5298 = vrot.slane %v5296, 5
        %v5299 = vsel %vm410, %v5294, %v5298
        %v5301 = vshrl.u32 %v5120, 16
        %v5303 = vrot.slane %v5301, 4
        %v5304 = vshll.u32 %v5120, 16
        %v5306 = vrot.slane %v5304, 5
        %v5307 = vor.u32 %v5303, %v5306
        %v5308 = vrot.slane %v5307, 4
        %v5310 = vshll.u32 %v5121, 16
        %v5312 = vrot.slane %v5310, 5
        %v5313 = vsel %vm410, %v5308, %v5312
        %v5314 = vshrl.u32 %v5121, 16
        %v5316 = vrot.slane %v5314, 4
        %v5317 = vor.u32 %v5316, %v5312
        %v5318 = vrot.slane %v5317, 4
        %v5320 = vshll.u32 %v5146, 16
        %v5322 = vrot.slane %v5320, 5
        %v5323 = vsel %vm410, %v5318, %v5322
        %v5325 = vshrl.u32 %v5122, 16
        %v5327 = vrot.slane %v5325, 4
        %v5328 = vshll.u32 %v5122, 16
        %v5330 = vrot.slane %v5328, 5
        %v5331 = vor.u32 %v5327, %v5330
        %v5332 = vrot.slane %v5331, 4
        %v5334 = vshll.u32 %v5123, 16
        %v5336 = vrot.slane %v5334, 5
        %v5337 = vsel %vm410, %v5332, %v5336
        %v5338 = vshrl.u32 %v5123, 16
        %v5340 = vrot.slane %v5338, 4
        %v5341 = vor.u32 %v5340, %v5336
        %v5342 = vrot.slane %v5341, 4
        %v5344 = vshll.u32 %v5147, 16
        %v5346 = vrot.slane %v5344, 5
        %v5347 = vsel %vm410, %v5342, %v5346
        %v5349 = vshrl.u32 %v5124, 16
        %v5351 = vrot.slane %v5349, 4
        %v5352 = vshll.u32 %v5124, 16
        %v5354 = vrot.slane %v5352, 5
        %v5355 = vor.u32 %v5351, %v5354
        %v5356 = vrot.slane %v5355, 4
        %v5358 = vshll.u32 %v5125, 16
        %v5360 = vrot.slane %v5358, 5
        %v5361 = vsel %vm410, %v5356, %v5360
        %v5362 = vshrl.u32 %v5125, 16
        %v5364 = vrot.slane %v5362, 4
        %v5365 = vor.u32 %v5364, %v5360
        %v5366 = vrot.slane %v5365, 4
        %v5368 = vshll.u32 %v5148, 16
        %v5370 = vrot.slane %v5368, 5
        %v5371 = vsel %vm410, %v5366, %v5370
        %v5373 = vshrl.u32 %v5126, 16
        %v5375 = vrot.slane %v5373, 4
        %v5376 = vshll.u32 %v5126, 16
        %v5378 = vrot.slane %v5376, 5
        %v5379 = vor.u32 %v5375, %v5378
        %v5380 = vrot.slane %v5379, 4
        %v5382 = vshll.u32 %v5127, 16
        %v5384 = vrot.slane %v5382, 5
        %v5385 = vsel %vm410, %v5380, %v5384
        %v5386 = vshrl.u32 %v5127, 16
        %v5388 = vrot.slane %v5386, 4
        %v5389 = vor.u32 %v5388, %v5384
        %v5390 = vrot.slane %v5389, 4
        %v5392 = vshll.u32 %v5149, 16
        %v5394 = vrot.slane %v5392, 5
        %v5395 = vsel %vm410, %v5390, %v5394
        %v5397 = vshrl.u32 %v5128, 16
        %v5399 = vrot.slane %v5397, 4
        %v5400 = vshll.u32 %v5128, 16
        %v5402 = vrot.slane %v5400, 5
        %v5403 = vor.u32 %v5399, %v5402
        %v5404 = vrot.slane %v5403, 4
        %v5406 = vshll.u32 %v5129, 16
        %v5408 = vrot.slane %v5406, 5
        %v5409 = vsel %vm410, %v5404, %v5408
        %v5410 = vshrl.u32 %v5129, 16
        %v5412 = vrot.slane %v5410, 4
        %v5413 = vor.u32 %v5412, %v5408
        %v5414 = vrot.slane %v5413, 4
        %v5416 = vshll.u32 %v5150, 16
        %v5418 = vrot.slane %v5416, 5
        %v5419 = vsel %vm410, %v5414, %v5418
        %v5421 = vshrl.u32 %v5130, 16
        %v5423 = vrot.slane %v5421, 4
        %v5424 = vshll.u32 %v5130, 16
        %v5426 = vrot.slane %v5424, 5
        %v5427 = vor.u32 %v5423, %v5426
        %v5428 = vrot.slane %v5427, 4
        %v5430 = vshll.u32 %v5131, 16
        %v5432 = vrot.slane %v5430, 5
        %v5433 = vsel %vm410, %v5428, %v5432
        %v5434 = vshrl.u32 %v5131, 16
        %v5436 = vrot.slane %v5434, 4
        %v5437 = vor.u32 %v5436, %v5432
        %v5438 = vrot.slane %v5437, 4
        %v5440 = vshll.u32 %v5151, 16
        %v5442 = vrot.slane %v5440, 5
        %v5443 = vsel %vm410, %v5438, %v5442
        %v5445 = vshrl.u32 %v5132, 16
        %v5447 = vrot.slane %v5445, 4
        %v5448 = vshll.u32 %v5132, 16
        %v5450 = vrot.slane %v5448, 5
        %v5451 = vor.u32 %v5447, %v5450
        %v5452 = vrot.slane %v5451, 4
        %v5454 = vshll.u32 %v5133, 16
        %v5456 = vrot.slane %v5454, 5
        %v5457 = vsel %vm410, %v5452, %v5456
        %v5458 = vshrl.u32 %v5133, 16
        %v5460 = vrot.slane %v5458, 4
        %v5461 = vor.u32 %v5460, %v5456
        %v5462 = vrot.slane %v5461, 4
        %v5464 = vshll.u32 %v5152, 16
        %v5466 = vrot.slane %v5464, 5
        %v5467 = vsel %vm410, %v5462, %v5466
        %v5469 = vshrl.u32 %v5134, 16
        %v5471 = vrot.slane %v5469, 4
        %v5472 = vshll.u32 %v5134, 16
        %v5474 = vrot.slane %v5472, 5
        %v5475 = vor.u32 %v5471, %v5474
        %v5476 = vrot.slane %v5475, 4
        %v5478 = vshll.u32 %v5135, 16
        %v5480 = vrot.slane %v5478, 5
        %v5481 = vsel %vm410, %v5476, %v5480
        %v5482 = vshrl.u32 %v5135, 16
        %v5484 = vrot.slane %v5482, 4
        %v5485 = vor.u32 %v5484, %v5480
        %v5486 = vrot.slane %v5485, 4
        %v5488 = vshll.u32 %v5153, 16
        %v5490 = vrot.slane %v5488, 5
        %v5491 = vsel %vm410, %v5486, %v5490
        %v5493 = vshrl.u32 %v5136, 16
        %v5495 = vrot.slane %v5493, 4
        %v5496 = vshll.u32 %v5136, 16
        %v5498 = vrot.slane %v5496, 5
        %v5499 = vor.u32 %v5495, %v5498
        %v5500 = vrot.slane %v5499, 4
        %v5502 = vshll.u32 %v5137, 16
        %v5504 = vrot.slane %v5502, 5
        %v5505 = vsel %vm410, %v5500, %v5504
        %v5506 = vshrl.u32 %v5137, 16
        %v5508 = vrot.slane %v5506, 4
        %v5509 = vor.u32 %v5508, %v5504
        %v5510 = vrot.slane %v5509, 4
        %v5512 = vshll.u32 %v5154, 16
        %v5514 = vrot.slane %v5512, 5
        %v5515 = vsel %vm410, %v5510, %v5514
        %v5517 = vshrl.u32 %v5138, 16
        %v5519 = vrot.slane %v5517, 4
        %v5520 = vshll.u32 %v5138, 16
        %v5522 = vrot.slane %v5520, 5
        %v5523 = vor.u32 %v5519, %v5522
        %v5524 = vrot.slane %v5523, 4
        %v5526 = vshll.u32 %v5139, 16
        %v5528 = vrot.slane %v5526, 5
        %v5529 = vsel %vm410, %v5524, %v5528
        %v5530 = vshrl.u32 %v5139, 16
        %v5532 = vrot.slane %v5530, 4
        %v5533 = vor.u32 %v5532, %v5528
        %v5534 = vrot.slane %v5533, 4
        %v5536 = vshll.u32 %v5155, 16
        %v5538 = vrot.slane %v5536, 5
        %v5539 = vsel %vm410, %v5534, %v5538
        %v5540 = vld [vmem:[#allocation2] sm:$0xe]
        %v5541 = vld [vmem:[#allocation2 + $0xc] sm:$0xe]
        %v5542 = vld [vmem:[#allocation2 + $0x18] sm:$0xe]
        %v5543 = vld [vmem:[#allocation2 + $0x24] sm:$0xe]
        %v5544 = vld [vmem:[#allocation2 + $0x30] sm:$0xe]
        %v5545 = vld [vmem:[#allocation2 + $0x3c] sm:$0xe]
        %v5546 = vld [vmem:[#allocation2 + $0x48] sm:$0xe]
        %v5547 = vld [vmem:[#allocation2 + $0x54] sm:$0xe]
        %v5548 = vld [vmem:[#allocation2 + $0x60] sm:$0xe]
        %v5549 = vld [vmem:[#allocation2 + $0x6c] sm:$0xe]
        %v5550 = vld [vmem:[#allocation2 + $0x78] sm:$0xe]
        %v5551 = vld [vmem:[#allocation2 + $0x84] sm:$0xe]
        %v5552 = vld [vmem:[#allocation2 + $0x90] sm:$0xe]
        %v5553 = vld [vmem:[#allocation2 + $0x9c] sm:$0xe]
        %v5554 = vld [vmem:[#allocation2 + $0xa8] sm:$0xe]
        %v5555 = vld [vmem:[#allocation2 + $0xb4] sm:$0xe]
        %v5604 = vrot.slane %v5540, 5
        %v5605 = vrot.slane %v5604, 4
        %v5606 = vrot.slane %v5109, 5
        %v5607 = vsel %vm861, %v5605, %v5606
        %v5608 = vrot.slane %v5606, 4
        %v5609 = vrot.slane %v5140, 5
        %v5610 = vsel %vm861, %v5608, %v5609
        %v5611 = vrot.slane %v5541, 5
        %v5612 = vrot.slane %v5611, 4
        %v5613 = vrot.slane %v5111, 5
        %v5614 = vsel %vm861, %v5612, %v5613
        %v5615 = vrot.slane %v5613, 4
        %v5616 = vrot.slane %v5141, 5
        %v5617 = vsel %vm861, %v5615, %v5616
        %v5618 = vrot.slane %v5542, 5
        %v5619 = vrot.slane %v5618, 4
        %v5620 = vrot.slane %v5113, 5
        %v5621 = vsel %vm861, %v5619, %v5620
        %v5622 = vrot.slane %v5620, 4
        %v5623 = vrot.slane %v5142, 5
        %v5624 = vsel %vm861, %v5622, %v5623
        %v5625 = vrot.slane %v5543, 5
        %v5626 = vrot.slane %v5625, 4
        %v5627 = vrot.slane %v5115, 5
        %v5628 = vsel %vm861, %v5626, %v5627
        %v5629 = vrot.slane %v5627, 4
        %v5630 = vrot.slane %v5143, 5
        %v5631 = vsel %vm861, %v5629, %v5630
        %v5632 = vrot.slane %v5544, 5
        %v5633 = vrot.slane %v5632, 4
        %v5634 = vrot.slane %v5117, 5
        %v5635 = vsel %vm861, %v5633, %v5634
        %v5636 = vrot.slane %v5634, 4
        %v5637 = vrot.slane %v5144, 5
        %v5638 = vsel %vm861, %v5636, %v5637
        %v5639 = vrot.slane %v5545, 5
        %v5640 = vrot.slane %v5639, 4
        %v5641 = vrot.slane %v5119, 5
        %v5642 = vsel %vm861, %v5640, %v5641
        %v5643 = vrot.slane %v5641, 4
        %v5644 = vrot.slane %v5145, 5
        %v5645 = vsel %vm861, %v5643, %v5644
        %v5646 = vrot.slane %v5546, 5
        %v5647 = vrot.slane %v5646, 4
        %v5648 = vrot.slane %v5121, 5
        %v5649 = vsel %vm861, %v5647, %v5648
        %v5650 = vrot.slane %v5648, 4
        %v5651 = vrot.slane %v5146, 5
        %v5652 = vsel %vm861, %v5650, %v5651
        %v5653 = vrot.slane %v5547, 5
        %v5654 = vrot.slane %v5653, 4
        %v5655 = vrot.slane %v5123, 5
        %v5656 = vsel %vm861, %v5654, %v5655
        %v5657 = vrot.slane %v5655, 4
        %v5658 = vrot.slane %v5147, 5
        %v5659 = vsel %vm861, %v5657, %v5658
        %v5660 = vrot.slane %v5548, 5
        %v5661 = vrot.slane %v5660, 4
        %v5662 = vrot.slane %v5125, 5
        %v5663 = vsel %vm861, %v5661, %v5662
        %v5664 = vrot.slane %v5662, 4
        %v5665 = vrot.slane %v5148, 5
        %v5666 = vsel %vm861, %v5664, %v5665
        %v5667 = vrot.slane %v5549, 5
        %v5668 = vrot.slane %v5667, 4
        %v5669 = vrot.slane %v5127, 5
        %v5670 = vsel %vm861, %v5668, %v5669
        %v5671 = vrot.slane %v5669, 4
        %v5672 = vrot.slane %v5149, 5
        %v5673 = vsel %vm861, %v5671, %v5672
        %v5674 = vrot.slane %v5550, 5
        %v5675 = vrot.slane %v5674, 4
        %v5676 = vrot.slane %v5129, 5
        %v5677 = vsel %vm861, %v5675, %v5676
        %v5678 = vrot.slane %v5676, 4
        %v5679 = vrot.slane %v5150, 5
        %v5680 = vsel %vm861, %v5678, %v5679
        %v5681 = vrot.slane %v5551, 5
        %v5682 = vrot.slane %v5681, 4
        %v5683 = vrot.slane %v5131, 5
        %v5684 = vsel %vm861, %v5682, %v5683
        %v5685 = vrot.slane %v5683, 4
        %v5686 = vrot.slane %v5151, 5
        %v5687 = vsel %vm861, %v5685, %v5686
        %v5688 = vrot.slane %v5552, 5
        %v5689 = vrot.slane %v5688, 4
        %v5690 = vrot.slane %v5133, 5
        %v5691 = vsel %vm861, %v5689, %v5690
        %v5692 = vrot.slane %v5690, 4
        %v5693 = vrot.slane %v5152, 5
        %v5694 = vsel %vm861, %v5692, %v5693
        %v5695 = vrot.slane %v5553, 5
        %v5696 = vrot.slane %v5695, 4
        %v5697 = vrot.slane %v5135, 5
        %v5698 = vsel %vm861, %v5696, %v5697
        %v5699 = vrot.slane %v5697, 4
        %v5700 = vrot.slane %v5153, 5
        %v5701 = vsel %vm861, %v5699, %v5700
        %v5702 = vrot.slane %v5554, 5
        %v5703 = vrot.slane %v5702, 4
        %v5704 = vrot.slane %v5137, 5
        %v5705 = vsel %vm861, %v5703, %v5704
        %v5706 = vrot.slane %v5704, 4
        %v5707 = vrot.slane %v5154, 5
        %v5708 = vsel %vm861, %v5706, %v5707
        %v5709 = vrot.slane %v5555, 5
        %v5710 = vrot.slane %v5709, 4
        %v5711 = vrot.slane %v5139, 5
        %v5712 = vsel %vm861, %v5710, %v5711
        %v5713 = vrot.slane %v5711, 4
        %v5714 = vrot.slane %v5155, 5
        %v5715 = vsel %vm861, %v5713, %v5714
        %v5716 = vld [vmem:[%s4474] sm:$0xf]
        %v5717 = vld [vmem:[%s4474 + $0x4] sm:$0xf]
        %v5718 = vld [vmem:[%s4474 + $0xc] sm:$0xf]
        %v5719 = vld [vmem:[%s4474 + $0x10] sm:$0xf]
        %v5720 = vld [vmem:[%s4474 + $0x18] sm:$0xf]
        %v5721 = vld [vmem:[%s4474 + $0x1c] sm:$0xf]
        %v5722 = vld [vmem:[%s4474 + $0x24] sm:$0xf]
        %v5723 = vld [vmem:[%s4474 + $0x28] sm:$0xf]
        %v5724 = vld [vmem:[%s4474 + $0x30] sm:$0xf]
        %v5725 = vld [vmem:[%s4474 + $0x34] sm:$0xf]
        %v5726 = vld [vmem:[%s4474 + $0x3c] sm:$0xf]
        %v5727 = vld [vmem:[%s4474 + $0x40] sm:$0xf]
        %v5728 = vld [vmem:[%s4474 + $0x48] sm:$0xf]
        %v5729 = vld [vmem:[%s4474 + $0x4c] sm:$0xf]
        %v5730 = vld [vmem:[%s4474 + $0x54] sm:$0xf]
        %v5731 = vld [vmem:[%s4474 + $0x58] sm:$0xf]
        %v5732 = vld [vmem:[%s4474 + $0x60] sm:$0xf]
        %v5733 = vld [vmem:[%s4474 + $0x64] sm:$0xf]
        %v5734 = vld [vmem:[%s4474 + $0x6c] sm:$0xf]
        %v5735 = vld [vmem:[%s4474 + $0x70] sm:$0xf]
        %v5736 = vld [vmem:[%s4474 + $0x78] sm:$0xf]
        %v5737 = vld [vmem:[%s4474 + $0x7c] sm:$0xf]
        %v5738 = vld [vmem:[%s4474 + $0x84] sm:$0xf]
        %v5739 = vld [vmem:[%s4474 + $0x88] sm:$0xf]
        %v5740 = vld [vmem:[%s4474 + $0x90] sm:$0xf]
        %v5741 = vld [vmem:[%s4474 + $0x94] sm:$0xf]
        %v5742 = vld [vmem:[%s4474 + $0x9c] sm:$0xf]
        %v5743 = vld [vmem:[%s4474 + $0xa0] sm:$0xf]
        %v5744 = vld [vmem:[%s4474 + $0xa8] sm:$0xf]
        %v5745 = vld [vmem:[%s4474 + $0xac] sm:$0xf]
        %v5746 = vld [vmem:[%s4474 + $0xb4] sm:$0xf]
        %v5747 = vld [vmem:[%s4474 + $0xb8] sm:$0xf]
        %v5748 = vld [vmem:[%s4474 + $0x8] sm:$0x1]
        %v5749 = vld [vmem:[%s4474 + $0x14] sm:$0x1]
        %v5750 = vld [vmem:[%s4474 + $0x20] sm:$0x1]
        %v5751 = vld [vmem:[%s4474 + $0x2c] sm:$0x1]
        %v5752 = vld [vmem:[%s4474 + $0x38] sm:$0x1]
        %v5753 = vld [vmem:[%s4474 + $0x44] sm:$0x1]
        %v5754 = vld [vmem:[%s4474 + $0x50] sm:$0x1]
        %v5755 = vld [vmem:[%s4474 + $0x5c] sm:$0x1]
        %v5756 = vld [vmem:[%s4474 + $0x68] sm:$0x1]
        %v5757 = vld [vmem:[%s4474 + $0x74] sm:$0x1]
        %v5758 = vld [vmem:[%s4474 + $0x80] sm:$0x1]
        %v5759 = vld [vmem:[%s4474 + $0x8c] sm:$0x1]
        %v5760 = vld [vmem:[%s4474 + $0x98] sm:$0x1]
        %v5761 = vld [vmem:[%s4474 + $0xa4] sm:$0x1]
        %v5762 = vld [vmem:[%s4474 + $0xb0] sm:$0x1]
        %v5763 = vld [vmem:[%s4474 + $0xbc] sm:$0x1]
        %v5765 = vshrl.u32 %v5716, 16
        %v5767 = vrot.slane %v5765, 4
        %v5768 = vshll.u32 %v5716, 16
        %v5770 = vrot.slane %v5768, 5
        %v5771 = vor.u32 %v5767, %v5770
        %v5772 = vrot.slane %v5771, 4
        %v5774 = vshll.u32 %v5717, 16
        %v5776 = vrot.slane %v5774, 5
        %v5777 = vsel %vm410, %v5772, %v5776
        %v5778 = vshrl.u32 %v5717, 16
        %v5780 = vrot.slane %v5778, 4
        %v5781 = vor.u32 %v5780, %v5776
        %v5782 = vrot.slane %v5781, 4
        %v5784 = vshll.u32 %v5748, 16
        %v5786 = vrot.slane %v5784, 5
        %v5787 = vsel %vm410, %v5782, %v5786
        %v5789 = vshrl.u32 %v5718, 16
        %v5791 = vrot.slane %v5789, 4
        %v5792 = vshll.u32 %v5718, 16
        %v5794 = vrot.slane %v5792, 5
        %v5795 = vor.u32 %v5791, %v5794
        %v5796 = vrot.slane %v5795, 4
        %v5798 = vshll.u32 %v5719, 16
        %v5800 = vrot.slane %v5798, 5
        %v5801 = vsel %vm410, %v5796, %v5800
        %v5802 = vshrl.u32 %v5719, 16
        %v5804 = vrot.slane %v5802, 4
        %v5805 = vor.u32 %v5804, %v5800
        %v5806 = vrot.slane %v5805, 4
        %v5808 = vshll.u32 %v5749, 16
        %v5810 = vrot.slane %v5808, 5
        %v5811 = vsel %vm410, %v5806, %v5810
        %v5813 = vshrl.u32 %v5720, 16
        %v5815 = vrot.slane %v5813, 4
        %v5816 = vshll.u32 %v5720, 16
        %v5818 = vrot.slane %v5816, 5
        %v5819 = vor.u32 %v5815, %v5818
        %v5820 = vrot.slane %v5819, 4
        %v5822 = vshll.u32 %v5721, 16
        %v5824 = vrot.slane %v5822, 5
        %v5825 = vsel %vm410, %v5820, %v5824
        %v5826 = vshrl.u32 %v5721, 16
        %v5828 = vrot.slane %v5826, 4
        %v5829 = vor.u32 %v5828, %v5824
        %v5830 = vrot.slane %v5829, 4
        %v5832 = vshll.u32 %v5750, 16
        %v5834 = vrot.slane %v5832, 5
        %v5835 = vsel %vm410, %v5830, %v5834
        %v5837 = vshrl.u32 %v5722, 16
        %v5839 = vrot.slane %v5837, 4
        %v5840 = vshll.u32 %v5722, 16
        %v5842 = vrot.slane %v5840, 5
        %v5843 = vor.u32 %v5839, %v5842
        %v5844 = vrot.slane %v5843, 4
        %v5846 = vshll.u32 %v5723, 16
        %v5848 = vrot.slane %v5846, 5
        %v5849 = vsel %vm410, %v5844, %v5848
        %v5850 = vshrl.u32 %v5723, 16
        %v5852 = vrot.slane %v5850, 4
        %v5853 = vor.u32 %v5852, %v5848
        %v5854 = vrot.slane %v5853, 4
        %v5856 = vshll.u32 %v5751, 16
        %v5858 = vrot.slane %v5856, 5
        %v5859 = vsel %vm410, %v5854, %v5858
        %v5861 = vshrl.u32 %v5724, 16
        %v5863 = vrot.slane %v5861, 4
        %v5864 = vshll.u32 %v5724, 16
        %v5866 = vrot.slane %v5864, 5
        %v5867 = vor.u32 %v5863, %v5866
        %v5868 = vrot.slane %v5867, 4
        %v5870 = vshll.u32 %v5725, 16
        %v5872 = vrot.slane %v5870, 5
        %v5873 = vsel %vm410, %v5868, %v5872
        %v5874 = vshrl.u32 %v5725, 16
        %v5876 = vrot.slane %v5874, 4
        %v5877 = vor.u32 %v5876, %v5872
        %v5878 = vrot.slane %v5877, 4
        %v5880 = vshll.u32 %v5752, 16
        %v5882 = vrot.slane %v5880, 5
        %v5883 = vsel %vm410, %v5878, %v5882
        %v5885 = vshrl.u32 %v5726, 16
        %v5887 = vrot.slane %v5885, 4
        %v5888 = vshll.u32 %v5726, 16
        %v5890 = vrot.slane %v5888, 5
        %v5891 = vor.u32 %v5887, %v5890
        %v5892 = vrot.slane %v5891, 4
        %v5894 = vshll.u32 %v5727, 16
        %v5896 = vrot.slane %v5894, 5
        %v5897 = vsel %vm410, %v5892, %v5896
        %v5898 = vshrl.u32 %v5727, 16
        %v5900 = vrot.slane %v5898, 4
        %v5901 = vor.u32 %v5900, %v5896
        %v5902 = vrot.slane %v5901, 4
        %v5904 = vshll.u32 %v5753, 16
        %v5906 = vrot.slane %v5904, 5
        %v5907 = vsel %vm410, %v5902, %v5906
        %v5909 = vshrl.u32 %v5728, 16
        %v5911 = vrot.slane %v5909, 4
        %v5912 = vshll.u32 %v5728, 16
        %v5914 = vrot.slane %v5912, 5
        %v5915 = vor.u32 %v5911, %v5914
        %v5916 = vrot.slane %v5915, 4
        %v5918 = vshll.u32 %v5729, 16
        %v5920 = vrot.slane %v5918, 5
        %v5921 = vsel %vm410, %v5916, %v5920
        %v5922 = vshrl.u32 %v5729, 16
        %v5924 = vrot.slane %v5922, 4
        %v5925 = vor.u32 %v5924, %v5920
        %v5926 = vrot.slane %v5925, 4
        %v5928 = vshll.u32 %v5754, 16
        %v5930 = vrot.slane %v5928, 5
        %v5931 = vsel %vm410, %v5926, %v5930
        %v5933 = vshrl.u32 %v5730, 16
        %v5935 = vrot.slane %v5933, 4
        %v5936 = vshll.u32 %v5730, 16
        %v5938 = vrot.slane %v5936, 5
        %v5939 = vor.u32 %v5935, %v5938
        %v5940 = vrot.slane %v5939, 4
        %v5942 = vshll.u32 %v5731, 16
        %v5944 = vrot.slane %v5942, 5
        %v5945 = vsel %vm410, %v5940, %v5944
        %v5946 = vshrl.u32 %v5731, 16
        %v5948 = vrot.slane %v5946, 4
        %v5949 = vor.u32 %v5948, %v5944
        %v5950 = vrot.slane %v5949, 4
        %v5952 = vshll.u32 %v5755, 16
        %v5954 = vrot.slane %v5952, 5
        %v5955 = vsel %vm410, %v5950, %v5954
        %v5957 = vshrl.u32 %v5732, 16
        %v5959 = vrot.slane %v5957, 4
        %v5960 = vshll.u32 %v5732, 16
        %v5962 = vrot.slane %v5960, 5
        %v5963 = vor.u32 %v5959, %v5962
        %v5964 = vrot.slane %v5963, 4
        %v5966 = vshll.u32 %v5733, 16
        %v5968 = vrot.slane %v5966, 5
        %v5969 = vsel %vm410, %v5964, %v5968
        %v5970 = vshrl.u32 %v5733, 16
        %v5972 = vrot.slane %v5970, 4
        %v5973 = vor.u32 %v5972, %v5968
        %v5974 = vrot.slane %v5973, 4
        %v5976 = vshll.u32 %v5756, 16
        %v5978 = vrot.slane %v5976, 5
        %v5979 = vsel %vm410, %v5974, %v5978
        %v5981 = vshrl.u32 %v5734, 16
        %v5983 = vrot.slane %v5981, 4
        %v5984 = vshll.u32 %v5734, 16
        %v5986 = vrot.slane %v5984, 5
        %v5987 = vor.u32 %v5983, %v5986
        %v5988 = vrot.slane %v5987, 4
        %v5990 = vshll.u32 %v5735, 16
        %v5992 = vrot.slane %v5990, 5
        %v5993 = vsel %vm410, %v5988, %v5992
        %v5994 = vshrl.u32 %v5735, 16
        %v5996 = vrot.slane %v5994, 4
        %v5997 = vor.u32 %v5996, %v5992
        %v5998 = vrot.slane %v5997, 4
        %v6000 = vshll.u32 %v5757, 16
        %v6002 = vrot.slane %v6000, 5
        %v6003 = vsel %vm410, %v5998, %v6002
        %v6005 = vshrl.u32 %v5736, 16
        %v6007 = vrot.slane %v6005, 4
        %v6008 = vshll.u32 %v5736, 16
        %v6010 = vrot.slane %v6008, 5
        %v6011 = vor.u32 %v6007, %v6010
        %v6012 = vrot.slane %v6011, 4
        %v6014 = vshll.u32 %v5737, 16
        %v6016 = vrot.slane %v6014, 5
        %v6017 = vsel %vm410, %v6012, %v6016
        %v6018 = vshrl.u32 %v5737, 16
        %v6020 = vrot.slane %v6018, 4
        %v6021 = vor.u32 %v6020, %v6016
        %v6022 = vrot.slane %v6021, 4
        %v6024 = vshll.u32 %v5758, 16
        %v6026 = vrot.slane %v6024, 5
        %v6027 = vsel %vm410, %v6022, %v6026
        %v6029 = vshrl.u32 %v5738, 16
        %v6031 = vrot.slane %v6029, 4
        %v6032 = vshll.u32 %v5738, 16
        %v6034 = vrot.slane %v6032, 5
        %v6035 = vor.u32 %v6031, %v6034
        %v6036 = vrot.slane %v6035, 4
        %v6038 = vshll.u32 %v5739, 16
        %v6040 = vrot.slane %v6038, 5
        %v6041 = vsel %vm410, %v6036, %v6040
        %v6042 = vshrl.u32 %v5739, 16
        %v6044 = vrot.slane %v6042, 4
        %v6045 = vor.u32 %v6044, %v6040
        %v6046 = vrot.slane %v6045, 4
        %v6048 = vshll.u32 %v5759, 16
        %v6050 = vrot.slane %v6048, 5
        %v6051 = vsel %vm410, %v6046, %v6050
        %v6053 = vshrl.u32 %v5740, 16
        %v6055 = vrot.slane %v6053, 4
        %v6056 = vshll.u32 %v5740, 16
        %v6058 = vrot.slane %v6056, 5
        %v6059 = vor.u32 %v6055, %v6058
        %v6060 = vrot.slane %v6059, 4
        %v6062 = vshll.u32 %v5741, 16
        %v6064 = vrot.slane %v6062, 5
        %v6065 = vsel %vm410, %v6060, %v6064
        %v6066 = vshrl.u32 %v5741, 16
        %v6068 = vrot.slane %v6066, 4
        %v6069 = vor.u32 %v6068, %v6064
        %v6070 = vrot.slane %v6069, 4
        %v6072 = vshll.u32 %v5760, 16
        %v6074 = vrot.slane %v6072, 5
        %v6075 = vsel %vm410, %v6070, %v6074
        %v6077 = vshrl.u32 %v5742, 16
        %v6079 = vrot.slane %v6077, 4
        %v6080 = vshll.u32 %v5742, 16
        %v6082 = vrot.slane %v6080, 5
        %v6083 = vor.u32 %v6079, %v6082
        %v6084 = vrot.slane %v6083, 4
        %v6086 = vshll.u32 %v5743, 16
        %v6088 = vrot.slane %v6086, 5
        %v6089 = vsel %vm410, %v6084, %v6088
        %v6090 = vshrl.u32 %v5743, 16
        %v6092 = vrot.slane %v6090, 4
        %v6093 = vor.u32 %v6092, %v6088
        %v6094 = vrot.slane %v6093, 4
        %v6096 = vshll.u32 %v5761, 16
        %v6098 = vrot.slane %v6096, 5
        %v6099 = vsel %vm410, %v6094, %v6098
        %v6101 = vshrl.u32 %v5744, 16
        %v6103 = vrot.slane %v6101, 4
        %v6104 = vshll.u32 %v5744, 16
        %v6106 = vrot.slane %v6104, 5
        %v6107 = vor.u32 %v6103, %v6106
        %v6108 = vrot.slane %v6107, 4
        %v6110 = vshll.u32 %v5745, 16
        %v6112 = vrot.slane %v6110, 5
        %v6113 = vsel %vm410, %v6108, %v6112
        %v6114 = vshrl.u32 %v5745, 16
        %v6116 = vrot.slane %v6114, 4
        %v6117 = vor.u32 %v6116, %v6112
        %v6118 = vrot.slane %v6117, 4
        %v6120 = vshll.u32 %v5762, 16
        %v6122 = vrot.slane %v6120, 5
        %v6123 = vsel %vm410, %v6118, %v6122
        %v6125 = vshrl.u32 %v5746, 16
        %v6127 = vrot.slane %v6125, 4
        %v6128 = vshll.u32 %v5746, 16
        %v6130 = vrot.slane %v6128, 5
        %v6131 = vor.u32 %v6127, %v6130
        %v6132 = vrot.slane %v6131, 4
        %v6134 = vshll.u32 %v5747, 16
        %v6136 = vrot.slane %v6134, 5
        %v6137 = vsel %vm410, %v6132, %v6136
        %v6138 = vshrl.u32 %v5747, 16
        %v6140 = vrot.slane %v6138, 4
        %v6141 = vor.u32 %v6140, %v6136
        %v6142 = vrot.slane %v6141, 4
        %v6144 = vshll.u32 %v5763, 16
        %v6146 = vrot.slane %v6144, 5
        %v6147 = vsel %vm410, %v6142, %v6146
        %v6148 = vld [vmem:[%s4474] sm:$0xe]
        %v6149 = vld [vmem:[%s4474 + $0xc] sm:$0xe]
        %v6150 = vld [vmem:[%s4474 + $0x18] sm:$0xe]
        %v6151 = vld [vmem:[%s4474 + $0x24] sm:$0xe]
        %v6152 = vld [vmem:[%s4474 + $0x30] sm:$0xe]
        %v6153 = vld [vmem:[%s4474 + $0x3c] sm:$0xe]
        %v6154 = vld [vmem:[%s4474 + $0x48] sm:$0xe]
        %v6155 = vld [vmem:[%s4474 + $0x54] sm:$0xe]
        %v6156 = vld [vmem:[%s4474 + $0x60] sm:$0xe]
        %v6157 = vld [vmem:[%s4474 + $0x6c] sm:$0xe]
        %v6158 = vld [vmem:[%s4474 + $0x78] sm:$0xe]
        %v6159 = vld [vmem:[%s4474 + $0x84] sm:$0xe]
        %v6160 = vld [vmem:[%s4474 + $0x90] sm:$0xe]
        %v6161 = vld [vmem:[%s4474 + $0x9c] sm:$0xe]
        %v6162 = vld [vmem:[%s4474 + $0xa8] sm:$0xe]
        %v6163 = vld [vmem:[%s4474 + $0xb4] sm:$0xe]
        %v6212 = vrot.slane %v6148, 5
        %v6213 = vrot.slane %v6212, 4
        %v6214 = vrot.slane %v5717, 5
        %v6215 = vsel %vm861, %v6213, %v6214
        %v6216 = vrot.slane %v6214, 4
        %v6217 = vrot.slane %v5748, 5
        %v6218 = vsel %vm861, %v6216, %v6217
        %v6219 = vrot.slane %v6149, 5
        %v6220 = vrot.slane %v6219, 4
        %v6221 = vrot.slane %v5719, 5
        %v6222 = vsel %vm861, %v6220, %v6221
        %v6223 = vrot.slane %v6221, 4
        %v6224 = vrot.slane %v5749, 5
        %v6225 = vsel %vm861, %v6223, %v6224
        %v6226 = vrot.slane %v6150, 5
        %v6227 = vrot.slane %v6226, 4
        %v6228 = vrot.slane %v5721, 5
        %v6229 = vsel %vm861, %v6227, %v6228
        %v6230 = vrot.slane %v6228, 4
        %v6231 = vrot.slane %v5750, 5
        %v6232 = vsel %vm861, %v6230, %v6231
        %v6233 = vrot.slane %v6151, 5
        %v6234 = vrot.slane %v6233, 4
        %v6235 = vrot.slane %v5723, 5
        %v6236 = vsel %vm861, %v6234, %v6235
        %v6237 = vrot.slane %v6235, 4
        %v6238 = vrot.slane %v5751, 5
        %v6239 = vsel %vm861, %v6237, %v6238
        %v6240 = vrot.slane %v6152, 5
        %v6241 = vrot.slane %v6240, 4
        %v6242 = vrot.slane %v5725, 5
        %v6243 = vsel %vm861, %v6241, %v6242
        %v6244 = vrot.slane %v6242, 4
        %v6245 = vrot.slane %v5752, 5
        %v6246 = vsel %vm861, %v6244, %v6245
        %v6247 = vrot.slane %v6153, 5
        %v6248 = vrot.slane %v6247, 4
        %v6249 = vrot.slane %v5727, 5
        %v6250 = vsel %vm861, %v6248, %v6249
        %v6251 = vrot.slane %v6249, 4
        %v6252 = vrot.slane %v5753, 5
        %v6253 = vsel %vm861, %v6251, %v6252
        %v6254 = vrot.slane %v6154, 5
        %v6255 = vrot.slane %v6254, 4
        %v6256 = vrot.slane %v5729, 5
        %v6257 = vsel %vm861, %v6255, %v6256
        %v6258 = vrot.slane %v6256, 4
        %v6259 = vrot.slane %v5754, 5
        %v6260 = vsel %vm861, %v6258, %v6259
        %v6261 = vrot.slane %v6155, 5
        %v6262 = vrot.slane %v6261, 4
        %v6263 = vrot.slane %v5731, 5
        %v6264 = vsel %vm861, %v6262, %v6263
        %v6265 = vrot.slane %v6263, 4
        %v6266 = vrot.slane %v5755, 5
        %v6267 = vsel %vm861, %v6265, %v6266
        %v6268 = vrot.slane %v6156, 5
        %v6269 = vrot.slane %v6268, 4
        %v6270 = vrot.slane %v5733, 5
        %v6271 = vsel %vm861, %v6269, %v6270
        %v6272 = vrot.slane %v6270, 4
        %v6273 = vrot.slane %v5756, 5
        %v6274 = vsel %vm861, %v6272, %v6273
        %v6275 = vrot.slane %v6157, 5
        %v6276 = vrot.slane %v6275, 4
        %v6277 = vrot.slane %v5735, 5
        %v6278 = vsel %vm861, %v6276, %v6277
        %v6279 = vrot.slane %v6277, 4
        %v6280 = vrot.slane %v5757, 5
        %v6281 = vsel %vm861, %v6279, %v6280
        %v6282 = vrot.slane %v6158, 5
        %v6283 = vrot.slane %v6282, 4
        %v6284 = vrot.slane %v5737, 5
        %v6285 = vsel %vm861, %v6283, %v6284
        %v6286 = vrot.slane %v6284, 4
        %v6287 = vrot.slane %v5758, 5
        %v6288 = vsel %vm861, %v6286, %v6287
        %v6289 = vrot.slane %v6159, 5
        %v6290 = vrot.slane %v6289, 4
        %v6291 = vrot.slane %v5739, 5
        %v6292 = vsel %vm861, %v6290, %v6291
        %v6293 = vrot.slane %v6291, 4
        %v6294 = vrot.slane %v5759, 5
        %v6295 = vsel %vm861, %v6293, %v6294
        %v6296 = vrot.slane %v6160, 5
        %v6297 = vrot.slane %v6296, 4
        %v6298 = vrot.slane %v5741, 5
        %v6299 = vsel %vm861, %v6297, %v6298
        %v6300 = vrot.slane %v6298, 4
        %v6301 = vrot.slane %v5760, 5
        %v6302 = vsel %vm861, %v6300, %v6301
        %v6303 = vrot.slane %v6161, 5
        %v6304 = vrot.slane %v6303, 4
        %v6305 = vrot.slane %v5743, 5
        %v6306 = vsel %vm861, %v6304, %v6305
        %v6307 = vrot.slane %v6305, 4
        %v6308 = vrot.slane %v5761, 5
        %v6309 = vsel %vm861, %v6307, %v6308
        %v6310 = vrot.slane %v6162, 5
        %v6311 = vrot.slane %v6310, 4
        %v6312 = vrot.slane %v5745, 5
        %v6313 = vsel %vm861, %v6311, %v6312
        %v6314 = vrot.slane %v6312, 4
        %v6315 = vrot.slane %v5762, 5
        %v6316 = vsel %vm861, %v6314, %v6315
        %v6317 = vrot.slane %v6163, 5
        %v6318 = vrot.slane %v6317, 4
        %v6319 = vrot.slane %v5747, 5
        %v6320 = vsel %vm861, %v6318, %v6319
        %v6321 = vrot.slane %v6319, 4
        %v6322 = vrot.slane %v5763, 5
        %v6323 = vsel %vm861, %v6321, %v6322
        %s6324 = scalar_lea.vmem [#allocation2], 24
        %v6325 = vld [vmem:[%s6324] sm:$0xf]
        %v6326 = vld [vmem:[%s6324 + $0x4] sm:$0xf]
        %v6327 = vld [vmem:[%s6324 + $0xc] sm:$0xf]
        %v6328 = vld [vmem:[%s6324 + $0x10] sm:$0xf]
        %v6329 = vld [vmem:[%s6324 + $0x18] sm:$0xf]
        %v6330 = vld [vmem:[%s6324 + $0x1c] sm:$0xf]
        %v6331 = vld [vmem:[%s6324 + $0x24] sm:$0xf]
        %v6332 = vld [vmem:[%s6324 + $0x28] sm:$0xf]
        %v6333 = vld [vmem:[%s6324 + $0x30] sm:$0xf]
        %v6334 = vld [vmem:[%s6324 + $0x34] sm:$0xf]
        %v6335 = vld [vmem:[%s6324 + $0x3c] sm:$0xf]
        %v6336 = vld [vmem:[%s6324 + $0x40] sm:$0xf]
        %v6337 = vld [vmem:[%s6324 + $0x48] sm:$0xf]
        %v6338 = vld [vmem:[%s6324 + $0x4c] sm:$0xf]
        %v6339 = vld [vmem:[%s6324 + $0x54] sm:$0xf]
        %v6340 = vld [vmem:[%s6324 + $0x58] sm:$0xf]
        %v6341 = vld [vmem:[%s6324 + $0x60] sm:$0xf]
        %v6342 = vld [vmem:[%s6324 + $0x64] sm:$0xf]
        %v6343 = vld [vmem:[%s6324 + $0x6c] sm:$0xf]
        %v6344 = vld [vmem:[%s6324 + $0x70] sm:$0xf]
        %v6345 = vld [vmem:[%s6324 + $0x78] sm:$0xf]
        %v6346 = vld [vmem:[%s6324 + $0x7c] sm:$0xf]
        %v6347 = vld [vmem:[%s6324 + $0x84] sm:$0xf]
        %v6348 = vld [vmem:[%s6324 + $0x88] sm:$0xf]
        %v6349 = vld [vmem:[%s6324 + $0x90] sm:$0xf]
        %v6350 = vld [vmem:[%s6324 + $0x94] sm:$0xf]
        %v6351 = vld [vmem:[%s6324 + $0x9c] sm:$0xf]
        %v6352 = vld [vmem:[%s6324 + $0xa0] sm:$0xf]
        %v6353 = vld [vmem:[%s6324 + $0xa8] sm:$0xf]
        %v6354 = vld [vmem:[%s6324 + $0xac] sm:$0xf]
        %v6355 = vld [vmem:[%s6324 + $0xb4] sm:$0xf]
        %v6356 = vld [vmem:[%s6324 + $0xb8] sm:$0xf]
        %v6357 = vld [vmem:[%s6324 + $0x8] sm:$0x1]
        %v6358 = vld [vmem:[%s6324 + $0x14] sm:$0x1]
        %v6359 = vld [vmem:[%s6324 + $0x20] sm:$0x1]
        %v6360 = vld [vmem:[%s6324 + $0x2c] sm:$0x1]
        %v6361 = vld [vmem:[%s6324 + $0x38] sm:$0x1]
        %v6362 = vld [vmem:[%s6324 + $0x44] sm:$0x1]
        %v6363 = vld [vmem:[%s6324 + $0x50] sm:$0x1]
        %v6364 = vld [vmem:[%s6324 + $0x5c] sm:$0x1]
        %v6365 = vld [vmem:[%s6324 + $0x68] sm:$0x1]
        %v6366 = vld [vmem:[%s6324 + $0x74] sm:$0x1]
        %v6367 = vld [vmem:[%s6324 + $0x80] sm:$0x1]
        %v6368 = vld [vmem:[%s6324 + $0x8c] sm:$0x1]
        %v6369 = vld [vmem:[%s6324 + $0x98] sm:$0x1]
        %v6370 = vld [vmem:[%s6324 + $0xa4] sm:$0x1]
        %v6371 = vld [vmem:[%s6324 + $0xb0] sm:$0x1]
        %v6372 = vld [vmem:[%s6324 + $0xbc] sm:$0x1]
        %v6374 = vshrl.u32 %v6325, 16
        %v6376 = vrot.slane %v6374, 4
        %v6377 = vshll.u32 %v6325, 16
        %v6379 = vrot.slane %v6377, 5
        %v6380 = vor.u32 %v6376, %v6379
        %v6381 = vrot.slane %v6380, 4
        %v6383 = vshll.u32 %v6326, 16
        %v6385 = vrot.slane %v6383, 5
        %v6386 = vsel %vm410, %v6381, %v6385
        %v6387 = vshrl.u32 %v6326, 16
        %v6389 = vrot.slane %v6387, 4
        %v6390 = vor.u32 %v6389, %v6385
        %v6391 = vrot.slane %v6390, 4
        %v6393 = vshll.u32 %v6357, 16
        %v6395 = vrot.slane %v6393, 5
        %v6396 = vsel %vm410, %v6391, %v6395
        %v6398 = vshrl.u32 %v6327, 16
        %v6400 = vrot.slane %v6398, 4
        %v6401 = vshll.u32 %v6327, 16
        %v6403 = vrot.slane %v6401, 5
        %v6404 = vor.u32 %v6400, %v6403
        %v6405 = vrot.slane %v6404, 4
        %v6407 = vshll.u32 %v6328, 16
        %v6409 = vrot.slane %v6407, 5
        %v6410 = vsel %vm410, %v6405, %v6409
        %v6411 = vshrl.u32 %v6328, 16
        %v6413 = vrot.slane %v6411, 4
        %v6414 = vor.u32 %v6413, %v6409
        %v6415 = vrot.slane %v6414, 4
        %v6417 = vshll.u32 %v6358, 16
        %v6419 = vrot.slane %v6417, 5
        %v6420 = vsel %vm410, %v6415, %v6419
        %v6422 = vshrl.u32 %v6329, 16
        %v6424 = vrot.slane %v6422, 4
        %v6425 = vshll.u32 %v6329, 16
        %v6427 = vrot.slane %v6425, 5
        %v6428 = vor.u32 %v6424, %v6427
        %v6429 = vrot.slane %v6428, 4
        %v6431 = vshll.u32 %v6330, 16
        %v6433 = vrot.slane %v6431, 5
        %v6434 = vsel %vm410, %v6429, %v6433
        %v6435 = vshrl.u32 %v6330, 16
        %v6437 = vrot.slane %v6435, 4
        %v6438 = vor.u32 %v6437, %v6433
        %v6439 = vrot.slane %v6438, 4
        %v6441 = vshll.u32 %v6359, 16
        %v6443 = vrot.slane %v6441, 5
        %v6444 = vsel %vm410, %v6439, %v6443
        %v6446 = vshrl.u32 %v6331, 16
        %v6448 = vrot.slane %v6446, 4
        %v6449 = vshll.u32 %v6331, 16
        %v6451 = vrot.slane %v6449, 5
        %v6452 = vor.u32 %v6448, %v6451
        %v6453 = vrot.slane %v6452, 4
        %v6455 = vshll.u32 %v6332, 16
        %v6457 = vrot.slane %v6455, 5
        %v6458 = vsel %vm410, %v6453, %v6457
        %v6459 = vshrl.u32 %v6332, 16
        %v6461 = vrot.slane %v6459, 4
        %v6462 = vor.u32 %v6461, %v6457
        %v6463 = vrot.slane %v6462, 4
        %v6465 = vshll.u32 %v6360, 16
        %v6467 = vrot.slane %v6465, 5
        %v6468 = vsel %vm410, %v6463, %v6467
        %v6470 = vshrl.u32 %v6333, 16
        %v6472 = vrot.slane %v6470, 4
        %v6473 = vshll.u32 %v6333, 16
        %v6475 = vrot.slane %v6473, 5
        %v6476 = vor.u32 %v6472, %v6475
        %v6477 = vrot.slane %v6476, 4
        %v6479 = vshll.u32 %v6334, 16
        %v6481 = vrot.slane %v6479, 5
        %v6482 = vsel %vm410, %v6477, %v6481
        %v6483 = vshrl.u32 %v6334, 16
        %v6485 = vrot.slane %v6483, 4
        %v6486 = vor.u32 %v6485, %v6481
        %v6487 = vrot.slane %v6486, 4
        %v6489 = vshll.u32 %v6361, 16
        %v6491 = vrot.slane %v6489, 5
        %v6492 = vsel %vm410, %v6487, %v6491
        %v6494 = vshrl.u32 %v6335, 16
        %v6496 = vrot.slane %v6494, 4
        %v6497 = vshll.u32 %v6335, 16
        %v6499 = vrot.slane %v6497, 5
        %v6500 = vor.u32 %v6496, %v6499
        %v6501 = vrot.slane %v6500, 4
        %v6503 = vshll.u32 %v6336, 16
        %v6505 = vrot.slane %v6503, 5
        %v6506 = vsel %vm410, %v6501, %v6505
        %v6507 = vshrl.u32 %v6336, 16
        %v6509 = vrot.slane %v6507, 4
        %v6510 = vor.u32 %v6509, %v6505
        %v6511 = vrot.slane %v6510, 4
        %v6513 = vshll.u32 %v6362, 16
        %v6515 = vrot.slane %v6513, 5
        %v6516 = vsel %vm410, %v6511, %v6515
        %v6518 = vshrl.u32 %v6337, 16
        %v6520 = vrot.slane %v6518, 4
        %v6521 = vshll.u32 %v6337, 16
        %v6523 = vrot.slane %v6521, 5
        %v6524 = vor.u32 %v6520, %v6523
        %v6525 = vrot.slane %v6524, 4
        %v6527 = vshll.u32 %v6338, 16
        %v6529 = vrot.slane %v6527, 5
        %v6530 = vsel %vm410, %v6525, %v6529
        %v6531 = vshrl.u32 %v6338, 16
        %v6533 = vrot.slane %v6531, 4
        %v6534 = vor.u32 %v6533, %v6529
        %v6535 = vrot.slane %v6534, 4
        %v6537 = vshll.u32 %v6363, 16
        %v6539 = vrot.slane %v6537, 5
        %v6540 = vsel %vm410, %v6535, %v6539
        %v6542 = vshrl.u32 %v6339, 16
        %v6544 = vrot.slane %v6542, 4
        %v6545 = vshll.u32 %v6339, 16
        %v6547 = vrot.slane %v6545, 5
        %v6548 = vor.u32 %v6544, %v6547
        %v6549 = vrot.slane %v6548, 4
        %v6551 = vshll.u32 %v6340, 16
        %v6553 = vrot.slane %v6551, 5
        %v6554 = vsel %vm410, %v6549, %v6553
        %v6555 = vshrl.u32 %v6340, 16
        %v6557 = vrot.slane %v6555, 4
        %v6558 = vor.u32 %v6557, %v6553
        %v6559 = vrot.slane %v6558, 4
        %v6561 = vshll.u32 %v6364, 16
        %v6563 = vrot.slane %v6561, 5
        %v6564 = vsel %vm410, %v6559, %v6563
        %v6566 = vshrl.u32 %v6341, 16
        %v6568 = vrot.slane %v6566, 4
        %v6569 = vshll.u32 %v6341, 16
        %v6571 = vrot.slane %v6569, 5
        %v6572 = vor.u32 %v6568, %v6571
        %v6573 = vrot.slane %v6572, 4
        %v6575 = vshll.u32 %v6342, 16
        %v6577 = vrot.slane %v6575, 5
        %v6578 = vsel %vm410, %v6573, %v6577
        %v6579 = vshrl.u32 %v6342, 16
        %v6581 = vrot.slane %v6579, 4
        %v6582 = vor.u32 %v6581, %v6577
        %v6583 = vrot.slane %v6582, 4
        %v6585 = vshll.u32 %v6365, 16
        %v6587 = vrot.slane %v6585, 5
        %v6588 = vsel %vm410, %v6583, %v6587
        %v6590 = vshrl.u32 %v6343, 16
        %v6592 = vrot.slane %v6590, 4
        %v6593 = vshll.u32 %v6343, 16
        %v6595 = vrot.slane %v6593, 5
        %v6596 = vor.u32 %v6592, %v6595
        %v6597 = vrot.slane %v6596, 4
        %v6599 = vshll.u32 %v6344, 16
        %v6601 = vrot.slane %v6599, 5
        %v6602 = vsel %vm410, %v6597, %v6601
        %v6603 = vshrl.u32 %v6344, 16
        %v6605 = vrot.slane %v6603, 4
        %v6606 = vor.u32 %v6605, %v6601
        %v6607 = vrot.slane %v6606, 4
        %v6609 = vshll.u32 %v6366, 16
        %v6611 = vrot.slane %v6609, 5
        %v6612 = vsel %vm410, %v6607, %v6611
        %v6614 = vshrl.u32 %v6345, 16
        %v6616 = vrot.slane %v6614, 4
        %v6617 = vshll.u32 %v6345, 16
        %v6619 = vrot.slane %v6617, 5
        %v6620 = vor.u32 %v6616, %v6619
        %v6621 = vrot.slane %v6620, 4
        %v6623 = vshll.u32 %v6346, 16
        %v6625 = vrot.slane %v6623, 5
        %v6626 = vsel %vm410, %v6621, %v6625
        %v6627 = vshrl.u32 %v6346, 16
        %v6629 = vrot.slane %v6627, 4
        %v6630 = vor.u32 %v6629, %v6625
        %v6631 = vrot.slane %v6630, 4
        %v6633 = vshll.u32 %v6367, 16
        %v6635 = vrot.slane %v6633, 5
        %v6636 = vsel %vm410, %v6631, %v6635
        %v6638 = vshrl.u32 %v6347, 16
        %v6640 = vrot.slane %v6638, 4
        %v6641 = vshll.u32 %v6347, 16
        %v6643 = vrot.slane %v6641, 5
        %v6644 = vor.u32 %v6640, %v6643
        %v6645 = vrot.slane %v6644, 4
        %v6647 = vshll.u32 %v6348, 16
        %v6649 = vrot.slane %v6647, 5
        %v6650 = vsel %vm410, %v6645, %v6649
        %v6651 = vshrl.u32 %v6348, 16
        %v6653 = vrot.slane %v6651, 4
        %v6654 = vor.u32 %v6653, %v6649
        %v6655 = vrot.slane %v6654, 4
        %v6657 = vshll.u32 %v6368, 16
        %v6659 = vrot.slane %v6657, 5
        %v6660 = vsel %vm410, %v6655, %v6659
        %v6662 = vshrl.u32 %v6349, 16
        %v6664 = vrot.slane %v6662, 4
        %v6665 = vshll.u32 %v6349, 16
        %v6667 = vrot.slane %v6665, 5
        %v6668 = vor.u32 %v6664, %v6667
        %v6669 = vrot.slane %v6668, 4
        %v6671 = vshll.u32 %v6350, 16
        %v6673 = vrot.slane %v6671, 5
        %v6674 = vsel %vm410, %v6669, %v6673
        %v6675 = vshrl.u32 %v6350, 16
        %v6677 = vrot.slane %v6675, 4
        %v6678 = vor.u32 %v6677, %v6673
        %v6679 = vrot.slane %v6678, 4
        %v6681 = vshll.u32 %v6369, 16
        %v6683 = vrot.slane %v6681, 5
        %v6684 = vsel %vm410, %v6679, %v6683
        %v6686 = vshrl.u32 %v6351, 16
        %v6688 = vrot.slane %v6686, 4
        %v6689 = vshll.u32 %v6351, 16
        %v6691 = vrot.slane %v6689, 5
        %v6692 = vor.u32 %v6688, %v6691
        %v6693 = vrot.slane %v6692, 4
        %v6695 = vshll.u32 %v6352, 16
        %v6697 = vrot.slane %v6695, 5
        %v6698 = vsel %vm410, %v6693, %v6697
        %v6699 = vshrl.u32 %v6352, 16
        %v6701 = vrot.slane %v6699, 4
        %v6702 = vor.u32 %v6701, %v6697
        %v6703 = vrot.slane %v6702, 4
        %v6705 = vshll.u32 %v6370, 16
        %v6707 = vrot.slane %v6705, 5
        %v6708 = vsel %vm410, %v6703, %v6707
        %v6710 = vshrl.u32 %v6353, 16
        %v6712 = vrot.slane %v6710, 4
        %v6713 = vshll.u32 %v6353, 16
        %v6715 = vrot.slane %v6713, 5
        %v6716 = vor.u32 %v6712, %v6715
        %v6717 = vrot.slane %v6716, 4
        %v6719 = vshll.u32 %v6354, 16
        %v6721 = vrot.slane %v6719, 5
        %v6722 = vsel %vm410, %v6717, %v6721
        %v6723 = vshrl.u32 %v6354, 16
        %v6725 = vrot.slane %v6723, 4
        %v6726 = vor.u32 %v6725, %v6721
        %v6727 = vrot.slane %v6726, 4
        %v6729 = vshll.u32 %v6371, 16
        %v6731 = vrot.slane %v6729, 5
        %v6732 = vsel %vm410, %v6727, %v6731
        %v6734 = vshrl.u32 %v6355, 16
        %v6736 = vrot.slane %v6734, 4
        %v6737 = vshll.u32 %v6355, 16
        %v6739 = vrot.slane %v6737, 5
        %v6740 = vor.u32 %v6736, %v6739
        %v6741 = vrot.slane %v6740, 4
        %v6743 = vshll.u32 %v6356, 16
        %v6745 = vrot.slane %v6743, 5
        %v6746 = vsel %vm410, %v6741, %v6745
        %v6747 = vshrl.u32 %v6356, 16
        %v6749 = vrot.slane %v6747, 4
        %v6750 = vor.u32 %v6749, %v6745
        %v6751 = vrot.slane %v6750, 4
        %v6753 = vshll.u32 %v6372, 16
        %v6755 = vrot.slane %v6753, 5
        %v6756 = vsel %vm410, %v6751, %v6755
        %v6757 = vld [vmem:[%s6324] sm:$0xe]
        %v6758 = vld [vmem:[%s6324 + $0xc] sm:$0xe]
        %v6759 = vld [vmem:[%s6324 + $0x18] sm:$0xe]
        %v6760 = vld [vmem:[%s6324 + $0x24] sm:$0xe]
        %v6761 = vld [vmem:[%s6324 + $0x30] sm:$0xe]
        %v6762 = vld [vmem:[%s6324 + $0x3c] sm:$0xe]
        %v6763 = vld [vmem:[%s6324 + $0x48] sm:$0xe]
        %v6764 = vld [vmem:[%s6324 + $0x54] sm:$0xe]
        %v6765 = vld [vmem:[%s6324 + $0x60] sm:$0xe]
        %v6766 = vld [vmem:[%s6324 + $0x6c] sm:$0xe]
        %v6767 = vld [vmem:[%s6324 + $0x78] sm:$0xe]
        %v6768 = vld [vmem:[%s6324 + $0x84] sm:$0xe]
        %v6769 = vld [vmem:[%s6324 + $0x90] sm:$0xe]
        %v6770 = vld [vmem:[%s6324 + $0x9c] sm:$0xe]
        %v6771 = vld [vmem:[%s6324 + $0xa8] sm:$0xe]
        %v6772 = vld [vmem:[%s6324 + $0xb4] sm:$0xe]
        %v6821 = vrot.slane %v6757, 5
        %v6822 = vrot.slane %v6821, 4
        %v6823 = vrot.slane %v6326, 5
        %v6824 = vsel %vm861, %v6822, %v6823
        %v6825 = vrot.slane %v6823, 4
        %v6826 = vrot.slane %v6357, 5
        %v6827 = vsel %vm861, %v6825, %v6826
        %v6828 = vrot.slane %v6758, 5
        %v6829 = vrot.slane %v6828, 4
        %v6830 = vrot.slane %v6328, 5
        %v6831 = vsel %vm861, %v6829, %v6830
        %v6832 = vrot.slane %v6830, 4
        %v6833 = vrot.slane %v6358, 5
        %v6834 = vsel %vm861, %v6832, %v6833
        %v6835 = vrot.slane %v6759, 5
        %v6836 = vrot.slane %v6835, 4
        %v6837 = vrot.slane %v6330, 5
        %v6838 = vsel %vm861, %v6836, %v6837
        %v6839 = vrot.slane %v6837, 4
        %v6840 = vrot.slane %v6359, 5
        %v6841 = vsel %vm861, %v6839, %v6840
        %v6842 = vrot.slane %v6760, 5
        %v6843 = vrot.slane %v6842, 4
        %v6844 = vrot.slane %v6332, 5
        %v6845 = vsel %vm861, %v6843, %v6844
        %v6846 = vrot.slane %v6844, 4
        %v6847 = vrot.slane %v6360, 5
        %v6848 = vsel %vm861, %v6846, %v6847
        %v6849 = vrot.slane %v6761, 5
        %v6850 = vrot.slane %v6849, 4
        %v6851 = vrot.slane %v6334, 5
        %v6852 = vsel %vm861, %v6850, %v6851
        %v6853 = vrot.slane %v6851, 4
        %v6854 = vrot.slane %v6361, 5
        %v6855 = vsel %vm861, %v6853, %v6854
        %v6856 = vrot.slane %v6762, 5
        %v6857 = vrot.slane %v6856, 4
        %v6858 = vrot.slane %v6336, 5
        %v6859 = vsel %vm861, %v6857, %v6858
        %v6860 = vrot.slane %v6858, 4
        %v6861 = vrot.slane %v6362, 5
        %v6862 = vsel %vm861, %v6860, %v6861
        %v6863 = vrot.slane %v6763, 5
        %v6864 = vrot.slane %v6863, 4
        %v6865 = vrot.slane %v6338, 5
        %v6866 = vsel %vm861, %v6864, %v6865
        %v6867 = vrot.slane %v6865, 4
        %v6868 = vrot.slane %v6363, 5
        %v6869 = vsel %vm861, %v6867, %v6868
        %v6870 = vrot.slane %v6764, 5
        %v6871 = vrot.slane %v6870, 4
        %v6872 = vrot.slane %v6340, 5
        %v6873 = vsel %vm861, %v6871, %v6872
        %v6874 = vrot.slane %v6872, 4
        %v6875 = vrot.slane %v6364, 5
        %v6876 = vsel %vm861, %v6874, %v6875
        %v6877 = vrot.slane %v6765, 5
        %v6878 = vrot.slane %v6877, 4
        %v6879 = vrot.slane %v6342, 5
        %v6880 = vsel %vm861, %v6878, %v6879
        %v6881 = vrot.slane %v6879, 4
        %v6882 = vrot.slane %v6365, 5
        %v6883 = vsel %vm861, %v6881, %v6882
        %v6884 = vrot.slane %v6766, 5
        %v6885 = vrot.slane %v6884, 4
        %v6886 = vrot.slane %v6344, 5
        %v6887 = vsel %vm861, %v6885, %v6886
        %v6888 = vrot.slane %v6886, 4
        %v6889 = vrot.slane %v6366, 5
        %v6890 = vsel %vm861, %v6888, %v6889
        %v6891 = vrot.slane %v6767, 5
        %v6892 = vrot.slane %v6891, 4
        %v6893 = vrot.slane %v6346, 5
        %v6894 = vsel %vm861, %v6892, %v6893
        %v6895 = vrot.slane %v6893, 4
        %v6896 = vrot.slane %v6367, 5
        %v6897 = vsel %vm861, %v6895, %v6896
        %v6898 = vrot.slane %v6768, 5
        %v6899 = vrot.slane %v6898, 4
        %v6900 = vrot.slane %v6348, 5
        %v6901 = vsel %vm861, %v6899, %v6900
        %v6902 = vrot.slane %v6900, 4
        %v6903 = vrot.slane %v6368, 5
        %v6904 = vsel %vm861, %v6902, %v6903
        %v6905 = vrot.slane %v6769, 5
        %v6906 = vrot.slane %v6905, 4
        %v6907 = vrot.slane %v6350, 5
        %v6908 = vsel %vm861, %v6906, %v6907
        %v6909 = vrot.slane %v6907, 4
        %v6910 = vrot.slane %v6369, 5
        %v6911 = vsel %vm861, %v6909, %v6910
        %v6912 = vrot.slane %v6770, 5
        %v6913 = vrot.slane %v6912, 4
        %v6914 = vrot.slane %v6352, 5
        %v6915 = vsel %vm861, %v6913, %v6914
        %v6916 = vrot.slane %v6914, 4
        %v6917 = vrot.slane %v6370, 5
        %v6918 = vsel %vm861, %v6916, %v6917
        %v6919 = vrot.slane %v6771, 5
        %v6920 = vrot.slane %v6919, 4
        %v6921 = vrot.slane %v6354, 5
        %v6922 = vsel %vm861, %v6920, %v6921
        %v6923 = vrot.slane %v6921, 4
        %v6924 = vrot.slane %v6371, 5
        %v6925 = vsel %vm861, %v6923, %v6924
        %v6926 = vrot.slane %v6772, 5
        %v6927 = vrot.slane %v6926, 4
        %v6928 = vrot.slane %v6356, 5
        %v6929 = vsel %vm861, %v6927, %v6928
        %v6930 = vrot.slane %v6928, 4
        %v6931 = vrot.slane %v6372, 5
        %v6932 = vsel %vm861, %v6930, %v6931
        %v6949 = vunpack.c.l.b16 %v5108
        %v6950 = vunpack.c.l.b16 %v5109
        %v6951 = vunpack.c.l.b16 %v5110
        %v6952 = vunpack.c.l.b16 %v5111
        %v6953 = vunpack.c.l.b16 %v5112
        %v6954 = vunpack.c.l.b16 %v5113
        %v6955 = vunpack.c.l.b16 %v5114
        %v6956 = vunpack.c.l.b16 %v5115
        %v6957 = vunpack.c.l.b16 %v5116
        %v6958 = vunpack.c.l.b16 %v5117
        %v6959 = vunpack.c.l.b16 %v5118
        %v6960 = vunpack.c.l.b16 %v5119
        %v6961 = vunpack.c.l.b16 %v5120
        %v6962 = vunpack.c.l.b16 %v5121
        %v6963 = vunpack.c.l.b16 %v5122
        %v6964 = vunpack.c.l.b16 %v5123
        %v6965 = vunpack.c.l.b16 %v5124
        %v6966 = vunpack.c.l.b16 %v5125
        %v6967 = vunpack.c.l.b16 %v5126
        %v6968 = vunpack.c.l.b16 %v5127
        %v6969 = vunpack.c.l.b16 %v5128
        %v6970 = vunpack.c.l.b16 %v5129
        %v6971 = vunpack.c.l.b16 %v5130
        %v6972 = vunpack.c.l.b16 %v5131
        %v6973 = vunpack.c.l.b16 %v5132
        %v6974 = vunpack.c.l.b16 %v5133
        %v6975 = vunpack.c.l.b16 %v5134
        %v6976 = vunpack.c.l.b16 %v5135
        %v6977 = vunpack.c.l.b16 %v5136
        %v6978 = vunpack.c.l.b16 %v5137
        %v6979 = vunpack.c.l.b16 %v5138
        %v6980 = vunpack.c.l.b16 %v5139
        %v6981 = vpack.c.b16 %v6950, %v6949
        %v6982 = vpack.c.b16 %v6952, %v6951
        %v6983 = vpack.c.b16 %v6954, %v6953
        %v6984 = vpack.c.b16 %v6956, %v6955
        %v6985 = vpack.c.b16 %v6958, %v6957
        %v6986 = vpack.c.b16 %v6960, %v6959
        %v6987 = vpack.c.b16 %v6962, %v6961
        %v6988 = vpack.c.b16 %v6964, %v6963
        %v6989 = vpack.c.b16 %v6966, %v6965
        %v6990 = vpack.c.b16 %v6968, %v6967
        %v6991 = vpack.c.b16 %v6970, %v6969
        %v6992 = vpack.c.b16 %v6972, %v6971
        %v6993 = vpack.c.b16 %v6974, %v6973
        %v6994 = vpack.c.b16 %v6976, %v6975
        %v6995 = vpack.c.b16 %v6978, %v6977
        %v6996 = vpack.c.b16 %v6980, %v6979
        %v7013 = vunpack.c.l.b16 %v5169
        %v7014 = vunpack.c.l.b16 %v5179
        %v7015 = vunpack.c.l.b16 %v5193
        %v7016 = vunpack.c.l.b16 %v5203
        %v7017 = vunpack.c.l.b16 %v5217
        %v7018 = vunpack.c.l.b16 %v5227
        %v7019 = vunpack.c.l.b16 %v5241
        %v7020 = vunpack.c.l.b16 %v5251
        %v7021 = vunpack.c.l.b16 %v5265
        %v7022 = vunpack.c.l.b16 %v5275
        %v7023 = vunpack.c.l.b16 %v5289
        %v7024 = vunpack.c.l.b16 %v5299
        %v7025 = vunpack.c.l.b16 %v5313
        %v7026 = vunpack.c.l.b16 %v5323
        %v7027 = vunpack.c.l.b16 %v5337
        %v7028 = vunpack.c.l.b16 %v5347
        %v7029 = vunpack.c.l.b16 %v5361
        %v7030 = vunpack.c.l.b16 %v5371
        %v7031 = vunpack.c.l.b16 %v5385
        %v7032 = vunpack.c.l.b16 %v5395
        %v7033 = vunpack.c.l.b16 %v5409
        %v7034 = vunpack.c.l.b16 %v5419
        %v7035 = vunpack.c.l.b16 %v5433
        %v7036 = vunpack.c.l.b16 %v5443
        %v7037 = vunpack.c.l.b16 %v5457
        %v7038 = vunpack.c.l.b16 %v5467
        %v7039 = vunpack.c.l.b16 %v5481
        %v7040 = vunpack.c.l.b16 %v5491
        %v7041 = vunpack.c.l.b16 %v5505
        %v7042 = vunpack.c.l.b16 %v5515
        %v7043 = vunpack.c.l.b16 %v5529
        %v7044 = vunpack.c.l.b16 %v5539
        %v7045 = vpack.c.b16 %v7014, %v7013
        %v7046 = vpack.c.b16 %v7016, %v7015
        %v7047 = vpack.c.b16 %v7018, %v7017
        %v7048 = vpack.c.b16 %v7020, %v7019
        %v7049 = vpack.c.b16 %v7022, %v7021
        %v7050 = vpack.c.b16 %v7024, %v7023
        %v7051 = vpack.c.b16 %v7026, %v7025
        %v7052 = vpack.c.b16 %v7028, %v7027
        %v7053 = vpack.c.b16 %v7030, %v7029
        %v7054 = vpack.c.b16 %v7032, %v7031
        %v7055 = vpack.c.b16 %v7034, %v7033
        %v7056 = vpack.c.b16 %v7036, %v7035
        %v7057 = vpack.c.b16 %v7038, %v7037
        %v7058 = vpack.c.b16 %v7040, %v7039
        %v7059 = vpack.c.b16 %v7042, %v7041
        %v7060 = vpack.c.b16 %v7044, %v7043
        %v7077 = vunpack.c.l.b16 %v5607
        %v7078 = vunpack.c.l.b16 %v5610
        %v7079 = vunpack.c.l.b16 %v5614
        %v7080 = vunpack.c.l.b16 %v5617
        %v7081 = vunpack.c.l.b16 %v5621
        %v7082 = vunpack.c.l.b16 %v5624
        %v7083 = vunpack.c.l.b16 %v5628
        %v7084 = vunpack.c.l.b16 %v5631
        %v7085 = vunpack.c.l.b16 %v5635
        %v7086 = vunpack.c.l.b16 %v5638
        %v7087 = vunpack.c.l.b16 %v5642
        %v7088 = vunpack.c.l.b16 %v5645
        %v7089 = vunpack.c.l.b16 %v5649
        %v7090 = vunpack.c.l.b16 %v5652
        %v7091 = vunpack.c.l.b16 %v5656
        %v7092 = vunpack.c.l.b16 %v5659
        %v7093 = vunpack.c.l.b16 %v5663
        %v7094 = vunpack.c.l.b16 %v5666
        %v7095 = vunpack.c.l.b16 %v5670
        %v7096 = vunpack.c.l.b16 %v5673
        %v7097 = vunpack.c.l.b16 %v5677
        %v7098 = vunpack.c.l.b16 %v5680
        %v7099 = vunpack.c.l.b16 %v5684
        %v7100 = vunpack.c.l.b16 %v5687
        %v7101 = vunpack.c.l.b16 %v5691
        %v7102 = vunpack.c.l.b16 %v5694
        %v7103 = vunpack.c.l.b16 %v5698
        %v7104 = vunpack.c.l.b16 %v5701
        %v7105 = vunpack.c.l.b16 %v5705
        %v7106 = vunpack.c.l.b16 %v5708
        %v7107 = vunpack.c.l.b16 %v5712
        %v7108 = vunpack.c.l.b16 %v5715
        %v7109 = vpack.c.b16 %v7078, %v7077
        %v7110 = vpack.c.b16 %v7080, %v7079
        %v7111 = vpack.c.b16 %v7082, %v7081
        %v7112 = vpack.c.b16 %v7084, %v7083
        %v7113 = vpack.c.b16 %v7086, %v7085
        %v7114 = vpack.c.b16 %v7088, %v7087
        %v7115 = vpack.c.b16 %v7090, %v7089
        %v7116 = vpack.c.b16 %v7092, %v7091
        %v7117 = vpack.c.b16 %v7094, %v7093
        %v7118 = vpack.c.b16 %v7096, %v7095
        %v7119 = vpack.c.b16 %v7098, %v7097
        %v7120 = vpack.c.b16 %v7100, %v7099
        %v7121 = vpack.c.b16 %v7102, %v7101
        %v7122 = vpack.c.b16 %v7104, %v7103
        %v7123 = vpack.c.b16 %v7106, %v7105
        %v7124 = vpack.c.b16 %v7108, %v7107
        %v7157 = vunpack.c.l.b16 %v5716
        %v7158 = vunpack.c.l.b16 %v5717
        %v7159 = vunpack.c.l.b16 %v5718
        %v7160 = vunpack.c.l.b16 %v5719
        %v7161 = vunpack.c.l.b16 %v5720
        %v7162 = vunpack.c.l.b16 %v5721
        %v7163 = vunpack.c.l.b16 %v5722
        %v7164 = vunpack.c.l.b16 %v5723
        %v7165 = vunpack.c.l.b16 %v5724
        %v7166 = vunpack.c.l.b16 %v5725
        %v7167 = vunpack.c.l.b16 %v5726
        %v7168 = vunpack.c.l.b16 %v5727
        %v7169 = vunpack.c.l.b16 %v5728
        %v7170 = vunpack.c.l.b16 %v5729
        %v7171 = vunpack.c.l.b16 %v5730
        %v7172 = vunpack.c.l.b16 %v5731
        %v7173 = vunpack.c.l.b16 %v5732
        %v7174 = vunpack.c.l.b16 %v5733
        %v7175 = vunpack.c.l.b16 %v5734
        %v7176 = vunpack.c.l.b16 %v5735
        %v7177 = vunpack.c.l.b16 %v5736
        %v7178 = vunpack.c.l.b16 %v5737
        %v7179 = vunpack.c.l.b16 %v5738
        %v7180 = vunpack.c.l.b16 %v5739
        %v7181 = vunpack.c.l.b16 %v5740
        %v7182 = vunpack.c.l.b16 %v5741
        %v7183 = vunpack.c.l.b16 %v5742
        %v7184 = vunpack.c.l.b16 %v5743
        %v7185 = vunpack.c.l.b16 %v5744
        %v7186 = vunpack.c.l.b16 %v5745
        %v7187 = vunpack.c.l.b16 %v5746
        %v7188 = vunpack.c.l.b16 %v5747
        %v7189 = vpack.c.b16 %v7158, %v7157
        %v7190 = vpack.c.b16 %v7160, %v7159
        %v7191 = vpack.c.b16 %v7162, %v7161
        %v7192 = vpack.c.b16 %v7164, %v7163
        %v7193 = vpack.c.b16 %v7166, %v7165
        %v7194 = vpack.c.b16 %v7168, %v7167
        %v7195 = vpack.c.b16 %v7170, %v7169
        %v7196 = vpack.c.b16 %v7172, %v7171
        %v7197 = vpack.c.b16 %v7174, %v7173
        %v7198 = vpack.c.b16 %v7176, %v7175
        %v7199 = vpack.c.b16 %v7178, %v7177
        %v7200 = vpack.c.b16 %v7180, %v7179
        %v7201 = vpack.c.b16 %v7182, %v7181
        %v7202 = vpack.c.b16 %v7184, %v7183
        %v7203 = vpack.c.b16 %v7186, %v7185
        %v7204 = vpack.c.b16 %v7188, %v7187
        %v7221 = vunpack.c.l.b16 %v5777
        %v7222 = vunpack.c.l.b16 %v5787
        %v7223 = vunpack.c.l.b16 %v5801
        %v7224 = vunpack.c.l.b16 %v5811
        %v7225 = vunpack.c.l.b16 %v5825
        %v7226 = vunpack.c.l.b16 %v5835
        %v7227 = vunpack.c.l.b16 %v5849
        %v7228 = vunpack.c.l.b16 %v5859
        %v7229 = vunpack.c.l.b16 %v5873
        %v7230 = vunpack.c.l.b16 %v5883
        %v7231 = vunpack.c.l.b16 %v5897
        %v7232 = vunpack.c.l.b16 %v5907
        %v7233 = vunpack.c.l.b16 %v5921
        %v7234 = vunpack.c.l.b16 %v5931
        %v7235 = vunpack.c.l.b16 %v5945
        %v7236 = vunpack.c.l.b16 %v5955
        %v7237 = vunpack.c.l.b16 %v5969
        %v7238 = vunpack.c.l.b16 %v5979
        %v7239 = vunpack.c.l.b16 %v5993
        %v7240 = vunpack.c.l.b16 %v6003
        %v7241 = vunpack.c.l.b16 %v6017
        %v7242 = vunpack.c.l.b16 %v6027
        %v7243 = vunpack.c.l.b16 %v6041
        %v7244 = vunpack.c.l.b16 %v6051
        %v7245 = vunpack.c.l.b16 %v6065
        %v7246 = vunpack.c.l.b16 %v6075
        %v7247 = vunpack.c.l.b16 %v6089
        %v7248 = vunpack.c.l.b16 %v6099
        %v7249 = vunpack.c.l.b16 %v6113
        %v7250 = vunpack.c.l.b16 %v6123
        %v7251 = vunpack.c.l.b16 %v6137
        %v7252 = vunpack.c.l.b16 %v6147
        %v7253 = vpack.c.b16 %v7222, %v7221
        %v7254 = vpack.c.b16 %v7224, %v7223
        %v7255 = vpack.c.b16 %v7226, %v7225
        %v7256 = vpack.c.b16 %v7228, %v7227
        %v7257 = vpack.c.b16 %v7230, %v7229
        %v7258 = vpack.c.b16 %v7232, %v7231
        %v7259 = vpack.c.b16 %v7234, %v7233
        %v7260 = vpack.c.b16 %v7236, %v7235
        %v7261 = vpack.c.b16 %v7238, %v7237
        %v7262 = vpack.c.b16 %v7240, %v7239
        %v7263 = vpack.c.b16 %v7242, %v7241
        %v7264 = vpack.c.b16 %v7244, %v7243
        %v7265 = vpack.c.b16 %v7246, %v7245
        %v7266 = vpack.c.b16 %v7248, %v7247
        %v7267 = vpack.c.b16 %v7250, %v7249
        %v7268 = vpack.c.b16 %v7252, %v7251
        %v7285 = vunpack.c.l.b16 %v6215
        %v7286 = vunpack.c.l.b16 %v6218
        %v7287 = vunpack.c.l.b16 %v6222
        %v7288 = vunpack.c.l.b16 %v6225
        %v7289 = vunpack.c.l.b16 %v6229
        %v7290 = vunpack.c.l.b16 %v6232
        %v7291 = vunpack.c.l.b16 %v6236
        %v7292 = vunpack.c.l.b16 %v6239
        %v7293 = vunpack.c.l.b16 %v6243
        %v7294 = vunpack.c.l.b16 %v6246
        %v7295 = vunpack.c.l.b16 %v6250
        %v7296 = vunpack.c.l.b16 %v6253
        %v7297 = vunpack.c.l.b16 %v6257
        %v7298 = vunpack.c.l.b16 %v6260
        %v7299 = vunpack.c.l.b16 %v6264
        %v7300 = vunpack.c.l.b16 %v6267
        %v7301 = vunpack.c.l.b16 %v6271
        %v7302 = vunpack.c.l.b16 %v6274
        %v7303 = vunpack.c.l.b16 %v6278
        %v7304 = vunpack.c.l.b16 %v6281
        %v7305 = vunpack.c.l.b16 %v6285
        %v7306 = vunpack.c.l.b16 %v6288
        %v7307 = vunpack.c.l.b16 %v6292
        %v7308 = vunpack.c.l.b16 %v6295
        %v7309 = vunpack.c.l.b16 %v6299
        %v7310 = vunpack.c.l.b16 %v6302
        %v7311 = vunpack.c.l.b16 %v6306
        %v7312 = vunpack.c.l.b16 %v6309
        %v7313 = vunpack.c.l.b16 %v6313
        %v7314 = vunpack.c.l.b16 %v6316
        %v7315 = vunpack.c.l.b16 %v6320
        %v7316 = vunpack.c.l.b16 %v6323
        %v7317 = vpack.c.b16 %v7286, %v7285
        %v7318 = vpack.c.b16 %v7288, %v7287
        %v7319 = vpack.c.b16 %v7290, %v7289
        %v7320 = vpack.c.b16 %v7292, %v7291
        %v7321 = vpack.c.b16 %v7294, %v7293
        %v7322 = vpack.c.b16 %v7296, %v7295
        %v7323 = vpack.c.b16 %v7298, %v7297
        %v7324 = vpack.c.b16 %v7300, %v7299
        %v7325 = vpack.c.b16 %v7302, %v7301
        %v7326 = vpack.c.b16 %v7304, %v7303
        %v7327 = vpack.c.b16 %v7306, %v7305
        %v7328 = vpack.c.b16 %v7308, %v7307
        %v7329 = vpack.c.b16 %v7310, %v7309
        %v7330 = vpack.c.b16 %v7312, %v7311
        %v7331 = vpack.c.b16 %v7314, %v7313
        %v7332 = vpack.c.b16 %v7316, %v7315
        %v7365 = vunpack.c.l.b16 %v6325
        %v7366 = vunpack.c.l.b16 %v6326
        %v7367 = vunpack.c.l.b16 %v6327
        %v7368 = vunpack.c.l.b16 %v6328
        %v7369 = vunpack.c.l.b16 %v6329
        %v7370 = vunpack.c.l.b16 %v6330
        %v7371 = vunpack.c.l.b16 %v6331
        %v7372 = vunpack.c.l.b16 %v6332
        %v7373 = vunpack.c.l.b16 %v6333
        %v7374 = vunpack.c.l.b16 %v6334
        %v7375 = vunpack.c.l.b16 %v6335
        %v7376 = vunpack.c.l.b16 %v6336
        %v7377 = vunpack.c.l.b16 %v6337
        %v7378 = vunpack.c.l.b16 %v6338
        %v7379 = vunpack.c.l.b16 %v6339
        %v7380 = vunpack.c.l.b16 %v6340
        %v7381 = vunpack.c.l.b16 %v6341
        %v7382 = vunpack.c.l.b16 %v6342
        %v7383 = vunpack.c.l.b16 %v6343
        %v7384 = vunpack.c.l.b16 %v6344
        %v7385 = vunpack.c.l.b16 %v6345
        %v7386 = vunpack.c.l.b16 %v6346
        %v7387 = vunpack.c.l.b16 %v6347
        %v7388 = vunpack.c.l.b16 %v6348
        %v7389 = vunpack.c.l.b16 %v6349
        %v7390 = vunpack.c.l.b16 %v6350
        %v7391 = vunpack.c.l.b16 %v6351
        %v7392 = vunpack.c.l.b16 %v6352
        %v7393 = vunpack.c.l.b16 %v6353
        %v7394 = vunpack.c.l.b16 %v6354
        %v7395 = vunpack.c.l.b16 %v6355
        %v7396 = vunpack.c.l.b16 %v6356
        %v7397 = vpack.c.b16 %v7366, %v7365
        %v7398 = vpack.c.b16 %v7368, %v7367
        %v7399 = vpack.c.b16 %v7370, %v7369
        %v7400 = vpack.c.b16 %v7372, %v7371
        %v7401 = vpack.c.b16 %v7374, %v7373
        %v7402 = vpack.c.b16 %v7376, %v7375
        %v7403 = vpack.c.b16 %v7378, %v7377
        %v7404 = vpack.c.b16 %v7380, %v7379
        %v7405 = vpack.c.b16 %v7382, %v7381
        %v7406 = vpack.c.b16 %v7384, %v7383
        %v7407 = vpack.c.b16 %v7386, %v7385
        %v7408 = vpack.c.b16 %v7388, %v7387
        %v7409 = vpack.c.b16 %v7390, %v7389
        %v7410 = vpack.c.b16 %v7392, %v7391
        %v7411 = vpack.c.b16 %v7394, %v7393
        %v7412 = vpack.c.b16 %v7396, %v7395
        %v7429 = vunpack.c.l.b16 %v6386
        %v7430 = vunpack.c.l.b16 %v6396
        %v7431 = vunpack.c.l.b16 %v6410
        %v7432 = vunpack.c.l.b16 %v6420
        %v7433 = vunpack.c.l.b16 %v6434
        %v7434 = vunpack.c.l.b16 %v6444
        %v7435 = vunpack.c.l.b16 %v6458
        %v7436 = vunpack.c.l.b16 %v6468
        %v7437 = vunpack.c.l.b16 %v6482
        %v7438 = vunpack.c.l.b16 %v6492
        %v7439 = vunpack.c.l.b16 %v6506
        %v7440 = vunpack.c.l.b16 %v6516
        %v7441 = vunpack.c.l.b16 %v6530
        %v7442 = vunpack.c.l.b16 %v6540
        %v7443 = vunpack.c.l.b16 %v6554
        %v7444 = vunpack.c.l.b16 %v6564
        %v7445 = vunpack.c.l.b16 %v6578
        %v7446 = vunpack.c.l.b16 %v6588
        %v7447 = vunpack.c.l.b16 %v6602
        %v7448 = vunpack.c.l.b16 %v6612
        %v7449 = vunpack.c.l.b16 %v6626
        %v7450 = vunpack.c.l.b16 %v6636
        %v7451 = vunpack.c.l.b16 %v6650
        %v7452 = vunpack.c.l.b16 %v6660
        %v7453 = vunpack.c.l.b16 %v6674
        %v7454 = vunpack.c.l.b16 %v6684
        %v7455 = vunpack.c.l.b16 %v6698
        %v7456 = vunpack.c.l.b16 %v6708
        %v7457 = vunpack.c.l.b16 %v6722
        %v7458 = vunpack.c.l.b16 %v6732
        %v7459 = vunpack.c.l.b16 %v6746
        %v7460 = vunpack.c.l.b16 %v6756
        %v7461 = vpack.c.b16 %v7430, %v7429
        %v7462 = vpack.c.b16 %v7432, %v7431
        %v7463 = vpack.c.b16 %v7434, %v7433
        %v7464 = vpack.c.b16 %v7436, %v7435
        %v7465 = vpack.c.b16 %v7438, %v7437
        %v7466 = vpack.c.b16 %v7440, %v7439
        %v7467 = vpack.c.b16 %v7442, %v7441
        %v7468 = vpack.c.b16 %v7444, %v7443
        %v7469 = vpack.c.b16 %v7446, %v7445
        %v7470 = vpack.c.b16 %v7448, %v7447
        %v7471 = vpack.c.b16 %v7450, %v7449
        %v7472 = vpack.c.b16 %v7452, %v7451
        %v7473 = vpack.c.b16 %v7454, %v7453
        %v7474 = vpack.c.b16 %v7456, %v7455
        %v7475 = vpack.c.b16 %v7458, %v7457
        %v7476 = vpack.c.b16 %v7460, %v7459
        %v7493 = vunpack.c.l.b16 %v6824
        %v7494 = vunpack.c.l.b16 %v6827
        %v7495 = vunpack.c.l.b16 %v6831
        %v7496 = vunpack.c.l.b16 %v6834
        %v7497 = vunpack.c.l.b16 %v6838
        %v7498 = vunpack.c.l.b16 %v6841
        %v7499 = vunpack.c.l.b16 %v6845
        %v7500 = vunpack.c.l.b16 %v6848
        %v7501 = vunpack.c.l.b16 %v6852
        %v7502 = vunpack.c.l.b16 %v6855
        %v7503 = vunpack.c.l.b16 %v6859
        %v7504 = vunpack.c.l.b16 %v6862
        %v7505 = vunpack.c.l.b16 %v6866
        %v7506 = vunpack.c.l.b16 %v6869
        %v7507 = vunpack.c.l.b16 %v6873
        %v7508 = vunpack.c.l.b16 %v6876
        %v7509 = vunpack.c.l.b16 %v6880
        %v7510 = vunpack.c.l.b16 %v6883
        %v7511 = vunpack.c.l.b16 %v6887
        %v7512 = vunpack.c.l.b16 %v6890
        %v7513 = vunpack.c.l.b16 %v6894
        %v7514 = vunpack.c.l.b16 %v6897
        %v7515 = vunpack.c.l.b16 %v6901
        %v7516 = vunpack.c.l.b16 %v6904
        %v7517 = vunpack.c.l.b16 %v6908
        %v7518 = vunpack.c.l.b16 %v6911
        %v7519 = vunpack.c.l.b16 %v6915
        %v7520 = vunpack.c.l.b16 %v6918
        %v7521 = vunpack.c.l.b16 %v6922
        %v7522 = vunpack.c.l.b16 %v6925
        %v7523 = vunpack.c.l.b16 %v6929
        %v7524 = vunpack.c.l.b16 %v6932
        %v7525 = vpack.c.b16 %v7494, %v7493
        %v7526 = vpack.c.b16 %v7496, %v7495
        %v7527 = vpack.c.b16 %v7498, %v7497
        %v7528 = vpack.c.b16 %v7500, %v7499
        %v7529 = vpack.c.b16 %v7502, %v7501
        %v7530 = vpack.c.b16 %v7504, %v7503
        %v7531 = vpack.c.b16 %v7506, %v7505
        %v7532 = vpack.c.b16 %v7508, %v7507
        %v7533 = vpack.c.b16 %v7510, %v7509
        %v7534 = vpack.c.b16 %v7512, %v7511
        %v7535 = vpack.c.b16 %v7514, %v7513
        %v7536 = vpack.c.b16 %v7516, %v7515
        %v7537 = vpack.c.b16 %v7518, %v7517
        %v7538 = vpack.c.b16 %v7520, %v7519
        %v7539 = vpack.c.b16 %v7522, %v7521
        %v7540 = vpack.c.b16 %v7524, %v7523
        %v7557 = vld [vmem:[#allocation6] sm:$0xf]
        %v7558 = vld [vmem:[#allocation6 + $0x4] sm:$0xf]
        %v7559 = vld [vmem:[#allocation6 + $0x8] sm:$0xf]
        %v7560 = vld [vmem:[#allocation6 + $0xc] sm:$0xf]
        %v7561 = vld [vmem:[#allocation6 + $0x10] sm:$0xf]
        %v7562 = vld [vmem:[#allocation6 + $0x14] sm:$0xf]
        %v7563 = vld [vmem:[#allocation6 + $0x18] sm:$0xf]
        %v7564 = vld [vmem:[#allocation6 + $0x1c] sm:$0xf]
        %v7565 = vld [vmem:[#allocation6 + $0x20] sm:$0xf]
        %v7566 = vld [vmem:[#allocation6 + $0x24] sm:$0xf]
        %v7567 = vld [vmem:[#allocation6 + $0x28] sm:$0xf]
        %v7568 = vld [vmem:[#allocation6 + $0x2c] sm:$0xf]
        %v7569 = vld [vmem:[#allocation6 + $0x30] sm:$0xf]
        %v7570 = vld [vmem:[#allocation6 + $0x34] sm:$0xf]
        %v7571 = vld [vmem:[#allocation6 + $0x38] sm:$0xf]
        %v7572 = vld [vmem:[#allocation6 + $0x3c] sm:$0xf]
        %v7573 = vld [vmem:[#allocation6 + $0x40] sm:$0xf]
        %v7574 = vld [vmem:[#allocation6 + $0x44] sm:$0xf]
        %v7575 = vld [vmem:[#allocation6 + $0x48] sm:$0xf]
        %v7576 = vld [vmem:[#allocation6 + $0x4c] sm:$0xf]
        %v7577 = vld [vmem:[#allocation6 + $0x50] sm:$0xf]
        %v7578 = vld [vmem:[#allocation6 + $0x54] sm:$0xf]
        %v7579 = vld [vmem:[#allocation6 + $0x58] sm:$0xf]
        %v7580 = vld [vmem:[#allocation6 + $0x5c] sm:$0xf]
        %v7581 = vld [vmem:[#allocation6 + $0x60] sm:$0xf]
        %v7582 = vld [vmem:[#allocation6 + $0x64] sm:$0xf]
        %v7583 = vld [vmem:[#allocation6 + $0x68] sm:$0xf]
        %v7584 = vld [vmem:[#allocation6 + $0x6c] sm:$0xf]
        %v7585 = vld [vmem:[#allocation6 + $0x70] sm:$0xf]
        %v7586 = vld [vmem:[#allocation6 + $0x74] sm:$0xf]
        %v7587 = vld [vmem:[#allocation6 + $0x78] sm:$0xf]
        %v7588 = vld [vmem:[#allocation6 + $0x7c] sm:$0xf]
        %v7589 = vld [vmem:[#allocation6 + $0x80] sm:$0xf]
        %v7590 = vld [vmem:[#allocation6 + $0x84] sm:$0xf]
        %v7591 = vld [vmem:[#allocation6 + $0x88] sm:$0xf]
        %v7592 = vld [vmem:[#allocation6 + $0x8c] sm:$0xf]
        %v7593 = vld [vmem:[#allocation6 + $0x90] sm:$0xf]
        %v7594 = vld [vmem:[#allocation6 + $0x94] sm:$0xf]
        %v7595 = vld [vmem:[#allocation6 + $0x98] sm:$0xf]
        %v7596 = vld [vmem:[#allocation6 + $0x9c] sm:$0xf]
        %v7597 = vld [vmem:[#allocation6 + $0xa0] sm:$0xf]
        %v7598 = vld [vmem:[#allocation6 + $0xa4] sm:$0xf]
        %v7599 = vld [vmem:[#allocation6 + $0xa8] sm:$0xf]
        %v7600 = vld [vmem:[#allocation6 + $0xac] sm:$0xf]
        %v7601 = vld [vmem:[#allocation6 + $0xb0] sm:$0xf]
        %v7602 = vld [vmem:[#allocation6 + $0xb4] sm:$0xf]
        %v7603 = vld [vmem:[#allocation6 + $0xb8] sm:$0xf]
        %v7604 = vld [vmem:[#allocation6 + $0xbc] sm:$0xf]
        %v7605 = vld [vmem:[#allocation6 + $0xc0] sm:$0xf]
        %v7606 = vld [vmem:[#allocation6 + $0xc4] sm:$0xf]
        %v7607 = vld [vmem:[#allocation6 + $0xc8] sm:$0xf]
        %v7608 = vld [vmem:[#allocation6 + $0xcc] sm:$0xf]
        %v7609 = vld [vmem:[#allocation6 + $0xd0] sm:$0xf]
        %v7610 = vld [vmem:[#allocation6 + $0xd4] sm:$0xf]
        %v7611 = vld [vmem:[#allocation6 + $0xd8] sm:$0xf]
        %v7612 = vld [vmem:[#allocation6 + $0xdc] sm:$0xf]
        %v7613 = vld [vmem:[#allocation6 + $0xe0] sm:$0xf]
        %v7614 = vld [vmem:[#allocation6 + $0xe4] sm:$0xf]
        %v7615 = vld [vmem:[#allocation6 + $0xe8] sm:$0xf]
        %v7616 = vld [vmem:[#allocation6 + $0xec] sm:$0xf]
        %v7617 = vld [vmem:[#allocation6 + $0xf0] sm:$0xf]
        %v7618 = vld [vmem:[#allocation6 + $0xf4] sm:$0xf]
        %v7619 = vld [vmem:[#allocation6 + $0xf8] sm:$0xf]
        %v7620 = vld [vmem:[#allocation6 + $0xfc] sm:$0xf]
        %v7621 = vld [vmem:[#allocation6 + $0x100] sm:$0xf]
        %v7622 = vld [vmem:[#allocation6 + $0x104] sm:$0xf]
        %v7623 = vld [vmem:[#allocation6 + $0x108] sm:$0xf]
        %v7624 = vld [vmem:[#allocation6 + $0x10c] sm:$0xf]
        %v7625 = vld [vmem:[#allocation6 + $0x110] sm:$0xf]
        %v7626 = vld [vmem:[#allocation6 + $0x114] sm:$0xf]
        %v7627 = vld [vmem:[#allocation6 + $0x118] sm:$0xf]
        %v7628 = vld [vmem:[#allocation6 + $0x11c] sm:$0xf]
        %v7629 = vld [vmem:[#allocation6 + $0x120] sm:$0xf]
        %v7630 = vld [vmem:[#allocation6 + $0x124] sm:$0xf]
        %v7631 = vld [vmem:[#allocation6 + $0x128] sm:$0xf]
        %v7632 = vld [vmem:[#allocation6 + $0x12c] sm:$0xf]
        %v7633 = vld [vmem:[#allocation6 + $0x130] sm:$0xf]
        %v7634 = vld [vmem:[#allocation6 + $0x134] sm:$0xf]
        %v7635 = vld [vmem:[#allocation6 + $0x138] sm:$0xf]
        %v7636 = vld [vmem:[#allocation6 + $0x13c] sm:$0xf]
        %v7637 = vld [vmem:[#allocation6 + $0x140] sm:$0xf]
        %v7638 = vld [vmem:[#allocation6 + $0x144] sm:$0xf]
        %v7639 = vld [vmem:[#allocation6 + $0x148] sm:$0xf]
        %v7640 = vld [vmem:[#allocation6 + $0x14c] sm:$0xf]
        %v7641 = vld [vmem:[#allocation6 + $0x150] sm:$0xf]
        %v7642 = vld [vmem:[#allocation6 + $0x154] sm:$0xf]
        %v7643 = vld [vmem:[#allocation6 + $0x158] sm:$0xf]
        %v7644 = vld [vmem:[#allocation6 + $0x15c] sm:$0xf]
        %v7645 = vld [vmem:[#allocation6 + $0x160] sm:$0xf]
        %v7646 = vld [vmem:[#allocation6 + $0x164] sm:$0xf]
        %v7647 = vld [vmem:[#allocation6 + $0x168] sm:$0xf]
        %v7648 = vld [vmem:[#allocation6 + $0x16c] sm:$0xf]
        %v7649 = vld [vmem:[#allocation6 + $0x170] sm:$0xf]
        %v7650 = vld [vmem:[#allocation6 + $0x174] sm:$0xf]
        %v7651 = vld [vmem:[#allocation6 + $0x178] sm:$0xf]
        %v7652 = vld [vmem:[#allocation6 + $0x17c] sm:$0xf]
        %v7653 = vld [vmem:[#allocation6 + $0x180] sm:$0xf]
        %v7654 = vld [vmem:[#allocation6 + $0x184] sm:$0xf]
        %v7655 = vld [vmem:[#allocation6 + $0x188] sm:$0xf]
        %v7656 = vld [vmem:[#allocation6 + $0x18c] sm:$0xf]
        %v7657 = vld [vmem:[#allocation6 + $0x190] sm:$0xf]
        %v7658 = vld [vmem:[#allocation6 + $0x194] sm:$0xf]
        %v7659 = vld [vmem:[#allocation6 + $0x198] sm:$0xf]
        %v7660 = vld [vmem:[#allocation6 + $0x19c] sm:$0xf]
        %v7661 = vld [vmem:[#allocation6 + $0x1a0] sm:$0xf]
        %v7662 = vld [vmem:[#allocation6 + $0x1a4] sm:$0xf]
        %v7663 = vld [vmem:[#allocation6 + $0x1a8] sm:$0xf]
        %v7664 = vld [vmem:[#allocation6 + $0x1ac] sm:$0xf]
        %v7665 = vld [vmem:[#allocation6 + $0x1b0] sm:$0xf]
        %v7666 = vld [vmem:[#allocation6 + $0x1b4] sm:$0xf]
        %v7667 = vld [vmem:[#allocation6 + $0x1b8] sm:$0xf]
        %v7668 = vld [vmem:[#allocation6 + $0x1bc] sm:$0xf]
        %v7669 = vld [vmem:[#allocation6 + $0x1c0] sm:$0xf]
        %v7670 = vld [vmem:[#allocation6 + $0x1c4] sm:$0xf]
        %v7671 = vld [vmem:[#allocation6 + $0x1c8] sm:$0xf]
        %v7672 = vld [vmem:[#allocation6 + $0x1cc] sm:$0xf]
        %v7673 = vld [vmem:[#allocation6 + $0x1d0] sm:$0xf]
        %v7674 = vld [vmem:[#allocation6 + $0x1d4] sm:$0xf]
        %v7675 = vld [vmem:[#allocation6 + $0x1d8] sm:$0xf]
        %v7676 = vld [vmem:[#allocation6 + $0x1dc] sm:$0xf]
        %v7677 = vld [vmem:[#allocation6 + $0x1e0] sm:$0xf]
        %v7678 = vld [vmem:[#allocation6 + $0x1e4] sm:$0xf]
        %v7679 = vld [vmem:[#allocation6 + $0x1e8] sm:$0xf]
        %v7680 = vld [vmem:[#allocation6 + $0x1ec] sm:$0xf]
        %v7681 = vld [vmem:[#allocation6 + $0x1f0] sm:$0xf]
        %v7682 = vld [vmem:[#allocation6 + $0x1f4] sm:$0xf]
        %v7683 = vld [vmem:[#allocation6 + $0x1f8] sm:$0xf]
        %v7684 = vld [vmem:[#allocation6 + $0x1fc] sm:$0xf]
        %v7685 = vld [vmem:[#allocation6 + $0x200] sm:$0xf]
        %v7686 = vld [vmem:[#allocation6 + $0x204] sm:$0xf]
        %v7687 = vld [vmem:[#allocation6 + $0x208] sm:$0xf]
        %v7688 = vld [vmem:[#allocation6 + $0x20c] sm:$0xf]
        %v7689 = vld [vmem:[#allocation6 + $0x210] sm:$0xf]
        %v7690 = vld [vmem:[#allocation6 + $0x214] sm:$0xf]
        %v7691 = vld [vmem:[#allocation6 + $0x218] sm:$0xf]
        %v7692 = vld [vmem:[#allocation6 + $0x21c] sm:$0xf]
        %v7693 = vld [vmem:[#allocation6 + $0x220] sm:$0xf]
        %v7694 = vld [vmem:[#allocation6 + $0x224] sm:$0xf]
        %v7695 = vld [vmem:[#allocation6 + $0x228] sm:$0xf]
        %v7696 = vld [vmem:[#allocation6 + $0x22c] sm:$0xf]
        %v7697 = vld [vmem:[#allocation6 + $0x230] sm:$0xf]
        %v7698 = vld [vmem:[#allocation6 + $0x234] sm:$0xf]
        %v7699 = vld [vmem:[#allocation6 + $0x238] sm:$0xf]
        %v7700 = vld [vmem:[#allocation6 + $0x23c] sm:$0xf]
        %v7845 = vunpack.c.l.b16 %v7557
        %v7846 = vunpack.c.l.b16 %v7558
        %v7847 = vunpack.c.l.b16 %v7559
        %v7848 = vunpack.c.l.b16 %v7560
        %v7849 = vunpack.c.l.b16 %v7561
        %v7850 = vunpack.c.l.b16 %v7562
        %v7851 = vunpack.c.l.b16 %v7563
        %v7852 = vunpack.c.l.b16 %v7564
        %v7853 = vunpack.c.l.b16 %v7565
        %v7854 = vunpack.c.l.b16 %v7566
        %v7855 = vunpack.c.l.b16 %v7567
        %v7856 = vunpack.c.l.b16 %v7568
        %v7857 = vunpack.c.l.b16 %v7569
        %v7858 = vunpack.c.l.b16 %v7570
        %v7859 = vunpack.c.l.b16 %v7571
        %v7860 = vunpack.c.l.b16 %v7572
        %v7861 = vunpack.c.l.b16 %v7573
        %v7862 = vunpack.c.l.b16 %v7574
        %v7863 = vunpack.c.l.b16 %v7575
        %v7864 = vunpack.c.l.b16 %v7576
        %v7865 = vunpack.c.l.b16 %v7577
        %v7866 = vunpack.c.l.b16 %v7578
        %v7867 = vunpack.c.l.b16 %v7579
        %v7868 = vunpack.c.l.b16 %v7580
        %v7869 = vunpack.c.l.b16 %v7581
        %v7870 = vunpack.c.l.b16 %v7582
        %v7871 = vunpack.c.l.b16 %v7583
        %v7872 = vunpack.c.l.b16 %v7584
        %v7873 = vunpack.c.l.b16 %v7585
        %v7874 = vunpack.c.l.b16 %v7586
        %v7875 = vunpack.c.l.b16 %v7587
        %v7876 = vunpack.c.l.b16 %v7588
        %v7877 = vunpack.c.l.b16 %v7589
        %v7878 = vunpack.c.l.b16 %v7590
        %v7879 = vunpack.c.l.b16 %v7591
        %v7880 = vunpack.c.l.b16 %v7592
        %v7881 = vunpack.c.l.b16 %v7593
        %v7882 = vunpack.c.l.b16 %v7594
        %v7883 = vunpack.c.l.b16 %v7595
        %v7884 = vunpack.c.l.b16 %v7596
        %v7885 = vunpack.c.l.b16 %v7597
        %v7886 = vunpack.c.l.b16 %v7598
        %v7887 = vunpack.c.l.b16 %v7599
        %v7888 = vunpack.c.l.b16 %v7600
        %v7889 = vunpack.c.l.b16 %v7601
        %v7890 = vunpack.c.l.b16 %v7602
        %v7891 = vunpack.c.l.b16 %v7603
        %v7892 = vunpack.c.l.b16 %v7604
        %v7893 = vunpack.c.l.b16 %v7605
        %v7894 = vunpack.c.l.b16 %v7606
        %v7895 = vunpack.c.l.b16 %v7607
        %v7896 = vunpack.c.l.b16 %v7608
        %v7897 = vunpack.c.l.b16 %v7609
        %v7898 = vunpack.c.l.b16 %v7610
        %v7899 = vunpack.c.l.b16 %v7611
        %v7900 = vunpack.c.l.b16 %v7612
        %v7901 = vunpack.c.l.b16 %v7613
        %v7902 = vunpack.c.l.b16 %v7614
        %v7903 = vunpack.c.l.b16 %v7615
        %v7904 = vunpack.c.l.b16 %v7616
        %v7905 = vunpack.c.l.b16 %v7617
        %v7906 = vunpack.c.l.b16 %v7618
        %v7907 = vunpack.c.l.b16 %v7619
        %v7908 = vunpack.c.l.b16 %v7620
        %v7909 = vunpack.c.l.b16 %v7621
        %v7910 = vunpack.c.l.b16 %v7622
        %v7911 = vunpack.c.l.b16 %v7623
        %v7912 = vunpack.c.l.b16 %v7624
        %v7913 = vunpack.c.l.b16 %v7625
        %v7914 = vunpack.c.l.b16 %v7626
        %v7915 = vunpack.c.l.b16 %v7627
        %v7916 = vunpack.c.l.b16 %v7628
        %v7917 = vunpack.c.l.b16 %v7629
        %v7918 = vunpack.c.l.b16 %v7630
        %v7919 = vunpack.c.l.b16 %v7631
        %v7920 = vunpack.c.l.b16 %v7632
        %v7921 = vunpack.c.l.b16 %v7633
        %v7922 = vunpack.c.l.b16 %v7634
        %v7923 = vunpack.c.l.b16 %v7635
        %v7924 = vunpack.c.l.b16 %v7636
        %v7925 = vunpack.c.l.b16 %v7637
        %v7926 = vunpack.c.l.b16 %v7638
        %v7927 = vunpack.c.l.b16 %v7639
        %v7928 = vunpack.c.l.b16 %v7640
        %v7929 = vunpack.c.l.b16 %v7641
        %v7930 = vunpack.c.l.b16 %v7642
        %v7931 = vunpack.c.l.b16 %v7643
        %v7932 = vunpack.c.l.b16 %v7644
        %v7933 = vunpack.c.l.b16 %v7645
        %v7934 = vunpack.c.l.b16 %v7646
        %v7935 = vunpack.c.l.b16 %v7647
        %v7936 = vunpack.c.l.b16 %v7648
        %v7937 = vunpack.c.l.b16 %v7649
        %v7938 = vunpack.c.l.b16 %v7650
        %v7939 = vunpack.c.l.b16 %v7651
        %v7940 = vunpack.c.l.b16 %v7652
        %v7941 = vunpack.c.l.b16 %v7653
        %v7942 = vunpack.c.l.b16 %v7654
        %v7943 = vunpack.c.l.b16 %v7655
        %v7944 = vunpack.c.l.b16 %v7656
        %v7945 = vunpack.c.l.b16 %v7657
        %v7946 = vunpack.c.l.b16 %v7658
        %v7947 = vunpack.c.l.b16 %v7659
        %v7948 = vunpack.c.l.b16 %v7660
        %v7949 = vunpack.c.l.b16 %v7661
        %v7950 = vunpack.c.l.b16 %v7662
        %v7951 = vunpack.c.l.b16 %v7663
        %v7952 = vunpack.c.l.b16 %v7664
        %v7953 = vunpack.c.l.b16 %v7665
        %v7954 = vunpack.c.l.b16 %v7666
        %v7955 = vunpack.c.l.b16 %v7667
        %v7956 = vunpack.c.l.b16 %v7668
        %v7957 = vunpack.c.l.b16 %v7669
        %v7958 = vunpack.c.l.b16 %v7670
        %v7959 = vunpack.c.l.b16 %v7671
        %v7960 = vunpack.c.l.b16 %v7672
        %v7961 = vunpack.c.l.b16 %v7673
        %v7962 = vunpack.c.l.b16 %v7674
        %v7963 = vunpack.c.l.b16 %v7675
        %v7964 = vunpack.c.l.b16 %v7676
        %v7965 = vunpack.c.l.b16 %v7677
        %v7966 = vunpack.c.l.b16 %v7678
        %v7967 = vunpack.c.l.b16 %v7679
        %v7968 = vunpack.c.l.b16 %v7680
        %v7969 = vunpack.c.l.b16 %v7681
        %v7970 = vunpack.c.l.b16 %v7682
        %v7971 = vunpack.c.l.b16 %v7683
        %v7972 = vunpack.c.l.b16 %v7684
        %v7973 = vunpack.c.l.b16 %v7685
        %v7974 = vunpack.c.l.b16 %v7686
        %v7975 = vunpack.c.l.b16 %v7687
        %v7976 = vunpack.c.l.b16 %v7688
        %v7977 = vunpack.c.l.b16 %v7689
        %v7978 = vunpack.c.l.b16 %v7690
        %v7979 = vunpack.c.l.b16 %v7691
        %v7980 = vunpack.c.l.b16 %v7692
        %v7981 = vunpack.c.l.b16 %v7693
        %v7982 = vunpack.c.l.b16 %v7694
        %v7983 = vunpack.c.l.b16 %v7695
        %v7984 = vunpack.c.l.b16 %v7696
        %v7985 = vunpack.c.l.b16 %v7697
        %v7986 = vunpack.c.l.b16 %v7698
        %v7987 = vunpack.c.l.b16 %v7699
        %v7988 = vunpack.c.l.b16 %v7700
        %v7989 = vpack.c.b16 %v7846, %v7845
        %v7990 = vpack.c.b16 %v7848, %v7847
        %v7991 = vpack.c.b16 %v7850, %v7849
        %v7992 = vpack.c.b16 %v7852, %v7851
        %v7993 = vpack.c.b16 %v7854, %v7853
        %v7994 = vpack.c.b16 %v7856, %v7855
        %v7995 = vpack.c.b16 %v7858, %v7857
        %v7996 = vpack.c.b16 %v7860, %v7859
        %v7997 = vpack.c.b16 %v7862, %v7861
        %v7998 = vpack.c.b16 %v7864, %v7863
        %v7999 = vpack.c.b16 %v7866, %v7865
        %v8000 = vpack.c.b16 %v7868, %v7867
        %v8001 = vpack.c.b16 %v7870, %v7869
        %v8002 = vpack.c.b16 %v7872, %v7871
        %v8003 = vpack.c.b16 %v7874, %v7873
        %v8004 = vpack.c.b16 %v7876, %v7875
        %v8005 = vpack.c.b16 %v7878, %v7877
        %v8006 = vpack.c.b16 %v7880, %v7879
        %v8007 = vpack.c.b16 %v7882, %v7881
        %v8008 = vpack.c.b16 %v7884, %v7883
        %v8009 = vpack.c.b16 %v7886, %v7885
        %v8010 = vpack.c.b16 %v7888, %v7887
        %v8011 = vpack.c.b16 %v7890, %v7889
        %v8012 = vpack.c.b16 %v7892, %v7891
        %v8013 = vpack.c.b16 %v7894, %v7893
        %v8014 = vpack.c.b16 %v7896, %v7895
        %v8015 = vpack.c.b16 %v7898, %v7897
        %v8016 = vpack.c.b16 %v7900, %v7899
        %v8017 = vpack.c.b16 %v7902, %v7901
        %v8018 = vpack.c.b16 %v7904, %v7903
        %v8019 = vpack.c.b16 %v7906, %v7905
        %v8020 = vpack.c.b16 %v7908, %v7907
        %v8021 = vpack.c.b16 %v7910, %v7909
        %v8022 = vpack.c.b16 %v7912, %v7911
        %v8023 = vpack.c.b16 %v7914, %v7913
        %v8024 = vpack.c.b16 %v7916, %v7915
        %v8025 = vpack.c.b16 %v7918, %v7917
        %v8026 = vpack.c.b16 %v7920, %v7919
        %v8027 = vpack.c.b16 %v7922, %v7921
        %v8028 = vpack.c.b16 %v7924, %v7923
        %v8029 = vpack.c.b16 %v7926, %v7925
        %v8030 = vpack.c.b16 %v7928, %v7927
        %v8031 = vpack.c.b16 %v7930, %v7929
        %v8032 = vpack.c.b16 %v7932, %v7931
        %v8033 = vpack.c.b16 %v7934, %v7933
        %v8034 = vpack.c.b16 %v7936, %v7935
        %v8035 = vpack.c.b16 %v7938, %v7937
        %v8036 = vpack.c.b16 %v7940, %v7939
        %v8037 = vpack.c.b16 %v7942, %v7941
        %v8038 = vpack.c.b16 %v7944, %v7943
        %v8039 = vpack.c.b16 %v7946, %v7945
        %v8040 = vpack.c.b16 %v7948, %v7947
        %v8041 = vpack.c.b16 %v7950, %v7949
        %v8042 = vpack.c.b16 %v7952, %v7951
        %v8043 = vpack.c.b16 %v7954, %v7953
        %v8044 = vpack.c.b16 %v7956, %v7955
        %v8045 = vpack.c.b16 %v7958, %v7957
        %v8046 = vpack.c.b16 %v7960, %v7959
        %v8047 = vpack.c.b16 %v7962, %v7961
        %v8048 = vpack.c.b16 %v7964, %v7963
        %v8049 = vpack.c.b16 %v7966, %v7965
        %v8050 = vpack.c.b16 %v7968, %v7967
        %v8051 = vpack.c.b16 %v7970, %v7969
        %v8052 = vpack.c.b16 %v7972, %v7971
        %v8053 = vpack.c.b16 %v7974, %v7973
        %v8054 = vpack.c.b16 %v7976, %v7975
        %v8055 = vpack.c.b16 %v7978, %v7977
        %v8056 = vpack.c.b16 %v7980, %v7979
        %v8057 = vpack.c.b16 %v7982, %v7981
        %v8058 = vpack.c.b16 %v7984, %v7983
        %v8059 = vpack.c.b16 %v7986, %v7985
        %v8060 = vpack.c.b16 %v7988, %v7987
        %8133 = vmatprep.subr.bf16.mxu0 0
        %8134 = vmatpush1.bf16.msra.mxu0 %v7989
        %8135 = vmatprep.subr.bf16.mxu0 0
        %8136 = vmatpush1.bf16.msra.mxu0 %v7990
        %8137 = vmatprep.subr.bf16.mxu0 0
        %8138 = vmatpush1.bf16.msra.mxu0 %v7991
        %8139 = vmatprep.subr.bf16.mxu0 0
        %8140 = vmatpush1.bf16.msra.mxu0 %v7992
        %8141 = vmatprep.subr.bf16.mxu0 0
        %8142 = vmatpush1.bf16.msra.mxu0 %v7993
        %8143 = vmatprep.subr.bf16.mxu0 0
        %8144 = vmatpush1.bf16.msra.mxu0 %v7994
        %8145 = vmatprep.subr.bf16.mxu0 0
        %8146 = vmatpush1.bf16.msra.mxu0 %v7995
        %8147 = vmatprep.subr.bf16.mxu0 0
        %8148 = vmatpush1.bf16.msra.mxu0 %v7996
        %8149 = vmatprep.subr.bf16.mxu0 0
        %8150 = vmatpush1.bf16.msra.mxu0 %v7997
        %8151 = vmatprep.subr.bf16.mxu0 0
        %8152 = vmatpush1.bf16.msra.mxu0 %v7998
        %8153 = vmatprep.subr.bf16.mxu0 0
        %8154 = vmatpush1.bf16.msra.mxu0 %v7999
        %8155 = vmatprep.subr.bf16.mxu0 0
        %8156 = vmatpush1.bf16.msra.mxu0 %v8000
        %8157 = vmatprep.subr.bf16.mxu0 0
        %8158 = vmatpush1.bf16.msra.mxu0 %v8001
        %8159 = vmatprep.subr.bf16.mxu0 0
        %8160 = vmatpush1.bf16.msra.mxu0 %v8002
        %8161 = vmatprep.subr.bf16.mxu0 0
        %8162 = vmatpush1.bf16.msra.mxu0 %v8003
        %8163 = vmatprep.subr.bf16.mxu0 0
        %8164 = vmatpush1.bf16.msra.mxu0 %v8004
        %8165 = vmatprep.mubr.bf16.mxu0 %v7045
        %8166 = vmatmul.mubr.bf16.gmra.mrb[0].mxu0 %v6981
        %v8167 = vpop.f32.mrb[0].mxu0
        %v8168 = vadd.f32 0.0, %v8167
        %v8169 = vpop.f32.mrb[0].mxu0
        %v8170 = vpop.f32.mrb[0].mxu0
        %v8171 = vadd.f32 0.0, %v8170
        %v8172 = vpop.f32.mrb[0].mxu0
        %8173 = vmatprep.mubr.bf16.mxu0 %v7046
        %8174 = vmatmul.mubr.bf16.gmra.mrb[0].mxu0 %v6982
        %v8175 = vpop.f32.mrb[0].mxu0
        %v8176 = vadd.f32 0.0, %v8175
        %v8177 = vpop.f32.mrb[0].mxu0
        %v8178 = vpop.f32.mrb[0].mxu0
        %v8179 = vadd.f32 0.0, %v8178
        %v8180 = vpop.f32.mrb[0].mxu0
        %8181 = vmatprep.mubr.bf16.mxu0 %v7047
        %8182 = vmatmul.mubr.bf16.gmra.mrb[0].mxu0 %v6983
        %v8183 = vpop.f32.mrb[0].mxu0
        %v8184 = vadd.f32 0.0, %v8183
        %v8185 = vpop.f32.mrb[0].mxu0
        %v8186 = vpop.f32.mrb[0].mxu0
        %v8187 = vadd.f32 0.0, %v8186
        %v8188 = vpop.f32.mrb[0].mxu0
        %8189 = vmatprep.mubr.bf16.mxu0 %v7048
        %8190 = vmatmul.mubr.bf16.gmra.mrb[0].mxu0 %v6984
        %v8191 = vpop.f32.mrb[0].mxu0
        %v8192 = vadd.f32 0.0, %v8191
        %v8193 = vpop.f32.mrb[0].mxu0
        %v8194 = vpop.f32.mrb[0].mxu0
        %v8195 = vadd.f32 0.0, %v8194
        %v8196 = vpop.f32.mrb[0].mxu0
        %8197 = vmatprep.mubr.bf16.mxu0 %v7049
        %8198 = vmatmul.mubr.bf16.gmra.mrb[0].mxu0 %v6985
        %v8199 = vpop.f32.mrb[0].mxu0
        %v8200 = vadd.f32 0.0, %v8199
        %v8201 = vpop.f32.mrb[0].mxu0
        %v8202 = vpop.f32.mrb[0].mxu0
        %v8203 = vadd.f32 0.0, %v8202
        %v8204 = vpop.f32.mrb[0].mxu0
        %8205 = vmatprep.mubr.bf16.mxu0 %v7050
        %8206 = vmatmul.mubr.bf16.gmra.mrb[0].mxu0 %v6986
        %v8207 = vpop.f32.mrb[0].mxu0
        %v8208 = vadd.f32 0.0, %v8207
        %v8209 = vpop.f32.mrb[0].mxu0
        %v8210 = vpop.f32.mrb[0].mxu0
        %v8211 = vadd.f32 0.0, %v8210
        %v8212 = vpop.f32.mrb[0].mxu0
        %8213 = vmatprep.mubr.bf16.mxu0 %v7051
        %8214 = vmatmul.mubr.bf16.gmra.mrb[0].mxu0 %v6987
        %v8215 = vpop.f32.mrb[0].mxu0
        %v8216 = vadd.f32 0.0, %v8215
        %v8217 = vpop.f32.mrb[0].mxu0
        %v8218 = vpop.f32.mrb[0].mxu0
        %v8219 = vadd.f32 0.0, %v8218
        %v8220 = vpop.f32.mrb[0].mxu0
        %8221 = vmatprep.mubr.bf16.mxu0 %v7052
        %8222 = vmatmul.mubr.bf16.gmra.mrb[0].mxu0 %v6988
        %v8223 = vpop.f32.mrb[0].mxu0
        %v8224 = vadd.f32 0.0, %v8223
        %v8225 = vpop.f32.mrb[0].mxu0
        %v8226 = vpop.f32.mrb[0].mxu0
        %v8227 = vadd.f32 0.0, %v8226
        %v8228 = vpop.f32.mrb[0].mxu0
        %8229 = vmatprep.mubr.bf16.mxu0 %v7053
        %8230 = vmatmul.mubr.bf16.gmra.mrb[0].mxu0 %v6989
        %v8231 = vpop.f32.mrb[0].mxu0
        %v8232 = vadd.f32 0.0, %v8231
        %v8233 = vpop.f32.mrb[0].mxu0
        %v8234 = vpop.f32.mrb[0].mxu0
        %v8235 = vadd.f32 0.0, %v8234
        %v8236 = vpop.f32.mrb[0].mxu0
        %8237 = vmatprep.mubr.bf16.mxu0 %v7054
        %8238 = vmatmul.mubr.bf16.gmra.mrb[0].mxu0 %v6990
        %v8239 = vpop.f32.mrb[0].mxu0
        %v8240 = vadd.f32 0.0, %v8239
        %v8241 = vpop.f32.mrb[0].mxu0
        %v8242 = vpop.f32.mrb[0].mxu0
        %v8243 = vadd.f32 0.0, %v8242
        %v8244 = vpop.f32.mrb[0].mxu0
        %8245 = vmatprep.mubr.bf16.mxu0 %v7055
        %8246 = vmatmul.mubr.bf16.gmra.mrb[0].mxu0 %v6991
        %v8247 = vpop.f32.mrb[0].mxu0
        %v8248 = vadd.f32 0.0, %v8247
        %v8249 = vpop.f32.mrb[0].mxu0
        %v8250 = vpop.f32.mrb[0].mxu0
        %v8251 = vadd.f32 0.0, %v8250
        %v8252 = vpop.f32.mrb[0].mxu0
        %8253 = vmatprep.mubr.bf16.mxu0 %v7056
        %8254 = vmatmul.mubr.bf16.gmra.mrb[0].mxu0 %v6992
        %v8255 = vpop.f32.mrb[0].mxu0
        %v8256 = vadd.f32 0.0, %v8255
        %v8257 = vpop.f32.mrb[0].mxu0
        %v8258 = vpop.f32.mrb[0].mxu0
        %v8259 = vadd.f32 0.0, %v8258
        %v8260 = vpop.f32.mrb[0].mxu0
        %8261 = vmatprep.mubr.bf16.mxu0 %v7057
        %8262 = vmatmul.mubr.bf16.gmra.mrb[0].mxu0 %v6993
        %v8263 = vpop.f32.mrb[0].mxu0
        %v8264 = vadd.f32 0.0, %v8263
        %v8265 = vpop.f32.mrb[0].mxu0
        %v8266 = vpop.f32.mrb[0].mxu0
        %v8267 = vadd.f32 0.0, %v8266
        %v8268 = vpop.f32.mrb[0].mxu0
        %8269 = vmatprep.mubr.bf16.mxu0 %v7058
        %8270 = vmatmul.mubr.bf16.gmra.mrb[0].mxu0 %v6994
        %v8271 = vpop.f32.mrb[0].mxu0
        %v8272 = vadd.f32 0.0, %v8271
        %v8273 = vpop.f32.mrb[0].mxu0
        %v8274 = vpop.f32.mrb[0].mxu0
        %v8275 = vadd.f32 0.0, %v8274
        %v8276 = vpop.f32.mrb[0].mxu0
        %8277 = vmatprep.mubr.bf16.mxu0 %v7059
        %8278 = vmatmul.mubr.bf16.gmra.mrb[0].mxu0 %v6995
        %v8279 = vpop.f32.mrb[0].mxu0
        %v8280 = vadd.f32 0.0, %v8279
        %v8281 = vpop.f32.mrb[0].mxu0
        %v8282 = vpop.f32.mrb[0].mxu0
        %v8283 = vadd.f32 0.0, %v8282
        %v8284 = vpop.f32.mrb[0].mxu0
        %8285 = vmatprep.mubr.bf16.mxu0 %v7060
        %8286 = vmatmul.mubr.bf16.gmra.mrb[0].mxu0 %v6996
        %v8287 = vpop.f32.mrb[0].mxu0
        %v8288 = vadd.f32 0.0, %v8287
        %v8289 = vpop.f32.mrb[0].mxu0
        %v8290 = vpop.f32.mrb[0].mxu0
        %v8291 = vadd.f32 0.0, %v8290
        %v8292 = vpop.f32.mrb[0].mxu0
        %8293 = vdwg.mxu0
        %8294 = vmatprep.subr.bf16.mxu0 0
        %8295 = vmatpush1.bf16.msra.mxu0 %v8005
        %8296 = vmatprep.subr.bf16.mxu0 0
        %8297 = vmatpush1.bf16.msra.mxu0 %v8006
        %8298 = vmatprep.subr.bf16.mxu0 0
        %8299 = vmatpush1.bf16.msra.mxu0 %v8007
        %8300 = vmatprep.subr.bf16.mxu0 0
        %8301 = vmatpush1.bf16.msra.mxu0 %v8008
        %8302 = vmatprep.subr.bf16.mxu0 0
        %8303 = vmatpush1.bf16.msra.mxu0 %v8009
        %8304 = vmatprep.subr.bf16.mxu0 0
        %8305 = vmatpush1.bf16.msra.mxu0 %v8010
        %8306 = vmatprep.subr.bf16.mxu0 0
        %8307 = vmatpush1.bf16.msra.mxu0 %v8011
        %8308 = vmatprep.subr.bf16.mxu0 0
        %8309 = vmatpush1.bf16.msra.mxu0 %v8012
        %8310 = vmatprep.subr.bf16.mxu0 0
        %8311 = vmatpush1.bf16.msra.mxu0 %v8013
        %8312 = vmatprep.subr.bf16.mxu0 0
        %8313 = vmatpush1.bf16.msra.mxu0 %v8014
        %8314 = vmatprep.subr.bf16.mxu0 0
        %8315 = vmatpush1.bf16.msra.mxu0 %v8015
        %8316 = vmatprep.subr.bf16.mxu0 0
        %8317 = vmatpush1.bf16.msra.mxu0 %v8016
        %8318 = vmatprep.subr.bf16.mxu0 0
        %8319 = vmatpush1.bf16.msra.mxu0 %v8017
        %8320 = vmatprep.subr.bf16.mxu0 0
        %8321 = vmatpush1.bf16.msra.mxu0 %v8018
        %8322 = vmatprep.subr.bf16.mxu0 0
        %8323 = vmatpush1.bf16.msra.mxu0 %v8019
        %8324 = vmatprep.subr.bf16.mxu0 0
        %8325 = vmatpush1.bf16.msra.mxu0 %v8020
        %8326 = vmatprep.mubr.bf16.mxu0 %v7189
        %8327 = vmatmul.mubr.bf16.gmra.mrb[0].mxu0 %v7109
        %v8328 = vpop.f32.mrb[0].mxu0
        %v8329 = vadd.f32 %v8168, %v8328
        %v8330 = vpop.f32.mrb[0].mxu0
        %v8331 = vpop.f32.mrb[0].mxu0
        %v8332 = vadd.f32 %v8171, %v8331
        %v8333 = vpop.f32.mrb[0].mxu0
        %8334 = vmatprep.mubr.bf16.mxu0 %v7190
        %8335 = vmatmul.mubr.bf16.gmra.mrb[0].mxu0 %v7110
        %v8336 = vpop.f32.mrb[0].mxu0
        %v8337 = vadd.f32 %v8176, %v8336
        %v8338 = vpop.f32.mrb[0].mxu0
        %v8339 = vpop.f32.mrb[0].mxu0
        %v8340 = vadd.f32 %v8179, %v8339
        %v8341 = vpop.f32.mrb[0].mxu0
        %8342 = vmatprep.mubr.bf16.mxu0 %v7191
        %8343 = vmatmul.mubr.bf16.gmra.mrb[0].mxu0 %v7111
        %v8344 = vpop.f32.mrb[0].mxu0
        %v8345 = vadd.f32 %v8184, %v8344
        %v8346 = vpop.f32.mrb[0].mxu0
        %v8347 = vpop.f32.mrb[0].mxu0
        %v8348 = vadd.f32 %v8187, %v8347
        %v8349 = vpop.f32.mrb[0].mxu0
        %8350 = vmatprep.mubr.bf16.mxu0 %v7192
        %8351 = vmatmul.mubr.bf16.gmra.mrb[0].mxu0 %v7112
        %v8352 = vpop.f32.mrb[0].mxu0
        %v8353 = vadd.f32 %v8192, %v8352
        %v8354 = vpop.f32.mrb[0].mxu0
        %v8355 = vpop.f32.mrb[0].mxu0
        %v8356 = vadd.f32 %v8195, %v8355
        %v8357 = vpop.f32.mrb[0].mxu0
        %8358 = vmatprep.mubr.bf16.mxu0 %v7193
        %8359 = vmatmul.mubr.bf16.gmra.mrb[0].mxu0 %v7113
        %v8360 = vpop.f32.mrb[0].mxu0
        %v8361 = vadd.f32 %v8200, %v8360
        %v8362 = vpop.f32.mrb[0].mxu0
        %v8363 = vpop.f32.mrb[0].mxu0
        %v8364 = vadd.f32 %v8203, %v8363
        %v8365 = vpop.f32.mrb[0].mxu0
        %8366 = vmatprep.mubr.bf16.mxu0 %v7194
        %8367 = vmatmul.mubr.bf16.gmra.mrb[0].mxu0 %v7114
        %v8368 = vpop.f32.mrb[0].mxu0
        %v8369 = vadd.f32 %v8208, %v8368
        %v8370 = vpop.f32.mrb[0].mxu0
        %v8371 = vpop.f32.mrb[0].mxu0
        %v8372 = vadd.f32 %v8211, %v8371
        %v8373 = vpop.f32.mrb[0].mxu0
        %8374 = vmatprep.mubr.bf16.mxu0 %v7195
        %8375 = vmatmul.mubr.bf16.gmra.mrb[0].mxu0 %v7115
        %v8376 = vpop.f32.mrb[0].mxu0
        %v8377 = vadd.f32 %v8216, %v8376
        %v8378 = vpop.f32.mrb[0].mxu0
        %v8379 = vpop.f32.mrb[0].mxu0
        %v8380 = vadd.f32 %v8219, %v8379
        %v8381 = vpop.f32.mrb[0].mxu0
        %8382 = vmatprep.mubr.bf16.mxu0 %v7196
        %8383 = vmatmul.mubr.bf16.gmra.mrb[0].mxu0 %v7116
        %v8384 = vpop.f32.mrb[0].mxu0
        %v8385 = vadd.f32 %v8224, %v8384
        %v8386 = vpop.f32.mrb[0].mxu0
        %v8387 = vpop.f32.mrb[0].mxu0
        %v8388 = vadd.f32 %v8227, %v8387
        %v8389 = vpop.f32.mrb[0].mxu0
        %8390 = vmatprep.mubr.bf16.mxu0 %v7197
        %8391 = vmatmul.mubr.bf16.gmra.mrb[0].mxu0 %v7117
        %v8392 = vpop.f32.mrb[0].mxu0
        %v8393 = vadd.f32 %v8232, %v8392
        %v8394 = vpop.f32.mrb[0].mxu0
        %v8395 = vpop.f32.mrb[0].mxu0
        %v8396 = vadd.f32 %v8235, %v8395
        %v8397 = vpop.f32.mrb[0].mxu0
        %8398 = vmatprep.mubr.bf16.mxu0 %v7198
        %8399 = vmatmul.mubr.bf16.gmra.mrb[0].mxu0 %v7118
        %v8400 = vpop.f32.mrb[0].mxu0
        %v8401 = vadd.f32 %v8240, %v8400
        %v8402 = vpop.f32.mrb[0].mxu0
        %v8403 = vpop.f32.mrb[0].mxu0
        %v8404 = vadd.f32 %v8243, %v8403
        %v8405 = vpop.f32.mrb[0].mxu0
        %8406 = vmatprep.mubr.bf16.mxu0 %v7199
        %8407 = vmatmul.mubr.bf16.gmra.mrb[0].mxu0 %v7119
        %v8408 = vpop.f32.mrb[0].mxu0
        %v8409 = vadd.f32 %v8248, %v8408
        %v8410 = vpop.f32.mrb[0].mxu0
        %v8411 = vpop.f32.mrb[0].mxu0
        %v8412 = vadd.f32 %v8251, %v8411
        %v8413 = vpop.f32.mrb[0].mxu0
        %8414 = vmatprep.mubr.bf16.mxu0 %v7200
        %8415 = vmatmul.mubr.bf16.gmra.mrb[0].mxu0 %v7120
        %v8416 = vpop.f32.mrb[0].mxu0
        %v8417 = vadd.f32 %v8256, %v8416
        %v8418 = vpop.f32.mrb[0].mxu0
        %v8419 = vpop.f32.mrb[0].mxu0
        %v8420 = vadd.f32 %v8259, %v8419
        %v8421 = vpop.f32.mrb[0].mxu0
        %8422 = vmatprep.mubr.bf16.mxu0 %v7201
        %8423 = vmatmul.mubr.bf16.gmra.mrb[0].mxu0 %v7121
        %v8424 = vpop.f32.mrb[0].mxu0
        %v8425 = vadd.f32 %v8264, %v8424
        %v8426 = vpop.f32.mrb[0].mxu0
        %v8427 = vpop.f32.mrb[0].mxu0
        %v8428 = vadd.f32 %v8267, %v8427
        %v8429 = vpop.f32.mrb[0].mxu0
        %8430 = vmatprep.mubr.bf16.mxu0 %v7202
        %8431 = vmatmul.mubr.bf16.gmra.mrb[0].mxu0 %v7122
        %v8432 = vpop.f32.mrb[0].mxu0
        %v8433 = vadd.f32 %v8272, %v8432
        %v8434 = vpop.f32.mrb[0].mxu0
        %v8435 = vpop.f32.mrb[0].mxu0
        %v8436 = vadd.f32 %v8275, %v8435
        %v8437 = vpop.f32.mrb[0].mxu0
        %8438 = vmatprep.mubr.bf16.mxu0 %v7203
        %8439 = vmatmul.mubr.bf16.gmra.mrb[0].mxu0 %v7123
        %v8440 = vpop.f32.mrb[0].mxu0
        %v8441 = vadd.f32 %v8280, %v8440
        %v8442 = vpop.f32.mrb[0].mxu0
        %v8443 = vpop.f32.mrb[0].mxu0
        %v8444 = vadd.f32 %v8283, %v8443
        %v8445 = vpop.f32.mrb[0].mxu0
        %8446 = vmatprep.mubr.bf16.mxu0 %v7204
        %8447 = vmatmul.mubr.bf16.gmra.mrb[0].mxu0 %v7124
        %v8448 = vpop.f32.mrb[0].mxu0
        %v8449 = vadd.f32 %v8288, %v8448
        %v8450 = vpop.f32.mrb[0].mxu0
        %v8451 = vpop.f32.mrb[0].mxu0
        %v8452 = vadd.f32 %v8291, %v8451
        %v8453 = vpop.f32.mrb[0].mxu0
        %8454 = vdwg.mxu0
        %8455 = vmatprep.subr.bf16.mxu0 0
        %8456 = vmatpush1.bf16.msra.mxu0 %v8021
        %8457 = vmatprep.subr.bf16.mxu0 0
        %8458 = vmatpush1.bf16.msra.mxu0 %v8022
        %8459 = vmatprep.subr.bf16.mxu0 0
        %8460 = vmatpush1.bf16.msra.mxu0 %v8023
        %8461 = vmatprep.subr.bf16.mxu0 0
        %8462 = vmatpush1.bf16.msra.mxu0 %v8024
        %8463 = vmatprep.subr.bf16.mxu0 0
        %8464 = vmatpush1.bf16.msra.mxu0 %v8025
        %8465 = vmatprep.subr.bf16.mxu0 0
        %8466 = vmatpush1.bf16.msra.mxu0 %v8026
        %8467 = vmatprep.subr.bf16.mxu0 0
        %8468 = vmatpush1.bf16.msra.mxu0 %v8027
        %8469 = vmatprep.subr.bf16.mxu0 0
        %8470 = vmatpush1.bf16.msra.mxu0 %v8028
        %8471 = vmatprep.subr.bf16.mxu0 0
        %8472 = vmatpush1.bf16.msra.mxu0 %v8029
        %8473 = vmatprep.subr.bf16.mxu0 0
        %8474 = vmatpush1.bf16.msra.mxu0 %v8030
        %8475 = vmatprep.subr.bf16.mxu0 0
        %8476 = vmatpush1.bf16.msra.mxu0 %v8031
        %8477 = vmatprep.subr.bf16.mxu0 0
        %8478 = vmatpush1.bf16.msra.mxu0 %v8032
        %8479 = vmatprep.subr.bf16.mxu0 0
        %8480 = vmatpush1.bf16.msra.mxu0 %v8033
        %8481 = vmatprep.subr.bf16.mxu0 0
        %8482 = vmatpush1.bf16.msra.mxu0 %v8034
        %8483 = vmatprep.subr.bf16.mxu0 0
        %8484 = vmatpush1.bf16.msra.mxu0 %v8035
        %8485 = vmatprep.subr.bf16.mxu0 0
        %8486 = vmatpush1.bf16.msra.mxu0 %v8036
        %8487 = vmatprep.mubr.bf16.mxu0 %v7317
        %8488 = vmatmul.mubr.bf16.gmra.mrb[0].mxu0 %v7253
        %v8489 = vpop.f32.mrb[0].mxu0
        %v8490 = vadd.f32 %v8329, %v8489
        %v8491 = vpop.f32.mrb[0].mxu0
        %v8492 = vpop.f32.mrb[0].mxu0
        %v8493 = vadd.f32 %v8332, %v8492
        %v8494 = vpop.f32.mrb[0].mxu0
        %8495 = vmatprep.mubr.bf16.mxu0 %v7318
        %8496 = vmatmul.mubr.bf16.gmra.mrb[0].mxu0 %v7254
        %v8497 = vpop.f32.mrb[0].mxu0
        %v8498 = vadd.f32 %v8337, %v8497
        %v8499 = vpop.f32.mrb[0].mxu0
        %v8500 = vpop.f32.mrb[0].mxu0
        %v8501 = vadd.f32 %v8340, %v8500
        %v8502 = vpop.f32.mrb[0].mxu0
        %8503 = vmatprep.mubr.bf16.mxu0 %v7319
        %8504 = vmatmul.mubr.bf16.gmra.mrb[0].mxu0 %v7255
        %v8505 = vpop.f32.mrb[0].mxu0
        %v8506 = vadd.f32 %v8345, %v8505
        %v8507 = vpop.f32.mrb[0].mxu0
        %v8508 = vpop.f32.mrb[0].mxu0
        %v8509 = vadd.f32 %v8348, %v8508
        %v8510 = vpop.f32.mrb[0].mxu0
        %8511 = vmatprep.mubr.bf16.mxu0 %v7320
        %8512 = vmatmul.mubr.bf16.gmra.mrb[0].mxu0 %v7256
        %v8513 = vpop.f32.mrb[0].mxu0
        %v8514 = vadd.f32 %v8353, %v8513
        %v8515 = vpop.f32.mrb[0].mxu0
        %v8516 = vpop.f32.mrb[0].mxu0
        %v8517 = vadd.f32 %v8356, %v8516
        %v8518 = vpop.f32.mrb[0].mxu0
        %8519 = vmatprep.mubr.bf16.mxu0 %v7321
        %8520 = vmatmul.mubr.bf16.gmra.mrb[0].mxu0 %v7257
        %v8521 = vpop.f32.mrb[0].mxu0
        %v8522 = vadd.f32 %v8361, %v8521
        %v8523 = vpop.f32.mrb[0].mxu0
        %v8524 = vpop.f32.mrb[0].mxu0
        %v8525 = vadd.f32 %v8364, %v8524
        %v8526 = vpop.f32.mrb[0].mxu0
        %8527 = vmatprep.mubr.bf16.mxu0 %v7322
        %8528 = vmatmul.mubr.bf16.gmra.mrb[0].mxu0 %v7258
        %v8529 = vpop.f32.mrb[0].mxu0
        %v8530 = vadd.f32 %v8369, %v8529
        %v8531 = vpop.f32.mrb[0].mxu0
        %v8532 = vpop.f32.mrb[0].mxu0
        %v8533 = vadd.f32 %v8372, %v8532
        %v8534 = vpop.f32.mrb[0].mxu0
        %8535 = vmatprep.mubr.bf16.mxu0 %v7323
        %8536 = vmatmul.mubr.bf16.gmra.mrb[0].mxu0 %v7259
        %v8537 = vpop.f32.mrb[0].mxu0
        %v8538 = vadd.f32 %v8377, %v8537
        %v8539 = vpop.f32.mrb[0].mxu0
        %v8540 = vpop.f32.mrb[0].mxu0
        %v8541 = vadd.f32 %v8380, %v8540
        %v8542 = vpop.f32.mrb[0].mxu0
        %8543 = vmatprep.mubr.bf16.mxu0 %v7324
        %8544 = vmatmul.mubr.bf16.gmra.mrb[0].mxu0 %v7260
        %v8545 = vpop.f32.mrb[0].mxu0
        %v8546 = vadd.f32 %v8385, %v8545
        %v8547 = vpop.f32.mrb[0].mxu0
        %v8548 = vpop.f32.mrb[0].mxu0
        %v8549 = vadd.f32 %v8388, %v8548
        %v8550 = vpop.f32.mrb[0].mxu0
        %8551 = vmatprep.mubr.bf16.mxu0 %v7325
        %8552 = vmatmul.mubr.bf16.gmra.mrb[0].mxu0 %v7261
        %v8553 = vpop.f32.mrb[0].mxu0
        %v8554 = vadd.f32 %v8393, %v8553
        %v8555 = vpop.f32.mrb[0].mxu0
        %v8556 = vpop.f32.mrb[0].mxu0
        %v8557 = vadd.f32 %v8396, %v8556
        %v8558 = vpop.f32.mrb[0].mxu0
        %8559 = vmatprep.mubr.bf16.mxu0 %v7326
        %8560 = vmatmul.mubr.bf16.gmra.mrb[0].mxu0 %v7262
        %v8561 = vpop.f32.mrb[0].mxu0
        %v8562 = vadd.f32 %v8401, %v8561
        %v8563 = vpop.f32.mrb[0].mxu0
        %v8564 = vpop.f32.mrb[0].mxu0
        %v8565 = vadd.f32 %v8404, %v8564
        %v8566 = vpop.f32.mrb[0].mxu0
        %8567 = vmatprep.mubr.bf16.mxu0 %v7327
        %8568 = vmatmul.mubr.bf16.gmra.mrb[0].mxu0 %v7263
        %v8569 = vpop.f32.mrb[0].mxu0
        %v8570 = vadd.f32 %v8409, %v8569
        %v8571 = vpop.f32.mrb[0].mxu0
        %v8572 = vpop.f32.mrb[0].mxu0
        %v8573 = vadd.f32 %v8412, %v8572
        %v8574 = vpop.f32.mrb[0].mxu0
        %8575 = vmatprep.mubr.bf16.mxu0 %v7328
        %8576 = vmatmul.mubr.bf16.gmra.mrb[0].mxu0 %v7264
        %v8577 = vpop.f32.mrb[0].mxu0
        %v8578 = vadd.f32 %v8417, %v8577
        %v8579 = vpop.f32.mrb[0].mxu0
        %v8580 = vpop.f32.mrb[0].mxu0
        %v8581 = vadd.f32 %v8420, %v8580
        %v8582 = vpop.f32.mrb[0].mxu0
        %8583 = vmatprep.mubr.bf16.mxu0 %v7329
        %8584 = vmatmul.mubr.bf16.gmra.mrb[0].mxu0 %v7265
        %v8585 = vpop.f32.mrb[0].mxu0
        %v8586 = vadd.f32 %v8425, %v8585
        %v8587 = vpop.f32.mrb[0].mxu0
        %v8588 = vpop.f32.mrb[0].mxu0
        %v8589 = vadd.f32 %v8428, %v8588
        %v8590 = vpop.f32.mrb[0].mxu0
        %8591 = vmatprep.mubr.bf16.mxu0 %v7330
        %8592 = vmatmul.mubr.bf16.gmra.mrb[0].mxu0 %v7266
        %v8593 = vpop.f32.mrb[0].mxu0
        %v8594 = vadd.f32 %v8433, %v8593
        %v8595 = vpop.f32.mrb[0].mxu0
        %v8596 = vpop.f32.mrb[0].mxu0
        %v8597 = vadd.f32 %v8436, %v8596
        %v8598 = vpop.f32.mrb[0].mxu0
        %8599 = vmatprep.mubr.bf16.mxu0 %v7331
        %8600 = vmatmul.mubr.bf16.gmra.mrb[0].mxu0 %v7267
        %v8601 = vpop.f32.mrb[0].mxu0
        %v8602 = vadd.f32 %v8441, %v8601
        %v8603 = vpop.f32.mrb[0].mxu0
        %v8604 = vpop.f32.mrb[0].mxu0
        %v8605 = vadd.f32 %v8444, %v8604
        %v8606 = vpop.f32.mrb[0].mxu0
        %8607 = vmatprep.mubr.bf16.mxu0 %v7332
        %8608 = vmatmul.mubr.bf16.gmra.mrb[0].mxu0 %v7268
        %v8609 = vpop.f32.mrb[0].mxu0
        %v8610 = vadd.f32 %v8449, %v8609
        %v8611 = vpop.f32.mrb[0].mxu0
        %v8612 = vpop.f32.mrb[0].mxu0
        %v8613 = vadd.f32 %v8452, %v8612
        %v8614 = vpop.f32.mrb[0].mxu0
        %8615 = vdwg.mxu0
        %8616 = vmatprep.subr.bf16.mxu0 0
        %8617 = vmatpush1.bf16.msra.mxu0 %v8037
        %8618 = vmatprep.subr.bf16.mxu0 0
        %8619 = vmatpush1.bf16.msra.mxu0 %v8038
        %8620 = vmatprep.subr.bf16.mxu0 0
        %8621 = vmatpush1.bf16.msra.mxu0 %v8039
        %8622 = vmatprep.subr.bf16.mxu0 0
        %8623 = vmatpush1.bf16.msra.mxu0 %v8040
        %8624 = vmatprep.subr.bf16.mxu0 0
        %8625 = vmatpush1.bf16.msra.mxu0 %v8041
        %8626 = vmatprep.subr.bf16.mxu0 0
        %8627 = vmatpush1.bf16.msra.mxu0 %v8042
        %8628 = vmatprep.subr.bf16.mxu0 0
        %8629 = vmatpush1.bf16.msra.mxu0 %v8043
        %8630 = vmatprep.subr.bf16.mxu0 0
        %8631 = vmatpush1.bf16.msra.mxu0 %v8044
        %8632 = vmatprep.subr.bf16.mxu0 0
        %8633 = vmatpush1.bf16.msra.mxu0 %v8045
        %8634 = vmatprep.subr.bf16.mxu0 0
        %8635 = vmatpush1.bf16.msra.mxu0 %v8046
        %8636 = vmatprep.subr.bf16.mxu0 0
        %8637 = vmatpush1.bf16.msra.mxu0 %v8047
        %8638 = vmatprep.subr.bf16.mxu0 0
        %8639 = vmatpush1.bf16.msra.mxu0 %v8048
        %8640 = vmatprep.subr.bf16.mxu0 0
        %8641 = vmatpush1.bf16.msra.mxu0 %v8049
        %8642 = vmatprep.subr.bf16.mxu0 0
        %8643 = vmatpush1.bf16.msra.mxu0 %v8050
        %8644 = vmatprep.subr.bf16.mxu0 0
        %8645 = vmatpush1.bf16.msra.mxu0 %v8051
        %8646 = vmatprep.subr.bf16.mxu0 0
        %8647 = vmatpush1.bf16.msra.mxu0 %v8052
        %8648 = vmatprep.mubr.bf16.mxu0 %v7461
        %8649 = vmatmul.mubr.bf16.gmra.mrb[0].mxu0 %v7397
        %v8650 = vpop.f32.mrb[0].mxu0
        %v8651 = vadd.f32 %v8490, %v8650
        %v8652 = vpop.f32.mrb[0].mxu0
        %v8653 = vpop.f32.mrb[0].mxu0
        %v8654 = vadd.f32 %v8493, %v8653
        %v8655 = vpop.f32.mrb[0].mxu0
        %8656 = vmatprep.mubr.bf16.mxu0 %v7462
        %8657 = vmatmul.mubr.bf16.gmra.mrb[0].mxu0 %v7398
        %v8658 = vpop.f32.mrb[0].mxu0
        %v8659 = vadd.f32 %v8498, %v8658
        %v8660 = vpop.f32.mrb[0].mxu0
        %v8661 = vpop.f32.mrb[0].mxu0
        %v8662 = vadd.f32 %v8501, %v8661
        %v8663 = vpop.f32.mrb[0].mxu0
        %8664 = vmatprep.mubr.bf16.mxu0 %v7463
        %8665 = vmatmul.mubr.bf16.gmra.mrb[0].mxu0 %v7399
        %v8666 = vpop.f32.mrb[0].mxu0
        %v8667 = vadd.f32 %v8506, %v8666
        %v8668 = vpop.f32.mrb[0].mxu0
        %v8669 = vpop.f32.mrb[0].mxu0
        %v8670 = vadd.f32 %v8509, %v8669
        %v8671 = vpop.f32.mrb[0].mxu0
        %8672 = vmatprep.mubr.bf16.mxu0 %v7464
        %8673 = vmatmul.mubr.bf16.gmra.mrb[0].mxu0 %v7400
        %v8674 = vpop.f32.mrb[0].mxu0
        %v8675 = vadd.f32 %v8514, %v8674
        %v8676 = vpop.f32.mrb[0].mxu0
        %v8677 = vpop.f32.mrb[0].mxu0
        %v8678 = vadd.f32 %v8517, %v8677
        %v8679 = vpop.f32.mrb[0].mxu0
        %8680 = vmatprep.mubr.bf16.mxu0 %v7465
        %8681 = vmatmul.mubr.bf16.gmra.mrb[0].mxu0 %v7401
        %v8682 = vpop.f32.mrb[0].mxu0
        %v8683 = vadd.f32 %v8522, %v8682
        %v8684 = vpop.f32.mrb[0].mxu0
        %v8685 = vpop.f32.mrb[0].mxu0
        %v8686 = vadd.f32 %v8525, %v8685
        %v8687 = vpop.f32.mrb[0].mxu0
        %8688 = vmatprep.mubr.bf16.mxu0 %v7466
        %8689 = vmatmul.mubr.bf16.gmra.mrb[0].mxu0 %v7402
        %v8690 = vpop.f32.mrb[0].mxu0
        %v8691 = vadd.f32 %v8530, %v8690
        %v8692 = vpop.f32.mrb[0].mxu0
        %v8693 = vpop.f32.mrb[0].mxu0
        %v8694 = vadd.f32 %v8533, %v8693
        %v8695 = vpop.f32.mrb[0].mxu0
        %8696 = vmatprep.mubr.bf16.mxu0 %v7467
        %8697 = vmatmul.mubr.bf16.gmra.mrb[0].mxu0 %v7403
        %v8698 = vpop.f32.mrb[0].mxu0
        %v8699 = vadd.f32 %v8538, %v8698
        %v8700 = vpop.f32.mrb[0].mxu0
        %v8701 = vpop.f32.mrb[0].mxu0
        %v8702 = vadd.f32 %v8541, %v8701
        %v8703 = vpop.f32.mrb[0].mxu0
        %8704 = vmatprep.mubr.bf16.mxu0 %v7468
        %8705 = vmatmul.mubr.bf16.gmra.mrb[0].mxu0 %v7404
        %v8706 = vpop.f32.mrb[0].mxu0
        %v8707 = vadd.f32 %v8546, %v8706
        %v8708 = vpop.f32.mrb[0].mxu0
        %v8709 = vpop.f32.mrb[0].mxu0
        %v8710 = vadd.f32 %v8549, %v8709
        %v8711 = vpop.f32.mrb[0].mxu0
        %8712 = vmatprep.mubr.bf16.mxu0 %v7469
        %8713 = vmatmul.mubr.bf16.gmra.mrb[0].mxu0 %v7405
        %v8714 = vpop.f32.mrb[0].mxu0
        %v8715 = vadd.f32 %v8554, %v8714
        %v8716 = vpop.f32.mrb[0].mxu0
        %v8717 = vpop.f32.mrb[0].mxu0
        %v8718 = vadd.f32 %v8557, %v8717
        %v8719 = vpop.f32.mrb[0].mxu0
        %8720 = vmatprep.mubr.bf16.mxu0 %v7470
        %8721 = vmatmul.mubr.bf16.gmra.mrb[0].mxu0 %v7406
        %v8722 = vpop.f32.mrb[0].mxu0
        %v8723 = vadd.f32 %v8562, %v8722
        %v8724 = vpop.f32.mrb[0].mxu0
        %v8725 = vpop.f32.mrb[0].mxu0
        %v8726 = vadd.f32 %v8565, %v8725
        %v8727 = vpop.f32.mrb[0].mxu0
        %8728 = vmatprep.mubr.bf16.mxu0 %v7471
        %8729 = vmatmul.mubr.bf16.gmra.mrb[0].mxu0 %v7407
        %v8730 = vpop.f32.mrb[0].mxu0
        %v8731 = vadd.f32 %v8570, %v8730
        %v8732 = vpop.f32.mrb[0].mxu0
        %v8733 = vpop.f32.mrb[0].mxu0
        %v8734 = vadd.f32 %v8573, %v8733
        %v8735 = vpop.f32.mrb[0].mxu0
        %8736 = vmatprep.mubr.bf16.mxu0 %v7472
        %8737 = vmatmul.mubr.bf16.gmra.mrb[0].mxu0 %v7408
        %v8738 = vpop.f32.mrb[0].mxu0
        %v8739 = vadd.f32 %v8578, %v8738
        %v8740 = vpop.f32.mrb[0].mxu0
        %v8741 = vpop.f32.mrb[0].mxu0
        %v8742 = vadd.f32 %v8581, %v8741
        %v8743 = vpop.f32.mrb[0].mxu0
        %8744 = vmatprep.mubr.bf16.mxu0 %v7473
        %8745 = vmatmul.mubr.bf16.gmra.mrb[0].mxu0 %v7409
        %v8746 = vpop.f32.mrb[0].mxu0
        %v8747 = vadd.f32 %v8586, %v8746
        %v8748 = vpop.f32.mrb[0].mxu0
        %v8749 = vpop.f32.mrb[0].mxu0
        %v8750 = vadd.f32 %v8589, %v8749
        %v8751 = vpop.f32.mrb[0].mxu0
        %8752 = vmatprep.mubr.bf16.mxu0 %v7474
        %8753 = vmatmul.mubr.bf16.gmra.mrb[0].mxu0 %v7410
        %v8754 = vpop.f32.mrb[0].mxu0
        %v8755 = vadd.f32 %v8594, %v8754
        %v8756 = vpop.f32.mrb[0].mxu0
        %v8757 = vpop.f32.mrb[0].mxu0
        %v8758 = vadd.f32 %v8597, %v8757
        %v8759 = vpop.f32.mrb[0].mxu0
        %8760 = vmatprep.mubr.bf16.mxu0 %v7475
        %8761 = vmatmul.mubr.bf16.gmra.mrb[0].mxu0 %v7411
        %v8762 = vpop.f32.mrb[0].mxu0
        %v8763 = vadd.f32 %v8602, %v8762
        %v8764 = vpop.f32.mrb[0].mxu0
        %v8765 = vpop.f32.mrb[0].mxu0
        %v8766 = vadd.f32 %v8605, %v8765
        %v8767 = vpop.f32.mrb[0].mxu0
        %8768 = vmatprep.mubr.bf16.mxu0 %v7476
        %8769 = vmatmul.mubr.bf16.gmra.mrb[0].mxu0 %v7412
        %v8770 = vpop.f32.mrb[0].mxu0
        %v8771 = vadd.f32 %v8610, %v8770
        %v8772 = vpop.f32.mrb[0].mxu0
        %v8773 = vpop.f32.mrb[0].mxu0
        %v8774 = vadd.f32 %v8613, %v8773
        %v8775 = vpop.f32.mrb[0].mxu0
        %8776 = vdwg.mxu0
        %8777 = vmatprep.subr.bf16.mxu0 0
        %8778 = vmatpush1.bf16.msra.mxu0 %v8053
        %8779 = vmatprep.subr.bf16.mxu0 0
        %8780 = vmatpush1.bf16.msra.mxu0 %v8054
        %8781 = vmatprep.subr.bf16.mxu0 0
        %8782 = vmatpush1.bf16.msra.mxu0 %v8055
        %8783 = vmatprep.subr.bf16.mxu0 0
        %8784 = vmatpush1.bf16.msra.mxu0 %v8056
        %8785 = vmatprep.subr.bf16.mxu0 0
        %8786 = vmatpush1.bf16.msra.mxu0 %v8057
        %8787 = vmatprep.subr.bf16.mxu0 0
        %8788 = vmatpush1.bf16.msra.mxu0 %v8058
        %8789 = vmatprep.subr.bf16.mxu0 0
        %8790 = vmatpush1.bf16.msra.mxu0 %v8059
        %8791 = vmatprep.subr.bf16.mxu0 0
        %8792 = vmatpush1.bf16.msra.mxu0 %v8060
        %8793 = vmatprep.subr.bf16.mxu0 0
        %8794 = vmatpush1.bf16.msra.mxu0 0
        %8795 = vmatprep.subr.bf16.mxu0 0
        %8796 = vmatpush1.bf16.msra.mxu0 0
        %8797 = vmatprep.subr.bf16.mxu0 0
        %8798 = vmatpush1.bf16.msra.mxu0 0
        %8799 = vmatprep.subr.bf16.mxu0 0
        %8800 = vmatpush1.bf16.msra.mxu0 0
        %8801 = vmatprep.subr.bf16.mxu0 0
        %8802 = vmatpush1.bf16.msra.mxu0 0
        %8803 = vmatprep.subr.bf16.mxu0 0
        %8804 = vmatpush1.bf16.msra.mxu0 0
        %8805 = vmatprep.subr.bf16.mxu0 0
        %8806 = vmatpush1.bf16.msra.mxu0 0
        %8807 = vmatprep.subr.bf16.mxu0 0
        %8808 = vmatpush1.bf16.msra.mxu0 0
        %8809 = vmatprep.mubr.bf16.mxu0 0
        %8810 = vmatmul.mubr.bf16.gmra.mrb[0].mxu0 %v7525
        %v8811 = vpop.f32.mrb[0].mxu0
        %v8812 = vadd.f32 %v8651, %v8811
        %v8813 = vpop.f32.mrb[0].mxu0
        %v8814 = vpop.f32.mrb[0].mxu0
        %v8815 = vadd.f32 %v8654, %v8814
        %v8816 = vpop.f32.mrb[0].mxu0
        %8817 = vmatprep.mubr.bf16.mxu0 0
        %8818 = vmatmul.mubr.bf16.gmra.mrb[0].mxu0 %v7526
        %v8819 = vpop.f32.mrb[0].mxu0
        %v8820 = vadd.f32 %v8659, %v8819
        %v8821 = vpop.f32.mrb[0].mxu0
        %v8822 = vpop.f32.mrb[0].mxu0
        %v8823 = vadd.f32 %v8662, %v8822
        %v8824 = vpop.f32.mrb[0].mxu0
        %8825 = vmatprep.mubr.bf16.mxu0 0
        %8826 = vmatmul.mubr.bf16.gmra.mrb[0].mxu0 %v7527
        %v8827 = vpop.f32.mrb[0].mxu0
        %v8828 = vadd.f32 %v8667, %v8827
        %v8829 = vpop.f32.mrb[0].mxu0
        %v8830 = vpop.f32.mrb[0].mxu0
        %v8831 = vadd.f32 %v8670, %v8830
        %v8832 = vpop.f32.mrb[0].mxu0
        %8833 = vmatprep.mubr.bf16.mxu0 0
        %8834 = vmatmul.mubr.bf16.gmra.mrb[0].mxu0 %v7528
        %v8835 = vpop.f32.mrb[0].mxu0
        %v8836 = vadd.f32 %v8675, %v8835
        %v8837 = vpop.f32.mrb[0].mxu0
        %v8838 = vpop.f32.mrb[0].mxu0
        %v8839 = vadd.f32 %v8678, %v8838
        %v8840 = vpop.f32.mrb[0].mxu0
        %8841 = vmatprep.mubr.bf16.mxu0 0
        %8842 = vmatmul.mubr.bf16.gmra.mrb[0].mxu0 %v7529
        %v8843 = vpop.f32.mrb[0].mxu0
        %v8844 = vadd.f32 %v8683, %v8843
        %v8845 = vpop.f32.mrb[0].mxu0
        %v8846 = vpop.f32.mrb[0].mxu0
        %v8847 = vadd.f32 %v8686, %v8846
        %v8848 = vpop.f32.mrb[0].mxu0
        %8849 = vmatprep.mubr.bf16.mxu0 0
        %8850 = vmatmul.mubr.bf16.gmra.mrb[0].mxu0 %v7530
        %v8851 = vpop.f32.mrb[0].mxu0
        %v8852 = vadd.f32 %v8691, %v8851
        %v8853 = vpop.f32.mrb[0].mxu0
        %v8854 = vpop.f32.mrb[0].mxu0
        %v8855 = vadd.f32 %v8694, %v8854
        %v8856 = vpop.f32.mrb[0].mxu0
        %8857 = vmatprep.mubr.bf16.mxu0 0
        %8858 = vmatmul.mubr.bf16.gmra.mrb[0].mxu0 %v7531
        %v8859 = vpop.f32.mrb[0].mxu0
        %v8860 = vadd.f32 %v8699, %v8859
        %v8861 = vpop.f32.mrb[0].mxu0
        %v8862 = vpop.f32.mrb[0].mxu0
        %v8863 = vadd.f32 %v8702, %v8862
        %v8864 = vpop.f32.mrb[0].mxu0
        %8865 = vmatprep.mubr.bf16.mxu0 0
        %8866 = vmatmul.mubr.bf16.gmra.mrb[0].mxu0 %v7532
        %v8867 = vpop.f32.mrb[0].mxu0
        %v8868 = vadd.f32 %v8707, %v8867
        %v8869 = vpop.f32.mrb[0].mxu0
        %v8870 = vpop.f32.mrb[0].mxu0
        %v8871 = vadd.f32 %v8710, %v8870
        %v8872 = vpop.f32.mrb[0].mxu0
        %8873 = vmatprep.mubr.bf16.mxu0 0
        %8874 = vmatmul.mubr.bf16.gmra.mrb[0].mxu0 %v7533
        %v8875 = vpop.f32.mrb[0].mxu0
        %v8876 = vadd.f32 %v8715, %v8875
        %v8877 = vpop.f32.mrb[0].mxu0
        %v8878 = vpop.f32.mrb[0].mxu0
        %v8879 = vadd.f32 %v8718, %v8878
        %v8880 = vpop.f32.mrb[0].mxu0
        %8881 = vmatprep.mubr.bf16.mxu0 0
        %8882 = vmatmul.mubr.bf16.gmra.mrb[0].mxu0 %v7534
        %v8883 = vpop.f32.mrb[0].mxu0
        %v8884 = vadd.f32 %v8723, %v8883
        %v8885 = vpop.f32.mrb[0].mxu0
        %v8886 = vpop.f32.mrb[0].mxu0
        %v8887 = vadd.f32 %v8726, %v8886
        %v8888 = vpop.f32.mrb[0].mxu0
        %8889 = vmatprep.mubr.bf16.mxu0 0
        %8890 = vmatmul.mubr.bf16.gmra.mrb[0].mxu0 %v7535
        %v8891 = vpop.f32.mrb[0].mxu0
        %v8892 = vadd.f32 %v8731, %v8891
        %v8893 = vpop.f32.mrb[0].mxu0
        %v8894 = vpop.f32.mrb[0].mxu0
        %v8895 = vadd.f32 %v8734, %v8894
        %v8896 = vpop.f32.mrb[0].mxu0
        %8897 = vmatprep.mubr.bf16.mxu0 0
        %8898 = vmatmul.mubr.bf16.gmra.mrb[0].mxu0 %v7536
        %v8899 = vpop.f32.mrb[0].mxu0
        %v8900 = vadd.f32 %v8739, %v8899
        %v8901 = vpop.f32.mrb[0].mxu0
        %v8902 = vpop.f32.mrb[0].mxu0
        %v8903 = vadd.f32 %v8742, %v8902
        %v8904 = vpop.f32.mrb[0].mxu0
        %8905 = vmatprep.mubr.bf16.mxu0 0
        %8906 = vmatmul.mubr.bf16.gmra.mrb[0].mxu0 %v7537
        %v8907 = vpop.f32.mrb[0].mxu0
        %v8908 = vadd.f32 %v8747, %v8907
        %v8909 = vpop.f32.mrb[0].mxu0
        %v8910 = vpop.f32.mrb[0].mxu0
        %v8911 = vadd.f32 %v8750, %v8910
        %v8912 = vpop.f32.mrb[0].mxu0
        %8913 = vmatprep.mubr.bf16.mxu0 0
        %8914 = vmatmul.mubr.bf16.gmra.mrb[0].mxu0 %v7538
        %v8915 = vpop.f32.mrb[0].mxu0
        %v8916 = vadd.f32 %v8755, %v8915
        %v8917 = vpop.f32.mrb[0].mxu0
        %v8918 = vpop.f32.mrb[0].mxu0
        %v8919 = vadd.f32 %v8758, %v8918
        %v8920 = vpop.f32.mrb[0].mxu0
        %8921 = vmatprep.mubr.bf16.mxu0 0
        %8922 = vmatmul.mubr.bf16.gmra.mrb[0].mxu0 %v7539
        %v8923 = vpop.f32.mrb[0].mxu0
        %v8924 = vadd.f32 %v8763, %v8923
        %v8925 = vpop.f32.mrb[0].mxu0
        %v8926 = vpop.f32.mrb[0].mxu0
        %v8927 = vadd.f32 %v8766, %v8926
        %v8928 = vpop.f32.mrb[0].mxu0
        %8929 = vmatprep.mubr.bf16.mxu0 0
        %8930 = vmatmul.mubr.bf16.gmra.mrb[0].mxu0 %v7540
        %v8931 = vpop.f32.mrb[0].mxu0
        %v8932 = vadd.f32 %v8771, %v8931
        %v8933 = vpop.f32.mrb[0].mxu0
        %v8934 = vpop.f32.mrb[0].mxu0
        %v8935 = vadd.f32 %v8774, %v8934
        %v8936 = vpop.f32.mrb[0].mxu0
        %8937 = vdwg.mxu0
        %v8938 = vld [vmem:[%s6] sm:$0x1]
        %v8940 = vlaneseq
        %v8941 = vshrl.u32 %v8940, 7
        %v8942 = vsub.s32 0, %v8941
        %v8943 = vrot.slane %v8938, %v8942
        %v8945 = vmul.f32 %v8812, %v8943
        %v8946 = vmul.f32 %v8815, %v8943
        %v8947 = vmul.f32 %v8820, %v8943
        %v8948 = vmul.f32 %v8823, %v8943
        %v8949 = vmul.f32 %v8828, %v8943
        %v8950 = vmul.f32 %v8831, %v8943
        %v8951 = vmul.f32 %v8836, %v8943
        %v8952 = vmul.f32 %v8839, %v8943
        %v8953 = vmul.f32 %v8844, %v8943
        %v8954 = vmul.f32 %v8847, %v8943
        %v8955 = vmul.f32 %v8852, %v8943
        %v8956 = vmul.f32 %v8855, %v8943
        %v8957 = vmul.f32 %v8860, %v8943
        %v8958 = vmul.f32 %v8863, %v8943
        %v8959 = vmul.f32 %v8868, %v8943
        %v8960 = vmul.f32 %v8871, %v8943
        %v8961 = vmul.f32 %v8876, %v8943
        %v8962 = vmul.f32 %v8879, %v8943
        %v8963 = vmul.f32 %v8884, %v8943
        %v8964 = vmul.f32 %v8887, %v8943
        %v8965 = vmul.f32 %v8892, %v8943
        %v8966 = vmul.f32 %v8895, %v8943
        %v8967 = vmul.f32 %v8900, %v8943
        %v8968 = vmul.f32 %v8903, %v8943
        %v8969 = vmul.f32 %v8908, %v8943
        %v8970 = vmul.f32 %v8911, %v8943
        %v8971 = vmul.f32 %v8916, %v8943
        %v8972 = vmul.f32 %v8919, %v8943
        %v8973 = vmul.f32 %v8924, %v8943
        %v8974 = vmul.f32 %v8927, %v8943
        %v8975 = vmul.f32 %v8932, %v8943
        %v8976 = vmul.f32 %v8935, %v8943
        %v8977 = vld [vmem:[%s7] sm:$0x1]
        %v8979 = vlaneseq
        %v8980 = vshrl.u32 %v8979, 7
        %v8981 = vsub.s32 0, %v8980
        %v8982 = vrot.slane %v8977, %v8981
        %v8984 = vadd.f32 %v8945, %v8982
        %v8985 = vadd.f32 %v8946, %v8982
        %v8986 = vadd.f32 %v8947, %v8982
        %v8987 = vadd.f32 %v8948, %v8982
        %v8988 = vadd.f32 %v8949, %v8982
        %v8989 = vadd.f32 %v8950, %v8982
        %v8990 = vadd.f32 %v8951, %v8982
        %v8991 = vadd.f32 %v8952, %v8982
        %v8992 = vadd.f32 %v8953, %v8982
        %v8993 = vadd.f32 %v8954, %v8982
        %v8994 = vadd.f32 %v8955, %v8982
        %v8995 = vadd.f32 %v8956, %v8982
        %v8996 = vadd.f32 %v8957, %v8982
        %v8997 = vadd.f32 %v8958, %v8982
        %v8998 = vadd.f32 %v8959, %v8982
        %v8999 = vadd.f32 %v8960, %v8982
        %v9000 = vadd.f32 %v8961, %v8982
        %v9001 = vadd.f32 %v8962, %v8982
        %v9002 = vadd.f32 %v8963, %v8982
        %v9003 = vadd.f32 %v8964, %v8982
        %v9004 = vadd.f32 %v8965, %v8982
        %v9005 = vadd.f32 %v8966, %v8982
        %v9006 = vadd.f32 %v8967, %v8982
        %v9007 = vadd.f32 %v8968, %v8982
        %v9008 = vadd.f32 %v8969, %v8982
        %v9009 = vadd.f32 %v8970, %v8982
        %v9010 = vadd.f32 %v8971, %v8982
        %v9011 = vadd.f32 %v8972, %v8982
        %v9012 = vadd.f32 %v8973, %v8982
        %v9013 = vadd.f32 %v8974, %v8982
        %v9014 = vadd.f32 %v8975, %v8982
        %v9015 = vadd.f32 %v8976, %v8982
        %v9016 = vld [vmem:[%s312] sm:$0xf]
        %v9017 = vld [vmem:[%s312 + $0x4] sm:$0xf]
        %v9018 = vld [vmem:[%s312 + $0x8] sm:$0xf]
        %v9019 = vld [vmem:[%s312 + $0xc] sm:$0xf]
        %v9020 = vld [vmem:[%s312 + $0x10] sm:$0xf]
        %v9021 = vld [vmem:[%s312 + $0x14] sm:$0xf]
        %v9022 = vld [vmem:[%s312 + $0x18] sm:$0xf]
        %v9023 = vld [vmem:[%s312 + $0x1c] sm:$0xf]
        %v9024 = vld [vmem:[%s312 + $0x20] sm:$0xf]
        %v9025 = vld [vmem:[%s312 + $0x24] sm:$0xf]
        %v9026 = vld [vmem:[%s312 + $0x28] sm:$0xf]
        %v9027 = vld [vmem:[%s312 + $0x2c] sm:$0xf]
        %v9028 = vld [vmem:[%s312 + $0x30] sm:$0xf]
        %v9029 = vld [vmem:[%s312 + $0x34] sm:$0xf]
        %v9030 = vld [vmem:[%s312 + $0x38] sm:$0xf]
        %v9031 = vld [vmem:[%s312 + $0x3c] sm:$0xf]
        %v9032 = vld [vmem:[%s312 + $0x40] sm:$0xf]
        %v9033 = vld [vmem:[%s312 + $0x44] sm:$0xf]
        %v9034 = vld [vmem:[%s312 + $0x48] sm:$0xf]
        %v9035 = vld [vmem:[%s312 + $0x4c] sm:$0xf]
        %v9036 = vld [vmem:[%s312 + $0x50] sm:$0xf]
        %v9037 = vld [vmem:[%s312 + $0x54] sm:$0xf]
        %v9038 = vld [vmem:[%s312 + $0x58] sm:$0xf]
        %v9039 = vld [vmem:[%s312 + $0x5c] sm:$0xf]
        %v9040 = vld [vmem:[%s312 + $0x60] sm:$0xf]
        %v9041 = vld [vmem:[%s312 + $0x64] sm:$0xf]
        %v9042 = vld [vmem:[%s312 + $0x68] sm:$0xf]
        %v9043 = vld [vmem:[%s312 + $0x6c] sm:$0xf]
        %v9044 = vld [vmem:[%s312 + $0x70] sm:$0xf]
        %v9045 = vld [vmem:[%s312 + $0x74] sm:$0xf]
        %v9046 = vld [vmem:[%s312 + $0x78] sm:$0xf]
        %v9047 = vld [vmem:[%s312 + $0x7c] sm:$0xf]
        %v9048 = vunpack.c.l.bf16 %v9016
        %v9049 = vunpack.c.l.bf16 %v9017
        %v9050 = vunpack.c.l.bf16 %v9018
        %v9051 = vunpack.c.l.bf16 %v9019
        %v9052 = vunpack.c.l.bf16 %v9020
        %v9053 = vunpack.c.l.bf16 %v9021
        %v9054 = vunpack.c.l.bf16 %v9022
        %v9055 = vunpack.c.l.bf16 %v9023
        %v9056 = vunpack.c.l.bf16 %v9024
        %v9057 = vunpack.c.l.bf16 %v9025
        %v9058 = vunpack.c.l.bf16 %v9026
        %v9059 = vunpack.c.l.bf16 %v9027
        %v9060 = vunpack.c.l.bf16 %v9028
        %v9061 = vunpack.c.l.bf16 %v9029
        %v9062 = vunpack.c.l.bf16 %v9030
        %v9063 = vunpack.c.l.bf16 %v9031
        %v9064 = vunpack.c.l.bf16 %v9032
        %v9065 = vunpack.c.l.bf16 %v9033
        %v9066 = vunpack.c.l.bf16 %v9034
        %v9067 = vunpack.c.l.bf16 %v9035
        %v9068 = vunpack.c.l.bf16 %v9036
        %v9069 = vunpack.c.l.bf16 %v9037
        %v9070 = vunpack.c.l.bf16 %v9038
        %v9071 = vunpack.c.l.bf16 %v9039
        %v9072 = vunpack.c.l.bf16 %v9040
        %v9073 = vunpack.c.l.bf16 %v9041
        %v9074 = vunpack.c.l.bf16 %v9042
        %v9075 = vunpack.c.l.bf16 %v9043
        %v9076 = vunpack.c.l.bf16 %v9044
        %v9077 = vunpack.c.l.bf16 %v9045
        %v9078 = vunpack.c.l.bf16 %v9046
        %v9079 = vunpack.c.l.bf16 %v9047
        %v9080 = vadd.f32 %v8984, %v9048
        %v9081 = vadd.f32 %v8985, %v9049
        %v9082 = vadd.f32 %v8986, %v9050
        %v9083 = vadd.f32 %v8987, %v9051
        %v9084 = vadd.f32 %v8988, %v9052
        %v9085 = vadd.f32 %v8989, %v9053
        %v9086 = vadd.f32 %v8990, %v9054
        %v9087 = vadd.f32 %v8991, %v9055
        %v9088 = vadd.f32 %v8992, %v9056
        %v9089 = vadd.f32 %v8993, %v9057
        %v9090 = vadd.f32 %v8994, %v9058
        %v9091 = vadd.f32 %v8995, %v9059
        %v9092 = vadd.f32 %v8996, %v9060
        %v9093 = vadd.f32 %v8997, %v9061
        %v9094 = vadd.f32 %v8998, %v9062
        %v9095 = vadd.f32 %v8999, %v9063
        %v9096 = vadd.f32 %v9000, %v9064
        %v9097 = vadd.f32 %v9001, %v9065
        %v9098 = vadd.f32 %v9002, %v9066
        %v9099 = vadd.f32 %v9003, %v9067
        %v9100 = vadd.f32 %v9004, %v9068
        %v9101 = vadd.f32 %v9005, %v9069
        %v9102 = vadd.f32 %v9006, %v9070
        %v9103 = vadd.f32 %v9007, %v9071
        %v9104 = vadd.f32 %v9008, %v9072
        %v9105 = vadd.f32 %v9009, %v9073
        %v9106 = vadd.f32 %v9010, %v9074
        %v9107 = vadd.f32 %v9011, %v9075
        %v9108 = vadd.f32 %v9012, %v9076
        %v9109 = vadd.f32 %v9013, %v9077
        %v9110 = vadd.f32 %v9014, %v9078
        %v9111 = vadd.f32 %v9015, %v9079
        %vm9112 = vcmp.gt.f32.partialorder %v9080, 0.0
        %vm9113 = vcmp.gt.f32.partialorder %v9081, 0.0
        %vm9114 = vcmp.gt.f32.partialorder %v9082, 0.0
        %vm9115 = vcmp.gt.f32.partialorder %v9083, 0.0
        %vm9116 = vcmp.gt.f32.partialorder %v9084, 0.0
        %vm9117 = vcmp.gt.f32.partialorder %v9085, 0.0
        %vm9118 = vcmp.gt.f32.partialorder %v9086, 0.0
        %vm9119 = vcmp.gt.f32.partialorder %v9087, 0.0
        %vm9120 = vcmp.gt.f32.partialorder %v9088, 0.0
        %vm9121 = vcmp.gt.f32.partialorder %v9089, 0.0
        %vm9122 = vcmp.gt.f32.partialorder %v9090, 0.0
        %vm9123 = vcmp.gt.f32.partialorder %v9091, 0.0
        %vm9124 = vcmp.gt.f32.partialorder %v9092, 0.0
        %vm9125 = vcmp.gt.f32.partialorder %v9093, 0.0
        %vm9126 = vcmp.gt.f32.partialorder %v9094, 0.0
        %vm9127 = vcmp.gt.f32.partialorder %v9095, 0.0
        %vm9128 = vcmp.gt.f32.partialorder %v9096, 0.0
        %vm9129 = vcmp.gt.f32.partialorder %v9097, 0.0
        %vm9130 = vcmp.gt.f32.partialorder %v9098, 0.0
        %vm9131 = vcmp.gt.f32.partialorder %v9099, 0.0
        %vm9132 = vcmp.gt.f32.partialorder %v9100, 0.0
        %vm9133 = vcmp.gt.f32.partialorder %v9101, 0.0
        %vm9134 = vcmp.gt.f32.partialorder %v9102, 0.0
        %vm9135 = vcmp.gt.f32.partialorder %v9103, 0.0
        %vm9136 = vcmp.gt.f32.partialorder %v9104, 0.0
        %vm9137 = vcmp.gt.f32.partialorder %v9105, 0.0
        %vm9138 = vcmp.gt.f32.partialorder %v9106, 0.0
        %vm9139 = vcmp.gt.f32.partialorder %v9107, 0.0
        %vm9140 = vcmp.gt.f32.partialorder %v9108, 0.0
        %vm9141 = vcmp.gt.f32.partialorder %v9109, 0.0
        %vm9142 = vcmp.gt.f32.partialorder %v9110, 0.0
        %vm9143 = vcmp.gt.f32.partialorder %v9111, 0.0
        %v9144 = vmin.f32 %v9080, 0.0
        %v9145 = vmin.f32 %v9081, 0.0
        %v9146 = vmin.f32 %v9082, 0.0
        %v9147 = vmin.f32 %v9083, 0.0
        %v9148 = vmin.f32 %v9084, 0.0
        %v9149 = vmin.f32 %v9085, 0.0
        %v9150 = vmin.f32 %v9086, 0.0
        %v9151 = vmin.f32 %v9087, 0.0
        %v9152 = vmin.f32 %v9088, 0.0
        %v9153 = vmin.f32 %v9089, 0.0
        %v9154 = vmin.f32 %v9090, 0.0
        %v9155 = vmin.f32 %v9091, 0.0
        %v9156 = vmin.f32 %v9092, 0.0
        %v9157 = vmin.f32 %v9093, 0.0
        %v9158 = vmin.f32 %v9094, 0.0
        %v9159 = vmin.f32 %v9095, 0.0
        %v9160 = vmin.f32 %v9096, 0.0
        %v9161 = vmin.f32 %v9097, 0.0
        %v9162 = vmin.f32 %v9098, 0.0
        %v9163 = vmin.f32 %v9099, 0.0
        %v9164 = vmin.f32 %v9100, 0.0
        %v9165 = vmin.f32 %v9101, 0.0
        %v9166 = vmin.f32 %v9102, 0.0
        %v9167 = vmin.f32 %v9103, 0.0
        %v9168 = vmin.f32 %v9104, 0.0
        %v9169 = vmin.f32 %v9105, 0.0
        %v9170 = vmin.f32 %v9106, 0.0
        %v9171 = vmin.f32 %v9107, 0.0
        %v9172 = vmin.f32 %v9108, 0.0
        %v9173 = vmin.f32 %v9109, 0.0
        %v9174 = vmin.f32 %v9110, 0.0
        %v9175 = vmin.f32 %v9111, 0.0
        %v9176 = vmul.f32 %v9144, 1.442695
        %v9177 = vpow.pop %v9176
        %v9178 = vmul.f32 %v9145, 1.442695
        %v9179 = vpow.pop %v9178
        %v9180 = vmul.f32 %v9146, 1.442695
        %v9181 = vpow.pop %v9180
        %v9182 = vmul.f32 %v9147, 1.442695
        %v9183 = vpow.pop %v9182
        %v9184 = vmul.f32 %v9148, 1.442695
        %v9185 = vpow.pop %v9184
        %v9186 = vmul.f32 %v9149, 1.442695
        %v9187 = vpow.pop %v9186
        %v9188 = vmul.f32 %v9150, 1.442695
        %v9189 = vpow.pop %v9188
        %v9190 = vmul.f32 %v9151, 1.442695
        %v9191 = vpow.pop %v9190
        %v9192 = vmul.f32 %v9152, 1.442695
        %v9193 = vpow.pop %v9192
        %v9194 = vmul.f32 %v9153, 1.442695
        %v9195 = vpow.pop %v9194
        %v9196 = vmul.f32 %v9154, 1.442695
        %v9197 = vpow.pop %v9196
        %v9198 = vmul.f32 %v9155, 1.442695
        %v9199 = vpow.pop %v9198
        %v9200 = vmul.f32 %v9156, 1.442695
        %v9201 = vpow.pop %v9200
        %v9202 = vmul.f32 %v9157, 1.442695
        %v9203 = vpow.pop %v9202
        %v9204 = vmul.f32 %v9158, 1.442695
        %v9205 = vpow.pop %v9204
        %v9206 = vmul.f32 %v9159, 1.442695
        %v9207 = vpow.pop %v9206
        %v9208 = vmul.f32 %v9160, 1.442695
        %v9209 = vpow.pop %v9208
        %v9210 = vmul.f32 %v9161, 1.442695
        %v9211 = vpow.pop %v9210
        %v9212 = vmul.f32 %v9162, 1.442695
        %v9213 = vpow.pop %v9212
        %v9214 = vmul.f32 %v9163, 1.442695
        %v9215 = vpow.pop %v9214
        %v9216 = vmul.f32 %v9164, 1.442695
        %v9217 = vpow.pop %v9216
        %v9218 = vmul.f32 %v9165, 1.442695
        %v9219 = vpow.pop %v9218
        %v9220 = vmul.f32 %v9166, 1.442695
        %v9221 = vpow.pop %v9220
        %v9222 = vmul.f32 %v9167, 1.442695
        %v9223 = vpow.pop %v9222
        %v9224 = vmul.f32 %v9168, 1.442695
        %v9225 = vpow.pop %v9224
        %v9226 = vmul.f32 %v9169, 1.442695
        %v9227 = vpow.pop %v9226
        %v9228 = vmul.f32 %v9170, 1.442695
        %v9229 = vpow.pop %v9228
        %v9230 = vmul.f32 %v9171, 1.442695
        %v9231 = vpow.pop %v9230
        %v9232 = vmul.f32 %v9172, 1.442695
        %v9233 = vpow.pop %v9232
        %v9234 = vmul.f32 %v9173, 1.442695
        %v9235 = vpow.pop %v9234
        %v9236 = vmul.f32 %v9174, 1.442695
        %v9237 = vpow.pop %v9236
        %v9238 = vmul.f32 %v9175, 1.442695
        %v9239 = vpow.pop %v9238
        %v9240 = vsub.f32 %v9177, 1.0
        %v9241 = vsub.f32 %v9179, 1.0
        %v9242 = vsub.f32 %v9181, 1.0
        %v9243 = vsub.f32 %v9183, 1.0
        %v9244 = vsub.f32 %v9185, 1.0
        %v9245 = vsub.f32 %v9187, 1.0
        %v9246 = vsub.f32 %v9189, 1.0
        %v9247 = vsub.f32 %v9191, 1.0
        %v9248 = vsub.f32 %v9193, 1.0
        %v9249 = vsub.f32 %v9195, 1.0
        %v9250 = vsub.f32 %v9197, 1.0
        %v9251 = vsub.f32 %v9199, 1.0
        %v9252 = vsub.f32 %v9201, 1.0
        %v9253 = vsub.f32 %v9203, 1.0
        %v9254 = vsub.f32 %v9205, 1.0
        %v9255 = vsub.f32 %v9207, 1.0
        %v9256 = vsub.f32 %v9209, 1.0
        %v9257 = vsub.f32 %v9211, 1.0
        %v9258 = vsub.f32 %v9213, 1.0
        %v9259 = vsub.f32 %v9215, 1.0
        %v9260 = vsub.f32 %v9217, 1.0
        %v9261 = vsub.f32 %v9219, 1.0
        %v9262 = vsub.f32 %v9221, 1.0
        %v9263 = vsub.f32 %v9223, 1.0
        %v9264 = vsub.f32 %v9225, 1.0
        %v9265 = vsub.f32 %v9227, 1.0
        %v9266 = vsub.f32 %v9229, 1.0
        %v9267 = vsub.f32 %v9231, 1.0
        %v9268 = vsub.f32 %v9233, 1.0
        %v9269 = vsub.f32 %v9235, 1.0
        %v9270 = vsub.f32 %v9237, 1.0
        %v9271 = vsub.f32 %v9239, 1.0
        %v9272 = vsel %vm9112, %v9080, %v9240
        %v9273 = vsel %vm9113, %v9081, %v9241
        %v9274 = vsel %vm9114, %v9082, %v9242
        %v9275 = vsel %vm9115, %v9083, %v9243
        %v9276 = vsel %vm9116, %v9084, %v9244
        %v9277 = vsel %vm9117, %v9085, %v9245
        %v9278 = vsel %vm9118, %v9086, %v9246
        %v9279 = vsel %vm9119, %v9087, %v9247
        %v9280 = vsel %vm9120, %v9088, %v9248
        %v9281 = vsel %vm9121, %v9089, %v9249
        %v9282 = vsel %vm9122, %v9090, %v9250
        %v9283 = vsel %vm9123, %v9091, %v9251
        %v9284 = vsel %vm9124, %v9092, %v9252
        %v9285 = vsel %vm9125, %v9093, %v9253
        %v9286 = vsel %vm9126, %v9094, %v9254
        %v9287 = vsel %vm9127, %v9095, %v9255
        %v9288 = vsel %vm9128, %v9096, %v9256
        %v9289 = vsel %vm9129, %v9097, %v9257
        %v9290 = vsel %vm9130, %v9098, %v9258
        %v9291 = vsel %vm9131, %v9099, %v9259
        %v9292 = vsel %vm9132, %v9100, %v9260
        %v9293 = vsel %vm9133, %v9101, %v9261
        %v9294 = vsel %vm9134, %v9102, %v9262
        %v9295 = vsel %vm9135, %v9103, %v9263
        %v9296 = vsel %vm9136, %v9104, %v9264
        %v9297 = vsel %vm9137, %v9105, %v9265
        %v9298 = vsel %vm9138, %v9106, %v9266
        %v9299 = vsel %vm9139, %v9107, %v9267
        %v9300 = vsel %vm9140, %v9108, %v9268
        %v9301 = vsel %vm9141, %v9109, %v9269
        %v9302 = vsel %vm9142, %v9110, %v9270
        %v9303 = vsel %vm9143, %v9111, %v9271
        %9304 = vst [vmem:[%s353] sm:$0xff] %v9272
        %9305 = vst [vmem:[%s353 + $0x8] sm:$0xff] %v9273
        %9306 = vst [vmem:[%s353 + $0x10] sm:$0xff] %v9274
        %9307 = vst [vmem:[%s353 + $0x18] sm:$0xff] %v9275
        %9308 = vst [vmem:[%s353 + $0x20] sm:$0xff] %v9276
        %9309 = vst [vmem:[%s353 + $0x28] sm:$0xff] %v9277
        %9310 = vst [vmem:[%s353 + $0x30] sm:$0xff] %v9278
        %9311 = vst [vmem:[%s353 + $0x38] sm:$0xff] %v9279
        %9312 = vst [vmem:[%s353 + $0x40] sm:$0xff] %v9280
        %9313 = vst [vmem:[%s353 + $0x48] sm:$0xff] %v9281
        %9314 = vst [vmem:[%s353 + $0x50] sm:$0xff] %v9282
        %9315 = vst [vmem:[%s353 + $0x58] sm:$0xff] %v9283
        %9316 = vst [vmem:[%s353 + $0x60] sm:$0xff] %v9284
        %9317 = vst [vmem:[%s353 + $0x68] sm:$0xff] %v9285
        %9318 = vst [vmem:[%s353 + $0x70] sm:$0xff] %v9286
        %9319 = vst [vmem:[%s353 + $0x78] sm:$0xff] %v9287
        %9320 = vst [vmem:[%s353 + $0x80] sm:$0xff] %v9288
        %9321 = vst [vmem:[%s353 + $0x88] sm:$0xff] %v9289
        %9322 = vst [vmem:[%s353 + $0x90] sm:$0xff] %v9290
        %9323 = vst [vmem:[%s353 + $0x98] sm:$0xff] %v9291
        %9324 = vst [vmem:[%s353 + $0xa0] sm:$0xff] %v9292
        %9325 = vst [vmem:[%s353 + $0xa8] sm:$0xff] %v9293
        %9326 = vst [vmem:[%s353 + $0xb0] sm:$0xff] %v9294
        %9327 = vst [vmem:[%s353 + $0xb8] sm:$0xff] %v9295
        %9328 = vst [vmem:[%s353 + $0xc0] sm:$0xff] %v9296
        %9329 = vst [vmem:[%s353 + $0xc8] sm:$0xff] %v9297
        %9330 = vst [vmem:[%s353 + $0xd0] sm:$0xff] %v9298
        %9331 = vst [vmem:[%s353 + $0xd8] sm:$0xff] %v9299
        %9332 = vst [vmem:[%s353 + $0xe0] sm:$0xff] %v9300
        %9333 = vst [vmem:[%s353 + $0xe8] sm:$0xff] %v9301
        %9334 = vst [vmem:[%s353 + $0xf0] sm:$0xff] %v9302
        %9335 = vst [vmem:[%s353 + $0xf8] sm:$0xff] %v9303
        %s9336 = sand.u32 %s212, 1
        %s9337 = scalar_lea.sflag [#allocation5], %s9336
        %s9338 = sand.u32 %s212, 1
        %s9339 = smul.addr %s9338, 256
        %s9340 = scalar_lea.vmem [#allocation8], %s9339
        // Predicated region
        $region61: #{tpu_custom_call.1} parent=51 // pred_check
          %p9341 = pneg %p222
        $region62: #{tpu_custom_call.1} parent=51 // pred_check_branch
          %9343 = sbr.rel (%p9341) target = $region64
        $region63: #{tpu_custom_call.1} parent=51 // pred_region
          %s9345 = ssub.s32 4096, 4096
          %9346 = vsyncadd %s9337, %s9345
          %s9347 = smul.addr %s26, 32
          %s9348 = smul.addr %s9347, 128
          %s9349 = scalar_lea.hbm %s8, %s9348
          %s9350 = sshll.u32 %s9340, 4
          %s9351 = int_to_ptr.vmem [resolvable:$true] %s9350
          %9356 = dma.vmem_to_hbm [thread:$0]  %s9351, 4096, %s9349, %s9337, 128, 128, 8
        $region64: #{tpu_custom_call.1} parent=51 // pred_fallthru
          _
      $region52: #{tpu_custom_call.1} parent=5 // pred_fallthru
        _
      %p9357 = scmp.le.s32.totalorder 2, %s21
      // Predicated region
      $region65: #{tpu_custom_call.1} parent=5 // pred_check
        %p9358 = pneg %p9357
      $region66: #{tpu_custom_call.1} parent=5 // pred_check_branch
        %9360 = sbr.rel (%p9358) target = $region68
      $region67: #{tpu_custom_call.1} parent=5 // pred_region
        %s9361 = ssub.s32 %s21, 2
        // Predicated region
        $region69: #{tpu_custom_call.1} parent=67 // pred_check
          %p9362 = pneg %p228
        $region70: #{tpu_custom_call.1} parent=67 // pred_check_branch
          %9364 = sbr.rel (%p9362) target = $region72
        $region71: #{tpu_custom_call.1} parent=67 // pred_region
          %s9365 = sand.u32 %s213, 1
          %s9366 = scalar_lea.sflag [#allocation5], %s9365
          %s9367 = sand.u32 %s213, 1
          %s9368 = smul.addr %s9367, 256
          %s9369 = scalar_lea.vmem [#allocation8], %s9368
          %9370 = dma.done %s9366, 4096
        $region72: #{tpu_custom_call.1} parent=67 // pred_fallthru
          _
      $region68: #{tpu_custom_call.1} parent=5 // pred_fallthru
        _
    $region6: #{tpu_custom_call.1} parent=1 // loop_footer
      %s25 = sadd.s32 1, %s21
    $region7: #{tpu_custom_call.1} parent=1 // loop_footer_branch
      %20 = sbr.rel target = $region3
    $region8: #{tpu_custom_call.1} parent=1 // loop_exit
      _
    %9371 = vsyncpa [#allocation4], 1
    %s9372 = scalar_lea.sflag [#allocation4], 1
    %9373 = vsyncpa %s9372, 1
    %9374 = vsyncpa [#allocation7], 1
    %9375 = vsyncpa [#allocation5], 1
    %s9376 = scalar_lea.sflag [#allocation5], 1
    %9377 = vsyncpa %s9376, 1

</llo_original>
